<compile_context>
chip_gen: v5e
topology: v5e:2x2
jax: 0.10.0
libtpu: 0.0.40
codegen_flags: <defaults>
</compile_context>

<pallas_src>
import functools

import jax
import jax.numpy as jnp
import numpy as np
from jax import lax
from jax.experimental import pallas as pl
from jax.experimental.pallas import tpu as pltpu

# ---- Model hyper-parameters (consistent with BRDFNet.__init__) ---------------
DEPTH = 4          # layer_0 (SIREN, first), layer_1 (SIREN), layer_2 (SIREN+skip), layer_3 (Linear)
WIDTH = 32
IN_CH = 8
OUT_CH = 4
SKIPS = (2,)
OMEGA_0 = 30.0     # SIREN frequency: forward is sin(30 * (Wx + b))


# ----------------------------- Pallas kernel ---------------------------------
def brdf_kernel(x_ref,
                w0_ref, b0_ref,
                w1_ref, b1_ref,
                w2_ref, b2_ref,
                w3_ref, b3_ref,
                out_ref,
                cat_ref):
    """One batch tile of the fused BRDFNet forward pass (all 4 layers).

    Packed layout (P = pack factor; channels on sublanes, batch on lanes):
      x_ref   : (P*IN_CH,  TM)   -- P batch sub-groups stacked on sublanes
      hidden  : (P*WIDTH,  TM)
      cat_ref : (P*(WIDTH+IN_CH), TM) VMEM scratch for the fused skip matmul
      out_ref : (P*OUT_CH, TM)
    Weights are block-diagonal (one copy per sub-group) with omega_0 folded in.
    Biases are kept in f32; matmul operands may be f32 or bf16.
    """
    dt = w1_ref.dtype                      # matmul operand dtype (f32 or bf16)
    prec = lax.Precision.HIGHEST if dt == jnp.float32 else None
    hidden = w1_ref.shape[0]               # = P*WIDTH

    x0 = x_ref[...]                        # (P*IN_CH, TM), already in dt

    # layer 0: SIREN (first layer); omega is pre-folded into W/b.
    h = jnp.sin(jnp.dot(w0_ref[...], x0, precision=prec,
                        preferred_element_type=jnp.float32) + b0_ref[...])

    # layer 1: SIREN
    h = jnp.sin(jnp.dot(w1_ref[...], h.astype(dt), precision=prec,
                        preferred_element_type=jnp.float32) + b1_ref[...])

    # layer 2: SIREN with skip, fused into a single matmul:
    #   W2 @ cat([h, x0])  with  W2 = [blockdiag(w2_hidden) | blockdiag(w2_skip)]
    cat_ref[:hidden, :] = h.astype(dt)
    cat_ref[hidden:, :] = x0
    h = jnp.sin(jnp.dot(w2_ref[...], cat_ref[...], precision=prec,
                        preferred_element_type=jnp.float32) + b2_ref[...])

    # layer 3: plain Linear, then Tanh (last_activation_func)
    y = jnp.dot(w3_ref[...], h.astype(dt), precision=prec,
                preferred_element_type=jnp.float32) + b3_ref[...]
    out_ref[...] = jnp.tanh(y)


# ------------------------------ wrapper ---------------------------------------
def _round_up(x, m):
    return ((x + m - 1) // m) * m


def _cdiv(a, b):
    return (a + b - 1) // b


@functools.partial(jax.jit, static_argnames=("tm", "pack", "use_bf16"))
def brdf_net_pallas(inx, params, tm=8192, pack=4, use_bf16=False):
    """inx: (N, IN_CH) float32.  params: dict of torch-layout weights/biases.

    Returns (N, OUT_CH) float32, identical semantics to BRDFNet.forward + Tanh.
      tm       : target batch elements per grid step (lane-granular).
      pack     : batch sub-groups packed block-diagonally into the MXU
                 (4 -> 128-wide operands; 8 -> 256-wide for v6e/v7x).
      use_bf16 : cast matmul operands to bf16 (f32 accumulate / activations).
    """
    n = inx.shape[0]
    cdt = jnp.bfloat16 if use_bf16 else jnp.float32

    # ---- tiling: `pack` batch elements per lane column, tile-balanced padding.
    nc = max(1, _cdiv(n, pack))                            # packed columns needed
    nc128 = _round_up(nc, 128)                             # lane granularity
    tm_cols = max(128, _round_up(tm, pack * 128) // pack)  # target columns/tile
    nt = _cdiv(nc128, tm_cols)
    if nc128 > 128:             # even grid => v7x's 2 TensorCores load-balance
        nt = _round_up(nt, 2)
    tm_cols = _round_up(_cdiv(nc128, nt), 128)
    ncols = nt * tm_cols
    n_pad = pack * ncols

    # ---- one-time weight prep: fold omega, block-diag pack, optional bf16 ----
    eye = jnp.eye(pack, dtype=jnp.float32)
    bd = lambda w: jnp.kron(eye, w)                        # block-diag x pack
    tile_b = lambda b: jnp.tile(b, pack).reshape(-1, 1).astype(jnp.float32)

    w0p = bd(OMEGA_0 * params["w0"]).astype(cdt)           # (P*W, P*IN)
    b0p = tile_b(OMEGA_0 * params["b0"])                   # (P*W, 1)
    w1p = bd(OMEGA_0 * params["w1"]).astype(cdt)           # (P*W, P*W)
    b1p = tile_b(OMEGA_0 * params["b1"])
    w2p = jnp.concatenate([bd(OMEGA_0 * params["w2"][:, :WIDTH]),
                           bd(OMEGA_0 * params["w2"][:, WIDTH:])],
                          axis=1).astype(cdt)              # (P*W, P*(W+IN))
    b2p = tile_b(OMEGA_0 * params["b2"])
    w3p = bd(params["w3"]).astype(cdt)                     # (P*OUT, P*W)
    b3p = tile_b(params["b3"])

    # ---- input relayout: (N, IN_CH) -> packed (pack*IN_CH, ncols) -------------
    x = jnp.pad(inx.astype(jnp.float32), ((0, n_pad - n), (0, 0)))   # (n_pad, IN)
    x_p = (x.T.reshape(IN_CH, pack, ncols)
           .transpose(1, 0, 2)
           .reshape(pack * IN_CH, ncols)
           .astype(cdt))          # x_p[g*IN_CH + c, j] == x[g*ncols + j, c]

    def full_spec(shape):
        # weights/biases: one full (untiled) block, constant index_map => kept
        # resident in VMEM across all grid steps.
        return pl.BlockSpec(shape, lambda i: (0, 0))

    out_p = pl.pallas_call(
        brdf_kernel,
        out_shape=jax.ShapeDtypeStruct((pack * OUT_CH, ncols), jnp.float32),
        grid_spec=pltpu.PrefetchScalarGridSpec(
            num_scalar_prefetch=0,
            grid=(nt,),
            in_specs=[
                pl.BlockSpec((pack * IN_CH, tm_cols), lambda i: (0, i)),  # batch tile
                full_spec(w0p.shape), full_spec(b0p.shape),
                full_spec(w1p.shape), full_spec(b1p.shape),
                full_spec(w2p.shape), full_spec(b2p.shape),
                full_spec(w3p.shape), full_spec(b3p.shape),
            ],
            out_specs=pl.BlockSpec((pack * OUT_CH, tm_cols), lambda i: (0, i)),
            scratch_shapes=[pltpu.VMEM((pack * (WIDTH + IN_CH), tm_cols), cdt)],
        ),
        compiler_params=pltpu.CompilerParams(
            dimension_semantics=("parallel",)),   # megacore-shardable (v7x: 2 TCs)
    )(x_p, w0p, b0p, w1p, b1p, w2p, b2p, w3p, b3p)

    # ---- unpack: (pack*OUT_CH, ncols) -> (N, OUT_CH) --------------------------
    out = (out_p.reshape(pack, OUT_CH, ncols)
           .transpose(1, 0, 2)
           .reshape(OUT_CH, pack * ncols))
    return out[:, :n].T


# --------------------------- parameter init -----------------------------------
def init_params(key):
    """Deterministic init mirroring BRDFNet.__init__ shapes (torch (out,in) layout).

    SIREN layers: first layer W ~ U(-1/in, 1/in); hidden W ~ U(-sqrt(6/in)/30,
    sqrt(6/in)/30); biases use the default torch Linear init U(-1/sqrt(in), ...).
    NOTE: the reference module zero-inits the last Linear layer; here we use a
    small random init instead so the numerical check is non-trivial.
    """
    ks = jax.random.split(key, 8)
    u = lambda k, shape, b: jax.random.uniform(k, shape, jnp.float32, -b, b)

    params = {}
    # layer 0: SIRENLayer(IN_CH, WIDTH, is_first_layer=True)
    params["w0"] = u(ks[0], (WIDTH, IN_CH), 1.0 / IN_CH)
    params["b0"] = u(ks[1], (WIDTH,), 1.0 / np.sqrt(IN_CH))
    # layer 1: SIRENLayer(WIDTH, WIDTH)
    params["w1"] = u(ks[2], (WIDTH, WIDTH), np.sqrt(6.0 / WIDTH) / OMEGA_0)
    params["b1"] = u(ks[3], (WIDTH,), 1.0 / np.sqrt(WIDTH))
    # layer 2 (skip): SIRENLayer(IN_CH + WIDTH, WIDTH)
    fan2 = IN_CH + WIDTH
    params["w2"] = u(ks[4], (WIDTH, fan2), np.sqrt(6.0 / fan2) / OMEGA_0)
    params["b2"] = u(ks[5], (WIDTH,), 1.0 / np.sqrt(fan2))
    # layer 3: nn.Linear(WIDTH, OUT_CH)  (module uses zeros; small random here)
    params["w3"] = u(ks[6], (OUT_CH, WIDTH), 1e-2)
    params["b3"] = u(ks[7], (OUT_CH,), 1e-2)
    return params


# ------------------------- pure-JAX reference ---------------------------------
def brdf_net_ref(inx, params):
    hp = lax.Precision.HIGHEST
    x = inx
    # layer 0
    x = jnp.sin(OMEGA_0 * (jnp.dot(x, params["w0"].T, precision=hp) + params["b0"]))
    # layer 1
    x = jnp.sin(OMEGA_0 * (jnp.dot(x, params["w1"].T, precision=hp) + params["b1"]))
    # layer 2: skip -> cat([x, inx], dim=1)
    x = jnp.concatenate([x, inx], axis=1)
    x = jnp.sin(OMEGA_0 * (jnp.dot(x, params["w2"].T, precision=hp) + params["b2"]))
    # layer 3 + Tanh
    x = jnp.dot(x, params["w3"].T, precision=hp) + params["b3"]
    return jnp.tanh(x)


# --------------------------------- main ----------------------------------------
if __name__ == "__main__":
    key = jax.random.PRNGKey(0)
    k_param, k1, k2 = jax.random.split(key, 3)

    params = init_params(k_param)

    # Case 1: tiny batch, not a multiple of 128 (or of the pack factor):
    # exercises the pad/slice path with a single-step grid.
    n1 = 301
    inx1 = jax.random.uniform(k1, (n1, IN_CH), jnp.float32, -1.0, 1.0)
    ref1 = jax.block_until_ready(brdf_net_ref(inx1, params))
    out1 = jax.block_until_ready(brdf_net_pallas(inx1, params))
    assert out1.shape == (n1, OUT_CH) and out1.dtype == jnp.float32
    np.testing.assert_allclose(np.asarray(out1), np.asarray(ref1), rtol=2e-3, atol=2e-3)

    # Case 2: larger batch -> even, multi-step grid (v7x megacore load balance).
    n2 = 1301
    inx2 = jax.random.uniform(k2, (n2, IN_CH), jnp.float32, -1.0, 1.0)
    ref2 = jax.block_until_ready(brdf_net_ref(inx2, params))
    out2 = jax.block_until_ready(brdf_net_pallas(inx2, params))
    np.testing.assert_allclose(np.asarray(out2), np.asarray(ref2), rtol=2e-3, atol=2e-3)

    # Case 3: small tile -> 4 grid steps (tile-balanced padding path).
    out3 = jax.block_until_ready(brdf_net_pallas(inx2, params, tm=512))
    np.testing.assert_allclose(np.asarray(out3), np.asarray(ref2), rtol=2e-3, atol=2e-3)

    # Case 4: 8-way (256-wide) block-diag packing, matching v6e/v7x MXU tiles.
    out4 = jax.block_until_ready(brdf_net_pallas(inx2, params, pack=8))
    np.testing.assert_allclose(np.asarray(out4), np.asarray(ref2), rtol=2e-3, atol=2e-3)

    # Case 5: bf16 matmul operands (f32 accumulate / activations).  With omega
    # folded the sin arguments are O(10), so bf16 rounding of the pre-activations
    # costs up to ~1e-2 absolute at the output -> gated by a relaxed tolerance.
    out5 = jax.block_until_ready(brdf_net_pallas(inx2, params, use_bf16=True))
    np.testing.assert_allclose(np.asarray(out5), np.asarray(ref2), rtol=0.0, atol=2.5e-2)

    print("KERNEL_OK")
</pallas_src>

<mosaic_0001>
module attributes {stable_mosaic.version = 11 : i64} {
  func.func @brdf_kernel(%arg0: i32, %arg1: memref<32x128xf32, #tpu.memory_space<vmem>>, %arg2: memref<128x32xf32, #tpu.memory_space<vmem>>, %arg3: memref<128x1xf32, #tpu.memory_space<vmem>>, %arg4: memref<128x128xf32, #tpu.memory_space<vmem>>, %arg5: memref<128x1xf32, #tpu.memory_space<vmem>>, %arg6: memref<128x160xf32, #tpu.memory_space<vmem>>, %arg7: memref<128x1xf32, #tpu.memory_space<vmem>>, %arg8: memref<16x128xf32, #tpu.memory_space<vmem>>, %arg9: memref<16x1xf32, #tpu.memory_space<vmem>>, %arg10: memref<16x128xf32, #tpu.memory_space<vmem>>, %arg11: memref<160x128xf32, #tpu.memory_space<vmem>>) attributes {dimension_semantics = [#tpu.dimension_semantics<parallel>], iteration_bounds = array<i64: 1>, scalar_prefetch = 0 : i64, scratch_operands = 1 : i64, tpu.core_type = #tpu.core_type<tc>, window_params = [{transform_indices = @transform_0, window_bounds = array<i64: 32, 128>}, {pipeline_mode = #tpu.pipeline_mode<synchronous>, transform_indices = @transform_1, window_bounds = array<i64: 128, 32>}, {pipeline_mode = #tpu.pipeline_mode<synchronous>, transform_indices = @transform_2, window_bounds = array<i64: 128, 1>}, {pipeline_mode = #tpu.pipeline_mode<synchronous>, transform_indices = @transform_3, window_bounds = array<i64: 128, 128>}, {pipeline_mode = #tpu.pipeline_mode<synchronous>, transform_indices = @transform_4, window_bounds = array<i64: 128, 1>}, {pipeline_mode = #tpu.pipeline_mode<synchronous>, transform_indices = @transform_5, window_bounds = array<i64: 128, 160>}, {pipeline_mode = #tpu.pipeline_mode<synchronous>, transform_indices = @transform_6, window_bounds = array<i64: 128, 1>}, {pipeline_mode = #tpu.pipeline_mode<synchronous>, transform_indices = @transform_7, window_bounds = array<i64: 16, 128>}, {pipeline_mode = #tpu.pipeline_mode<synchronous>, transform_indices = @transform_8, window_bounds = array<i64: 16, 1>}, {transform_indices = @transform_9, window_bounds = array<i64: 16, 128>}]} {
    %c0 = arith.constant 0 : index
    %c0_0 = arith.constant 0 : index
    %0 = vector.load %arg1[%c0, %c0_0] : memref<32x128xf32, #tpu.memory_space<vmem>>, vector<32x128xf32>
    %c0_1 = arith.constant 0 : index
    %c0_2 = arith.constant 0 : index
    %1 = vector.load %arg2[%c0_1, %c0_2] : memref<128x32xf32, #tpu.memory_space<vmem>>, vector<128x32xf32>
    %cst = arith.constant dense<0.000000e+00> : vector<128x128xf32>
    %2 = tpu.matmul %1, %0, %cst {dimension_numbers = #tpu.dot_dimension_numbers<[1], [0], [0], [1], [0, 0, 1, 1], [], []>, precision = #tpu.contract_precision<fp32>} : vector<128x32xf32>, vector<32x128xf32>, vector<128x128xf32> -> vector<128x128xf32>
    %c0_3 = arith.constant 0 : index
    %c0_4 = arith.constant 0 : index
    %3 = vector.load %arg3[%c0_3, %c0_4] : memref<128x1xf32, #tpu.memory_space<vmem>>, vector<128x1xf32>
    %4 = vector.broadcast %3 : vector<128x1xf32> to vector<128x128xf32>
    %5 = arith.addf %2, %4 : vector<128x128xf32>
    %6 = math.sin %5 : vector<128x128xf32>
    %c0_5 = arith.constant 0 : index
    %c0_6 = arith.constant 0 : index
    %7 = vector.load %arg4[%c0_5, %c0_6] : memref<128x128xf32, #tpu.memory_space<vmem>>, vector<128x128xf32>
    %cst_7 = arith.constant dense<0.000000e+00> : vector<128x128xf32>
    %8 = tpu.matmul %7, %6, %cst_7 {dimension_numbers = #tpu.dot_dimension_numbers<[1], [0], [0], [1], [0, 0, 1, 1], [], []>, precision = #tpu.contract_precision<fp32>} : vector<128x128xf32>, vector<128x128xf32>, vector<128x128xf32> -> vector<128x128xf32>
    %c0_8 = arith.constant 0 : index
    %c0_9 = arith.constant 0 : index
    %9 = vector.load %arg5[%c0_8, %c0_9] : memref<128x1xf32, #tpu.memory_space<vmem>>, vector<128x1xf32>
    %10 = vector.broadcast %9 : vector<128x1xf32> to vector<128x128xf32>
    %11 = arith.addf %8, %10 : vector<128x128xf32>
    %12 = math.sin %11 : vector<128x128xf32>
    %c0_10 = arith.constant 0 : index
    %c0_11 = arith.constant 0 : index
    %13 = vector.load %arg11[%c0_10, %c0_11] : memref<160x128xf32, #tpu.memory_space<vmem>>, vector<128x128xf32>
    tpu.vector_store %arg11[%c0_10, %c0_11], %12 {strides = array<i32>} : memref<160x128xf32, #tpu.memory_space<vmem>>, vector<128x128xf32>,
    %c128 = arith.constant 128 : index
    %c0_12 = arith.constant 0 : index
    %14 = vector.load %arg11[%c128, %c0_12] : memref<160x128xf32, #tpu.memory_space<vmem>>, vector<32x128xf32>
    tpu.vector_store %arg11[%c128, %c0_12], %0 {strides = array<i32>} : memref<160x128xf32, #tpu.memory_space<vmem>>, vector<32x128xf32>,
    %c0_13 = arith.constant 0 : index
    %c0_14 = arith.constant 0 : index
    %15 = vector.load %arg6[%c0_13, %c0_14] : memref<128x160xf32, #tpu.memory_space<vmem>>, vector<128x160xf32>
    %c0_15 = arith.constant 0 : index
    %c0_16 = arith.constant 0 : index
    %16 = vector.load %arg11[%c0_15, %c0_16] : memref<160x128xf32, #tpu.memory_space<vmem>>, vector<160x128xf32>
    %cst_17 = arith.constant dense<0.000000e+00> : vector<128x128xf32>
    %17 = tpu.matmul %15, %16, %cst_17 {dimension_numbers = #tpu.dot_dimension_numbers<[1], [0], [0], [1], [0, 0, 1, 1], [], []>, precision = #tpu.contract_precision<fp32>} : vector<128x160xf32>, vector<160x128xf32>, vector<128x128xf32> -> vector<128x128xf32>
    %c0_18 = arith.constant 0 : index
    %c0_19 = arith.constant 0 : index
    %18 = vector.load %arg7[%c0_18, %c0_19] : memref<128x1xf32, #tpu.memory_space<vmem>>, vector<128x1xf32>
    %19 = vector.broadcast %18 : vector<128x1xf32> to vector<128x128xf32>
    %20 = arith.addf %17, %19 : vector<128x128xf32>
    %21 = math.sin %20 : vector<128x128xf32>
    %c0_20 = arith.constant 0 : index
    %c0_21 = arith.constant 0 : index
    %22 = vector.load %arg8[%c0_20, %c0_21] : memref<16x128xf32, #tpu.memory_space<vmem>>, vector<16x128xf32>
    %cst_22 = arith.constant dense<0.000000e+00> : vector<16x128xf32>
    %23 = tpu.matmul %22, %21, %cst_22 {dimension_numbers = #tpu.dot_dimension_numbers<[1], [0], [0], [1], [0, 0, 1, 1], [], []>, precision = #tpu.contract_precision<fp32>} : vector<16x128xf32>, vector<128x128xf32>, vector<16x128xf32> -> vector<16x128xf32>
    %c0_23 = arith.constant 0 : index
    %c0_24 = arith.constant 0 : index
    %24 = vector.load %arg9[%c0_23, %c0_24] : memref<16x1xf32, #tpu.memory_space<vmem>>, vector<16x1xf32>
    %25 = vector.broadcast %24 : vector<16x1xf32> to vector<16x128xf32>
    %26 = arith.addf %23, %25 : vector<16x128xf32>
    %27 = math.tanh %26 : vector<16x128xf32>
    %c0_25 = arith.constant 0 : index
    %c0_26 = arith.constant 0 : index
    %28 = vector.load %arg10[%c0_25, %c0_26] : memref<16x128xf32, #tpu.memory_space<vmem>>, vector<16x128xf32>
    tpu.vector_store %arg10[%c0_25, %c0_26], %27 {strides = array<i32>} : memref<16x128xf32, #tpu.memory_space<vmem>>, vector<16x128xf32>,
    return
  }
  func.func @transform_0(%arg0: i32) -> (i32, i32) {
    %c0_i32 = arith.constant 0 : i32
    %c0_i32_0 = arith.constant 0 : i32
    return %c0_i32, %arg0 : i32, i32
  }
  func.func @transform_1(%arg0: i32) -> (i32, i32) {
    %c0_i32 = arith.constant 0 : i32
    %c0_i32_0 = arith.constant 0 : i32
    %c0_i32_1 = arith.constant 0 : i32
    return %c0_i32, %c0_i32_0 : i32, i32
  }
  func.func @transform_2(%arg0: i32) -> (i32, i32) {
    %c0_i32 = arith.constant 0 : i32
    %c0_i32_0 = arith.constant 0 : i32
    %c0_i32_1 = arith.constant 0 : i32
    return %c0_i32, %c0_i32_0 : i32, i32
  }
  func.func @transform_3(%arg0: i32) -> (i32, i32) {
    %c0_i32 = arith.constant 0 : i32
    %c0_i32_0 = arith.constant 0 : i32
    %c0_i32_1 = arith.constant 0 : i32
    return %c0_i32, %c0_i32_0 : i32, i32
  }
  func.func @transform_4(%arg0: i32) -> (i32, i32) {
    %c0_i32 = arith.constant 0 : i32
    %c0_i32_0 = arith.constant 0 : i32
    %c0_i32_1 = arith.constant 0 : i32
    return %c0_i32, %c0_i32_0 : i32, i32
  }
  func.func @transform_5(%arg0: i32) -> (i32, i32) {
    %c0_i32 = arith.constant 0 : i32
    %c0_i32_0 = arith.constant 0 : i32
    %c0_i32_1 = arith.constant 0 : i32
    return %c0_i32, %c0_i32_0 : i32, i32
  }
  func.func @transform_6(%arg0: i32) -> (i32, i32) {
    %c0_i32 = arith.constant 0 : i32
    %c0_i32_0 = arith.constant 0 : i32
    %c0_i32_1 = arith.constant 0 : i32
    return %c0_i32, %c0_i32_0 : i32, i32
  }
  func.func @transform_7(%arg0: i32) -> (i32, i32) {
    %c0_i32 = arith.constant 0 : i32
    %c0_i32_0 = arith.constant 0 : i32
    %c0_i32_1 = arith.constant 0 : i32
    return %c0_i32, %c0_i32_0 : i32, i32
  }
  func.func @transform_8(%arg0: i32) -> (i32, i32) {
    %c0_i32 = arith.constant 0 : i32
    %c0_i32_0 = arith.constant 0 : i32
    %c0_i32_1 = arith.constant 0 : i32
    return %c0_i32, %c0_i32_0 : i32, i32
  }
  func.func @transform_9(%arg0: i32) -> (i32, i32) {
    %c0_i32 = arith.constant 0 : i32
    %c0_i32_0 = arith.constant 0 : i32
    return %c0_i32, %arg0 : i32, i32
  }
}

</mosaic_0001>

<llo_original>
// kernel: tile.23
$region0: #{tile.23}
  #allocation0 [shape = 's32[1]{0}', space=sflag, size = 0x4, scoped, tag = 'scoped memory for tile.23']
  %s0 = inlined_call_operand.vmem [shape: f32[32], index: 0, kind: input, shape index: {}]
  %s1 = inlined_call_operand.vmem [shape: f32[4,32], index: 1, kind: output, shape index: {}]
  // Predicated region
  $region2: #{tile.23} parent=0 // pred_check
    _
  $region3: #{tile.23} parent=0 // pred_check_branch
    %3 = sbr.rel (0) target = $region5
  $region4: #{tile.23} parent=0 // pred_region
    _
  $region5: #{tile.23} parent=0 // pred_fallthru
    _
  %v4 = vld [vmem:[%s0] ss:$0 sm:$0xff]
  %5 = vst [vmem:[%s1] sm:$0xf] %v4

// kernel: tile.38
$region0: #{tile.38}
  #allocation0 [shape = 's32[1]{0}', space=sflag, size = 0x4, scoped, tag = 'scoped memory for tile.38']
  %s0 = inlined_call_operand.vmem [shape: f32[4], index: 0, kind: input, shape index: {}]
  %s1 = inlined_call_operand.vmem [shape: f32[4,4], index: 1, kind: output, shape index: {}]
  // Predicated region
  $region2: #{tile.38} parent=0 // pred_check
    _
  $region3: #{tile.38} parent=0 // pred_check_branch
    %3 = sbr.rel (0) target = $region5
  $region4: #{tile.38} parent=0 // pred_region
    _
  $region5: #{tile.38} parent=0 // pred_fallthru
    _
  %v4 = vld [vmem:[%s0] ss:$0 sm:$0xff]
  %5 = vst [vmem:[%s1] sm:$0xf] %v4

// kernel: tile.0
$region0: #{tile.0}
  %s0 = inlined_call_operand.vmem [shape: f32[4,32], index: 0, kind: input, shape index: {}]
  %s1 = inlined_call_operand.vmem [shape: f32[128,1], index: 1, kind: output, shape index: {}]
  $region1: #{tile.0} parent=0
    #allocation0 [shape = 'u8[4096]{0}', space=vmem, size = 0x1000, scoped, tag = 'scoped mem for input reshape']
    %s3 = ssub.s32 16, 1
    %v4 = vld [vmem:[%s0] sm:%s3]
    %5 = vst [vmem:[#allocation0] sm:%s3] %v4
    %v6 = vld [vmem:[#allocation0] sm:$0xf]
    %vm7 = vcmask 7168
    %8 = vst.msk [vmem:[%s1] sm:$0x1] %vm7, %v6
    %s9 = scalar_lea.vmem %s1, 31
    %10 = vst.msk [vmem:[%s9] sm:$0x2] %vm7, %v6
    %s11 = scalar_lea.vmem %s1, 62
    %12 = vst.msk [vmem:[%s11] sm:$0x4] %vm7, %v6
    %s13 = scalar_lea.vmem %s1, 93
    %14 = vst.msk [vmem:[%s13] sm:$0x8] %vm7, %v6
    %v15 = vld [vmem:[#allocation0] sm:$0xf]
    %16 = vrot.lane.b32.xlu0 %v15, 127
    %v17 = vpop.permute.xlu0 %16
    %vm18 = vcmask 7168
    %s19 = scalar_lea.vmem %s1, 1
    %20 = vst.msk [vmem:[%s19] sm:$0x1] %vm18, %v17
    %s21 = scalar_lea.vmem %s1, 32
    %22 = vst.msk [vmem:[%s21] sm:$0x2] %vm18, %v17
    %s23 = scalar_lea.vmem %s1, 63
    %24 = vst.msk [vmem:[%s23] sm:$0x4] %vm18, %v17
    %s25 = scalar_lea.vmem %s1, 94
    %26 = vst.msk [vmem:[%s25] sm:$0x8] %vm18, %v17
    %v27 = vld [vmem:[#allocation0] sm:$0xf]
    %28 = vrot.lane.b32.xlu0 %v27, 126
    %v29 = vpop.permute.xlu0 %28
    %vm30 = vcmask 7168
    %s31 = scalar_lea.vmem %s1, 2
    %32 = vst.msk [vmem:[%s31] sm:$0x1] %vm30, %v29
    %s33 = scalar_lea.vmem %s1, 33
    %34 = vst.msk [vmem:[%s33] sm:$0x2] %vm30, %v29
    %s35 = scalar_lea.vmem %s1, 64
    %36 = vst.msk [vmem:[%s35] sm:$0x4] %vm30, %v29
    %s37 = scalar_lea.vmem %s1, 95
    %38 = vst.msk [vmem:[%s37] sm:$0x8] %vm30, %v29
    %v39 = vld [vmem:[#allocation0] sm:$0xf]
    %40 = vrot.lane.b32.xlu0 %v39, 125
    %v41 = vpop.permute.xlu0 %40
    %vm42 = vcmask 7168
    %s43 = scalar_lea.vmem %s1, 3
    %44 = vst.msk [vmem:[%s43] sm:$0x1] %vm42, %v41
    %s45 = scalar_lea.vmem %s1, 34
    %46 = vst.msk [vmem:[%s45] sm:$0x2] %vm42, %v41
    %s47 = scalar_lea.vmem %s1, 65
    %48 = vst.msk [vmem:[%s47] sm:$0x4] %vm42, %v41
    %s49 = scalar_lea.vmem %s1, 96
    %50 = vst.msk [vmem:[%s49] sm:$0x8] %vm42, %v41
    %v51 = vld [vmem:[#allocation0] sm:$0xf]
    %52 = vrot.lane.b32.xlu0 %v51, 124
    %v53 = vpop.permute.xlu0 %52
    %vm54 = vcmask 7168
    %s55 = scalar_lea.vmem %s1, 4
    %56 = vst.msk [vmem:[%s55] sm:$0x1] %vm54, %v53
    %s57 = scalar_lea.vmem %s1, 35
    %58 = vst.msk [vmem:[%s57] sm:$0x2] %vm54, %v53
    %s59 = scalar_lea.vmem %s1, 66
    %60 = vst.msk [vmem:[%s59] sm:$0x4] %vm54, %v53
    %s61 = scalar_lea.vmem %s1, 97
    %62 = vst.msk [vmem:[%s61] sm:$0x8] %vm54, %v53
    %v63 = vld [vmem:[#allocation0] sm:$0xf]
    %64 = vrot.lane.b32.xlu0 %v63, 123
    %v65 = vpop.permute.xlu0 %64
    %vm66 = vcmask 7168
    %s67 = scalar_lea.vmem %s1, 5
    %68 = vst.msk [vmem:[%s67] sm:$0x1] %vm66, %v65
    %s69 = scalar_lea.vmem %s1, 36
    %70 = vst.msk [vmem:[%s69] sm:$0x2] %vm66, %v65
    %s71 = scalar_lea.vmem %s1, 67
    %72 = vst.msk [vmem:[%s71] sm:$0x4] %vm66, %v65
    %s73 = scalar_lea.vmem %s1, 98
    %74 = vst.msk [vmem:[%s73] sm:$0x8] %vm66, %v65
    %v75 = vld [vmem:[#allocation0] sm:$0xf]
    %76 = vrot.lane.b32.xlu0 %v75, 122
    %v77 = vpop.permute.xlu0 %76
    %vm78 = vcmask 7168
    %s79 = scalar_lea.vmem %s1, 6
    %80 = vst.msk [vmem:[%s79] sm:$0x1] %vm78, %v77
    %s81 = scalar_lea.vmem %s1, 37
    %82 = vst.msk [vmem:[%s81] sm:$0x2] %vm78, %v77
    %s83 = scalar_lea.vmem %s1, 68
    %84 = vst.msk [vmem:[%s83] sm:$0x4] %vm78, %v77
    %s85 = scalar_lea.vmem %s1, 99
    %86 = vst.msk [vmem:[%s85] sm:$0x8] %vm78, %v77
    %v87 = vld [vmem:[#allocation0] sm:$0xf]
    %88 = vrot.lane.b32.xlu0 %v87, 121
    %v89 = vpop.permute.xlu0 %88
    %vm90 = vcmask 7168
    %s91 = scalar_lea.vmem %s1, 7
    %92 = vst.msk [vmem:[%s91] sm:$0x1] %vm90, %v89
    %s93 = scalar_lea.vmem %s1, 38
    %94 = vst.msk [vmem:[%s93] sm:$0x2] %vm90, %v89
    %s95 = scalar_lea.vmem %s1, 69
    %96 = vst.msk [vmem:[%s95] sm:$0x4] %vm90, %v89
    %s97 = scalar_lea.vmem %s1, 100
    %98 = vst.msk [vmem:[%s97] sm:$0x8] %vm90, %v89
    %v99 = vld [vmem:[#allocation0] sm:$0xf]
    %100 = vrot.lane.b32.xlu0 %v99, 120
    %v101 = vpop.permute.xlu0 %100
    %vm102 = vcmask 7168
    %s103 = scalar_lea.vmem %s1, 8
    %104 = vst.msk [vmem:[%s103] sm:$0x1] %vm102, %v101
    %s105 = scalar_lea.vmem %s1, 39
    %106 = vst.msk [vmem:[%s105] sm:$0x2] %vm102, %v101
    %s107 = scalar_lea.vmem %s1, 70
    %108 = vst.msk [vmem:[%s107] sm:$0x4] %vm102, %v101
    %s109 = scalar_lea.vmem %s1, 101
    %110 = vst.msk [vmem:[%s109] sm:$0x8] %vm102, %v101
    %v111 = vld [vmem:[#allocation0] sm:$0xf]
    %112 = vrot.lane.b32.xlu0 %v111, 119
    %v113 = vpop.permute.xlu0 %112
    %vm114 = vcmask 7168
    %s115 = scalar_lea.vmem %s1, 9
    %116 = vst.msk [vmem:[%s115] sm:$0x1] %vm114, %v113
    %s117 = scalar_lea.vmem %s1, 40
    %118 = vst.msk [vmem:[%s117] sm:$0x2] %vm114, %v113
    %s119 = scalar_lea.vmem %s1, 71
    %120 = vst.msk [vmem:[%s119] sm:$0x4] %vm114, %v113
    %s121 = scalar_lea.vmem %s1, 102
    %122 = vst.msk [vmem:[%s121] sm:$0x8] %vm114, %v113
    %v123 = vld [vmem:[#allocation0] sm:$0xf]
    %124 = vrot.lane.b32.xlu0 %v123, 118
    %v125 = vpop.permute.xlu0 %124
    %vm126 = vcmask 7168
    %s127 = scalar_lea.vmem %s1, 10
    %128 = vst.msk [vmem:[%s127] sm:$0x1] %vm126, %v125
    %s129 = scalar_lea.vmem %s1, 41
    %130 = vst.msk [vmem:[%s129] sm:$0x2] %vm126, %v125
    %s131 = scalar_lea.vmem %s1, 72
    %132 = vst.msk [vmem:[%s131] sm:$0x4] %vm126, %v125
    %s133 = scalar_lea.vmem %s1, 103
    %134 = vst.msk [vmem:[%s133] sm:$0x8] %vm126, %v125
    %v135 = vld [vmem:[#allocation0] sm:$0xf]
    %136 = vrot.lane.b32.xlu0 %v135, 117
    %v137 = vpop.permute.xlu0 %136
    %vm138 = vcmask 7168
    %s139 = scalar_lea.vmem %s1, 11
    %140 = vst.msk [vmem:[%s139] sm:$0x1] %vm138, %v137
    %s141 = scalar_lea.vmem %s1, 42
    %142 = vst.msk [vmem:[%s141] sm:$0x2] %vm138, %v137
    %s143 = scalar_lea.vmem %s1, 73
    %144 = vst.msk [vmem:[%s143] sm:$0x4] %vm138, %v137
    %s145 = scalar_lea.vmem %s1, 104
    %146 = vst.msk [vmem:[%s145] sm:$0x8] %vm138, %v137
    %v147 = vld [vmem:[#allocation0] sm:$0xf]
    %148 = vrot.lane.b32.xlu0 %v147, 116
    %v149 = vpop.permute.xlu0 %148
    %vm150 = vcmask 7168
    %s151 = scalar_lea.vmem %s1, 12
    %152 = vst.msk [vmem:[%s151] sm:$0x1] %vm150, %v149
    %s153 = scalar_lea.vmem %s1, 43
    %154 = vst.msk [vmem:[%s153] sm:$0x2] %vm150, %v149
    %s155 = scalar_lea.vmem %s1, 74
    %156 = vst.msk [vmem:[%s155] sm:$0x4] %vm150, %v149
    %s157 = scalar_lea.vmem %s1, 105
    %158 = vst.msk [vmem:[%s157] sm:$0x8] %vm150, %v149
    %v159 = vld [vmem:[#allocation0] sm:$0xf]
    %160 = vrot.lane.b32.xlu0 %v159, 115
    %v161 = vpop.permute.xlu0 %160
    %vm162 = vcmask 7168
    %s163 = scalar_lea.vmem %s1, 13
    %164 = vst.msk [vmem:[%s163] sm:$0x1] %vm162, %v161
    %s165 = scalar_lea.vmem %s1, 44
    %166 = vst.msk [vmem:[%s165] sm:$0x2] %vm162, %v161
    %s167 = scalar_lea.vmem %s1, 75
    %168 = vst.msk [vmem:[%s167] sm:$0x4] %vm162, %v161
    %s169 = scalar_lea.vmem %s1, 106
    %170 = vst.msk [vmem:[%s169] sm:$0x8] %vm162, %v161
    %v171 = vld [vmem:[#allocation0] sm:$0xf]
    %172 = vrot.lane.b32.xlu0 %v171, 114
    %v173 = vpop.permute.xlu0 %172
    %vm174 = vcmask 7168
    %s175 = scalar_lea.vmem %s1, 14
    %176 = vst.msk [vmem:[%s175] sm:$0x1] %vm174, %v173
    %s177 = scalar_lea.vmem %s1, 45
    %178 = vst.msk [vmem:[%s177] sm:$0x2] %vm174, %v173
    %s179 = scalar_lea.vmem %s1, 76
    %180 = vst.msk [vmem:[%s179] sm:$0x4] %vm174, %v173
    %s181 = scalar_lea.vmem %s1, 107
    %182 = vst.msk [vmem:[%s181] sm:$0x8] %vm174, %v173
    %v183 = vld [vmem:[#allocation0] sm:$0xf]
    %184 = vrot.lane.b32.xlu0 %v183, 113
    %v185 = vpop.permute.xlu0 %184
    %vm186 = vcmask 7168
    %s187 = scalar_lea.vmem %s1, 15
    %188 = vst.msk [vmem:[%s187] sm:$0x1] %vm186, %v185
    %s189 = scalar_lea.vmem %s1, 46
    %190 = vst.msk [vmem:[%s189] sm:$0x2] %vm186, %v185
    %s191 = scalar_lea.vmem %s1, 77
    %192 = vst.msk [vmem:[%s191] sm:$0x4] %vm186, %v185
    %s193 = scalar_lea.vmem %s1, 108
    %194 = vst.msk [vmem:[%s193] sm:$0x8] %vm186, %v185
    %v195 = vld [vmem:[#allocation0] sm:$0xf]
    %196 = vrot.lane.b32.xlu0 %v195, 112
    %v197 = vpop.permute.xlu0 %196
    %vm198 = vcmask 7168
    %s199 = scalar_lea.vmem %s1, 16
    %200 = vst.msk [vmem:[%s199] sm:$0x1] %vm198, %v197
    %s201 = scalar_lea.vmem %s1, 47
    %202 = vst.msk [vmem:[%s201] sm:$0x2] %vm198, %v197
    %s203 = scalar_lea.vmem %s1, 78
    %204 = vst.msk [vmem:[%s203] sm:$0x4] %vm198, %v197
    %s205 = scalar_lea.vmem %s1, 109
    %206 = vst.msk [vmem:[%s205] sm:$0x8] %vm198, %v197
    %v207 = vld [vmem:[#allocation0] sm:$0xf]
    %208 = vrot.lane.b32.xlu0 %v207, 111
    %v209 = vpop.permute.xlu0 %208
    %vm210 = vcmask 7168
    %s211 = scalar_lea.vmem %s1, 17
    %212 = vst.msk [vmem:[%s211] sm:$0x1] %vm210, %v209
    %s213 = scalar_lea.vmem %s1, 48
    %214 = vst.msk [vmem:[%s213] sm:$0x2] %vm210, %v209
    %s215 = scalar_lea.vmem %s1, 79
    %216 = vst.msk [vmem:[%s215] sm:$0x4] %vm210, %v209
    %s217 = scalar_lea.vmem %s1, 110
    %218 = vst.msk [vmem:[%s217] sm:$0x8] %vm210, %v209
    %v219 = vld [vmem:[#allocation0] sm:$0xf]
    %220 = vrot.lane.b32.xlu0 %v219, 110
    %v221 = vpop.permute.xlu0 %220
    %vm222 = vcmask 7168
    %s223 = scalar_lea.vmem %s1, 18
    %224 = vst.msk [vmem:[%s223] sm:$0x1] %vm222, %v221
    %s225 = scalar_lea.vmem %s1, 49
    %226 = vst.msk [vmem:[%s225] sm:$0x2] %vm222, %v221
    %s227 = scalar_lea.vmem %s1, 80
    %228 = vst.msk [vmem:[%s227] sm:$0x4] %vm222, %v221
    %s229 = scalar_lea.vmem %s1, 111
    %230 = vst.msk [vmem:[%s229] sm:$0x8] %vm222, %v221
    %v231 = vld [vmem:[#allocation0] sm:$0xf]
    %232 = vrot.lane.b32.xlu0 %v231, 109
    %v233 = vpop.permute.xlu0 %232
    %vm234 = vcmask 7168
    %s235 = scalar_lea.vmem %s1, 19
    %236 = vst.msk [vmem:[%s235] sm:$0x1] %vm234, %v233
    %s237 = scalar_lea.vmem %s1, 50
    %238 = vst.msk [vmem:[%s237] sm:$0x2] %vm234, %v233
    %s239 = scalar_lea.vmem %s1, 81
    %240 = vst.msk [vmem:[%s239] sm:$0x4] %vm234, %v233
    %s241 = scalar_lea.vmem %s1, 112
    %242 = vst.msk [vmem:[%s241] sm:$0x8] %vm234, %v233
    %v243 = vld [vmem:[#allocation0] sm:$0xf]
    %244 = vrot.lane.b32.xlu0 %v243, 108
    %v245 = vpop.permute.xlu0 %244
    %vm246 = vcmask 7168
    %s247 = scalar_lea.vmem %s1, 20
    %248 = vst.msk [vmem:[%s247] sm:$0x1] %vm246, %v245
    %s249 = scalar_lea.vmem %s1, 51
    %250 = vst.msk [vmem:[%s249] sm:$0x2] %vm246, %v245
    %s251 = scalar_lea.vmem %s1, 82
    %252 = vst.msk [vmem:[%s251] sm:$0x4] %vm246, %v245
    %s253 = scalar_lea.vmem %s1, 113
    %254 = vst.msk [vmem:[%s253] sm:$0x8] %vm246, %v245
    %v255 = vld [vmem:[#allocation0] sm:$0xf]
    %256 = vrot.lane.b32.xlu0 %v255, 107
    %v257 = vpop.permute.xlu0 %256
    %vm258 = vcmask 7168
    %s259 = scalar_lea.vmem %s1, 21
    %260 = vst.msk [vmem:[%s259] sm:$0x1] %vm258, %v257
    %s261 = scalar_lea.vmem %s1, 52
    %262 = vst.msk [vmem:[%s261] sm:$0x2] %vm258, %v257
    %s263 = scalar_lea.vmem %s1, 83
    %264 = vst.msk [vmem:[%s263] sm:$0x4] %vm258, %v257
    %s265 = scalar_lea.vmem %s1, 114
    %266 = vst.msk [vmem:[%s265] sm:$0x8] %vm258, %v257
    %v267 = vld [vmem:[#allocation0] sm:$0xf]
    %268 = vrot.lane.b32.xlu0 %v267, 106
    %v269 = vpop.permute.xlu0 %268
    %vm270 = vcmask 7168
    %s271 = scalar_lea.vmem %s1, 22
    %272 = vst.msk [vmem:[%s271] sm:$0x1] %vm270, %v269
    %s273 = scalar_lea.vmem %s1, 53
    %274 = vst.msk [vmem:[%s273] sm:$0x2] %vm270, %v269
    %s275 = scalar_lea.vmem %s1, 84
    %276 = vst.msk [vmem:[%s275] sm:$0x4] %vm270, %v269
    %s277 = scalar_lea.vmem %s1, 115
    %278 = vst.msk [vmem:[%s277] sm:$0x8] %vm270, %v269
    %v279 = vld [vmem:[#allocation0] sm:$0xf]
    %280 = vrot.lane.b32.xlu0 %v279, 105
    %v281 = vpop.permute.xlu0 %280
    %vm282 = vcmask 7168
    %s283 = scalar_lea.vmem %s1, 23
    %284 = vst.msk [vmem:[%s283] sm:$0x1] %vm282, %v281
    %s285 = scalar_lea.vmem %s1, 54
    %286 = vst.msk [vmem:[%s285] sm:$0x2] %vm282, %v281
    %s287 = scalar_lea.vmem %s1, 85
    %288 = vst.msk [vmem:[%s287] sm:$0x4] %vm282, %v281
    %s289 = scalar_lea.vmem %s1, 116
    %290 = vst.msk [vmem:[%s289] sm:$0x8] %vm282, %v281
    %v291 = vld [vmem:[#allocation0] sm:$0xf]
    %292 = vrot.lane.b32.xlu0 %v291, 104
    %v293 = vpop.permute.xlu0 %292
    %vm294 = vcmask 7168
    %s295 = scalar_lea.vmem %s1, 24
    %296 = vst.msk [vmem:[%s295] sm:$0x1] %vm294, %v293
    %s297 = scalar_lea.vmem %s1, 55
    %298 = vst.msk [vmem:[%s297] sm:$0x2] %vm294, %v293
    %s299 = scalar_lea.vmem %s1, 86
    %300 = vst.msk [vmem:[%s299] sm:$0x4] %vm294, %v293
    %s301 = scalar_lea.vmem %s1, 117
    %302 = vst.msk [vmem:[%s301] sm:$0x8] %vm294, %v293
    %v303 = vld [vmem:[#allocation0] sm:$0xf]
    %304 = vrot.lane.b32.xlu0 %v303, 103
    %v305 = vpop.permute.xlu0 %304
    %vm306 = vcmask 7168
    %s307 = scalar_lea.vmem %s1, 25
    %308 = vst.msk [vmem:[%s307] sm:$0x1] %vm306, %v305
    %s309 = scalar_lea.vmem %s1, 56
    %310 = vst.msk [vmem:[%s309] sm:$0x2] %vm306, %v305
    %s311 = scalar_lea.vmem %s1, 87
    %312 = vst.msk [vmem:[%s311] sm:$0x4] %vm306, %v305
    %s313 = scalar_lea.vmem %s1, 118
    %314 = vst.msk [vmem:[%s313] sm:$0x8] %vm306, %v305
    %v315 = vld [vmem:[#allocation0] sm:$0xf]
    %316 = vrot.lane.b32.xlu0 %v315, 102
    %v317 = vpop.permute.xlu0 %316
    %vm318 = vcmask 7168
    %s319 = scalar_lea.vmem %s1, 26
    %320 = vst.msk [vmem:[%s319] sm:$0x1] %vm318, %v317
    %s321 = scalar_lea.vmem %s1, 57
    %322 = vst.msk [vmem:[%s321] sm:$0x2] %vm318, %v317
    %s323 = scalar_lea.vmem %s1, 88
    %324 = vst.msk [vmem:[%s323] sm:$0x4] %vm318, %v317
    %s325 = scalar_lea.vmem %s1, 119
    %326 = vst.msk [vmem:[%s325] sm:$0x8] %vm318, %v317
    %v327 = vld [vmem:[#allocation0] sm:$0xf]
    %328 = vrot.lane.b32.xlu0 %v327, 101
    %v329 = vpop.permute.xlu0 %328
    %vm330 = vcmask 7168
    %s331 = scalar_lea.vmem %s1, 27
    %332 = vst.msk [vmem:[%s331] sm:$0x1] %vm330, %v329
    %s333 = scalar_lea.vmem %s1, 58
    %334 = vst.msk [vmem:[%s333] sm:$0x2] %vm330, %v329
    %s335 = scalar_lea.vmem %s1, 89
    %336 = vst.msk [vmem:[%s335] sm:$0x4] %vm330, %v329
    %s337 = scalar_lea.vmem %s1, 120
    %338 = vst.msk [vmem:[%s337] sm:$0x8] %vm330, %v329
    %v339 = vld [vmem:[#allocation0] sm:$0xf]
    %340 = vrot.lane.b32.xlu0 %v339, 100
    %v341 = vpop.permute.xlu0 %340
    %vm342 = vcmask 7168
    %s343 = scalar_lea.vmem %s1, 28
    %344 = vst.msk [vmem:[%s343] sm:$0x1] %vm342, %v341
    %s345 = scalar_lea.vmem %s1, 59
    %346 = vst.msk [vmem:[%s345] sm:$0x2] %vm342, %v341
    %s347 = scalar_lea.vmem %s1, 90
    %348 = vst.msk [vmem:[%s347] sm:$0x4] %vm342, %v341
    %s349 = scalar_lea.vmem %s1, 121
    %350 = vst.msk [vmem:[%s349] sm:$0x8] %vm342, %v341
    %v351 = vld [vmem:[#allocation0] sm:$0xf]
    %352 = vrot.lane.b32.xlu0 %v351, 99
    %v353 = vpop.permute.xlu0 %352
    %vm354 = vcmask 7168
    %s355 = scalar_lea.vmem %s1, 29
    %356 = vst.msk [vmem:[%s355] sm:$0x1] %vm354, %v353
    %s357 = scalar_lea.vmem %s1, 60
    %358 = vst.msk [vmem:[%s357] sm:$0x2] %vm354, %v353
    %s359 = scalar_lea.vmem %s1, 91
    %360 = vst.msk [vmem:[%s359] sm:$0x4] %vm354, %v353
    %s361 = scalar_lea.vmem %s1, 122
    %362 = vst.msk [vmem:[%s361] sm:$0x8] %vm354, %v353
    %v363 = vld [vmem:[#allocation0] sm:$0xf]
    %364 = vrot.lane.b32.xlu0 %v363, 98
    %v365 = vpop.permute.xlu0 %364
    %vm366 = vcmask 7168
    %s367 = scalar_lea.vmem %s1, 30
    %368 = vst.msk [vmem:[%s367] sm:$0x1] %vm366, %v365
    %s369 = scalar_lea.vmem %s1, 61
    %370 = vst.msk [vmem:[%s369] sm:$0x2] %vm366, %v365
    %s371 = scalar_lea.vmem %s1, 92
    %372 = vst.msk [vmem:[%s371] sm:$0x4] %vm366, %v365
    %s373 = scalar_lea.vmem %s1, 123
    %374 = vst.msk [vmem:[%s373] sm:$0x8] %vm366, %v365
    %v375 = vld [vmem:[#allocation0] sm:$0xf]
    %376 = vrot.lane.b32.xlu0 %v375, 97
    %v377 = vpop.permute.xlu0 %376
    %vm378 = vcmask 7168
    %s379 = scalar_lea.vmem %s1, 31
    %380 = vst.msk [vmem:[%s379] sm:$0x1] %vm378, %v377
    %s381 = scalar_lea.vmem %s1, 62
    %382 = vst.msk [vmem:[%s381] sm:$0x2] %vm378, %v377
    %s383 = scalar_lea.vmem %s1, 93
    %384 = vst.msk [vmem:[%s383] sm:$0x4] %vm378, %v377
    %s385 = scalar_lea.vmem %s1, 124
    %386 = vst.msk [vmem:[%s385] sm:$0x8] %vm378, %v377

// kernel: tile.3
$region0: #{tile.3}
  %s0 = inlined_call_operand.vmem [shape: f32[4,4], index: 0, kind: input, shape index: {}]
  %s1 = inlined_call_operand.vmem [shape: f32[16,1], index: 1, kind: output, shape index: {}]
  $region1: #{tile.3} parent=0
    #allocation0 [shape = 'u8[4096]{0}', space=vmem, size = 0x1000, scoped, tag = 'scoped mem for input reshape']
    %s3 = ssub.s32 16, 1
    %v4 = vld [vmem:[%s0] sm:%s3]
    %5 = vst [vmem:[#allocation0] sm:%s3] %v4
    %v6 = vld [vmem:[#allocation0] sm:$0xf]
    %vm7 = vcmask 7168
    %8 = vst.msk [vmem:[%s1] ss:$4 sm:$0xf] %vm7, %v6
    %v9 = vld [vmem:[#allocation0] sm:$0xf]
    %10 = vrot.lane.b32.xlu0 %v9, 127
    %v11 = vpop.permute.xlu0 %10
    %vm12 = vcmask 7168
    %s13 = scalar_lea.vmem %s1, 1
    %14 = vst.msk [vmem:[%s13] ss:$4 sm:$0xf] %vm12, %v11
    %v15 = vld [vmem:[#allocation0] sm:$0xf]
    %16 = vrot.lane.b32.xlu0 %v15, 126
    %v17 = vpop.permute.xlu0 %16
    %vm18 = vcmask 7168
    %s19 = scalar_lea.vmem %s1, 2
    %20 = vst.msk [vmem:[%s19] ss:$4 sm:$0xf] %vm18, %v17
    %v21 = vld [vmem:[#allocation0] sm:$0xf]
    %22 = vrot.lane.b32.xlu0 %v21, 125
    %v23 = vpop.permute.xlu0 %22
    %vm24 = vcmask 7168
    %s25 = scalar_lea.vmem %s1, 3
    %26 = vst.msk [vmem:[%s25] ss:$4 sm:$0xf] %vm24, %v23

// kernel: brdf_net_pallas.1
$region0: #{brdf_net_pallas.1}
  #allocation0 [shape = 'u32[]', space=smem, size = 0x4, offset = 0x4, fixed_abs, tag = 'smem constant byte address 0x4 - core index']
  #allocation1 [shape = 'u32[72,128]{1,0:T(1,128)}', space=vmem, size = 0x9000, scoped, tag = 'internal scratch']
  #allocation2 [shape = 'f32[160,128]{1,0:T(8,128)}', space=vmem, size = 0x14000, scoped, tag = 'scratch operand']
  %s0 = inlined_call_operand.vmem [shape: f32[32,128], index: 0, kind: input, shape index: {}]
  %s1 = inlined_call_operand.vmem [shape: f32[128,32], index: 1, kind: input, shape index: {}]
  %s2 = inlined_call_operand.vmem [shape: f32[128,1], index: 2, kind: input, shape index: {}]
  %s3 = inlined_call_operand.vmem [shape: f32[128,128], index: 3, kind: input, shape index: {}]
  %s4 = inlined_call_operand.vmem [shape: f32[128,1], index: 4, kind: input, shape index: {}]
  %s5 = inlined_call_operand.vmem [shape: f32[128,160], index: 5, kind: input, shape index: {}]
  %s6 = inlined_call_operand.vmem [shape: f32[128,1], index: 6, kind: input, shape index: {}]
  %s7 = inlined_call_operand.vmem [shape: f32[16,128], index: 7, kind: input, shape index: {}]
  %s8 = inlined_call_operand.vmem [shape: f32[16,1], index: 8, kind: input, shape index: {}]
  %s9 = inlined_call_operand.vmem [shape: f32[16,128], index: 9, kind: output, shape index: {}]
  %s10 = sld [smem:[#allocation0]]
  $region46: #{brdf_net_pallas.1} parent=0
    _
  %s12 = ssub.s32 1, %s10
  %s13 = scalar_select 0, %s12, %s10
  // Predicated region
  $region2: #{brdf_net_pallas.1} parent=0 // pred_check
    _
  $region3: #{brdf_net_pallas.1} parent=0 // pred_check_branch
    %15 = sbr.rel (0) target = $region5
  $region4: #{brdf_net_pallas.1} parent=0 // pred_region
    _
  $region5: #{brdf_net_pallas.1} parent=0 // pred_fallthru
    _
  // Predicated region
  $region6: #{brdf_net_pallas.1} parent=0 // pred_check
    _
  $region7: #{brdf_net_pallas.1} parent=0 // pred_check_branch
    %17 = sbr.rel (0) target = $region9
  $region8: #{brdf_net_pallas.1} parent=0 // pred_region
    _
  $region9: #{brdf_net_pallas.1} parent=0 // pred_fallthru
    _
  // Predicated region
  $region10: #{brdf_net_pallas.1} parent=0 // pred_check
    _
  $region11: #{brdf_net_pallas.1} parent=0 // pred_check_branch
    %19 = sbr.rel (0) target = $region13
  $region12: #{brdf_net_pallas.1} parent=0 // pred_region
    _
  $region13: #{brdf_net_pallas.1} parent=0 // pred_fallthru
    _
  // Predicated region
  $region14: #{brdf_net_pallas.1} parent=0 // pred_check
    _
  $region15: #{brdf_net_pallas.1} parent=0 // pred_check_branch
    %21 = sbr.rel (0) target = $region17
  $region16: #{brdf_net_pallas.1} parent=0 // pred_region
    _
  $region17: #{brdf_net_pallas.1} parent=0 // pred_fallthru
    _
  // Predicated region
  $region18: #{brdf_net_pallas.1} parent=0 // pred_check
    _
  $region19: #{brdf_net_pallas.1} parent=0 // pred_check_branch
    %23 = sbr.rel (0) target = $region21
  $region20: #{brdf_net_pallas.1} parent=0 // pred_region
    _
  $region21: #{brdf_net_pallas.1} parent=0 // pred_fallthru
    _
  // Predicated region
  $region22: #{brdf_net_pallas.1} parent=0 // pred_check
    _
  $region23: #{brdf_net_pallas.1} parent=0 // pred_check_branch
    %25 = sbr.rel (0) target = $region25
  $region24: #{brdf_net_pallas.1} parent=0 // pred_region
    _
  $region25: #{brdf_net_pallas.1} parent=0 // pred_fallthru
    _
  // Predicated region
  $region26: #{brdf_net_pallas.1} parent=0 // pred_check
    _
  $region27: #{brdf_net_pallas.1} parent=0 // pred_check_branch
    %27 = sbr.rel (0) target = $region29
  $region28: #{brdf_net_pallas.1} parent=0 // pred_region
    _
  $region29: #{brdf_net_pallas.1} parent=0 // pred_fallthru
    _
  // Predicated region
  $region30: #{brdf_net_pallas.1} parent=0 // pred_check
    _
  $region31: #{brdf_net_pallas.1} parent=0 // pred_check_branch
    %29 = sbr.rel (0) target = $region33
  $region32: #{brdf_net_pallas.1} parent=0 // pred_region
    _
  $region33: #{brdf_net_pallas.1} parent=0 // pred_fallthru
    _
  // Predicated region
  $region34: #{brdf_net_pallas.1} parent=0 // pred_check
    _
  $region35: #{brdf_net_pallas.1} parent=0 // pred_check_branch
    %31 = sbr.rel (0) target = $region37
  $region36: #{brdf_net_pallas.1} parent=0 // pred_region
    _
  $region37: #{brdf_net_pallas.1} parent=0 // pred_fallthru
    _
  %v32 = vld [vmem:[%s0] sm:$0xff]
  %v33 = vld [vmem:[%s0 + $0x8] sm:$0xff]
  %v34 = vld [vmem:[%s0 + $0x10] sm:$0xff]
  %v35 = vld [vmem:[%s0 + $0x18] sm:$0xff]
  %v36 = vld [vmem:[%s1] sm:$0xff]
  %v37 = vld [vmem:[%s1 + $0x8] sm:$0xff]
  %v38 = vld [vmem:[%s1 + $0x10] sm:$0xff]
  %v39 = vld [vmem:[%s1 + $0x18] sm:$0xff]
  %v40 = vld [vmem:[%s1 + $0x20] sm:$0xff]
  %v41 = vld [vmem:[%s1 + $0x28] sm:$0xff]
  %v42 = vld [vmem:[%s1 + $0x30] sm:$0xff]
  %v43 = vld [vmem:[%s1 + $0x38] sm:$0xff]
  %v44 = vld [vmem:[%s1 + $0x40] sm:$0xff]
  %v45 = vld [vmem:[%s1 + $0x48] sm:$0xff]
  %v46 = vld [vmem:[%s1 + $0x50] sm:$0xff]
  %v47 = vld [vmem:[%s1 + $0x58] sm:$0xff]
  %v48 = vld [vmem:[%s1 + $0x60] sm:$0xff]
  %v49 = vld [vmem:[%s1 + $0x68] sm:$0xff]
  %v50 = vld [vmem:[%s1 + $0x70] sm:$0xff]
  %v51 = vld [vmem:[%s1 + $0x78] sm:$0xff]
  %v52 = vld [vmem:[%s2] sm:$0xff]
  %v53 = vld [vmem:[%s2 + $0x8] sm:$0xff]
  %v54 = vld [vmem:[%s2 + $0x10] sm:$0xff]
  %v55 = vld [vmem:[%s2 + $0x18] sm:$0xff]
  %v56 = vld [vmem:[%s2 + $0x20] sm:$0xff]
  %v57 = vld [vmem:[%s2 + $0x28] sm:$0xff]
  %v58 = vld [vmem:[%s2 + $0x30] sm:$0xff]
  %v59 = vld [vmem:[%s2 + $0x38] sm:$0xff]
  %v60 = vld [vmem:[%s2 + $0x40] sm:$0xff]
  %v61 = vld [vmem:[%s2 + $0x48] sm:$0xff]
  %v62 = vld [vmem:[%s2 + $0x50] sm:$0xff]
  %v63 = vld [vmem:[%s2 + $0x58] sm:$0xff]
  %v64 = vld [vmem:[%s2 + $0x60] sm:$0xff]
  %v65 = vld [vmem:[%s2 + $0x68] sm:$0xff]
  %v66 = vld [vmem:[%s2 + $0x70] sm:$0xff]
  %v67 = vld [vmem:[%s2 + $0x78] sm:$0xff]
  %69 = vset.pattern.permute.xlu0 0
  %70 = vperm.xlu0 %69, %v52
  %v71 = vpop.permute.xlu0 %70
  %74 = vset.pattern.permute.xlu0 0
  %75 = vperm.xlu0 %74, %v53
  %v76 = vpop.permute.xlu0 %75
  %79 = vset.pattern.permute.xlu0 0
  %80 = vperm.xlu0 %79, %v54
  %v81 = vpop.permute.xlu0 %80
  %84 = vset.pattern.permute.xlu0 0
  %85 = vperm.xlu0 %84, %v55
  %v86 = vpop.permute.xlu0 %85
  %89 = vset.pattern.permute.xlu0 0
  %90 = vperm.xlu0 %89, %v56
  %v91 = vpop.permute.xlu0 %90
  %94 = vset.pattern.permute.xlu0 0
  %95 = vperm.xlu0 %94, %v57
  %v96 = vpop.permute.xlu0 %95
  %99 = vset.pattern.permute.xlu0 0
  %100 = vperm.xlu0 %99, %v58
  %v101 = vpop.permute.xlu0 %100
  %104 = vset.pattern.permute.xlu0 0
  %105 = vperm.xlu0 %104, %v59
  %v106 = vpop.permute.xlu0 %105
  %109 = vset.pattern.permute.xlu0 0
  %110 = vperm.xlu0 %109, %v60
  %v111 = vpop.permute.xlu0 %110
  %114 = vset.pattern.permute.xlu0 0
  %115 = vperm.xlu0 %114, %v61
  %v116 = vpop.permute.xlu0 %115
  %119 = vset.pattern.permute.xlu0 0
  %120 = vperm.xlu0 %119, %v62
  %v121 = vpop.permute.xlu0 %120
  %124 = vset.pattern.permute.xlu0 0
  %125 = vperm.xlu0 %124, %v63
  %v126 = vpop.permute.xlu0 %125
  %129 = vset.pattern.permute.xlu0 0
  %130 = vperm.xlu0 %129, %v64
  %v131 = vpop.permute.xlu0 %130
  %134 = vset.pattern.permute.xlu0 0
  %135 = vperm.xlu0 %134, %v65
  %v136 = vpop.permute.xlu0 %135
  %139 = vset.pattern.permute.xlu0 0
  %140 = vperm.xlu0 %139, %v66
  %v141 = vpop.permute.xlu0 %140
  %144 = vset.pattern.permute.xlu0 0
  %145 = vperm.xlu0 %144, %v67
  %v146 = vpop.permute.xlu0 %145
  %vm148 = vcmask 261120
  %v150 = vsel %vm148, %v36, 0
  %v153 = vsel %vm148, %v37, 0
  %v156 = vsel %vm148, %v38, 0
  %v159 = vsel %vm148, %v39, 0
  %v162 = vsel %vm148, %v40, 0
  %v165 = vsel %vm148, %v41, 0
  %v168 = vsel %vm148, %v42, 0
  %v171 = vsel %vm148, %v43, 0
  %v174 = vsel %vm148, %v44, 0
  %v177 = vsel %vm148, %v45, 0
  %v180 = vsel %vm148, %v46, 0
  %v183 = vsel %vm148, %v47, 0
  %v186 = vsel %vm148, %v48, 0
  %v189 = vsel %vm148, %v49, 0
  %v192 = vsel %vm148, %v50, 0
  %v195 = vsel %vm148, %v51, 0
  %197 = vmatpush.msra.mxu0 0.0
  %198 = vmatpush.msra.mxu0 0.0
  %199 = vmatpush.msra.mxu0 0.0
  %200 = vmatpush.msra.mxu0 0.0
  %201 = vmatpush.msra.mxu0 0.0
  %202 = vmatpush.msra.mxu0 0.0
  %203 = vmatpush.msra.mxu0 0.0
  %204 = vmatpush.msra.mxu0 0.0
  %205 = vmatpush.msra.mxu0 0.0
  %206 = vmatpush.msra.mxu0 0.0
  %207 = vmatpush.msra.mxu0 0.0
  %208 = vmatpush.msra.mxu0 0.0
  %v209 = vand.u32 %v35, 4294901760
  %210 = vmatpush.msra.mxu0 %v209
  %v211 = vand.u32 %v34, 4294901760
  %212 = vmatpush.msra.mxu0 %v211
  %v213 = vand.u32 %v33, 4294901760
  %214 = vmatpush.msra.mxu0 %v213
  %v215 = vand.u32 %v32, 4294901760
  %216 = vmatpush.msra.mxu0 %v215
  %v217 = vand.u32 %v150, 4294901760
  %v218 = vsub.f32 %v150, %v217
  %v219 = vand.u32 %v218, 4294901760
  %v220 = vsub.f32 %v218, %v219
  %v221 = vand.u32 %v220, 4294901760
  %222 = vmatmul.f32.gmra.mxu0 %v221
  %v223 = vpop.f32.mrf.mxu0
  %v224 = vadd.f32 %v71, %v223
  %v225 = vand.u32 %v153, 4294901760
  %v226 = vsub.f32 %v153, %v225
  %v227 = vand.u32 %v226, 4294901760
  %v228 = vsub.f32 %v226, %v227
  %v229 = vand.u32 %v228, 4294901760
  %230 = vmatmul.f32.gmra.mxu0 %v229
  %v231 = vpop.f32.mrf.mxu0
  %v232 = vadd.f32 %v76, %v231
  %v233 = vand.u32 %v156, 4294901760
  %v234 = vsub.f32 %v156, %v233
  %v235 = vand.u32 %v234, 4294901760
  %v236 = vsub.f32 %v234, %v235
  %v237 = vand.u32 %v236, 4294901760
  %238 = vmatmul.f32.gmra.mxu0 %v237
  %v239 = vpop.f32.mrf.mxu0
  %v240 = vadd.f32 %v81, %v239
  %v241 = vand.u32 %v159, 4294901760
  %v242 = vsub.f32 %v159, %v241
  %v243 = vand.u32 %v242, 4294901760
  %v244 = vsub.f32 %v242, %v243
  %v245 = vand.u32 %v244, 4294901760
  %246 = vmatmul.f32.gmra.mxu0 %v245
  %v247 = vpop.f32.mrf.mxu0
  %v248 = vadd.f32 %v86, %v247
  %v249 = vand.u32 %v162, 4294901760
  %v250 = vsub.f32 %v162, %v249
  %v251 = vand.u32 %v250, 4294901760
  %v252 = vsub.f32 %v250, %v251
  %v253 = vand.u32 %v252, 4294901760
  %254 = vmatmul.f32.gmra.mxu0 %v253
  %v255 = vpop.f32.mrf.mxu0
  %v256 = vadd.f32 %v91, %v255
  %v257 = vand.u32 %v165, 4294901760
  %v258 = vsub.f32 %v165, %v257
  %v259 = vand.u32 %v258, 4294901760
  %v260 = vsub.f32 %v258, %v259
  %v261 = vand.u32 %v260, 4294901760
  %262 = vmatmul.f32.gmra.mxu0 %v261
  %v263 = vpop.f32.mrf.mxu0
  %v264 = vadd.f32 %v96, %v263
  %v265 = vand.u32 %v168, 4294901760
  %v266 = vsub.f32 %v168, %v265
  %v267 = vand.u32 %v266, 4294901760
  %v268 = vsub.f32 %v266, %v267
  %v269 = vand.u32 %v268, 4294901760
  %270 = vmatmul.f32.gmra.mxu0 %v269
  %v271 = vpop.f32.mrf.mxu0
  %v272 = vadd.f32 %v101, %v271
  %v273 = vand.u32 %v171, 4294901760
  %v274 = vsub.f32 %v171, %v273
  %v275 = vand.u32 %v274, 4294901760
  %v276 = vsub.f32 %v274, %v275
  %v277 = vand.u32 %v276, 4294901760
  %278 = vmatmul.f32.gmra.mxu0 %v277
  %v279 = vpop.f32.mrf.mxu0
  %v280 = vadd.f32 %v106, %v279
  %v281 = vand.u32 %v174, 4294901760
  %v282 = vsub.f32 %v174, %v281
  %v283 = vand.u32 %v282, 4294901760
  %v284 = vsub.f32 %v282, %v283
  %v285 = vand.u32 %v284, 4294901760
  %286 = vmatmul.f32.gmra.mxu0 %v285
  %v287 = vpop.f32.mrf.mxu0
  %v288 = vadd.f32 %v111, %v287
  %v289 = vand.u32 %v177, 4294901760
  %v290 = vsub.f32 %v177, %v289
  %v291 = vand.u32 %v290, 4294901760
  %v292 = vsub.f32 %v290, %v291
  %v293 = vand.u32 %v292, 4294901760
  %294 = vmatmul.f32.gmra.mxu0 %v293
  %v295 = vpop.f32.mrf.mxu0
  %v296 = vadd.f32 %v116, %v295
  %v297 = vand.u32 %v180, 4294901760
  %v298 = vsub.f32 %v180, %v297
  %v299 = vand.u32 %v298, 4294901760
  %v300 = vsub.f32 %v298, %v299
  %v301 = vand.u32 %v300, 4294901760
  %302 = vmatmul.f32.gmra.mxu0 %v301
  %v303 = vpop.f32.mrf.mxu0
  %v304 = vadd.f32 %v121, %v303
  %v305 = vand.u32 %v183, 4294901760
  %v306 = vsub.f32 %v183, %v305
  %v307 = vand.u32 %v306, 4294901760
  %v308 = vsub.f32 %v306, %v307
  %v309 = vand.u32 %v308, 4294901760
  %310 = vmatmul.f32.gmra.mxu0 %v309
  %v311 = vpop.f32.mrf.mxu0
  %v312 = vadd.f32 %v126, %v311
  %v313 = vand.u32 %v186, 4294901760
  %v314 = vsub.f32 %v186, %v313
  %v315 = vand.u32 %v314, 4294901760
  %v316 = vsub.f32 %v314, %v315
  %v317 = vand.u32 %v316, 4294901760
  %318 = vmatmul.f32.gmra.mxu0 %v317
  %v319 = vpop.f32.mrf.mxu0
  %v320 = vadd.f32 %v131, %v319
  %v321 = vand.u32 %v189, 4294901760
  %v322 = vsub.f32 %v189, %v321
  %v323 = vand.u32 %v322, 4294901760
  %v324 = vsub.f32 %v322, %v323
  %v325 = vand.u32 %v324, 4294901760
  %326 = vmatmul.f32.gmra.mxu0 %v325
  %v327 = vpop.f32.mrf.mxu0
  %v328 = vadd.f32 %v136, %v327
  %v329 = vand.u32 %v192, 4294901760
  %v330 = vsub.f32 %v192, %v329
  %v331 = vand.u32 %v330, 4294901760
  %v332 = vsub.f32 %v330, %v331
  %v333 = vand.u32 %v332, 4294901760
  %334 = vmatmul.f32.gmra.mxu0 %v333
  %v335 = vpop.f32.mrf.mxu0
  %v336 = vadd.f32 %v141, %v335
  %v337 = vand.u32 %v195, 4294901760
  %v338 = vsub.f32 %v195, %v337
  %v339 = vand.u32 %v338, 4294901760
  %v340 = vsub.f32 %v338, %v339
  %v341 = vand.u32 %v340, 4294901760
  %342 = vmatmul.f32.gmra.mxu0 %v341
  %v343 = vpop.f32.mrf.mxu0
  %v344 = vadd.f32 %v146, %v343
  %345 = vdwg.mxu0
  %346 = vmatpush.msra.mxu0 0.0
  %347 = vmatpush.msra.mxu0 0.0
  %348 = vmatpush.msra.mxu0 0.0
  %349 = vmatpush.msra.mxu0 0.0
  %350 = vmatpush.msra.mxu0 0.0
  %351 = vmatpush.msra.mxu0 0.0
  %352 = vmatpush.msra.mxu0 0.0
  %353 = vmatpush.msra.mxu0 0.0
  %354 = vmatpush.msra.mxu0 0.0
  %355 = vmatpush.msra.mxu0 0.0
  %356 = vmatpush.msra.mxu0 0.0
  %357 = vmatpush.msra.mxu0 0.0
  %v358 = vand.u32 %v35, 4294901760
  %v359 = vsub.f32 %v35, %v358
  %v360 = vand.u32 %v359, 4294901760
  %v361 = vsub.f32 %v359, %v360
  %v362 = vand.u32 %v361, 4294901760
  %363 = vmatpush.msra.mxu0 %v362
  %v364 = vand.u32 %v34, 4294901760
  %v365 = vsub.f32 %v34, %v364
  %v366 = vand.u32 %v365, 4294901760
  %v367 = vsub.f32 %v365, %v366
  %v368 = vand.u32 %v367, 4294901760
  %369 = vmatpush.msra.mxu0 %v368
  %v370 = vand.u32 %v33, 4294901760
  %v371 = vsub.f32 %v33, %v370
  %v372 = vand.u32 %v371, 4294901760
  %v373 = vsub.f32 %v371, %v372
  %v374 = vand.u32 %v373, 4294901760
  %375 = vmatpush.msra.mxu0 %v374
  %v376 = vand.u32 %v32, 4294901760
  %v377 = vsub.f32 %v32, %v376
  %v378 = vand.u32 %v377, 4294901760
  %v379 = vsub.f32 %v377, %v378
  %v380 = vand.u32 %v379, 4294901760
  %381 = vmatpush.msra.mxu0 %v380
  %v382 = vand.u32 %v150, 4294901760
  %383 = vmatmul.f32.gmra.mxu0 %v382
  %v384 = vpop.f32.mrf.mxu0
  %v385 = vadd.f32 %v224, %v384
  %v386 = vand.u32 %v153, 4294901760
  %387 = vmatmul.f32.gmra.mxu0 %v386
  %v388 = vpop.f32.mrf.mxu0
  %v389 = vadd.f32 %v232, %v388
  %v390 = vand.u32 %v156, 4294901760
  %391 = vmatmul.f32.gmra.mxu0 %v390
  %v392 = vpop.f32.mrf.mxu0
  %v393 = vadd.f32 %v240, %v392
  %v394 = vand.u32 %v159, 4294901760
  %395 = vmatmul.f32.gmra.mxu0 %v394
  %v396 = vpop.f32.mrf.mxu0
  %v397 = vadd.f32 %v248, %v396
  %v398 = vand.u32 %v162, 4294901760
  %399 = vmatmul.f32.gmra.mxu0 %v398
  %v400 = vpop.f32.mrf.mxu0
  %v401 = vadd.f32 %v256, %v400
  %v402 = vand.u32 %v165, 4294901760
  %403 = vmatmul.f32.gmra.mxu0 %v402
  %v404 = vpop.f32.mrf.mxu0
  %v405 = vadd.f32 %v264, %v404
  %v406 = vand.u32 %v168, 4294901760
  %407 = vmatmul.f32.gmra.mxu0 %v406
  %v408 = vpop.f32.mrf.mxu0
  %v409 = vadd.f32 %v272, %v408
  %v410 = vand.u32 %v171, 4294901760
  %411 = vmatmul.f32.gmra.mxu0 %v410
  %v412 = vpop.f32.mrf.mxu0
  %v413 = vadd.f32 %v280, %v412
  %v414 = vand.u32 %v174, 4294901760
  %415 = vmatmul.f32.gmra.mxu0 %v414
  %v416 = vpop.f32.mrf.mxu0
  %v417 = vadd.f32 %v288, %v416
  %v418 = vand.u32 %v177, 4294901760
  %419 = vmatmul.f32.gmra.mxu0 %v418
  %v420 = vpop.f32.mrf.mxu0
  %v421 = vadd.f32 %v296, %v420
  %v422 = vand.u32 %v180, 4294901760
  %423 = vmatmul.f32.gmra.mxu0 %v422
  %v424 = vpop.f32.mrf.mxu0
  %v425 = vadd.f32 %v304, %v424
  %v426 = vand.u32 %v183, 4294901760
  %427 = vmatmul.f32.gmra.mxu0 %v426
  %v428 = vpop.f32.mrf.mxu0
  %v429 = vadd.f32 %v312, %v428
  %v430 = vand.u32 %v186, 4294901760
  %431 = vmatmul.f32.gmra.mxu0 %v430
  %v432 = vpop.f32.mrf.mxu0
  %v433 = vadd.f32 %v320, %v432
  %v434 = vand.u32 %v189, 4294901760
  %435 = vmatmul.f32.gmra.mxu0 %v434
  %v436 = vpop.f32.mrf.mxu0
  %v437 = vadd.f32 %v328, %v436
  %v438 = vand.u32 %v192, 4294901760
  %439 = vmatmul.f32.gmra.mxu0 %v438
  %v440 = vpop.f32.mrf.mxu0
  %v441 = vadd.f32 %v336, %v440
  %v442 = vand.u32 %v195, 4294901760
  %443 = vmatmul.f32.gmra.mxu0 %v442
  %v444 = vpop.f32.mrf.mxu0
  %v445 = vadd.f32 %v344, %v444
  %446 = vdwg.mxu0
  %447 = vmatpush.msra.mxu0 0.0
  %448 = vmatpush.msra.mxu0 0.0
  %449 = vmatpush.msra.mxu0 0.0
  %450 = vmatpush.msra.mxu0 0.0
  %451 = vmatpush.msra.mxu0 0.0
  %452 = vmatpush.msra.mxu0 0.0
  %453 = vmatpush.msra.mxu0 0.0
  %454 = vmatpush.msra.mxu0 0.0
  %455 = vmatpush.msra.mxu0 0.0
  %456 = vmatpush.msra.mxu0 0.0
  %457 = vmatpush.msra.mxu0 0.0
  %458 = vmatpush.msra.mxu0 0.0
  %v459 = vand.u32 %v35, 4294901760
  %v460 = vsub.f32 %v35, %v459
  %461 = vmatpush.msra.mxu0 %v460
  %v462 = vand.u32 %v34, 4294901760
  %v463 = vsub.f32 %v34, %v462
  %464 = vmatpush.msra.mxu0 %v463
  %v465 = vand.u32 %v33, 4294901760
  %v466 = vsub.f32 %v33, %v465
  %467 = vmatpush.msra.mxu0 %v466
  %v468 = vand.u32 %v32, 4294901760
  %v469 = vsub.f32 %v32, %v468
  %470 = vmatpush.msra.mxu0 %v469
  %v471 = vand.u32 %v150, 4294901760
  %v472 = vsub.f32 %v150, %v471
  %473 = vmatmul.f32.gmra.mxu0 %v472
  %v474 = vpop.f32.mrf.mxu0
  %v475 = vadd.f32 %v385, %v474
  %v476 = vand.u32 %v153, 4294901760
  %v477 = vsub.f32 %v153, %v476
  %478 = vmatmul.f32.gmra.mxu0 %v477
  %v479 = vpop.f32.mrf.mxu0
  %v480 = vadd.f32 %v389, %v479
  %v481 = vand.u32 %v156, 4294901760
  %v482 = vsub.f32 %v156, %v481
  %483 = vmatmul.f32.gmra.mxu0 %v482
  %v484 = vpop.f32.mrf.mxu0
  %v485 = vadd.f32 %v393, %v484
  %v486 = vand.u32 %v159, 4294901760
  %v487 = vsub.f32 %v159, %v486
  %488 = vmatmul.f32.gmra.mxu0 %v487
  %v489 = vpop.f32.mrf.mxu0
  %v490 = vadd.f32 %v397, %v489
  %v491 = vand.u32 %v162, 4294901760
  %v492 = vsub.f32 %v162, %v491
  %493 = vmatmul.f32.gmra.mxu0 %v492
  %v494 = vpop.f32.mrf.mxu0
  %v495 = vadd.f32 %v401, %v494
  %v496 = vand.u32 %v165, 4294901760
  %v497 = vsub.f32 %v165, %v496
  %498 = vmatmul.f32.gmra.mxu0 %v497
  %v499 = vpop.f32.mrf.mxu0
  %v500 = vadd.f32 %v405, %v499
  %v501 = vand.u32 %v168, 4294901760
  %v502 = vsub.f32 %v168, %v501
  %503 = vmatmul.f32.gmra.mxu0 %v502
  %v504 = vpop.f32.mrf.mxu0
  %v505 = vadd.f32 %v409, %v504
  %v506 = vand.u32 %v171, 4294901760
  %v507 = vsub.f32 %v171, %v506
  %508 = vmatmul.f32.gmra.mxu0 %v507
  %v509 = vpop.f32.mrf.mxu0
  %v510 = vadd.f32 %v413, %v509
  %v511 = vand.u32 %v174, 4294901760
  %v512 = vsub.f32 %v174, %v511
  %513 = vmatmul.f32.gmra.mxu0 %v512
  %v514 = vpop.f32.mrf.mxu0
  %v515 = vadd.f32 %v417, %v514
  %v516 = vand.u32 %v177, 4294901760
  %v517 = vsub.f32 %v177, %v516
  %518 = vmatmul.f32.gmra.mxu0 %v517
  %v519 = vpop.f32.mrf.mxu0
  %v520 = vadd.f32 %v421, %v519
  %v521 = vand.u32 %v180, 4294901760
  %v522 = vsub.f32 %v180, %v521
  %523 = vmatmul.f32.gmra.mxu0 %v522
  %v524 = vpop.f32.mrf.mxu0
  %v525 = vadd.f32 %v425, %v524
  %v526 = vand.u32 %v183, 4294901760
  %v527 = vsub.f32 %v183, %v526
  %528 = vmatmul.f32.gmra.mxu0 %v527
  %v529 = vpop.f32.mrf.mxu0
  %v530 = vadd.f32 %v429, %v529
  %v531 = vand.u32 %v186, 4294901760
  %v532 = vsub.f32 %v186, %v531
  %533 = vmatmul.f32.gmra.mxu0 %v532
  %v534 = vpop.f32.mrf.mxu0
  %v535 = vadd.f32 %v433, %v534
  %v536 = vand.u32 %v189, 4294901760
  %v537 = vsub.f32 %v189, %v536
  %538 = vmatmul.f32.gmra.mxu0 %v537
  %v539 = vpop.f32.mrf.mxu0
  %v540 = vadd.f32 %v437, %v539
  %v541 = vand.u32 %v192, 4294901760
  %v542 = vsub.f32 %v192, %v541
  %543 = vmatmul.f32.gmra.mxu0 %v542
  %v544 = vpop.f32.mrf.mxu0
  %v545 = vadd.f32 %v441, %v544
  %v546 = vand.u32 %v195, 4294901760
  %v547 = vsub.f32 %v195, %v546
  %548 = vmatmul.f32.gmra.mxu0 %v547
  %v549 = vpop.f32.mrf.mxu0
  %v550 = vadd.f32 %v445, %v549
  %551 = vdwg.mxu0
  %552 = vmatpush.msra.mxu0 0.0
  %553 = vmatpush.msra.mxu0 0.0
  %554 = vmatpush.msra.mxu0 0.0
  %555 = vmatpush.msra.mxu0 0.0
  %556 = vmatpush.msra.mxu0 0.0
  %557 = vmatpush.msra.mxu0 0.0
  %558 = vmatpush.msra.mxu0 0.0
  %559 = vmatpush.msra.mxu0 0.0
  %560 = vmatpush.msra.mxu0 0.0
  %561 = vmatpush.msra.mxu0 0.0
  %562 = vmatpush.msra.mxu0 0.0
  %563 = vmatpush.msra.mxu0 0.0
  %v564 = vand.u32 %v35, 4294901760
  %565 = vmatpush.msra.mxu0 %v564
  %v566 = vand.u32 %v34, 4294901760
  %567 = vmatpush.msra.mxu0 %v566
  %v568 = vand.u32 %v33, 4294901760
  %569 = vmatpush.msra.mxu0 %v568
  %v570 = vand.u32 %v32, 4294901760
  %571 = vmatpush.msra.mxu0 %v570
  %v572 = vand.u32 %v150, 4294901760
  %v573 = vsub.f32 %v150, %v572
  %v574 = vand.u32 %v573, 4294901760
  %575 = vmatmul.f32.gmra.mxu0 %v574
  %v576 = vpop.f32.mrf.mxu0
  %v577 = vadd.f32 %v475, %v576
  %v578 = vand.u32 %v153, 4294901760
  %v579 = vsub.f32 %v153, %v578
  %v580 = vand.u32 %v579, 4294901760
  %581 = vmatmul.f32.gmra.mxu0 %v580
  %v582 = vpop.f32.mrf.mxu0
  %v583 = vadd.f32 %v480, %v582
  %v584 = vand.u32 %v156, 4294901760
  %v585 = vsub.f32 %v156, %v584
  %v586 = vand.u32 %v585, 4294901760
  %587 = vmatmul.f32.gmra.mxu0 %v586
  %v588 = vpop.f32.mrf.mxu0
  %v589 = vadd.f32 %v485, %v588
  %v590 = vand.u32 %v159, 4294901760
  %v591 = vsub.f32 %v159, %v590
  %v592 = vand.u32 %v591, 4294901760
  %593 = vmatmul.f32.gmra.mxu0 %v592
  %v594 = vpop.f32.mrf.mxu0
  %v595 = vadd.f32 %v490, %v594
  %v596 = vand.u32 %v162, 4294901760
  %v597 = vsub.f32 %v162, %v596
  %v598 = vand.u32 %v597, 4294901760
  %599 = vmatmul.f32.gmra.mxu0 %v598
  %v600 = vpop.f32.mrf.mxu0
  %v601 = vadd.f32 %v495, %v600
  %v602 = vand.u32 %v165, 4294901760
  %v603 = vsub.f32 %v165, %v602
  %v604 = vand.u32 %v603, 4294901760
  %605 = vmatmul.f32.gmra.mxu0 %v604
  %v606 = vpop.f32.mrf.mxu0
  %v607 = vadd.f32 %v500, %v606
  %v608 = vand.u32 %v168, 4294901760
  %v609 = vsub.f32 %v168, %v608
  %v610 = vand.u32 %v609, 4294901760
  %611 = vmatmul.f32.gmra.mxu0 %v610
  %v612 = vpop.f32.mrf.mxu0
  %v613 = vadd.f32 %v505, %v612
  %v614 = vand.u32 %v171, 4294901760
  %v615 = vsub.f32 %v171, %v614
  %v616 = vand.u32 %v615, 4294901760
  %617 = vmatmul.f32.gmra.mxu0 %v616
  %v618 = vpop.f32.mrf.mxu0
  %v619 = vadd.f32 %v510, %v618
  %v620 = vand.u32 %v174, 4294901760
  %v621 = vsub.f32 %v174, %v620
  %v622 = vand.u32 %v621, 4294901760
  %623 = vmatmul.f32.gmra.mxu0 %v622
  %v624 = vpop.f32.mrf.mxu0
  %v625 = vadd.f32 %v515, %v624
  %v626 = vand.u32 %v177, 4294901760
  %v627 = vsub.f32 %v177, %v626
  %v628 = vand.u32 %v627, 4294901760
  %629 = vmatmul.f32.gmra.mxu0 %v628
  %v630 = vpop.f32.mrf.mxu0
  %v631 = vadd.f32 %v520, %v630
  %v632 = vand.u32 %v180, 4294901760
  %v633 = vsub.f32 %v180, %v632
  %v634 = vand.u32 %v633, 4294901760
  %635 = vmatmul.f32.gmra.mxu0 %v634
  %v636 = vpop.f32.mrf.mxu0
  %v637 = vadd.f32 %v525, %v636
  %v638 = vand.u32 %v183, 4294901760
  %v639 = vsub.f32 %v183, %v638
  %v640 = vand.u32 %v639, 4294901760
  %641 = vmatmul.f32.gmra.mxu0 %v640
  %v642 = vpop.f32.mrf.mxu0
  %v643 = vadd.f32 %v530, %v642
  %v644 = vand.u32 %v186, 4294901760
  %v645 = vsub.f32 %v186, %v644
  %v646 = vand.u32 %v645, 4294901760
  %647 = vmatmul.f32.gmra.mxu0 %v646
  %v648 = vpop.f32.mrf.mxu0
  %v649 = vadd.f32 %v535, %v648
  %v650 = vand.u32 %v189, 4294901760
  %v651 = vsub.f32 %v189, %v650
  %v652 = vand.u32 %v651, 4294901760
  %653 = vmatmul.f32.gmra.mxu0 %v652
  %v654 = vpop.f32.mrf.mxu0
  %v655 = vadd.f32 %v540, %v654
  %v656 = vand.u32 %v192, 4294901760
  %v657 = vsub.f32 %v192, %v656
  %v658 = vand.u32 %v657, 4294901760
  %659 = vmatmul.f32.gmra.mxu0 %v658
  %v660 = vpop.f32.mrf.mxu0
  %v661 = vadd.f32 %v545, %v660
  %v662 = vand.u32 %v195, 4294901760
  %v663 = vsub.f32 %v195, %v662
  %v664 = vand.u32 %v663, 4294901760
  %665 = vmatmul.f32.gmra.mxu0 %v664
  %v666 = vpop.f32.mrf.mxu0
  %v667 = vadd.f32 %v550, %v666
  %668 = vdwg.mxu0
  %669 = vmatpush.msra.mxu0 0.0
  %670 = vmatpush.msra.mxu0 0.0
  %671 = vmatpush.msra.mxu0 0.0
  %672 = vmatpush.msra.mxu0 0.0
  %673 = vmatpush.msra.mxu0 0.0
  %674 = vmatpush.msra.mxu0 0.0
  %675 = vmatpush.msra.mxu0 0.0
  %676 = vmatpush.msra.mxu0 0.0
  %677 = vmatpush.msra.mxu0 0.0
  %678 = vmatpush.msra.mxu0 0.0
  %679 = vmatpush.msra.mxu0 0.0
  %680 = vmatpush.msra.mxu0 0.0
  %v681 = vand.u32 %v35, 4294901760
  %v682 = vsub.f32 %v35, %v681
  %v683 = vand.u32 %v682, 4294901760
  %684 = vmatpush.msra.mxu0 %v683
  %v685 = vand.u32 %v34, 4294901760
  %v686 = vsub.f32 %v34, %v685
  %v687 = vand.u32 %v686, 4294901760
  %688 = vmatpush.msra.mxu0 %v687
  %v689 = vand.u32 %v33, 4294901760
  %v690 = vsub.f32 %v33, %v689
  %v691 = vand.u32 %v690, 4294901760
  %692 = vmatpush.msra.mxu0 %v691
  %v693 = vand.u32 %v32, 4294901760
  %v694 = vsub.f32 %v32, %v693
  %v695 = vand.u32 %v694, 4294901760
  %696 = vmatpush.msra.mxu0 %v695
  %v697 = vand.u32 %v150, 4294901760
  %698 = vmatmul.f32.gmra.mxu0 %v697
  %v699 = vpop.f32.mrf.mxu0
  %v700 = vadd.f32 %v577, %v699
  %v701 = vand.u32 %v153, 4294901760
  %702 = vmatmul.f32.gmra.mxu0 %v701
  %v703 = vpop.f32.mrf.mxu0
  %v704 = vadd.f32 %v583, %v703
  %v705 = vand.u32 %v156, 4294901760
  %706 = vmatmul.f32.gmra.mxu0 %v705
  %v707 = vpop.f32.mrf.mxu0
  %v708 = vadd.f32 %v589, %v707
  %v709 = vand.u32 %v159, 4294901760
  %710 = vmatmul.f32.gmra.mxu0 %v709
  %v711 = vpop.f32.mrf.mxu0
  %v712 = vadd.f32 %v595, %v711
  %v713 = vand.u32 %v162, 4294901760
  %714 = vmatmul.f32.gmra.mxu0 %v713
  %v715 = vpop.f32.mrf.mxu0
  %v716 = vadd.f32 %v601, %v715
  %v717 = vand.u32 %v165, 4294901760
  %718 = vmatmul.f32.gmra.mxu0 %v717
  %v719 = vpop.f32.mrf.mxu0
  %v720 = vadd.f32 %v607, %v719
  %v721 = vand.u32 %v168, 4294901760
  %722 = vmatmul.f32.gmra.mxu0 %v721
  %v723 = vpop.f32.mrf.mxu0
  %v724 = vadd.f32 %v613, %v723
  %v725 = vand.u32 %v171, 4294901760
  %726 = vmatmul.f32.gmra.mxu0 %v725
  %v727 = vpop.f32.mrf.mxu0
  %v728 = vadd.f32 %v619, %v727
  %v729 = vand.u32 %v174, 4294901760
  %730 = vmatmul.f32.gmra.mxu0 %v729
  %v731 = vpop.f32.mrf.mxu0
  %v732 = vadd.f32 %v625, %v731
  %v733 = vand.u32 %v177, 4294901760
  %734 = vmatmul.f32.gmra.mxu0 %v733
  %v735 = vpop.f32.mrf.mxu0
  %v736 = vadd.f32 %v631, %v735
  %v737 = vand.u32 %v180, 4294901760
  %738 = vmatmul.f32.gmra.mxu0 %v737
  %v739 = vpop.f32.mrf.mxu0
  %v740 = vadd.f32 %v637, %v739
  %v741 = vand.u32 %v183, 4294901760
  %742 = vmatmul.f32.gmra.mxu0 %v741
  %v743 = vpop.f32.mrf.mxu0
  %v744 = vadd.f32 %v643, %v743
  %v745 = vand.u32 %v186, 4294901760
  %746 = vmatmul.f32.gmra.mxu0 %v745
  %v747 = vpop.f32.mrf.mxu0
  %v748 = vadd.f32 %v649, %v747
  %v749 = vand.u32 %v189, 4294901760
  %750 = vmatmul.f32.gmra.mxu0 %v749
  %v751 = vpop.f32.mrf.mxu0
  %v752 = vadd.f32 %v655, %v751
  %v753 = vand.u32 %v192, 4294901760
  %754 = vmatmul.f32.gmra.mxu0 %v753
  %v755 = vpop.f32.mrf.mxu0
  %v756 = vadd.f32 %v661, %v755
  %v757 = vand.u32 %v195, 4294901760
  %758 = vmatmul.f32.gmra.mxu0 %v757
  %v759 = vpop.f32.mrf.mxu0
  %v760 = vadd.f32 %v667, %v759
  %761 = vdwg.mxu0
  %762 = vmatpush.msra.mxu0 0.0
  %763 = vmatpush.msra.mxu0 0.0
  %764 = vmatpush.msra.mxu0 0.0
  %765 = vmatpush.msra.mxu0 0.0
  %766 = vmatpush.msra.mxu0 0.0
  %767 = vmatpush.msra.mxu0 0.0
  %768 = vmatpush.msra.mxu0 0.0
  %769 = vmatpush.msra.mxu0 0.0
  %770 = vmatpush.msra.mxu0 0.0
  %771 = vmatpush.msra.mxu0 0.0
  %772 = vmatpush.msra.mxu0 0.0
  %773 = vmatpush.msra.mxu0 0.0
  %v774 = vand.u32 %v35, 4294901760
  %775 = vmatpush.msra.mxu0 %v774
  %v776 = vand.u32 %v34, 4294901760
  %777 = vmatpush.msra.mxu0 %v776
  %v778 = vand.u32 %v33, 4294901760
  %779 = vmatpush.msra.mxu0 %v778
  %v780 = vand.u32 %v32, 4294901760
  %781 = vmatpush.msra.mxu0 %v780
  %v782 = vand.u32 %v150, 4294901760
  %783 = vmatmul.f32.gmra.mxu0 %v782
  %v784 = vpop.f32.mrf.mxu0
  %v785 = vadd.f32 %v700, %v784
  %v786 = vand.u32 %v153, 4294901760
  %787 = vmatmul.f32.gmra.mxu0 %v786
  %v788 = vpop.f32.mrf.mxu0
  %v789 = vadd.f32 %v704, %v788
  %v790 = vand.u32 %v156, 4294901760
  %791 = vmatmul.f32.gmra.mxu0 %v790
  %v792 = vpop.f32.mrf.mxu0
  %v793 = vadd.f32 %v708, %v792
  %v794 = vand.u32 %v159, 4294901760
  %795 = vmatmul.f32.gmra.mxu0 %v794
  %v796 = vpop.f32.mrf.mxu0
  %v797 = vadd.f32 %v712, %v796
  %v798 = vand.u32 %v162, 4294901760
  %799 = vmatmul.f32.gmra.mxu0 %v798
  %v800 = vpop.f32.mrf.mxu0
  %v801 = vadd.f32 %v716, %v800
  %v802 = vand.u32 %v165, 4294901760
  %803 = vmatmul.f32.gmra.mxu0 %v802
  %v804 = vpop.f32.mrf.mxu0
  %v805 = vadd.f32 %v720, %v804
  %v806 = vand.u32 %v168, 4294901760
  %807 = vmatmul.f32.gmra.mxu0 %v806
  %v808 = vpop.f32.mrf.mxu0
  %v809 = vadd.f32 %v724, %v808
  %v810 = vand.u32 %v171, 4294901760
  %811 = vmatmul.f32.gmra.mxu0 %v810
  %v812 = vpop.f32.mrf.mxu0
  %v813 = vadd.f32 %v728, %v812
  %v814 = vand.u32 %v174, 4294901760
  %815 = vmatmul.f32.gmra.mxu0 %v814
  %v816 = vpop.f32.mrf.mxu0
  %v817 = vadd.f32 %v732, %v816
  %v818 = vand.u32 %v177, 4294901760
  %819 = vmatmul.f32.gmra.mxu0 %v818
  %v820 = vpop.f32.mrf.mxu0
  %v821 = vadd.f32 %v736, %v820
  %v822 = vand.u32 %v180, 4294901760
  %823 = vmatmul.f32.gmra.mxu0 %v822
  %v824 = vpop.f32.mrf.mxu0
  %v825 = vadd.f32 %v740, %v824
  %v826 = vand.u32 %v183, 4294901760
  %827 = vmatmul.f32.gmra.mxu0 %v826
  %v828 = vpop.f32.mrf.mxu0
  %v829 = vadd.f32 %v744, %v828
  %v830 = vand.u32 %v186, 4294901760
  %831 = vmatmul.f32.gmra.mxu0 %v830
  %v832 = vpop.f32.mrf.mxu0
  %v833 = vadd.f32 %v748, %v832
  %v834 = vand.u32 %v189, 4294901760
  %835 = vmatmul.f32.gmra.mxu0 %v834
  %v836 = vpop.f32.mrf.mxu0
  %v837 = vadd.f32 %v752, %v836
  %v838 = vand.u32 %v192, 4294901760
  %839 = vmatmul.f32.gmra.mxu0 %v838
  %v840 = vpop.f32.mrf.mxu0
  %v841 = vadd.f32 %v756, %v840
  %v842 = vand.u32 %v195, 4294901760
  %843 = vmatmul.f32.gmra.mxu0 %v842
  %v844 = vpop.f32.mrf.mxu0
  %v845 = vadd.f32 %v760, %v844
  %846 = vdwg.mxu0
  %v847 = vand.u32 2147483647, %v785
  %vm848 = vcmp.le.f32.partialorder %v847, 0.7853982
  %vm849 = vcmp.lt.s32.totalorder %v785, 0
  %v850 = vand.u32 %v785, 2139095040
  %v851 = vshrl.u32 %v850, 23
  %v852 = vsub.s32 %v851, 127
  %v853 = vand.u32 2147483647, %v785
  %v854 = vand.u32 %v853, 8388607
  %v855 = vor.u32 %v854, 8388608
  %v856 = vsub.s32 0, %v855
  %v857 = vadd.s32 %v852, 1
  %vm858 = vcmp.gt.s32.totalorder %v857, 0
  %v859 = vsel %vm858, %v857, 0
  %v860 = vshrl.u32 %v859, 5
  %v861 = vand.u32 %v859, 31
  %v862 = vsub.s32 32, %v861
  %v863 = vshrl.u32 683565275, %v862
  %v864 = vshll.u32 683565275, %v861
  %v865 = vshrl.u32 2475754826, %v862
  %v866 = vor.u32 %v864, %v865
  %v867 = vshll.u32 2475754826, %v861
  %v868 = vshrl.u32 2131351028, %v862
  %v869 = vor.u32 %v867, %v868
  %v870 = vshll.u32 2131351028, %v861
  %v871 = vshrl.u32 2102212464, %v862
  %v872 = vor.u32 %v870, %v871
  %v873 = vshll.u32 2102212464, %v861
  %v874 = vshrl.u32 920167782, %v862
  %v875 = vor.u32 %v873, %v874
  %v876 = vshll.u32 920167782, %v861
  %v877 = vshrl.u32 1326507024, %v862
  %v878 = vor.u32 %v876, %v877
  %vm879 = vcmp.lt.s32.totalorder %v860, 1
  %vm880 = vcmp.lt.s32.totalorder %v860, 2
  %vm881 = vcmp.lt.s32.totalorder %v860, 3
  %vm882 = vcmp.lt.s32.totalorder %v860, 4
  %v883 = vsel %vm879, %v863, %v866
  %v884 = vsel %vm882, %v872, 2102212464
  %v885 = vsel %vm881, %v869, %v884
  %v886 = vsel %vm880, %v883, %v885
  %v887 = vsel %vm879, %v866, %v869
  %v888 = vsel %vm882, %v875, 920167782
  %v889 = vsel %vm881, %v872, %v888
  %v890 = vsel %vm880, %v887, %v889
  %v891 = vsel %vm879, %v869, %v872
  %v892 = vsel %vm882, %v878, 1326507024
  %v893 = vsel %vm881, %v875, %v892
  %v894 = vsel %vm880, %v891, %v893
  %v895 = vshll.u32 %v855, 8
  %v896 = vand.u32 %v895, 65535
  %v897 = vshrl.u32 %v895, 16
  %v898 = vand.u32 %v894, 65535
  %v899 = vshrl.u32 %v894, 16
  %v900 = vmul.u32 %v896, %v898
  %v901 = vmul.u32 %v896, %v899
  %v902 = vmul.u32 %v897, %v898
  %v903 = vmul.u32 %v897, %v899
  %v904 = vshll.u32 %v901, 16
  %v905 = vshrl.u32 %v901, 16
  %v906 = vshll.u32 %v902, 16
  %v907 = vshrl.u32 %v902, 16
  %vm908 = vc.u32 %v900, %v904
  %v909 = vsel %vm908, 1, 0
  %v910 = vadd.s32 %v900, %v904
  %v911 = vadd.s32 %v903, %v909
  %vm912 = vc.u32 %v910, %v906
  %v913 = vsel %vm912, 1, 0
  %v914 = vadd.s32 %v910, %v906
  %v915 = vadd.s32 %v911, %v913
  %v916 = vadd.s32 %v915, %v905
  %v917 = vadd.s32 %v916, %v907
  %v918 = vand.u32 %v895, 65535
  %v919 = vshrl.u32 %v895, 16
  %v920 = vand.u32 %v890, 65535
  %v921 = vshrl.u32 %v890, 16
  %v922 = vmul.u32 %v918, %v920
  %v923 = vmul.u32 %v918, %v921
  %v924 = vmul.u32 %v919, %v920
  %v925 = vmul.u32 %v919, %v921
  %v926 = vshll.u32 %v923, 16
  %v927 = vshrl.u32 %v923, 16
  %v928 = vshll.u32 %v924, 16
  %v929 = vshrl.u32 %v924, 16
  %vm930 = vc.u32 %v922, %v926
  %v931 = vsel %vm930, 1, 0
  %v932 = vadd.s32 %v922, %v926
  %v933 = vadd.s32 %v925, %v931
  %vm934 = vc.u32 %v932, %v928
  %v935 = vsel %vm934, 1, 0
  %v936 = vadd.s32 %v932, %v928
  %v937 = vadd.s32 %v933, %v935
  %v938 = vadd.s32 %v937, %v927
  %v939 = vadd.s32 %v938, %v929
  %v940 = vmul.u32 %v895, %v886
  %v941 = vadd.s32 %v917, %v936
  %vm942 = vc.u32 %v917, %v936
  %v943 = vadd.s32 %v939, 1
  %v944 = vsel %vm942, %v943, %v939
  %v945 = vadd.s32 %v940, %v944
  %v946 = vadd.s32 %v945, 536870912
  %v947 = vshrl.u32 %v946, 30
  %v948 = vshll.u32 %v947, 30
  %v949 = vsub.s32 %v945, %v948
  %vm950 = vcmp.lt.s32.totalorder %v949, 0
  %v951 = vsub.s32 0, %v949
  %v952 = vsel %vm950, %v951, %v949
  %v953 = vclz %v952
  %v954 = vsub.s32 %v953, 2
  %vm955 = vcmp.gt.s32.totalorder 0, %v954
  %v956 = vsel %vm955, 0, %v954
  %v957 = vsub.s32 32, %v956
  %v958 = vshll.u32 %v949, %v956
  %v959 = vshrl.u32 %v941, %v957
  %v960 = vor.u32 %v958, %v959
  %v961 = vsub.s32 4294967266, %v956
  %v962 = vadd.s32 %v961, 127
  %v963 = vshll.u32 %v962, 23
  %v964 = vor.u32 4788187, %v963
  %v965 = vand.u32 2147483647, %v964
  %v967 = vcvt.s32.f32 %v960
  %v968 = vmul.f32 %v967, %v965
  %v969 = vxor.u32 %v968, 2147483648
  %v970 = vsel %vm849, %v969, %v968
  %v971 = vsub.s32 4, %v947
  %v972 = vsel %vm849, %v971, %v947
  %v973 = vsel %vm848, %v785, %v970
  %v974 = vsel %vm848, 0, %v972
  %v975 = vmul.f32 %v973, %v973
  %v976 = vmul.f32 %v975, -0.001358992
  %v977 = vadd.f32 %v976, 0.041655596
  %v978 = vmul.f32 %v975, %v977
  %v979 = vadd.f32 %v978, -0.4999988
  %v980 = vmul.f32 %v975, %v979
  %v981 = vadd.f32 1.0, %v980
  %v982 = vmul.f32 %v973, %v973
  %v983 = vmul.f32 %v982, -0.00019511016
  %v984 = vadd.f32 %v983, 0.008332121
  %v985 = vmul.f32 %v982, %v984
  %v986 = vadd.f32 %v985, -0.16666654
  %v987 = vmul.f32 %v982, %v986
  %v988 = vadd.f32 %v987, 1.0
  %v989 = vmul.f32 %v988, %v973
  %vm990 = vweird.f32 %v785
  %v991 = vadd.s32 %v974, 3
  %v992 = vand.u32 %v991, 3
  %vm993 = vcmp.lt.s32.totalorder %v992, 2
  %vm994 = vcmp.eq.s32.totalorder %v992, 0
  %v995 = vxor.u32 %v989, 2147483648
  %v996 = vsel %vm994, %v981, %v995
  %vm997 = vcmp.eq.s32.totalorder %v992, 2
  %v998 = vxor.u32 %v981, 2147483648
  %v999 = vsel %vm997, %v998, %v989
  %v1000 = vsel %vm993, %v996, %v999
  %v1001 = vsel %vm990, nan, %v1000
  %v1002 = vand.u32 2147483647, %v789
  %vm1003 = vcmp.le.f32.partialorder %v1002, 0.7853982
  %vm1004 = vcmp.lt.s32.totalorder %v789, 0
  %v1005 = vand.u32 %v789, 2139095040
  %v1006 = vshrl.u32 %v1005, 23
  %v1007 = vsub.s32 %v1006, 127
  %v1008 = vand.u32 2147483647, %v789
  %v1009 = vand.u32 %v1008, 8388607
  %v1010 = vor.u32 %v1009, 8388608
  %v1011 = vsub.s32 0, %v1010
  %v1012 = vadd.s32 %v1007, 1
  %vm1013 = vcmp.gt.s32.totalorder %v1012, 0
  %v1014 = vsel %vm1013, %v1012, 0
  %v1015 = vshrl.u32 %v1014, 5
  %v1016 = vand.u32 %v1014, 31
  %v1017 = vsub.s32 32, %v1016
  %v1018 = vshrl.u32 683565275, %v1017
  %v1019 = vshll.u32 683565275, %v1016
  %v1020 = vshrl.u32 2475754826, %v1017
  %v1021 = vor.u32 %v1019, %v1020
  %v1022 = vshll.u32 2475754826, %v1016
  %v1023 = vshrl.u32 2131351028, %v1017
  %v1024 = vor.u32 %v1022, %v1023
  %v1025 = vshll.u32 2131351028, %v1016
  %v1026 = vshrl.u32 2102212464, %v1017
  %v1027 = vor.u32 %v1025, %v1026
  %v1028 = vshll.u32 2102212464, %v1016
  %v1029 = vshrl.u32 920167782, %v1017
  %v1030 = vor.u32 %v1028, %v1029
  %v1031 = vshll.u32 920167782, %v1016
  %v1032 = vshrl.u32 1326507024, %v1017
  %v1033 = vor.u32 %v1031, %v1032
  %vm1034 = vcmp.lt.s32.totalorder %v1015, 1
  %vm1035 = vcmp.lt.s32.totalorder %v1015, 2
  %vm1036 = vcmp.lt.s32.totalorder %v1015, 3
  %vm1037 = vcmp.lt.s32.totalorder %v1015, 4
  %v1038 = vsel %vm1034, %v1018, %v1021
  %v1039 = vsel %vm1037, %v1027, 2102212464
  %v1040 = vsel %vm1036, %v1024, %v1039
  %v1041 = vsel %vm1035, %v1038, %v1040
  %v1042 = vsel %vm1034, %v1021, %v1024
  %v1043 = vsel %vm1037, %v1030, 920167782
  %v1044 = vsel %vm1036, %v1027, %v1043
  %v1045 = vsel %vm1035, %v1042, %v1044
  %v1046 = vsel %vm1034, %v1024, %v1027
  %v1047 = vsel %vm1037, %v1033, 1326507024
  %v1048 = vsel %vm1036, %v1030, %v1047
  %v1049 = vsel %vm1035, %v1046, %v1048
  %v1050 = vshll.u32 %v1010, 8
  %v1051 = vand.u32 %v1050, 65535
  %v1052 = vshrl.u32 %v1050, 16
  %v1053 = vand.u32 %v1049, 65535
  %v1054 = vshrl.u32 %v1049, 16
  %v1055 = vmul.u32 %v1051, %v1053
  %v1056 = vmul.u32 %v1051, %v1054
  %v1057 = vmul.u32 %v1052, %v1053
  %v1058 = vmul.u32 %v1052, %v1054
  %v1059 = vshll.u32 %v1056, 16
  %v1060 = vshrl.u32 %v1056, 16
  %v1061 = vshll.u32 %v1057, 16
  %v1062 = vshrl.u32 %v1057, 16
  %vm1063 = vc.u32 %v1055, %v1059
  %v1064 = vsel %vm1063, 1, 0
  %v1065 = vadd.s32 %v1055, %v1059
  %v1066 = vadd.s32 %v1058, %v1064
  %vm1067 = vc.u32 %v1065, %v1061
  %v1068 = vsel %vm1067, 1, 0
  %v1069 = vadd.s32 %v1065, %v1061
  %v1070 = vadd.s32 %v1066, %v1068
  %v1071 = vadd.s32 %v1070, %v1060
  %v1072 = vadd.s32 %v1071, %v1062
  %v1073 = vand.u32 %v1050, 65535
  %v1074 = vshrl.u32 %v1050, 16
  %v1075 = vand.u32 %v1045, 65535
  %v1076 = vshrl.u32 %v1045, 16
  %v1077 = vmul.u32 %v1073, %v1075
  %v1078 = vmul.u32 %v1073, %v1076
  %v1079 = vmul.u32 %v1074, %v1075
  %v1080 = vmul.u32 %v1074, %v1076
  %v1081 = vshll.u32 %v1078, 16
  %v1082 = vshrl.u32 %v1078, 16
  %v1083 = vshll.u32 %v1079, 16
  %v1084 = vshrl.u32 %v1079, 16
  %vm1085 = vc.u32 %v1077, %v1081
  %v1086 = vsel %vm1085, 1, 0
  %v1087 = vadd.s32 %v1077, %v1081
  %v1088 = vadd.s32 %v1080, %v1086
  %vm1089 = vc.u32 %v1087, %v1083
  %v1090 = vsel %vm1089, 1, 0
  %v1091 = vadd.s32 %v1087, %v1083
  %v1092 = vadd.s32 %v1088, %v1090
  %v1093 = vadd.s32 %v1092, %v1082
  %v1094 = vadd.s32 %v1093, %v1084
  %v1095 = vmul.u32 %v1050, %v1041
  %v1096 = vadd.s32 %v1072, %v1091
  %vm1097 = vc.u32 %v1072, %v1091
  %v1098 = vadd.s32 %v1094, 1
  %v1099 = vsel %vm1097, %v1098, %v1094
  %v1100 = vadd.s32 %v1095, %v1099
  %v1101 = vadd.s32 %v1100, 536870912
  %v1102 = vshrl.u32 %v1101, 30
  %v1103 = vshll.u32 %v1102, 30
  %v1104 = vsub.s32 %v1100, %v1103
  %vm1105 = vcmp.lt.s32.totalorder %v1104, 0
  %v1106 = vsub.s32 0, %v1104
  %v1107 = vsel %vm1105, %v1106, %v1104
  %v1108 = vclz %v1107
  %v1109 = vsub.s32 %v1108, 2
  %vm1110 = vcmp.gt.s32.totalorder 0, %v1109
  %v1111 = vsel %vm1110, 0, %v1109
  %v1112 = vsub.s32 32, %v1111
  %v1113 = vshll.u32 %v1104, %v1111
  %v1114 = vshrl.u32 %v1096, %v1112
  %v1115 = vor.u32 %v1113, %v1114
  %v1116 = vsub.s32 4294967266, %v1111
  %v1117 = vadd.s32 %v1116, 127
  %v1118 = vshll.u32 %v1117, 23
  %v1119 = vor.u32 4788187, %v1118
  %v1120 = vand.u32 2147483647, %v1119
  %v1122 = vcvt.s32.f32 %v1115
  %v1123 = vmul.f32 %v1122, %v1120
  %v1124 = vxor.u32 %v1123, 2147483648
  %v1125 = vsel %vm1004, %v1124, %v1123
  %v1126 = vsub.s32 4, %v1102
  %v1127 = vsel %vm1004, %v1126, %v1102
  %v1128 = vsel %vm1003, %v789, %v1125
  %v1129 = vsel %vm1003, 0, %v1127
  %v1130 = vmul.f32 %v1128, %v1128
  %v1131 = vmul.f32 %v1130, -0.001358992
  %v1132 = vadd.f32 %v1131, 0.041655596
  %v1133 = vmul.f32 %v1130, %v1132
  %v1134 = vadd.f32 %v1133, -0.4999988
  %v1135 = vmul.f32 %v1130, %v1134
  %v1136 = vadd.f32 1.0, %v1135
  %v1137 = vmul.f32 %v1128, %v1128
  %v1138 = vmul.f32 %v1137, -0.00019511016
  %v1139 = vadd.f32 %v1138, 0.008332121
  %v1140 = vmul.f32 %v1137, %v1139
  %v1141 = vadd.f32 %v1140, -0.16666654
  %v1142 = vmul.f32 %v1137, %v1141
  %v1143 = vadd.f32 %v1142, 1.0
  %v1144 = vmul.f32 %v1143, %v1128
  %vm1145 = vweird.f32 %v789
  %v1146 = vadd.s32 %v1129, 3
  %v1147 = vand.u32 %v1146, 3
  %vm1148 = vcmp.lt.s32.totalorder %v1147, 2
  %vm1149 = vcmp.eq.s32.totalorder %v1147, 0
  %v1150 = vxor.u32 %v1144, 2147483648
  %v1151 = vsel %vm1149, %v1136, %v1150
  %vm1152 = vcmp.eq.s32.totalorder %v1147, 2
  %v1153 = vxor.u32 %v1136, 2147483648
  %v1154 = vsel %vm1152, %v1153, %v1144
  %v1155 = vsel %vm1148, %v1151, %v1154
  %v1156 = vsel %vm1145, nan, %v1155
  %v1157 = vand.u32 2147483647, %v793
  %vm1158 = vcmp.le.f32.partialorder %v1157, 0.7853982
  %vm1159 = vcmp.lt.s32.totalorder %v793, 0
  %v1160 = vand.u32 %v793, 2139095040
  %v1161 = vshrl.u32 %v1160, 23
  %v1162 = vsub.s32 %v1161, 127
  %v1163 = vand.u32 2147483647, %v793
  %v1164 = vand.u32 %v1163, 8388607
  %v1165 = vor.u32 %v1164, 8388608
  %v1166 = vsub.s32 0, %v1165
  %v1167 = vadd.s32 %v1162, 1
  %vm1168 = vcmp.gt.s32.totalorder %v1167, 0
  %v1169 = vsel %vm1168, %v1167, 0
  %v1170 = vshrl.u32 %v1169, 5
  %v1171 = vand.u32 %v1169, 31
  %v1172 = vsub.s32 32, %v1171
  %v1173 = vshrl.u32 683565275, %v1172
  %v1174 = vshll.u32 683565275, %v1171
  %v1175 = vshrl.u32 2475754826, %v1172
  %v1176 = vor.u32 %v1174, %v1175
  %v1177 = vshll.u32 2475754826, %v1171
  %v1178 = vshrl.u32 2131351028, %v1172
  %v1179 = vor.u32 %v1177, %v1178
  %v1180 = vshll.u32 2131351028, %v1171
  %v1181 = vshrl.u32 2102212464, %v1172
  %v1182 = vor.u32 %v1180, %v1181
  %v1183 = vshll.u32 2102212464, %v1171
  %v1184 = vshrl.u32 920167782, %v1172
  %v1185 = vor.u32 %v1183, %v1184
  %v1186 = vshll.u32 920167782, %v1171
  %v1187 = vshrl.u32 1326507024, %v1172
  %v1188 = vor.u32 %v1186, %v1187
  %vm1189 = vcmp.lt.s32.totalorder %v1170, 1
  %vm1190 = vcmp.lt.s32.totalorder %v1170, 2
  %vm1191 = vcmp.lt.s32.totalorder %v1170, 3
  %vm1192 = vcmp.lt.s32.totalorder %v1170, 4
  %v1193 = vsel %vm1189, %v1173, %v1176
  %v1194 = vsel %vm1192, %v1182, 2102212464
  %v1195 = vsel %vm1191, %v1179, %v1194
  %v1196 = vsel %vm1190, %v1193, %v1195
  %v1197 = vsel %vm1189, %v1176, %v1179
  %v1198 = vsel %vm1192, %v1185, 920167782
  %v1199 = vsel %vm1191, %v1182, %v1198
  %v1200 = vsel %vm1190, %v1197, %v1199
  %v1201 = vsel %vm1189, %v1179, %v1182
  %v1202 = vsel %vm1192, %v1188, 1326507024
  %v1203 = vsel %vm1191, %v1185, %v1202
  %v1204 = vsel %vm1190, %v1201, %v1203
  %v1205 = vshll.u32 %v1165, 8
  %v1206 = vand.u32 %v1205, 65535
  %v1207 = vshrl.u32 %v1205, 16
  %v1208 = vand.u32 %v1204, 65535
  %v1209 = vshrl.u32 %v1204, 16
  %v1210 = vmul.u32 %v1206, %v1208
  %v1211 = vmul.u32 %v1206, %v1209
  %v1212 = vmul.u32 %v1207, %v1208
  %v1213 = vmul.u32 %v1207, %v1209
  %v1214 = vshll.u32 %v1211, 16
  %v1215 = vshrl.u32 %v1211, 16
  %v1216 = vshll.u32 %v1212, 16
  %v1217 = vshrl.u32 %v1212, 16
  %vm1218 = vc.u32 %v1210, %v1214
  %v1219 = vsel %vm1218, 1, 0
  %v1220 = vadd.s32 %v1210, %v1214
  %v1221 = vadd.s32 %v1213, %v1219
  %vm1222 = vc.u32 %v1220, %v1216
  %v1223 = vsel %vm1222, 1, 0
  %v1224 = vadd.s32 %v1220, %v1216
  %v1225 = vadd.s32 %v1221, %v1223
  %v1226 = vadd.s32 %v1225, %v1215
  %v1227 = vadd.s32 %v1226, %v1217
  %v1228 = vand.u32 %v1205, 65535
  %v1229 = vshrl.u32 %v1205, 16
  %v1230 = vand.u32 %v1200, 65535
  %v1231 = vshrl.u32 %v1200, 16
  %v1232 = vmul.u32 %v1228, %v1230
  %v1233 = vmul.u32 %v1228, %v1231
  %v1234 = vmul.u32 %v1229, %v1230
  %v1235 = vmul.u32 %v1229, %v1231
  %v1236 = vshll.u32 %v1233, 16
  %v1237 = vshrl.u32 %v1233, 16
  %v1238 = vshll.u32 %v1234, 16
  %v1239 = vshrl.u32 %v1234, 16
  %vm1240 = vc.u32 %v1232, %v1236
  %v1241 = vsel %vm1240, 1, 0
  %v1242 = vadd.s32 %v1232, %v1236
  %v1243 = vadd.s32 %v1235, %v1241
  %vm1244 = vc.u32 %v1242, %v1238
  %v1245 = vsel %vm1244, 1, 0
  %v1246 = vadd.s32 %v1242, %v1238
  %v1247 = vadd.s32 %v1243, %v1245
  %v1248 = vadd.s32 %v1247, %v1237
  %v1249 = vadd.s32 %v1248, %v1239
  %v1250 = vmul.u32 %v1205, %v1196
  %v1251 = vadd.s32 %v1227, %v1246
  %vm1252 = vc.u32 %v1227, %v1246
  %v1253 = vadd.s32 %v1249, 1
  %v1254 = vsel %vm1252, %v1253, %v1249
  %v1255 = vadd.s32 %v1250, %v1254
  %v1256 = vadd.s32 %v1255, 536870912
  %v1257 = vshrl.u32 %v1256, 30
  %v1258 = vshll.u32 %v1257, 30
  %v1259 = vsub.s32 %v1255, %v1258
  %vm1260 = vcmp.lt.s32.totalorder %v1259, 0
  %v1261 = vsub.s32 0, %v1259
  %v1262 = vsel %vm1260, %v1261, %v1259
  %v1263 = vclz %v1262
  %v1264 = vsub.s32 %v1263, 2
  %vm1265 = vcmp.gt.s32.totalorder 0, %v1264
  %v1266 = vsel %vm1265, 0, %v1264
  %v1267 = vsub.s32 32, %v1266
  %v1268 = vshll.u32 %v1259, %v1266
  %v1269 = vshrl.u32 %v1251, %v1267
  %v1270 = vor.u32 %v1268, %v1269
  %v1271 = vsub.s32 4294967266, %v1266
  %v1272 = vadd.s32 %v1271, 127
  %v1273 = vshll.u32 %v1272, 23
  %v1274 = vor.u32 4788187, %v1273
  %v1275 = vand.u32 2147483647, %v1274
  %v1277 = vcvt.s32.f32 %v1270
  %v1278 = vmul.f32 %v1277, %v1275
  %v1279 = vxor.u32 %v1278, 2147483648
  %v1280 = vsel %vm1159, %v1279, %v1278
  %v1281 = vsub.s32 4, %v1257
  %v1282 = vsel %vm1159, %v1281, %v1257
  %v1283 = vsel %vm1158, %v793, %v1280
  %v1284 = vsel %vm1158, 0, %v1282
  %v1285 = vmul.f32 %v1283, %v1283
  %v1286 = vmul.f32 %v1285, -0.001358992
  %v1287 = vadd.f32 %v1286, 0.041655596
  %v1288 = vmul.f32 %v1285, %v1287
  %v1289 = vadd.f32 %v1288, -0.4999988
  %v1290 = vmul.f32 %v1285, %v1289
  %v1291 = vadd.f32 1.0, %v1290
  %v1292 = vmul.f32 %v1283, %v1283
  %v1293 = vmul.f32 %v1292, -0.00019511016
  %v1294 = vadd.f32 %v1293, 0.008332121
  %v1295 = vmul.f32 %v1292, %v1294
  %v1296 = vadd.f32 %v1295, -0.16666654
  %v1297 = vmul.f32 %v1292, %v1296
  %v1298 = vadd.f32 %v1297, 1.0
  %v1299 = vmul.f32 %v1298, %v1283
  %vm1300 = vweird.f32 %v793
  %v1301 = vadd.s32 %v1284, 3
  %v1302 = vand.u32 %v1301, 3
  %vm1303 = vcmp.lt.s32.totalorder %v1302, 2
  %vm1304 = vcmp.eq.s32.totalorder %v1302, 0
  %v1305 = vxor.u32 %v1299, 2147483648
  %v1306 = vsel %vm1304, %v1291, %v1305
  %vm1307 = vcmp.eq.s32.totalorder %v1302, 2
  %v1308 = vxor.u32 %v1291, 2147483648
  %v1309 = vsel %vm1307, %v1308, %v1299
  %v1310 = vsel %vm1303, %v1306, %v1309
  %v1311 = vsel %vm1300, nan, %v1310
  %v1312 = vand.u32 2147483647, %v797
  %vm1313 = vcmp.le.f32.partialorder %v1312, 0.7853982
  %vm1314 = vcmp.lt.s32.totalorder %v797, 0
  %v1315 = vand.u32 %v797, 2139095040
  %v1316 = vshrl.u32 %v1315, 23
  %v1317 = vsub.s32 %v1316, 127
  %v1318 = vand.u32 2147483647, %v797
  %v1319 = vand.u32 %v1318, 8388607
  %v1320 = vor.u32 %v1319, 8388608
  %v1321 = vsub.s32 0, %v1320
  %v1322 = vadd.s32 %v1317, 1
  %vm1323 = vcmp.gt.s32.totalorder %v1322, 0
  %v1324 = vsel %vm1323, %v1322, 0
  %v1325 = vshrl.u32 %v1324, 5
  %v1326 = vand.u32 %v1324, 31
  %v1327 = vsub.s32 32, %v1326
  %v1328 = vshrl.u32 683565275, %v1327
  %v1329 = vshll.u32 683565275, %v1326
  %v1330 = vshrl.u32 2475754826, %v1327
  %v1331 = vor.u32 %v1329, %v1330
  %v1332 = vshll.u32 2475754826, %v1326
  %v1333 = vshrl.u32 2131351028, %v1327
  %v1334 = vor.u32 %v1332, %v1333
  %v1335 = vshll.u32 2131351028, %v1326
  %v1336 = vshrl.u32 2102212464, %v1327
  %v1337 = vor.u32 %v1335, %v1336
  %v1338 = vshll.u32 2102212464, %v1326
  %v1339 = vshrl.u32 920167782, %v1327
  %v1340 = vor.u32 %v1338, %v1339
  %v1341 = vshll.u32 920167782, %v1326
  %v1342 = vshrl.u32 1326507024, %v1327
  %v1343 = vor.u32 %v1341, %v1342
  %vm1344 = vcmp.lt.s32.totalorder %v1325, 1
  %vm1345 = vcmp.lt.s32.totalorder %v1325, 2
  %vm1346 = vcmp.lt.s32.totalorder %v1325, 3
  %vm1347 = vcmp.lt.s32.totalorder %v1325, 4
  %v1348 = vsel %vm1344, %v1328, %v1331
  %v1349 = vsel %vm1347, %v1337, 2102212464
  %v1350 = vsel %vm1346, %v1334, %v1349
  %v1351 = vsel %vm1345, %v1348, %v1350
  %v1352 = vsel %vm1344, %v1331, %v1334
  %v1353 = vsel %vm1347, %v1340, 920167782
  %v1354 = vsel %vm1346, %v1337, %v1353
  %v1355 = vsel %vm1345, %v1352, %v1354
  %v1356 = vsel %vm1344, %v1334, %v1337
  %v1357 = vsel %vm1347, %v1343, 1326507024
  %v1358 = vsel %vm1346, %v1340, %v1357
  %v1359 = vsel %vm1345, %v1356, %v1358
  %v1360 = vshll.u32 %v1320, 8
  %v1361 = vand.u32 %v1360, 65535
  %v1362 = vshrl.u32 %v1360, 16
  %v1363 = vand.u32 %v1359, 65535
  %v1364 = vshrl.u32 %v1359, 16
  %v1365 = vmul.u32 %v1361, %v1363
  %v1366 = vmul.u32 %v1361, %v1364
  %v1367 = vmul.u32 %v1362, %v1363
  %v1368 = vmul.u32 %v1362, %v1364
  %v1369 = vshll.u32 %v1366, 16
  %v1370 = vshrl.u32 %v1366, 16
  %v1371 = vshll.u32 %v1367, 16
  %v1372 = vshrl.u32 %v1367, 16
  %vm1373 = vc.u32 %v1365, %v1369
  %v1374 = vsel %vm1373, 1, 0
  %v1375 = vadd.s32 %v1365, %v1369
  %v1376 = vadd.s32 %v1368, %v1374
  %vm1377 = vc.u32 %v1375, %v1371
  %v1378 = vsel %vm1377, 1, 0
  %v1379 = vadd.s32 %v1375, %v1371
  %v1380 = vadd.s32 %v1376, %v1378
  %v1381 = vadd.s32 %v1380, %v1370
  %v1382 = vadd.s32 %v1381, %v1372
  %v1383 = vand.u32 %v1360, 65535
  %v1384 = vshrl.u32 %v1360, 16
  %v1385 = vand.u32 %v1355, 65535
  %v1386 = vshrl.u32 %v1355, 16
  %v1387 = vmul.u32 %v1383, %v1385
  %v1388 = vmul.u32 %v1383, %v1386
  %v1389 = vmul.u32 %v1384, %v1385
  %v1390 = vmul.u32 %v1384, %v1386
  %v1391 = vshll.u32 %v1388, 16
  %v1392 = vshrl.u32 %v1388, 16
  %v1393 = vshll.u32 %v1389, 16
  %v1394 = vshrl.u32 %v1389, 16
  %vm1395 = vc.u32 %v1387, %v1391
  %v1396 = vsel %vm1395, 1, 0
  %v1397 = vadd.s32 %v1387, %v1391
  %v1398 = vadd.s32 %v1390, %v1396
  %vm1399 = vc.u32 %v1397, %v1393
  %v1400 = vsel %vm1399, 1, 0
  %v1401 = vadd.s32 %v1397, %v1393
  %v1402 = vadd.s32 %v1398, %v1400
  %v1403 = vadd.s32 %v1402, %v1392
  %v1404 = vadd.s32 %v1403, %v1394
  %v1405 = vmul.u32 %v1360, %v1351
  %v1406 = vadd.s32 %v1382, %v1401
  %vm1407 = vc.u32 %v1382, %v1401
  %v1408 = vadd.s32 %v1404, 1
  %v1409 = vsel %vm1407, %v1408, %v1404
  %v1410 = vadd.s32 %v1405, %v1409
  %v1411 = vadd.s32 %v1410, 536870912
  %v1412 = vshrl.u32 %v1411, 30
  %v1413 = vshll.u32 %v1412, 30
  %v1414 = vsub.s32 %v1410, %v1413
  %vm1415 = vcmp.lt.s32.totalorder %v1414, 0
  %v1416 = vsub.s32 0, %v1414
  %v1417 = vsel %vm1415, %v1416, %v1414
  %v1418 = vclz %v1417
  %v1419 = vsub.s32 %v1418, 2
  %vm1420 = vcmp.gt.s32.totalorder 0, %v1419
  %v1421 = vsel %vm1420, 0, %v1419
  %v1422 = vsub.s32 32, %v1421
  %v1423 = vshll.u32 %v1414, %v1421
  %v1424 = vshrl.u32 %v1406, %v1422
  %v1425 = vor.u32 %v1423, %v1424
  %v1426 = vsub.s32 4294967266, %v1421
  %v1427 = vadd.s32 %v1426, 127
  %v1428 = vshll.u32 %v1427, 23
  %v1429 = vor.u32 4788187, %v1428
  %v1430 = vand.u32 2147483647, %v1429
  %v1432 = vcvt.s32.f32 %v1425
  %v1433 = vmul.f32 %v1432, %v1430
  %v1434 = vxor.u32 %v1433, 2147483648
  %v1435 = vsel %vm1314, %v1434, %v1433
  %v1436 = vsub.s32 4, %v1412
  %v1437 = vsel %vm1314, %v1436, %v1412
  %v1438 = vsel %vm1313, %v797, %v1435
  %v1439 = vsel %vm1313, 0, %v1437
  %v1440 = vmul.f32 %v1438, %v1438
  %v1441 = vmul.f32 %v1440, -0.001358992
  %v1442 = vadd.f32 %v1441, 0.041655596
  %v1443 = vmul.f32 %v1440, %v1442
  %v1444 = vadd.f32 %v1443, -0.4999988
  %v1445 = vmul.f32 %v1440, %v1444
  %v1446 = vadd.f32 1.0, %v1445
  %v1447 = vmul.f32 %v1438, %v1438
  %v1448 = vmul.f32 %v1447, -0.00019511016
  %v1449 = vadd.f32 %v1448, 0.008332121
  %v1450 = vmul.f32 %v1447, %v1449
  %v1451 = vadd.f32 %v1450, -0.16666654
  %v1452 = vmul.f32 %v1447, %v1451
  %v1453 = vadd.f32 %v1452, 1.0
  %v1454 = vmul.f32 %v1453, %v1438
  %vm1455 = vweird.f32 %v797
  %v1456 = vadd.s32 %v1439, 3
  %v1457 = vand.u32 %v1456, 3
  %vm1458 = vcmp.lt.s32.totalorder %v1457, 2
  %vm1459 = vcmp.eq.s32.totalorder %v1457, 0
  %v1460 = vxor.u32 %v1454, 2147483648
  %v1461 = vsel %vm1459, %v1446, %v1460
  %vm1462 = vcmp.eq.s32.totalorder %v1457, 2
  %v1463 = vxor.u32 %v1446, 2147483648
  %v1464 = vsel %vm1462, %v1463, %v1454
  %v1465 = vsel %vm1458, %v1461, %v1464
  %v1466 = vsel %vm1455, nan, %v1465
  %v1467 = vand.u32 2147483647, %v801
  %vm1468 = vcmp.le.f32.partialorder %v1467, 0.7853982
  %vm1469 = vcmp.lt.s32.totalorder %v801, 0
  %v1470 = vand.u32 %v801, 2139095040
  %v1471 = vshrl.u32 %v1470, 23
  %v1472 = vsub.s32 %v1471, 127
  %v1473 = vand.u32 2147483647, %v801
  %v1474 = vand.u32 %v1473, 8388607
  %v1475 = vor.u32 %v1474, 8388608
  %v1476 = vsub.s32 0, %v1475
  %v1477 = vadd.s32 %v1472, 1
  %vm1478 = vcmp.gt.s32.totalorder %v1477, 0
  %v1479 = vsel %vm1478, %v1477, 0
  %v1480 = vshrl.u32 %v1479, 5
  %v1481 = vand.u32 %v1479, 31
  %v1482 = vsub.s32 32, %v1481
  %v1483 = vshrl.u32 683565275, %v1482
  %v1484 = vshll.u32 683565275, %v1481
  %v1485 = vshrl.u32 2475754826, %v1482
  %v1486 = vor.u32 %v1484, %v1485
  %v1487 = vshll.u32 2475754826, %v1481
  %v1488 = vshrl.u32 2131351028, %v1482
  %v1489 = vor.u32 %v1487, %v1488
  %v1490 = vshll.u32 2131351028, %v1481
  %v1491 = vshrl.u32 2102212464, %v1482
  %v1492 = vor.u32 %v1490, %v1491
  %v1493 = vshll.u32 2102212464, %v1481
  %v1494 = vshrl.u32 920167782, %v1482
  %v1495 = vor.u32 %v1493, %v1494
  %v1496 = vshll.u32 920167782, %v1481
  %v1497 = vshrl.u32 1326507024, %v1482
  %v1498 = vor.u32 %v1496, %v1497
  %vm1499 = vcmp.lt.s32.totalorder %v1480, 1
  %vm1500 = vcmp.lt.s32.totalorder %v1480, 2
  %vm1501 = vcmp.lt.s32.totalorder %v1480, 3
  %vm1502 = vcmp.lt.s32.totalorder %v1480, 4
  %v1503 = vsel %vm1499, %v1483, %v1486
  %v1504 = vsel %vm1502, %v1492, 2102212464
  %v1505 = vsel %vm1501, %v1489, %v1504
  %v1506 = vsel %vm1500, %v1503, %v1505
  %v1507 = vsel %vm1499, %v1486, %v1489
  %v1508 = vsel %vm1502, %v1495, 920167782
  %v1509 = vsel %vm1501, %v1492, %v1508
  %v1510 = vsel %vm1500, %v1507, %v1509
  %v1511 = vsel %vm1499, %v1489, %v1492
  %v1512 = vsel %vm1502, %v1498, 1326507024
  %v1513 = vsel %vm1501, %v1495, %v1512
  %v1514 = vsel %vm1500, %v1511, %v1513
  %v1515 = vshll.u32 %v1475, 8
  %v1516 = vand.u32 %v1515, 65535
  %v1517 = vshrl.u32 %v1515, 16
  %v1518 = vand.u32 %v1514, 65535
  %v1519 = vshrl.u32 %v1514, 16
  %v1520 = vmul.u32 %v1516, %v1518
  %v1521 = vmul.u32 %v1516, %v1519
  %v1522 = vmul.u32 %v1517, %v1518
  %v1523 = vmul.u32 %v1517, %v1519
  %v1524 = vshll.u32 %v1521, 16
  %v1525 = vshrl.u32 %v1521, 16
  %v1526 = vshll.u32 %v1522, 16
  %v1527 = vshrl.u32 %v1522, 16
  %vm1528 = vc.u32 %v1520, %v1524
  %v1529 = vsel %vm1528, 1, 0
  %v1530 = vadd.s32 %v1520, %v1524
  %v1531 = vadd.s32 %v1523, %v1529
  %vm1532 = vc.u32 %v1530, %v1526
  %v1533 = vsel %vm1532, 1, 0
  %v1534 = vadd.s32 %v1530, %v1526
  %v1535 = vadd.s32 %v1531, %v1533
  %v1536 = vadd.s32 %v1535, %v1525
  %v1537 = vadd.s32 %v1536, %v1527
  %v1538 = vand.u32 %v1515, 65535
  %v1539 = vshrl.u32 %v1515, 16
  %v1540 = vand.u32 %v1510, 65535
  %v1541 = vshrl.u32 %v1510, 16
  %v1542 = vmul.u32 %v1538, %v1540
  %v1543 = vmul.u32 %v1538, %v1541
  %v1544 = vmul.u32 %v1539, %v1540
  %v1545 = vmul.u32 %v1539, %v1541
  %v1546 = vshll.u32 %v1543, 16
  %v1547 = vshrl.u32 %v1543, 16
  %v1548 = vshll.u32 %v1544, 16
  %v1549 = vshrl.u32 %v1544, 16
  %vm1550 = vc.u32 %v1542, %v1546
  %v1551 = vsel %vm1550, 1, 0
  %v1552 = vadd.s32 %v1542, %v1546
  %v1553 = vadd.s32 %v1545, %v1551
  %vm1554 = vc.u32 %v1552, %v1548
  %v1555 = vsel %vm1554, 1, 0
  %v1556 = vadd.s32 %v1552, %v1548
  %v1557 = vadd.s32 %v1553, %v1555
  %v1558 = vadd.s32 %v1557, %v1547
  %v1559 = vadd.s32 %v1558, %v1549
  %v1560 = vmul.u32 %v1515, %v1506
  %v1561 = vadd.s32 %v1537, %v1556
  %vm1562 = vc.u32 %v1537, %v1556
  %v1563 = vadd.s32 %v1559, 1
  %v1564 = vsel %vm1562, %v1563, %v1559
  %v1565 = vadd.s32 %v1560, %v1564
  %v1566 = vadd.s32 %v1565, 536870912
  %v1567 = vshrl.u32 %v1566, 30
  %v1568 = vshll.u32 %v1567, 30
  %v1569 = vsub.s32 %v1565, %v1568
  %vm1570 = vcmp.lt.s32.totalorder %v1569, 0
  %v1571 = vsub.s32 0, %v1569
  %v1572 = vsel %vm1570, %v1571, %v1569
  %v1573 = vclz %v1572
  %v1574 = vsub.s32 %v1573, 2
  %vm1575 = vcmp.gt.s32.totalorder 0, %v1574
  %v1576 = vsel %vm1575, 0, %v1574
  %v1577 = vsub.s32 32, %v1576
  %v1578 = vshll.u32 %v1569, %v1576
  %v1579 = vshrl.u32 %v1561, %v1577
  %v1580 = vor.u32 %v1578, %v1579
  %v1581 = vsub.s32 4294967266, %v1576
  %v1582 = vadd.s32 %v1581, 127
  %v1583 = vshll.u32 %v1582, 23
  %v1584 = vor.u32 4788187, %v1583
  %v1585 = vand.u32 2147483647, %v1584
  %v1587 = vcvt.s32.f32 %v1580
  %v1588 = vmul.f32 %v1587, %v1585
  %v1589 = vxor.u32 %v1588, 2147483648
  %v1590 = vsel %vm1469, %v1589, %v1588
  %v1591 = vsub.s32 4, %v1567
  %v1592 = vsel %vm1469, %v1591, %v1567
  %v1593 = vsel %vm1468, %v801, %v1590
  %v1594 = vsel %vm1468, 0, %v1592
  %v1595 = vmul.f32 %v1593, %v1593
  %v1596 = vmul.f32 %v1595, -0.001358992
  %v1597 = vadd.f32 %v1596, 0.041655596
  %v1598 = vmul.f32 %v1595, %v1597
  %v1599 = vadd.f32 %v1598, -0.4999988
  %v1600 = vmul.f32 %v1595, %v1599
  %v1601 = vadd.f32 1.0, %v1600
  %v1602 = vmul.f32 %v1593, %v1593
  %v1603 = vmul.f32 %v1602, -0.00019511016
  %v1604 = vadd.f32 %v1603, 0.008332121
  %v1605 = vmul.f32 %v1602, %v1604
  %v1606 = vadd.f32 %v1605, -0.16666654
  %v1607 = vmul.f32 %v1602, %v1606
  %v1608 = vadd.f32 %v1607, 1.0
  %v1609 = vmul.f32 %v1608, %v1593
  %vm1610 = vweird.f32 %v801
  %v1611 = vadd.s32 %v1594, 3
  %v1612 = vand.u32 %v1611, 3
  %vm1613 = vcmp.lt.s32.totalorder %v1612, 2
  %vm1614 = vcmp.eq.s32.totalorder %v1612, 0
  %v1615 = vxor.u32 %v1609, 2147483648
  %v1616 = vsel %vm1614, %v1601, %v1615
  %vm1617 = vcmp.eq.s32.totalorder %v1612, 2
  %v1618 = vxor.u32 %v1601, 2147483648
  %v1619 = vsel %vm1617, %v1618, %v1609
  %v1620 = vsel %vm1613, %v1616, %v1619
  %v1621 = vsel %vm1610, nan, %v1620
  %v1622 = vand.u32 2147483647, %v805
  %vm1623 = vcmp.le.f32.partialorder %v1622, 0.7853982
  %vm1624 = vcmp.lt.s32.totalorder %v805, 0
  %v1625 = vand.u32 %v805, 2139095040
  %v1626 = vshrl.u32 %v1625, 23
  %v1627 = vsub.s32 %v1626, 127
  %v1628 = vand.u32 2147483647, %v805
  %v1629 = vand.u32 %v1628, 8388607
  %v1630 = vor.u32 %v1629, 8388608
  %v1631 = vsub.s32 0, %v1630
  %v1632 = vadd.s32 %v1627, 1
  %vm1633 = vcmp.gt.s32.totalorder %v1632, 0
  %v1634 = vsel %vm1633, %v1632, 0
  %v1635 = vshrl.u32 %v1634, 5
  %v1636 = vand.u32 %v1634, 31
  %v1637 = vsub.s32 32, %v1636
  %v1638 = vshrl.u32 683565275, %v1637
  %v1639 = vshll.u32 683565275, %v1636
  %v1640 = vshrl.u32 2475754826, %v1637
  %v1641 = vor.u32 %v1639, %v1640
  %v1642 = vshll.u32 2475754826, %v1636
  %v1643 = vshrl.u32 2131351028, %v1637
  %v1644 = vor.u32 %v1642, %v1643
  %v1645 = vshll.u32 2131351028, %v1636
  %v1646 = vshrl.u32 2102212464, %v1637
  %v1647 = vor.u32 %v1645, %v1646
  %v1648 = vshll.u32 2102212464, %v1636
  %v1649 = vshrl.u32 920167782, %v1637
  %v1650 = vor.u32 %v1648, %v1649
  %v1651 = vshll.u32 920167782, %v1636
  %v1652 = vshrl.u32 1326507024, %v1637
  %v1653 = vor.u32 %v1651, %v1652
  %vm1654 = vcmp.lt.s32.totalorder %v1635, 1
  %vm1655 = vcmp.lt.s32.totalorder %v1635, 2
  %vm1656 = vcmp.lt.s32.totalorder %v1635, 3
  %vm1657 = vcmp.lt.s32.totalorder %v1635, 4
  %v1658 = vsel %vm1654, %v1638, %v1641
  %v1659 = vsel %vm1657, %v1647, 2102212464
  %v1660 = vsel %vm1656, %v1644, %v1659
  %v1661 = vsel %vm1655, %v1658, %v1660
  %v1662 = vsel %vm1654, %v1641, %v1644
  %v1663 = vsel %vm1657, %v1650, 920167782
  %v1664 = vsel %vm1656, %v1647, %v1663
  %v1665 = vsel %vm1655, %v1662, %v1664
  %v1666 = vsel %vm1654, %v1644, %v1647
  %v1667 = vsel %vm1657, %v1653, 1326507024
  %v1668 = vsel %vm1656, %v1650, %v1667
  %v1669 = vsel %vm1655, %v1666, %v1668
  %v1670 = vshll.u32 %v1630, 8
  %v1671 = vand.u32 %v1670, 65535
  %v1672 = vshrl.u32 %v1670, 16
  %v1673 = vand.u32 %v1669, 65535
  %v1674 = vshrl.u32 %v1669, 16
  %v1675 = vmul.u32 %v1671, %v1673
  %v1676 = vmul.u32 %v1671, %v1674
  %v1677 = vmul.u32 %v1672, %v1673
  %v1678 = vmul.u32 %v1672, %v1674
  %v1679 = vshll.u32 %v1676, 16
  %v1680 = vshrl.u32 %v1676, 16
  %v1681 = vshll.u32 %v1677, 16
  %v1682 = vshrl.u32 %v1677, 16
  %vm1683 = vc.u32 %v1675, %v1679
  %v1684 = vsel %vm1683, 1, 0
  %v1685 = vadd.s32 %v1675, %v1679
  %v1686 = vadd.s32 %v1678, %v1684
  %vm1687 = vc.u32 %v1685, %v1681
  %v1688 = vsel %vm1687, 1, 0
  %v1689 = vadd.s32 %v1685, %v1681
  %v1690 = vadd.s32 %v1686, %v1688
  %v1691 = vadd.s32 %v1690, %v1680
  %v1692 = vadd.s32 %v1691, %v1682
  %v1693 = vand.u32 %v1670, 65535
  %v1694 = vshrl.u32 %v1670, 16
  %v1695 = vand.u32 %v1665, 65535
  %v1696 = vshrl.u32 %v1665, 16
  %v1697 = vmul.u32 %v1693, %v1695
  %v1698 = vmul.u32 %v1693, %v1696
  %v1699 = vmul.u32 %v1694, %v1695
  %v1700 = vmul.u32 %v1694, %v1696
  %v1701 = vshll.u32 %v1698, 16
  %v1702 = vshrl.u32 %v1698, 16
  %v1703 = vshll.u32 %v1699, 16
  %v1704 = vshrl.u32 %v1699, 16
  %vm1705 = vc.u32 %v1697, %v1701
  %v1706 = vsel %vm1705, 1, 0
  %v1707 = vadd.s32 %v1697, %v1701
  %v1708 = vadd.s32 %v1700, %v1706
  %vm1709 = vc.u32 %v1707, %v1703
  %v1710 = vsel %vm1709, 1, 0
  %v1711 = vadd.s32 %v1707, %v1703
  %v1712 = vadd.s32 %v1708, %v1710
  %v1713 = vadd.s32 %v1712, %v1702
  %v1714 = vadd.s32 %v1713, %v1704
  %v1715 = vmul.u32 %v1670, %v1661
  %v1716 = vadd.s32 %v1692, %v1711
  %vm1717 = vc.u32 %v1692, %v1711
  %v1718 = vadd.s32 %v1714, 1
  %v1719 = vsel %vm1717, %v1718, %v1714
  %v1720 = vadd.s32 %v1715, %v1719
  %v1721 = vadd.s32 %v1720, 536870912
  %v1722 = vshrl.u32 %v1721, 30
  %v1723 = vshll.u32 %v1722, 30
  %v1724 = vsub.s32 %v1720, %v1723
  %vm1725 = vcmp.lt.s32.totalorder %v1724, 0
  %v1726 = vsub.s32 0, %v1724
  %v1727 = vsel %vm1725, %v1726, %v1724
  %v1728 = vclz %v1727
  %v1729 = vsub.s32 %v1728, 2
  %vm1730 = vcmp.gt.s32.totalorder 0, %v1729
  %v1731 = vsel %vm1730, 0, %v1729
  %v1732 = vsub.s32 32, %v1731
  %v1733 = vshll.u32 %v1724, %v1731
  %v1734 = vshrl.u32 %v1716, %v1732
  %v1735 = vor.u32 %v1733, %v1734
  %v1736 = vsub.s32 4294967266, %v1731
  %v1737 = vadd.s32 %v1736, 127
  %v1738 = vshll.u32 %v1737, 23
  %v1739 = vor.u32 4788187, %v1738
  %v1740 = vand.u32 2147483647, %v1739
  %v1742 = vcvt.s32.f32 %v1735
  %v1743 = vmul.f32 %v1742, %v1740
  %v1744 = vxor.u32 %v1743, 2147483648
  %v1745 = vsel %vm1624, %v1744, %v1743
  %v1746 = vsub.s32 4, %v1722
  %v1747 = vsel %vm1624, %v1746, %v1722
  %v1748 = vsel %vm1623, %v805, %v1745
  %v1749 = vsel %vm1623, 0, %v1747
  %v1750 = vmul.f32 %v1748, %v1748
  %v1751 = vmul.f32 %v1750, -0.001358992
  %v1752 = vadd.f32 %v1751, 0.041655596
  %v1753 = vmul.f32 %v1750, %v1752
  %v1754 = vadd.f32 %v1753, -0.4999988
  %v1755 = vmul.f32 %v1750, %v1754
  %v1756 = vadd.f32 1.0, %v1755
  %v1757 = vmul.f32 %v1748, %v1748
  %v1758 = vmul.f32 %v1757, -0.00019511016
  %v1759 = vadd.f32 %v1758, 0.008332121
  %v1760 = vmul.f32 %v1757, %v1759
  %v1761 = vadd.f32 %v1760, -0.16666654
  %v1762 = vmul.f32 %v1757, %v1761
  %v1763 = vadd.f32 %v1762, 1.0
  %v1764 = vmul.f32 %v1763, %v1748
  %vm1765 = vweird.f32 %v805
  %v1766 = vadd.s32 %v1749, 3
  %v1767 = vand.u32 %v1766, 3
  %vm1768 = vcmp.lt.s32.totalorder %v1767, 2
  %vm1769 = vcmp.eq.s32.totalorder %v1767, 0
  %v1770 = vxor.u32 %v1764, 2147483648
  %v1771 = vsel %vm1769, %v1756, %v1770
  %vm1772 = vcmp.eq.s32.totalorder %v1767, 2
  %v1773 = vxor.u32 %v1756, 2147483648
  %v1774 = vsel %vm1772, %v1773, %v1764
  %v1775 = vsel %vm1768, %v1771, %v1774
  %v1776 = vsel %vm1765, nan, %v1775
  %v1777 = vand.u32 2147483647, %v809
  %vm1778 = vcmp.le.f32.partialorder %v1777, 0.7853982
  %vm1779 = vcmp.lt.s32.totalorder %v809, 0
  %v1780 = vand.u32 %v809, 2139095040
  %v1781 = vshrl.u32 %v1780, 23
  %v1782 = vsub.s32 %v1781, 127
  %v1783 = vand.u32 2147483647, %v809
  %v1784 = vand.u32 %v1783, 8388607
  %v1785 = vor.u32 %v1784, 8388608
  %v1786 = vsub.s32 0, %v1785
  %v1787 = vadd.s32 %v1782, 1
  %vm1788 = vcmp.gt.s32.totalorder %v1787, 0
  %v1789 = vsel %vm1788, %v1787, 0
  %v1790 = vshrl.u32 %v1789, 5
  %v1791 = vand.u32 %v1789, 31
  %v1792 = vsub.s32 32, %v1791
  %v1793 = vshrl.u32 683565275, %v1792
  %v1794 = vshll.u32 683565275, %v1791
  %v1795 = vshrl.u32 2475754826, %v1792
  %v1796 = vor.u32 %v1794, %v1795
  %v1797 = vshll.u32 2475754826, %v1791
  %v1798 = vshrl.u32 2131351028, %v1792
  %v1799 = vor.u32 %v1797, %v1798
  %v1800 = vshll.u32 2131351028, %v1791
  %v1801 = vshrl.u32 2102212464, %v1792
  %v1802 = vor.u32 %v1800, %v1801
  %v1803 = vshll.u32 2102212464, %v1791
  %v1804 = vshrl.u32 920167782, %v1792
  %v1805 = vor.u32 %v1803, %v1804
  %v1806 = vshll.u32 920167782, %v1791
  %v1807 = vshrl.u32 1326507024, %v1792
  %v1808 = vor.u32 %v1806, %v1807
  %vm1809 = vcmp.lt.s32.totalorder %v1790, 1
  %vm1810 = vcmp.lt.s32.totalorder %v1790, 2
  %vm1811 = vcmp.lt.s32.totalorder %v1790, 3
  %vm1812 = vcmp.lt.s32.totalorder %v1790, 4
  %v1813 = vsel %vm1809, %v1793, %v1796
  %v1814 = vsel %vm1812, %v1802, 2102212464
  %v1815 = vsel %vm1811, %v1799, %v1814
  %v1816 = vsel %vm1810, %v1813, %v1815
  %v1817 = vsel %vm1809, %v1796, %v1799
  %v1818 = vsel %vm1812, %v1805, 920167782
  %v1819 = vsel %vm1811, %v1802, %v1818
  %v1820 = vsel %vm1810, %v1817, %v1819
  %v1821 = vsel %vm1809, %v1799, %v1802
  %v1822 = vsel %vm1812, %v1808, 1326507024
  %v1823 = vsel %vm1811, %v1805, %v1822
  %v1824 = vsel %vm1810, %v1821, %v1823
  %v1825 = vshll.u32 %v1785, 8
  %v1826 = vand.u32 %v1825, 65535
  %v1827 = vshrl.u32 %v1825, 16
  %v1828 = vand.u32 %v1824, 65535
  %v1829 = vshrl.u32 %v1824, 16
  %v1830 = vmul.u32 %v1826, %v1828
  %v1831 = vmul.u32 %v1826, %v1829
  %v1832 = vmul.u32 %v1827, %v1828
  %v1833 = vmul.u32 %v1827, %v1829
  %v1834 = vshll.u32 %v1831, 16
  %v1835 = vshrl.u32 %v1831, 16
  %v1836 = vshll.u32 %v1832, 16
  %v1837 = vshrl.u32 %v1832, 16
  %vm1838 = vc.u32 %v1830, %v1834
  %v1839 = vsel %vm1838, 1, 0
  %v1840 = vadd.s32 %v1830, %v1834
  %v1841 = vadd.s32 %v1833, %v1839
  %vm1842 = vc.u32 %v1840, %v1836
  %v1843 = vsel %vm1842, 1, 0
  %v1844 = vadd.s32 %v1840, %v1836
  %v1845 = vadd.s32 %v1841, %v1843
  %v1846 = vadd.s32 %v1845, %v1835
  %v1847 = vadd.s32 %v1846, %v1837
  %v1848 = vand.u32 %v1825, 65535
  %v1849 = vshrl.u32 %v1825, 16
  %v1850 = vand.u32 %v1820, 65535
  %v1851 = vshrl.u32 %v1820, 16
  %v1852 = vmul.u32 %v1848, %v1850
  %v1853 = vmul.u32 %v1848, %v1851
  %v1854 = vmul.u32 %v1849, %v1850
  %v1855 = vmul.u32 %v1849, %v1851
  %v1856 = vshll.u32 %v1853, 16
  %v1857 = vshrl.u32 %v1853, 16
  %v1858 = vshll.u32 %v1854, 16
  %v1859 = vshrl.u32 %v1854, 16
  %vm1860 = vc.u32 %v1852, %v1856
  %v1861 = vsel %vm1860, 1, 0
  %v1862 = vadd.s32 %v1852, %v1856
  %v1863 = vadd.s32 %v1855, %v1861
  %vm1864 = vc.u32 %v1862, %v1858
  %v1865 = vsel %vm1864, 1, 0
  %v1866 = vadd.s32 %v1862, %v1858
  %v1867 = vadd.s32 %v1863, %v1865
  %v1868 = vadd.s32 %v1867, %v1857
  %v1869 = vadd.s32 %v1868, %v1859
  %v1870 = vmul.u32 %v1825, %v1816
  %v1871 = vadd.s32 %v1847, %v1866
  %vm1872 = vc.u32 %v1847, %v1866
  %v1873 = vadd.s32 %v1869, 1
  %v1874 = vsel %vm1872, %v1873, %v1869
  %v1875 = vadd.s32 %v1870, %v1874
  %v1876 = vadd.s32 %v1875, 536870912
  %v1877 = vshrl.u32 %v1876, 30
  %v1878 = vshll.u32 %v1877, 30
  %v1879 = vsub.s32 %v1875, %v1878
  %vm1880 = vcmp.lt.s32.totalorder %v1879, 0
  %v1881 = vsub.s32 0, %v1879
  %v1882 = vsel %vm1880, %v1881, %v1879
  %v1883 = vclz %v1882
  %v1884 = vsub.s32 %v1883, 2
  %vm1885 = vcmp.gt.s32.totalorder 0, %v1884
  %v1886 = vsel %vm1885, 0, %v1884
  %v1887 = vsub.s32 32, %v1886
  %v1888 = vshll.u32 %v1879, %v1886
  %v1889 = vshrl.u32 %v1871, %v1887
  %v1890 = vor.u32 %v1888, %v1889
  %v1891 = vsub.s32 4294967266, %v1886
  %v1892 = vadd.s32 %v1891, 127
  %v1893 = vshll.u32 %v1892, 23
  %v1894 = vor.u32 4788187, %v1893
  %v1895 = vand.u32 2147483647, %v1894
  %v1897 = vcvt.s32.f32 %v1890
  %v1898 = vmul.f32 %v1897, %v1895
  %v1899 = vxor.u32 %v1898, 2147483648
  %v1900 = vsel %vm1779, %v1899, %v1898
  %v1901 = vsub.s32 4, %v1877
  %v1902 = vsel %vm1779, %v1901, %v1877
  %v1903 = vsel %vm1778, %v809, %v1900
  %v1904 = vsel %vm1778, 0, %v1902
  %v1905 = vmul.f32 %v1903, %v1903
  %v1906 = vmul.f32 %v1905, -0.001358992
  %v1907 = vadd.f32 %v1906, 0.041655596
  %v1908 = vmul.f32 %v1905, %v1907
  %v1909 = vadd.f32 %v1908, -0.4999988
  %v1910 = vmul.f32 %v1905, %v1909
  %v1911 = vadd.f32 1.0, %v1910
  %v1912 = vmul.f32 %v1903, %v1903
  %v1913 = vmul.f32 %v1912, -0.00019511016
  %v1914 = vadd.f32 %v1913, 0.008332121
  %v1915 = vmul.f32 %v1912, %v1914
  %v1916 = vadd.f32 %v1915, -0.16666654
  %v1917 = vmul.f32 %v1912, %v1916
  %v1918 = vadd.f32 %v1917, 1.0
  %v1919 = vmul.f32 %v1918, %v1903
  %vm1920 = vweird.f32 %v809
  %v1921 = vadd.s32 %v1904, 3
  %v1922 = vand.u32 %v1921, 3
  %vm1923 = vcmp.lt.s32.totalorder %v1922, 2
  %vm1924 = vcmp.eq.s32.totalorder %v1922, 0
  %v1925 = vxor.u32 %v1919, 2147483648
  %v1926 = vsel %vm1924, %v1911, %v1925
  %vm1927 = vcmp.eq.s32.totalorder %v1922, 2
  %v1928 = vxor.u32 %v1911, 2147483648
  %v1929 = vsel %vm1927, %v1928, %v1919
  %v1930 = vsel %vm1923, %v1926, %v1929
  %v1931 = vsel %vm1920, nan, %v1930
  %v1932 = vand.u32 2147483647, %v813
  %vm1933 = vcmp.le.f32.partialorder %v1932, 0.7853982
  %vm1934 = vcmp.lt.s32.totalorder %v813, 0
  %v1935 = vand.u32 %v813, 2139095040
  %v1936 = vshrl.u32 %v1935, 23
  %v1937 = vsub.s32 %v1936, 127
  %v1938 = vand.u32 2147483647, %v813
  %v1939 = vand.u32 %v1938, 8388607
  %v1940 = vor.u32 %v1939, 8388608
  %v1941 = vsub.s32 0, %v1940
  %v1942 = vadd.s32 %v1937, 1
  %vm1943 = vcmp.gt.s32.totalorder %v1942, 0
  %v1944 = vsel %vm1943, %v1942, 0
  %v1945 = vshrl.u32 %v1944, 5
  %v1946 = vand.u32 %v1944, 31
  %v1947 = vsub.s32 32, %v1946
  %v1948 = vshrl.u32 683565275, %v1947
  %v1949 = vshll.u32 683565275, %v1946
  %v1950 = vshrl.u32 2475754826, %v1947
  %v1951 = vor.u32 %v1949, %v1950
  %v1952 = vshll.u32 2475754826, %v1946
  %v1953 = vshrl.u32 2131351028, %v1947
  %v1954 = vor.u32 %v1952, %v1953
  %v1955 = vshll.u32 2131351028, %v1946
  %v1956 = vshrl.u32 2102212464, %v1947
  %v1957 = vor.u32 %v1955, %v1956
  %v1958 = vshll.u32 2102212464, %v1946
  %v1959 = vshrl.u32 920167782, %v1947
  %v1960 = vor.u32 %v1958, %v1959
  %v1961 = vshll.u32 920167782, %v1946
  %v1962 = vshrl.u32 1326507024, %v1947
  %v1963 = vor.u32 %v1961, %v1962
  %vm1964 = vcmp.lt.s32.totalorder %v1945, 1
  %vm1965 = vcmp.lt.s32.totalorder %v1945, 2
  %vm1966 = vcmp.lt.s32.totalorder %v1945, 3
  %vm1967 = vcmp.lt.s32.totalorder %v1945, 4
  %v1968 = vsel %vm1964, %v1948, %v1951
  %v1969 = vsel %vm1967, %v1957, 2102212464
  %v1970 = vsel %vm1966, %v1954, %v1969
  %v1971 = vsel %vm1965, %v1968, %v1970
  %v1972 = vsel %vm1964, %v1951, %v1954
  %v1973 = vsel %vm1967, %v1960, 920167782
  %v1974 = vsel %vm1966, %v1957, %v1973
  %v1975 = vsel %vm1965, %v1972, %v1974
  %v1976 = vsel %vm1964, %v1954, %v1957
  %v1977 = vsel %vm1967, %v1963, 1326507024
  %v1978 = vsel %vm1966, %v1960, %v1977
  %v1979 = vsel %vm1965, %v1976, %v1978
  %v1980 = vshll.u32 %v1940, 8
  %v1981 = vand.u32 %v1980, 65535
  %v1982 = vshrl.u32 %v1980, 16
  %v1983 = vand.u32 %v1979, 65535
  %v1984 = vshrl.u32 %v1979, 16
  %v1985 = vmul.u32 %v1981, %v1983
  %v1986 = vmul.u32 %v1981, %v1984
  %v1987 = vmul.u32 %v1982, %v1983
  %v1988 = vmul.u32 %v1982, %v1984
  %v1989 = vshll.u32 %v1986, 16
  %v1990 = vshrl.u32 %v1986, 16
  %v1991 = vshll.u32 %v1987, 16
  %v1992 = vshrl.u32 %v1987, 16
  %vm1993 = vc.u32 %v1985, %v1989
  %v1994 = vsel %vm1993, 1, 0
  %v1995 = vadd.s32 %v1985, %v1989
  %v1996 = vadd.s32 %v1988, %v1994
  %vm1997 = vc.u32 %v1995, %v1991
  %v1998 = vsel %vm1997, 1, 0
  %v1999 = vadd.s32 %v1995, %v1991
  %v2000 = vadd.s32 %v1996, %v1998
  %v2001 = vadd.s32 %v2000, %v1990
  %v2002 = vadd.s32 %v2001, %v1992
  %v2003 = vand.u32 %v1980, 65535
  %v2004 = vshrl.u32 %v1980, 16
  %v2005 = vand.u32 %v1975, 65535
  %v2006 = vshrl.u32 %v1975, 16
  %v2007 = vmul.u32 %v2003, %v2005
  %v2008 = vmul.u32 %v2003, %v2006
  %v2009 = vmul.u32 %v2004, %v2005
  %v2010 = vmul.u32 %v2004, %v2006
  %v2011 = vshll.u32 %v2008, 16
  %v2012 = vshrl.u32 %v2008, 16
  %v2013 = vshll.u32 %v2009, 16
  %v2014 = vshrl.u32 %v2009, 16
  %vm2015 = vc.u32 %v2007, %v2011
  %v2016 = vsel %vm2015, 1, 0
  %v2017 = vadd.s32 %v2007, %v2011
  %v2018 = vadd.s32 %v2010, %v2016
  %vm2019 = vc.u32 %v2017, %v2013
  %v2020 = vsel %vm2019, 1, 0
  %v2021 = vadd.s32 %v2017, %v2013
  %v2022 = vadd.s32 %v2018, %v2020
  %v2023 = vadd.s32 %v2022, %v2012
  %v2024 = vadd.s32 %v2023, %v2014
  %v2025 = vmul.u32 %v1980, %v1971
  %v2026 = vadd.s32 %v2002, %v2021
  %vm2027 = vc.u32 %v2002, %v2021
  %v2028 = vadd.s32 %v2024, 1
  %v2029 = vsel %vm2027, %v2028, %v2024
  %v2030 = vadd.s32 %v2025, %v2029
  %v2031 = vadd.s32 %v2030, 536870912
  %v2032 = vshrl.u32 %v2031, 30
  %v2033 = vshll.u32 %v2032, 30
  %v2034 = vsub.s32 %v2030, %v2033
  %vm2035 = vcmp.lt.s32.totalorder %v2034, 0
  %v2036 = vsub.s32 0, %v2034
  %v2037 = vsel %vm2035, %v2036, %v2034
  %v2038 = vclz %v2037
  %v2039 = vsub.s32 %v2038, 2
  %vm2040 = vcmp.gt.s32.totalorder 0, %v2039
  %v2041 = vsel %vm2040, 0, %v2039
  %v2042 = vsub.s32 32, %v2041
  %v2043 = vshll.u32 %v2034, %v2041
  %v2044 = vshrl.u32 %v2026, %v2042
  %v2045 = vor.u32 %v2043, %v2044
  %v2046 = vsub.s32 4294967266, %v2041
  %v2047 = vadd.s32 %v2046, 127
  %v2048 = vshll.u32 %v2047, 23
  %v2049 = vor.u32 4788187, %v2048
  %v2050 = vand.u32 2147483647, %v2049
  %v2052 = vcvt.s32.f32 %v2045
  %v2053 = vmul.f32 %v2052, %v2050
  %v2054 = vxor.u32 %v2053, 2147483648
  %v2055 = vsel %vm1934, %v2054, %v2053
  %v2056 = vsub.s32 4, %v2032
  %v2057 = vsel %vm1934, %v2056, %v2032
  %v2058 = vsel %vm1933, %v813, %v2055
  %v2059 = vsel %vm1933, 0, %v2057
  %v2060 = vmul.f32 %v2058, %v2058
  %v2061 = vmul.f32 %v2060, -0.001358992
  %v2062 = vadd.f32 %v2061, 0.041655596
  %v2063 = vmul.f32 %v2060, %v2062
  %v2064 = vadd.f32 %v2063, -0.4999988
  %v2065 = vmul.f32 %v2060, %v2064
  %v2066 = vadd.f32 1.0, %v2065
  %v2067 = vmul.f32 %v2058, %v2058
  %v2068 = vmul.f32 %v2067, -0.00019511016
  %v2069 = vadd.f32 %v2068, 0.008332121
  %v2070 = vmul.f32 %v2067, %v2069
  %v2071 = vadd.f32 %v2070, -0.16666654
  %v2072 = vmul.f32 %v2067, %v2071
  %v2073 = vadd.f32 %v2072, 1.0
  %v2074 = vmul.f32 %v2073, %v2058
  %vm2075 = vweird.f32 %v813
  %v2076 = vadd.s32 %v2059, 3
  %v2077 = vand.u32 %v2076, 3
  %vm2078 = vcmp.lt.s32.totalorder %v2077, 2
  %vm2079 = vcmp.eq.s32.totalorder %v2077, 0
  %v2080 = vxor.u32 %v2074, 2147483648
  %v2081 = vsel %vm2079, %v2066, %v2080
  %vm2082 = vcmp.eq.s32.totalorder %v2077, 2
  %v2083 = vxor.u32 %v2066, 2147483648
  %v2084 = vsel %vm2082, %v2083, %v2074
  %v2085 = vsel %vm2078, %v2081, %v2084
  %v2086 = vsel %vm2075, nan, %v2085
  %v2087 = vand.u32 2147483647, %v817
  %vm2088 = vcmp.le.f32.partialorder %v2087, 0.7853982
  %vm2089 = vcmp.lt.s32.totalorder %v817, 0
  %v2090 = vand.u32 %v817, 2139095040
  %v2091 = vshrl.u32 %v2090, 23
  %v2092 = vsub.s32 %v2091, 127
  %v2093 = vand.u32 2147483647, %v817
  %v2094 = vand.u32 %v2093, 8388607
  %v2095 = vor.u32 %v2094, 8388608
  %v2096 = vsub.s32 0, %v2095
  %v2097 = vadd.s32 %v2092, 1
  %vm2098 = vcmp.gt.s32.totalorder %v2097, 0
  %v2099 = vsel %vm2098, %v2097, 0
  %v2100 = vshrl.u32 %v2099, 5
  %v2101 = vand.u32 %v2099, 31
  %v2102 = vsub.s32 32, %v2101
  %v2103 = vshrl.u32 683565275, %v2102
  %v2104 = vshll.u32 683565275, %v2101
  %v2105 = vshrl.u32 2475754826, %v2102
  %v2106 = vor.u32 %v2104, %v2105
  %v2107 = vshll.u32 2475754826, %v2101
  %v2108 = vshrl.u32 2131351028, %v2102
  %v2109 = vor.u32 %v2107, %v2108
  %v2110 = vshll.u32 2131351028, %v2101
  %v2111 = vshrl.u32 2102212464, %v2102
  %v2112 = vor.u32 %v2110, %v2111
  %v2113 = vshll.u32 2102212464, %v2101
  %v2114 = vshrl.u32 920167782, %v2102
  %v2115 = vor.u32 %v2113, %v2114
  %v2116 = vshll.u32 920167782, %v2101
  %v2117 = vshrl.u32 1326507024, %v2102
  %v2118 = vor.u32 %v2116, %v2117
  %vm2119 = vcmp.lt.s32.totalorder %v2100, 1
  %vm2120 = vcmp.lt.s32.totalorder %v2100, 2
  %vm2121 = vcmp.lt.s32.totalorder %v2100, 3
  %vm2122 = vcmp.lt.s32.totalorder %v2100, 4
  %v2123 = vsel %vm2119, %v2103, %v2106
  %v2124 = vsel %vm2122, %v2112, 2102212464
  %v2125 = vsel %vm2121, %v2109, %v2124
  %v2126 = vsel %vm2120, %v2123, %v2125
  %v2127 = vsel %vm2119, %v2106, %v2109
  %v2128 = vsel %vm2122, %v2115, 920167782
  %v2129 = vsel %vm2121, %v2112, %v2128
  %v2130 = vsel %vm2120, %v2127, %v2129
  %v2131 = vsel %vm2119, %v2109, %v2112
  %v2132 = vsel %vm2122, %v2118, 1326507024
  %v2133 = vsel %vm2121, %v2115, %v2132
  %v2134 = vsel %vm2120, %v2131, %v2133
  %v2135 = vshll.u32 %v2095, 8
  %v2136 = vand.u32 %v2135, 65535
  %v2137 = vshrl.u32 %v2135, 16
  %v2138 = vand.u32 %v2134, 65535
  %v2139 = vshrl.u32 %v2134, 16
  %v2140 = vmul.u32 %v2136, %v2138
  %v2141 = vmul.u32 %v2136, %v2139
  %v2142 = vmul.u32 %v2137, %v2138
  %v2143 = vmul.u32 %v2137, %v2139
  %v2144 = vshll.u32 %v2141, 16
  %v2145 = vshrl.u32 %v2141, 16
  %v2146 = vshll.u32 %v2142, 16
  %v2147 = vshrl.u32 %v2142, 16
  %vm2148 = vc.u32 %v2140, %v2144
  %v2149 = vsel %vm2148, 1, 0
  %v2150 = vadd.s32 %v2140, %v2144
  %v2151 = vadd.s32 %v2143, %v2149
  %vm2152 = vc.u32 %v2150, %v2146
  %v2153 = vsel %vm2152, 1, 0
  %v2154 = vadd.s32 %v2150, %v2146
  %v2155 = vadd.s32 %v2151, %v2153
  %v2156 = vadd.s32 %v2155, %v2145
  %v2157 = vadd.s32 %v2156, %v2147
  %v2158 = vand.u32 %v2135, 65535
  %v2159 = vshrl.u32 %v2135, 16
  %v2160 = vand.u32 %v2130, 65535
  %v2161 = vshrl.u32 %v2130, 16
  %v2162 = vmul.u32 %v2158, %v2160
  %v2163 = vmul.u32 %v2158, %v2161
  %v2164 = vmul.u32 %v2159, %v2160
  %v2165 = vmul.u32 %v2159, %v2161
  %v2166 = vshll.u32 %v2163, 16
  %v2167 = vshrl.u32 %v2163, 16
  %v2168 = vshll.u32 %v2164, 16
  %v2169 = vshrl.u32 %v2164, 16
  %vm2170 = vc.u32 %v2162, %v2166
  %v2171 = vsel %vm2170, 1, 0
  %v2172 = vadd.s32 %v2162, %v2166
  %v2173 = vadd.s32 %v2165, %v2171
  %vm2174 = vc.u32 %v2172, %v2168
  %v2175 = vsel %vm2174, 1, 0
  %v2176 = vadd.s32 %v2172, %v2168
  %v2177 = vadd.s32 %v2173, %v2175
  %v2178 = vadd.s32 %v2177, %v2167
  %v2179 = vadd.s32 %v2178, %v2169
  %v2180 = vmul.u32 %v2135, %v2126
  %v2181 = vadd.s32 %v2157, %v2176
  %vm2182 = vc.u32 %v2157, %v2176
  %v2183 = vadd.s32 %v2179, 1
  %v2184 = vsel %vm2182, %v2183, %v2179
  %v2185 = vadd.s32 %v2180, %v2184
  %v2186 = vadd.s32 %v2185, 536870912
  %v2187 = vshrl.u32 %v2186, 30
  %v2188 = vshll.u32 %v2187, 30
  %v2189 = vsub.s32 %v2185, %v2188
  %vm2190 = vcmp.lt.s32.totalorder %v2189, 0
  %v2191 = vsub.s32 0, %v2189
  %v2192 = vsel %vm2190, %v2191, %v2189
  %v2193 = vclz %v2192
  %v2194 = vsub.s32 %v2193, 2
  %vm2195 = vcmp.gt.s32.totalorder 0, %v2194
  %v2196 = vsel %vm2195, 0, %v2194
  %v2197 = vsub.s32 32, %v2196
  %v2198 = vshll.u32 %v2189, %v2196
  %v2199 = vshrl.u32 %v2181, %v2197
  %v2200 = vor.u32 %v2198, %v2199
  %v2201 = vsub.s32 4294967266, %v2196
  %v2202 = vadd.s32 %v2201, 127
  %v2203 = vshll.u32 %v2202, 23
  %v2204 = vor.u32 4788187, %v2203
  %v2205 = vand.u32 2147483647, %v2204
  %v2207 = vcvt.s32.f32 %v2200
  %v2208 = vmul.f32 %v2207, %v2205
  %v2209 = vxor.u32 %v2208, 2147483648
  %v2210 = vsel %vm2089, %v2209, %v2208
  %v2211 = vsub.s32 4, %v2187
  %v2212 = vsel %vm2089, %v2211, %v2187
  %v2213 = vsel %vm2088, %v817, %v2210
  %v2214 = vsel %vm2088, 0, %v2212
  %v2215 = vmul.f32 %v2213, %v2213
  %v2216 = vmul.f32 %v2215, -0.001358992
  %v2217 = vadd.f32 %v2216, 0.041655596
  %v2218 = vmul.f32 %v2215, %v2217
  %v2219 = vadd.f32 %v2218, -0.4999988
  %v2220 = vmul.f32 %v2215, %v2219
  %v2221 = vadd.f32 1.0, %v2220
  %v2222 = vmul.f32 %v2213, %v2213
  %v2223 = vmul.f32 %v2222, -0.00019511016
  %v2224 = vadd.f32 %v2223, 0.008332121
  %v2225 = vmul.f32 %v2222, %v2224
  %v2226 = vadd.f32 %v2225, -0.16666654
  %v2227 = vmul.f32 %v2222, %v2226
  %v2228 = vadd.f32 %v2227, 1.0
  %v2229 = vmul.f32 %v2228, %v2213
  %vm2230 = vweird.f32 %v817
  %v2231 = vadd.s32 %v2214, 3
  %v2232 = vand.u32 %v2231, 3
  %vm2233 = vcmp.lt.s32.totalorder %v2232, 2
  %vm2234 = vcmp.eq.s32.totalorder %v2232, 0
  %v2235 = vxor.u32 %v2229, 2147483648
  %v2236 = vsel %vm2234, %v2221, %v2235
  %vm2237 = vcmp.eq.s32.totalorder %v2232, 2
  %v2238 = vxor.u32 %v2221, 2147483648
  %v2239 = vsel %vm2237, %v2238, %v2229
  %v2240 = vsel %vm2233, %v2236, %v2239
  %v2241 = vsel %vm2230, nan, %v2240
  %v2242 = vand.u32 2147483647, %v821
  %vm2243 = vcmp.le.f32.partialorder %v2242, 0.7853982
  %vm2244 = vcmp.lt.s32.totalorder %v821, 0
  %v2245 = vand.u32 %v821, 2139095040
  %v2246 = vshrl.u32 %v2245, 23
  %v2247 = vsub.s32 %v2246, 127
  %v2248 = vand.u32 2147483647, %v821
  %v2249 = vand.u32 %v2248, 8388607
  %v2250 = vor.u32 %v2249, 8388608
  %v2251 = vsub.s32 0, %v2250
  %v2252 = vadd.s32 %v2247, 1
  %vm2253 = vcmp.gt.s32.totalorder %v2252, 0
  %v2254 = vsel %vm2253, %v2252, 0
  %v2255 = vshrl.u32 %v2254, 5
  %v2256 = vand.u32 %v2254, 31
  %v2257 = vsub.s32 32, %v2256
  %v2258 = vshrl.u32 683565275, %v2257
  %v2259 = vshll.u32 683565275, %v2256
  %v2260 = vshrl.u32 2475754826, %v2257
  %v2261 = vor.u32 %v2259, %v2260
  %v2262 = vshll.u32 2475754826, %v2256
  %v2263 = vshrl.u32 2131351028, %v2257
  %v2264 = vor.u32 %v2262, %v2263
  %v2265 = vshll.u32 2131351028, %v2256
  %v2266 = vshrl.u32 2102212464, %v2257
  %v2267 = vor.u32 %v2265, %v2266
  %v2268 = vshll.u32 2102212464, %v2256
  %v2269 = vshrl.u32 920167782, %v2257
  %v2270 = vor.u32 %v2268, %v2269
  %v2271 = vshll.u32 920167782, %v2256
  %v2272 = vshrl.u32 1326507024, %v2257
  %v2273 = vor.u32 %v2271, %v2272
  %vm2274 = vcmp.lt.s32.totalorder %v2255, 1
  %vm2275 = vcmp.lt.s32.totalorder %v2255, 2
  %vm2276 = vcmp.lt.s32.totalorder %v2255, 3
  %vm2277 = vcmp.lt.s32.totalorder %v2255, 4
  %v2278 = vsel %vm2274, %v2258, %v2261
  %v2279 = vsel %vm2277, %v2267, 2102212464
  %v2280 = vsel %vm2276, %v2264, %v2279
  %v2281 = vsel %vm2275, %v2278, %v2280
  %v2282 = vsel %vm2274, %v2261, %v2264
  %v2283 = vsel %vm2277, %v2270, 920167782
  %v2284 = vsel %vm2276, %v2267, %v2283
  %v2285 = vsel %vm2275, %v2282, %v2284
  %v2286 = vsel %vm2274, %v2264, %v2267
  %v2287 = vsel %vm2277, %v2273, 1326507024
  %v2288 = vsel %vm2276, %v2270, %v2287
  %v2289 = vsel %vm2275, %v2286, %v2288
  %v2290 = vshll.u32 %v2250, 8
  %v2291 = vand.u32 %v2290, 65535
  %v2292 = vshrl.u32 %v2290, 16
  %v2293 = vand.u32 %v2289, 65535
  %v2294 = vshrl.u32 %v2289, 16
  %v2295 = vmul.u32 %v2291, %v2293
  %v2296 = vmul.u32 %v2291, %v2294
  %v2297 = vmul.u32 %v2292, %v2293
  %v2298 = vmul.u32 %v2292, %v2294
  %v2299 = vshll.u32 %v2296, 16
  %v2300 = vshrl.u32 %v2296, 16
  %v2301 = vshll.u32 %v2297, 16
  %v2302 = vshrl.u32 %v2297, 16
  %vm2303 = vc.u32 %v2295, %v2299
  %v2304 = vsel %vm2303, 1, 0
  %v2305 = vadd.s32 %v2295, %v2299
  %v2306 = vadd.s32 %v2298, %v2304
  %vm2307 = vc.u32 %v2305, %v2301
  %v2308 = vsel %vm2307, 1, 0
  %v2309 = vadd.s32 %v2305, %v2301
  %v2310 = vadd.s32 %v2306, %v2308
  %v2311 = vadd.s32 %v2310, %v2300
  %v2312 = vadd.s32 %v2311, %v2302
  %v2313 = vand.u32 %v2290, 65535
  %v2314 = vshrl.u32 %v2290, 16
  %v2315 = vand.u32 %v2285, 65535
  %v2316 = vshrl.u32 %v2285, 16
  %v2317 = vmul.u32 %v2313, %v2315
  %v2318 = vmul.u32 %v2313, %v2316
  %v2319 = vmul.u32 %v2314, %v2315
  %v2320 = vmul.u32 %v2314, %v2316
  %v2321 = vshll.u32 %v2318, 16
  %v2322 = vshrl.u32 %v2318, 16
  %v2323 = vshll.u32 %v2319, 16
  %v2324 = vshrl.u32 %v2319, 16
  %vm2325 = vc.u32 %v2317, %v2321
  %v2326 = vsel %vm2325, 1, 0
  %v2327 = vadd.s32 %v2317, %v2321
  %v2328 = vadd.s32 %v2320, %v2326
  %vm2329 = vc.u32 %v2327, %v2323
  %v2330 = vsel %vm2329, 1, 0
  %v2331 = vadd.s32 %v2327, %v2323
  %v2332 = vadd.s32 %v2328, %v2330
  %v2333 = vadd.s32 %v2332, %v2322
  %v2334 = vadd.s32 %v2333, %v2324
  %v2335 = vmul.u32 %v2290, %v2281
  %v2336 = vadd.s32 %v2312, %v2331
  %vm2337 = vc.u32 %v2312, %v2331
  %v2338 = vadd.s32 %v2334, 1
  %v2339 = vsel %vm2337, %v2338, %v2334
  %v2340 = vadd.s32 %v2335, %v2339
  %v2341 = vadd.s32 %v2340, 536870912
  %v2342 = vshrl.u32 %v2341, 30
  %v2343 = vshll.u32 %v2342, 30
  %v2344 = vsub.s32 %v2340, %v2343
  %vm2345 = vcmp.lt.s32.totalorder %v2344, 0
  %v2346 = vsub.s32 0, %v2344
  %v2347 = vsel %vm2345, %v2346, %v2344
  %v2348 = vclz %v2347
  %v2349 = vsub.s32 %v2348, 2
  %vm2350 = vcmp.gt.s32.totalorder 0, %v2349
  %v2351 = vsel %vm2350, 0, %v2349
  %v2352 = vsub.s32 32, %v2351
  %v2353 = vshll.u32 %v2344, %v2351
  %v2354 = vshrl.u32 %v2336, %v2352
  %v2355 = vor.u32 %v2353, %v2354
  %v2356 = vsub.s32 4294967266, %v2351
  %v2357 = vadd.s32 %v2356, 127
  %v2358 = vshll.u32 %v2357, 23
  %v2359 = vor.u32 4788187, %v2358
  %v2360 = vand.u32 2147483647, %v2359
  %v2362 = vcvt.s32.f32 %v2355
  %v2363 = vmul.f32 %v2362, %v2360
  %v2364 = vxor.u32 %v2363, 2147483648
  %v2365 = vsel %vm2244, %v2364, %v2363
  %v2366 = vsub.s32 4, %v2342
  %v2367 = vsel %vm2244, %v2366, %v2342
  %v2368 = vsel %vm2243, %v821, %v2365
  %v2369 = vsel %vm2243, 0, %v2367
  %v2370 = vmul.f32 %v2368, %v2368
  %v2371 = vmul.f32 %v2370, -0.001358992
  %v2372 = vadd.f32 %v2371, 0.041655596
  %v2373 = vmul.f32 %v2370, %v2372
  %v2374 = vadd.f32 %v2373, -0.4999988
  %v2375 = vmul.f32 %v2370, %v2374
  %v2376 = vadd.f32 1.0, %v2375
  %v2377 = vmul.f32 %v2368, %v2368
  %v2378 = vmul.f32 %v2377, -0.00019511016
  %v2379 = vadd.f32 %v2378, 0.008332121
  %v2380 = vmul.f32 %v2377, %v2379
  %v2381 = vadd.f32 %v2380, -0.16666654
  %v2382 = vmul.f32 %v2377, %v2381
  %v2383 = vadd.f32 %v2382, 1.0
  %v2384 = vmul.f32 %v2383, %v2368
  %vm2385 = vweird.f32 %v821
  %v2386 = vadd.s32 %v2369, 3
  %v2387 = vand.u32 %v2386, 3
  %vm2388 = vcmp.lt.s32.totalorder %v2387, 2
  %vm2389 = vcmp.eq.s32.totalorder %v2387, 0
  %v2390 = vxor.u32 %v2384, 2147483648
  %v2391 = vsel %vm2389, %v2376, %v2390
  %vm2392 = vcmp.eq.s32.totalorder %v2387, 2
  %v2393 = vxor.u32 %v2376, 2147483648
  %v2394 = vsel %vm2392, %v2393, %v2384
  %v2395 = vsel %vm2388, %v2391, %v2394
  %v2396 = vsel %vm2385, nan, %v2395
  %v2397 = vand.u32 2147483647, %v825
  %vm2398 = vcmp.le.f32.partialorder %v2397, 0.7853982
  %vm2399 = vcmp.lt.s32.totalorder %v825, 0
  %v2400 = vand.u32 %v825, 2139095040
  %v2401 = vshrl.u32 %v2400, 23
  %v2402 = vsub.s32 %v2401, 127
  %v2403 = vand.u32 2147483647, %v825
  %v2404 = vand.u32 %v2403, 8388607
  %v2405 = vor.u32 %v2404, 8388608
  %v2406 = vsub.s32 0, %v2405
  %v2407 = vadd.s32 %v2402, 1
  %vm2408 = vcmp.gt.s32.totalorder %v2407, 0
  %v2409 = vsel %vm2408, %v2407, 0
  %v2410 = vshrl.u32 %v2409, 5
  %v2411 = vand.u32 %v2409, 31
  %v2412 = vsub.s32 32, %v2411
  %v2413 = vshrl.u32 683565275, %v2412
  %v2414 = vshll.u32 683565275, %v2411
  %v2415 = vshrl.u32 2475754826, %v2412
  %v2416 = vor.u32 %v2414, %v2415
  %v2417 = vshll.u32 2475754826, %v2411
  %v2418 = vshrl.u32 2131351028, %v2412
  %v2419 = vor.u32 %v2417, %v2418
  %v2420 = vshll.u32 2131351028, %v2411
  %v2421 = vshrl.u32 2102212464, %v2412
  %v2422 = vor.u32 %v2420, %v2421
  %v2423 = vshll.u32 2102212464, %v2411
  %v2424 = vshrl.u32 920167782, %v2412
  %v2425 = vor.u32 %v2423, %v2424
  %v2426 = vshll.u32 920167782, %v2411
  %v2427 = vshrl.u32 1326507024, %v2412
  %v2428 = vor.u32 %v2426, %v2427
  %vm2429 = vcmp.lt.s32.totalorder %v2410, 1
  %vm2430 = vcmp.lt.s32.totalorder %v2410, 2
  %vm2431 = vcmp.lt.s32.totalorder %v2410, 3
  %vm2432 = vcmp.lt.s32.totalorder %v2410, 4
  %v2433 = vsel %vm2429, %v2413, %v2416
  %v2434 = vsel %vm2432, %v2422, 2102212464
  %v2435 = vsel %vm2431, %v2419, %v2434
  %v2436 = vsel %vm2430, %v2433, %v2435
  %v2437 = vsel %vm2429, %v2416, %v2419
  %v2438 = vsel %vm2432, %v2425, 920167782
  %v2439 = vsel %vm2431, %v2422, %v2438
  %v2440 = vsel %vm2430, %v2437, %v2439
  %v2441 = vsel %vm2429, %v2419, %v2422
  %v2442 = vsel %vm2432, %v2428, 1326507024
  %v2443 = vsel %vm2431, %v2425, %v2442
  %v2444 = vsel %vm2430, %v2441, %v2443
  %v2445 = vshll.u32 %v2405, 8
  %v2446 = vand.u32 %v2445, 65535
  %v2447 = vshrl.u32 %v2445, 16
  %v2448 = vand.u32 %v2444, 65535
  %v2449 = vshrl.u32 %v2444, 16
  %v2450 = vmul.u32 %v2446, %v2448
  %v2451 = vmul.u32 %v2446, %v2449
  %v2452 = vmul.u32 %v2447, %v2448
  %v2453 = vmul.u32 %v2447, %v2449
  %v2454 = vshll.u32 %v2451, 16
  %v2455 = vshrl.u32 %v2451, 16
  %v2456 = vshll.u32 %v2452, 16
  %v2457 = vshrl.u32 %v2452, 16
  %vm2458 = vc.u32 %v2450, %v2454
  %v2459 = vsel %vm2458, 1, 0
  %v2460 = vadd.s32 %v2450, %v2454
  %v2461 = vadd.s32 %v2453, %v2459
  %vm2462 = vc.u32 %v2460, %v2456
  %v2463 = vsel %vm2462, 1, 0
  %v2464 = vadd.s32 %v2460, %v2456
  %v2465 = vadd.s32 %v2461, %v2463
  %v2466 = vadd.s32 %v2465, %v2455
  %v2467 = vadd.s32 %v2466, %v2457
  %v2468 = vand.u32 %v2445, 65535
  %v2469 = vshrl.u32 %v2445, 16
  %v2470 = vand.u32 %v2440, 65535
  %v2471 = vshrl.u32 %v2440, 16
  %v2472 = vmul.u32 %v2468, %v2470
  %v2473 = vmul.u32 %v2468, %v2471
  %v2474 = vmul.u32 %v2469, %v2470
  %v2475 = vmul.u32 %v2469, %v2471
  %v2476 = vshll.u32 %v2473, 16
  %v2477 = vshrl.u32 %v2473, 16
  %v2478 = vshll.u32 %v2474, 16
  %v2479 = vshrl.u32 %v2474, 16
  %vm2480 = vc.u32 %v2472, %v2476
  %v2481 = vsel %vm2480, 1, 0
  %v2482 = vadd.s32 %v2472, %v2476
  %v2483 = vadd.s32 %v2475, %v2481
  %vm2484 = vc.u32 %v2482, %v2478
  %v2485 = vsel %vm2484, 1, 0
  %v2486 = vadd.s32 %v2482, %v2478
  %v2487 = vadd.s32 %v2483, %v2485
  %v2488 = vadd.s32 %v2487, %v2477
  %v2489 = vadd.s32 %v2488, %v2479
  %v2490 = vmul.u32 %v2445, %v2436
  %v2491 = vadd.s32 %v2467, %v2486
  %vm2492 = vc.u32 %v2467, %v2486
  %v2493 = vadd.s32 %v2489, 1
  %v2494 = vsel %vm2492, %v2493, %v2489
  %v2495 = vadd.s32 %v2490, %v2494
  %v2496 = vadd.s32 %v2495, 536870912
  %v2497 = vshrl.u32 %v2496, 30
  %v2498 = vshll.u32 %v2497, 30
  %v2499 = vsub.s32 %v2495, %v2498
  %vm2500 = vcmp.lt.s32.totalorder %v2499, 0
  %v2501 = vsub.s32 0, %v2499
  %v2502 = vsel %vm2500, %v2501, %v2499
  %v2503 = vclz %v2502
  %v2504 = vsub.s32 %v2503, 2
  %vm2505 = vcmp.gt.s32.totalorder 0, %v2504
  %v2506 = vsel %vm2505, 0, %v2504
  %v2507 = vsub.s32 32, %v2506
  %v2508 = vshll.u32 %v2499, %v2506
  %v2509 = vshrl.u32 %v2491, %v2507
  %v2510 = vor.u32 %v2508, %v2509
  %v2511 = vsub.s32 4294967266, %v2506
  %v2512 = vadd.s32 %v2511, 127
  %v2513 = vshll.u32 %v2512, 23
  %v2514 = vor.u32 4788187, %v2513
  %v2515 = vand.u32 2147483647, %v2514
  %v2517 = vcvt.s32.f32 %v2510
  %v2518 = vmul.f32 %v2517, %v2515
  %v2519 = vxor.u32 %v2518, 2147483648
  %v2520 = vsel %vm2399, %v2519, %v2518
  %v2521 = vsub.s32 4, %v2497
  %v2522 = vsel %vm2399, %v2521, %v2497
  %v2523 = vsel %vm2398, %v825, %v2520
  %v2524 = vsel %vm2398, 0, %v2522
  %v2525 = vmul.f32 %v2523, %v2523
  %v2526 = vmul.f32 %v2525, -0.001358992
  %v2527 = vadd.f32 %v2526, 0.041655596
  %v2528 = vmul.f32 %v2525, %v2527
  %v2529 = vadd.f32 %v2528, -0.4999988
  %v2530 = vmul.f32 %v2525, %v2529
  %v2531 = vadd.f32 1.0, %v2530
  %v2532 = vmul.f32 %v2523, %v2523
  %v2533 = vmul.f32 %v2532, -0.00019511016
  %v2534 = vadd.f32 %v2533, 0.008332121
  %v2535 = vmul.f32 %v2532, %v2534
  %v2536 = vadd.f32 %v2535, -0.16666654
  %v2537 = vmul.f32 %v2532, %v2536
  %v2538 = vadd.f32 %v2537, 1.0
  %v2539 = vmul.f32 %v2538, %v2523
  %vm2540 = vweird.f32 %v825
  %v2541 = vadd.s32 %v2524, 3
  %v2542 = vand.u32 %v2541, 3
  %vm2543 = vcmp.lt.s32.totalorder %v2542, 2
  %vm2544 = vcmp.eq.s32.totalorder %v2542, 0
  %v2545 = vxor.u32 %v2539, 2147483648
  %v2546 = vsel %vm2544, %v2531, %v2545
  %vm2547 = vcmp.eq.s32.totalorder %v2542, 2
  %v2548 = vxor.u32 %v2531, 2147483648
  %v2549 = vsel %vm2547, %v2548, %v2539
  %v2550 = vsel %vm2543, %v2546, %v2549
  %v2551 = vsel %vm2540, nan, %v2550
  %v2552 = vand.u32 2147483647, %v829
  %vm2553 = vcmp.le.f32.partialorder %v2552, 0.7853982
  %vm2554 = vcmp.lt.s32.totalorder %v829, 0
  %v2555 = vand.u32 %v829, 2139095040
  %v2556 = vshrl.u32 %v2555, 23
  %v2557 = vsub.s32 %v2556, 127
  %v2558 = vand.u32 2147483647, %v829
  %v2559 = vand.u32 %v2558, 8388607
  %v2560 = vor.u32 %v2559, 8388608
  %v2561 = vsub.s32 0, %v2560
  %v2562 = vadd.s32 %v2557, 1
  %vm2563 = vcmp.gt.s32.totalorder %v2562, 0
  %v2564 = vsel %vm2563, %v2562, 0
  %v2565 = vshrl.u32 %v2564, 5
  %v2566 = vand.u32 %v2564, 31
  %v2567 = vsub.s32 32, %v2566
  %v2568 = vshrl.u32 683565275, %v2567
  %v2569 = vshll.u32 683565275, %v2566
  %v2570 = vshrl.u32 2475754826, %v2567
  %v2571 = vor.u32 %v2569, %v2570
  %v2572 = vshll.u32 2475754826, %v2566
  %v2573 = vshrl.u32 2131351028, %v2567
  %v2574 = vor.u32 %v2572, %v2573
  %v2575 = vshll.u32 2131351028, %v2566
  %v2576 = vshrl.u32 2102212464, %v2567
  %v2577 = vor.u32 %v2575, %v2576
  %v2578 = vshll.u32 2102212464, %v2566
  %v2579 = vshrl.u32 920167782, %v2567
  %v2580 = vor.u32 %v2578, %v2579
  %v2581 = vshll.u32 920167782, %v2566
  %v2582 = vshrl.u32 1326507024, %v2567
  %v2583 = vor.u32 %v2581, %v2582
  %vm2584 = vcmp.lt.s32.totalorder %v2565, 1
  %vm2585 = vcmp.lt.s32.totalorder %v2565, 2
  %vm2586 = vcmp.lt.s32.totalorder %v2565, 3
  %vm2587 = vcmp.lt.s32.totalorder %v2565, 4
  %v2588 = vsel %vm2584, %v2568, %v2571
  %v2589 = vsel %vm2587, %v2577, 2102212464
  %v2590 = vsel %vm2586, %v2574, %v2589
  %v2591 = vsel %vm2585, %v2588, %v2590
  %v2592 = vsel %vm2584, %v2571, %v2574
  %v2593 = vsel %vm2587, %v2580, 920167782
  %v2594 = vsel %vm2586, %v2577, %v2593
  %v2595 = vsel %vm2585, %v2592, %v2594
  %v2596 = vsel %vm2584, %v2574, %v2577
  %v2597 = vsel %vm2587, %v2583, 1326507024
  %v2598 = vsel %vm2586, %v2580, %v2597
  %v2599 = vsel %vm2585, %v2596, %v2598
  %v2600 = vshll.u32 %v2560, 8
  %v2601 = vand.u32 %v2600, 65535
  %v2602 = vshrl.u32 %v2600, 16
  %v2603 = vand.u32 %v2599, 65535
  %v2604 = vshrl.u32 %v2599, 16
  %v2605 = vmul.u32 %v2601, %v2603
  %v2606 = vmul.u32 %v2601, %v2604
  %v2607 = vmul.u32 %v2602, %v2603
  %v2608 = vmul.u32 %v2602, %v2604
  %v2609 = vshll.u32 %v2606, 16
  %v2610 = vshrl.u32 %v2606, 16
  %v2611 = vshll.u32 %v2607, 16
  %v2612 = vshrl.u32 %v2607, 16
  %vm2613 = vc.u32 %v2605, %v2609
  %v2614 = vsel %vm2613, 1, 0
  %v2615 = vadd.s32 %v2605, %v2609
  %v2616 = vadd.s32 %v2608, %v2614
  %vm2617 = vc.u32 %v2615, %v2611
  %v2618 = vsel %vm2617, 1, 0
  %v2619 = vadd.s32 %v2615, %v2611
  %v2620 = vadd.s32 %v2616, %v2618
  %v2621 = vadd.s32 %v2620, %v2610
  %v2622 = vadd.s32 %v2621, %v2612
  %v2623 = vand.u32 %v2600, 65535
  %v2624 = vshrl.u32 %v2600, 16
  %v2625 = vand.u32 %v2595, 65535
  %v2626 = vshrl.u32 %v2595, 16
  %v2627 = vmul.u32 %v2623, %v2625
  %v2628 = vmul.u32 %v2623, %v2626
  %v2629 = vmul.u32 %v2624, %v2625
  %v2630 = vmul.u32 %v2624, %v2626
  %v2631 = vshll.u32 %v2628, 16
  %v2632 = vshrl.u32 %v2628, 16
  %v2633 = vshll.u32 %v2629, 16
  %v2634 = vshrl.u32 %v2629, 16
  %vm2635 = vc.u32 %v2627, %v2631
  %v2636 = vsel %vm2635, 1, 0
  %v2637 = vadd.s32 %v2627, %v2631
  %v2638 = vadd.s32 %v2630, %v2636
  %vm2639 = vc.u32 %v2637, %v2633
  %v2640 = vsel %vm2639, 1, 0
  %v2641 = vadd.s32 %v2637, %v2633
  %v2642 = vadd.s32 %v2638, %v2640
  %v2643 = vadd.s32 %v2642, %v2632
  %v2644 = vadd.s32 %v2643, %v2634
  %v2645 = vmul.u32 %v2600, %v2591
  %v2646 = vadd.s32 %v2622, %v2641
  %vm2647 = vc.u32 %v2622, %v2641
  %v2648 = vadd.s32 %v2644, 1
  %v2649 = vsel %vm2647, %v2648, %v2644
  %v2650 = vadd.s32 %v2645, %v2649
  %v2651 = vadd.s32 %v2650, 536870912
  %v2652 = vshrl.u32 %v2651, 30
  %v2653 = vshll.u32 %v2652, 30
  %v2654 = vsub.s32 %v2650, %v2653
  %vm2655 = vcmp.lt.s32.totalorder %v2654, 0
  %v2656 = vsub.s32 0, %v2654
  %v2657 = vsel %vm2655, %v2656, %v2654
  %v2658 = vclz %v2657
  %v2659 = vsub.s32 %v2658, 2
  %vm2660 = vcmp.gt.s32.totalorder 0, %v2659
  %v2661 = vsel %vm2660, 0, %v2659
  %v2662 = vsub.s32 32, %v2661
  %v2663 = vshll.u32 %v2654, %v2661
  %v2664 = vshrl.u32 %v2646, %v2662
  %v2665 = vor.u32 %v2663, %v2664
  %v2666 = vsub.s32 4294967266, %v2661
  %v2667 = vadd.s32 %v2666, 127
  %v2668 = vshll.u32 %v2667, 23
  %v2669 = vor.u32 4788187, %v2668
  %v2670 = vand.u32 2147483647, %v2669
  %v2672 = vcvt.s32.f32 %v2665
  %v2673 = vmul.f32 %v2672, %v2670
  %v2674 = vxor.u32 %v2673, 2147483648
  %v2675 = vsel %vm2554, %v2674, %v2673
  %v2676 = vsub.s32 4, %v2652
  %v2677 = vsel %vm2554, %v2676, %v2652
  %v2678 = vsel %vm2553, %v829, %v2675
  %v2679 = vsel %vm2553, 0, %v2677
  %v2680 = vmul.f32 %v2678, %v2678
  %v2681 = vmul.f32 %v2680, -0.001358992
  %v2682 = vadd.f32 %v2681, 0.041655596
  %v2683 = vmul.f32 %v2680, %v2682
  %v2684 = vadd.f32 %v2683, -0.4999988
  %v2685 = vmul.f32 %v2680, %v2684
  %v2686 = vadd.f32 1.0, %v2685
  %v2687 = vmul.f32 %v2678, %v2678
  %v2688 = vmul.f32 %v2687, -0.00019511016
  %v2689 = vadd.f32 %v2688, 0.008332121
  %v2690 = vmul.f32 %v2687, %v2689
  %v2691 = vadd.f32 %v2690, -0.16666654
  %v2692 = vmul.f32 %v2687, %v2691
  %v2693 = vadd.f32 %v2692, 1.0
  %v2694 = vmul.f32 %v2693, %v2678
  %vm2695 = vweird.f32 %v829
  %v2696 = vadd.s32 %v2679, 3
  %v2697 = vand.u32 %v2696, 3
  %vm2698 = vcmp.lt.s32.totalorder %v2697, 2
  %vm2699 = vcmp.eq.s32.totalorder %v2697, 0
  %v2700 = vxor.u32 %v2694, 2147483648
  %v2701 = vsel %vm2699, %v2686, %v2700
  %vm2702 = vcmp.eq.s32.totalorder %v2697, 2
  %v2703 = vxor.u32 %v2686, 2147483648
  %v2704 = vsel %vm2702, %v2703, %v2694
  %v2705 = vsel %vm2698, %v2701, %v2704
  %v2706 = vsel %vm2695, nan, %v2705
  %v2707 = vand.u32 2147483647, %v833
  %vm2708 = vcmp.le.f32.partialorder %v2707, 0.7853982
  %vm2709 = vcmp.lt.s32.totalorder %v833, 0
  %v2710 = vand.u32 %v833, 2139095040
  %v2711 = vshrl.u32 %v2710, 23
  %v2712 = vsub.s32 %v2711, 127
  %v2713 = vand.u32 2147483647, %v833
  %v2714 = vand.u32 %v2713, 8388607
  %v2715 = vor.u32 %v2714, 8388608
  %v2716 = vsub.s32 0, %v2715
  %v2717 = vadd.s32 %v2712, 1
  %vm2718 = vcmp.gt.s32.totalorder %v2717, 0
  %v2719 = vsel %vm2718, %v2717, 0
  %v2720 = vshrl.u32 %v2719, 5
  %v2721 = vand.u32 %v2719, 31
  %v2722 = vsub.s32 32, %v2721
  %v2723 = vshrl.u32 683565275, %v2722
  %v2724 = vshll.u32 683565275, %v2721
  %v2725 = vshrl.u32 2475754826, %v2722
  %v2726 = vor.u32 %v2724, %v2725
  %v2727 = vshll.u32 2475754826, %v2721
  %v2728 = vshrl.u32 2131351028, %v2722
  %v2729 = vor.u32 %v2727, %v2728
  %v2730 = vshll.u32 2131351028, %v2721
  %v2731 = vshrl.u32 2102212464, %v2722
  %v2732 = vor.u32 %v2730, %v2731
  %v2733 = vshll.u32 2102212464, %v2721
  %v2734 = vshrl.u32 920167782, %v2722
  %v2735 = vor.u32 %v2733, %v2734
  %v2736 = vshll.u32 920167782, %v2721
  %v2737 = vshrl.u32 1326507024, %v2722
  %v2738 = vor.u32 %v2736, %v2737
  %vm2739 = vcmp.lt.s32.totalorder %v2720, 1
  %vm2740 = vcmp.lt.s32.totalorder %v2720, 2
  %vm2741 = vcmp.lt.s32.totalorder %v2720, 3
  %vm2742 = vcmp.lt.s32.totalorder %v2720, 4
  %v2743 = vsel %vm2739, %v2723, %v2726
  %v2744 = vsel %vm2742, %v2732, 2102212464
  %v2745 = vsel %vm2741, %v2729, %v2744
  %v2746 = vsel %vm2740, %v2743, %v2745
  %v2747 = vsel %vm2739, %v2726, %v2729
  %v2748 = vsel %vm2742, %v2735, 920167782
  %v2749 = vsel %vm2741, %v2732, %v2748
  %v2750 = vsel %vm2740, %v2747, %v2749
  %v2751 = vsel %vm2739, %v2729, %v2732
  %v2752 = vsel %vm2742, %v2738, 1326507024
  %v2753 = vsel %vm2741, %v2735, %v2752
  %v2754 = vsel %vm2740, %v2751, %v2753
  %v2755 = vshll.u32 %v2715, 8
  %v2756 = vand.u32 %v2755, 65535
  %v2757 = vshrl.u32 %v2755, 16
  %v2758 = vand.u32 %v2754, 65535
  %v2759 = vshrl.u32 %v2754, 16
  %v2760 = vmul.u32 %v2756, %v2758
  %v2761 = vmul.u32 %v2756, %v2759
  %v2762 = vmul.u32 %v2757, %v2758
  %v2763 = vmul.u32 %v2757, %v2759
  %v2764 = vshll.u32 %v2761, 16
  %v2765 = vshrl.u32 %v2761, 16
  %v2766 = vshll.u32 %v2762, 16
  %v2767 = vshrl.u32 %v2762, 16
  %vm2768 = vc.u32 %v2760, %v2764
  %v2769 = vsel %vm2768, 1, 0
  %v2770 = vadd.s32 %v2760, %v2764
  %v2771 = vadd.s32 %v2763, %v2769
  %vm2772 = vc.u32 %v2770, %v2766
  %v2773 = vsel %vm2772, 1, 0
  %v2774 = vadd.s32 %v2770, %v2766
  %v2775 = vadd.s32 %v2771, %v2773
  %v2776 = vadd.s32 %v2775, %v2765
  %v2777 = vadd.s32 %v2776, %v2767
  %v2778 = vand.u32 %v2755, 65535
  %v2779 = vshrl.u32 %v2755, 16
  %v2780 = vand.u32 %v2750, 65535
  %v2781 = vshrl.u32 %v2750, 16
  %v2782 = vmul.u32 %v2778, %v2780
  %v2783 = vmul.u32 %v2778, %v2781
  %v2784 = vmul.u32 %v2779, %v2780
  %v2785 = vmul.u32 %v2779, %v2781
  %v2786 = vshll.u32 %v2783, 16
  %v2787 = vshrl.u32 %v2783, 16
  %v2788 = vshll.u32 %v2784, 16
  %v2789 = vshrl.u32 %v2784, 16
  %vm2790 = vc.u32 %v2782, %v2786
  %v2791 = vsel %vm2790, 1, 0
  %v2792 = vadd.s32 %v2782, %v2786
  %v2793 = vadd.s32 %v2785, %v2791
  %vm2794 = vc.u32 %v2792, %v2788
  %v2795 = vsel %vm2794, 1, 0
  %v2796 = vadd.s32 %v2792, %v2788
  %v2797 = vadd.s32 %v2793, %v2795
  %v2798 = vadd.s32 %v2797, %v2787
  %v2799 = vadd.s32 %v2798, %v2789
  %v2800 = vmul.u32 %v2755, %v2746
  %v2801 = vadd.s32 %v2777, %v2796
  %vm2802 = vc.u32 %v2777, %v2796
  %v2803 = vadd.s32 %v2799, 1
  %v2804 = vsel %vm2802, %v2803, %v2799
  %v2805 = vadd.s32 %v2800, %v2804
  %v2806 = vadd.s32 %v2805, 536870912
  %v2807 = vshrl.u32 %v2806, 30
  %v2808 = vshll.u32 %v2807, 30
  %v2809 = vsub.s32 %v2805, %v2808
  %vm2810 = vcmp.lt.s32.totalorder %v2809, 0
  %v2811 = vsub.s32 0, %v2809
  %v2812 = vsel %vm2810, %v2811, %v2809
  %v2813 = vclz %v2812
  %v2814 = vsub.s32 %v2813, 2
  %vm2815 = vcmp.gt.s32.totalorder 0, %v2814
  %v2816 = vsel %vm2815, 0, %v2814
  %v2817 = vsub.s32 32, %v2816
  %v2818 = vshll.u32 %v2809, %v2816
  %v2819 = vshrl.u32 %v2801, %v2817
  %v2820 = vor.u32 %v2818, %v2819
  %v2821 = vsub.s32 4294967266, %v2816
  %v2822 = vadd.s32 %v2821, 127
  %v2823 = vshll.u32 %v2822, 23
  %v2824 = vor.u32 4788187, %v2823
  %v2825 = vand.u32 2147483647, %v2824
  %v2827 = vcvt.s32.f32 %v2820
  %v2828 = vmul.f32 %v2827, %v2825
  %v2829 = vxor.u32 %v2828, 2147483648
  %v2830 = vsel %vm2709, %v2829, %v2828
  %v2831 = vsub.s32 4, %v2807
  %v2832 = vsel %vm2709, %v2831, %v2807
  %v2833 = vsel %vm2708, %v833, %v2830
  %v2834 = vsel %vm2708, 0, %v2832
  %v2835 = vmul.f32 %v2833, %v2833
  %v2836 = vmul.f32 %v2835, -0.001358992
  %v2837 = vadd.f32 %v2836, 0.041655596
  %v2838 = vmul.f32 %v2835, %v2837
  %v2839 = vadd.f32 %v2838, -0.4999988
  %v2840 = vmul.f32 %v2835, %v2839
  %v2841 = vadd.f32 1.0, %v2840
  %v2842 = vmul.f32 %v2833, %v2833
  %v2843 = vmul.f32 %v2842, -0.00019511016
  %v2844 = vadd.f32 %v2843, 0.008332121
  %v2845 = vmul.f32 %v2842, %v2844
  %v2846 = vadd.f32 %v2845, -0.16666654
  %v2847 = vmul.f32 %v2842, %v2846
  %v2848 = vadd.f32 %v2847, 1.0
  %v2849 = vmul.f32 %v2848, %v2833
  %vm2850 = vweird.f32 %v833
  %v2851 = vadd.s32 %v2834, 3
  %v2852 = vand.u32 %v2851, 3
  %vm2853 = vcmp.lt.s32.totalorder %v2852, 2
  %vm2854 = vcmp.eq.s32.totalorder %v2852, 0
  %v2855 = vxor.u32 %v2849, 2147483648
  %v2856 = vsel %vm2854, %v2841, %v2855
  %vm2857 = vcmp.eq.s32.totalorder %v2852, 2
  %v2858 = vxor.u32 %v2841, 2147483648
  %v2859 = vsel %vm2857, %v2858, %v2849
  %v2860 = vsel %vm2853, %v2856, %v2859
  %v2861 = vsel %vm2850, nan, %v2860
  %v2862 = vand.u32 2147483647, %v837
  %vm2863 = vcmp.le.f32.partialorder %v2862, 0.7853982
  %vm2864 = vcmp.lt.s32.totalorder %v837, 0
  %v2865 = vand.u32 %v837, 2139095040
  %v2866 = vshrl.u32 %v2865, 23
  %v2867 = vsub.s32 %v2866, 127
  %v2868 = vand.u32 2147483647, %v837
  %v2869 = vand.u32 %v2868, 8388607
  %v2870 = vor.u32 %v2869, 8388608
  %v2871 = vsub.s32 0, %v2870
  %v2872 = vadd.s32 %v2867, 1
  %vm2873 = vcmp.gt.s32.totalorder %v2872, 0
  %v2874 = vsel %vm2873, %v2872, 0
  %v2875 = vshrl.u32 %v2874, 5
  %v2876 = vand.u32 %v2874, 31
  %v2877 = vsub.s32 32, %v2876
  %v2878 = vshrl.u32 683565275, %v2877
  %v2879 = vshll.u32 683565275, %v2876
  %v2880 = vshrl.u32 2475754826, %v2877
  %v2881 = vor.u32 %v2879, %v2880
  %v2882 = vshll.u32 2475754826, %v2876
  %v2883 = vshrl.u32 2131351028, %v2877
  %v2884 = vor.u32 %v2882, %v2883
  %v2885 = vshll.u32 2131351028, %v2876
  %v2886 = vshrl.u32 2102212464, %v2877
  %v2887 = vor.u32 %v2885, %v2886
  %v2888 = vshll.u32 2102212464, %v2876
  %v2889 = vshrl.u32 920167782, %v2877
  %v2890 = vor.u32 %v2888, %v2889
  %v2891 = vshll.u32 920167782, %v2876
  %v2892 = vshrl.u32 1326507024, %v2877
  %v2893 = vor.u32 %v2891, %v2892
  %vm2894 = vcmp.lt.s32.totalorder %v2875, 1
  %vm2895 = vcmp.lt.s32.totalorder %v2875, 2
  %vm2896 = vcmp.lt.s32.totalorder %v2875, 3
  %vm2897 = vcmp.lt.s32.totalorder %v2875, 4
  %v2898 = vsel %vm2894, %v2878, %v2881
  %v2899 = vsel %vm2897, %v2887, 2102212464
  %v2900 = vsel %vm2896, %v2884, %v2899
  %v2901 = vsel %vm2895, %v2898, %v2900
  %v2902 = vsel %vm2894, %v2881, %v2884
  %v2903 = vsel %vm2897, %v2890, 920167782
  %v2904 = vsel %vm2896, %v2887, %v2903
  %v2905 = vsel %vm2895, %v2902, %v2904
  %v2906 = vsel %vm2894, %v2884, %v2887
  %v2907 = vsel %vm2897, %v2893, 1326507024
  %v2908 = vsel %vm2896, %v2890, %v2907
  %v2909 = vsel %vm2895, %v2906, %v2908
  %v2910 = vshll.u32 %v2870, 8
  %v2911 = vand.u32 %v2910, 65535
  %v2912 = vshrl.u32 %v2910, 16
  %v2913 = vand.u32 %v2909, 65535
  %v2914 = vshrl.u32 %v2909, 16
  %v2915 = vmul.u32 %v2911, %v2913
  %v2916 = vmul.u32 %v2911, %v2914
  %v2917 = vmul.u32 %v2912, %v2913
  %v2918 = vmul.u32 %v2912, %v2914
  %v2919 = vshll.u32 %v2916, 16
  %v2920 = vshrl.u32 %v2916, 16
  %v2921 = vshll.u32 %v2917, 16
  %v2922 = vshrl.u32 %v2917, 16
  %vm2923 = vc.u32 %v2915, %v2919
  %v2924 = vsel %vm2923, 1, 0
  %v2925 = vadd.s32 %v2915, %v2919
  %v2926 = vadd.s32 %v2918, %v2924
  %vm2927 = vc.u32 %v2925, %v2921
  %v2928 = vsel %vm2927, 1, 0
  %v2929 = vadd.s32 %v2925, %v2921
  %v2930 = vadd.s32 %v2926, %v2928
  %v2931 = vadd.s32 %v2930, %v2920
  %v2932 = vadd.s32 %v2931, %v2922
  %v2933 = vand.u32 %v2910, 65535
  %v2934 = vshrl.u32 %v2910, 16
  %v2935 = vand.u32 %v2905, 65535
  %v2936 = vshrl.u32 %v2905, 16
  %v2937 = vmul.u32 %v2933, %v2935
  %v2938 = vmul.u32 %v2933, %v2936
  %v2939 = vmul.u32 %v2934, %v2935
  %v2940 = vmul.u32 %v2934, %v2936
  %v2941 = vshll.u32 %v2938, 16
  %v2942 = vshrl.u32 %v2938, 16
  %v2943 = vshll.u32 %v2939, 16
  %v2944 = vshrl.u32 %v2939, 16
  %vm2945 = vc.u32 %v2937, %v2941
  %v2946 = vsel %vm2945, 1, 0
  %v2947 = vadd.s32 %v2937, %v2941
  %v2948 = vadd.s32 %v2940, %v2946
  %vm2949 = vc.u32 %v2947, %v2943
  %v2950 = vsel %vm2949, 1, 0
  %v2951 = vadd.s32 %v2947, %v2943
  %v2952 = vadd.s32 %v2948, %v2950
  %v2953 = vadd.s32 %v2952, %v2942
  %v2954 = vadd.s32 %v2953, %v2944
  %v2955 = vmul.u32 %v2910, %v2901
  %v2956 = vadd.s32 %v2932, %v2951
  %vm2957 = vc.u32 %v2932, %v2951
  %v2958 = vadd.s32 %v2954, 1
  %v2959 = vsel %vm2957, %v2958, %v2954
  %v2960 = vadd.s32 %v2955, %v2959
  %v2961 = vadd.s32 %v2960, 536870912
  %v2962 = vshrl.u32 %v2961, 30
  %v2963 = vshll.u32 %v2962, 30
  %v2964 = vsub.s32 %v2960, %v2963
  %vm2965 = vcmp.lt.s32.totalorder %v2964, 0
  %v2966 = vsub.s32 0, %v2964
  %v2967 = vsel %vm2965, %v2966, %v2964
  %v2968 = vclz %v2967
  %v2969 = vsub.s32 %v2968, 2
  %vm2970 = vcmp.gt.s32.totalorder 0, %v2969
  %v2971 = vsel %vm2970, 0, %v2969
  %v2972 = vsub.s32 32, %v2971
  %v2973 = vshll.u32 %v2964, %v2971
  %v2974 = vshrl.u32 %v2956, %v2972
  %v2975 = vor.u32 %v2973, %v2974
  %v2976 = vsub.s32 4294967266, %v2971
  %v2977 = vadd.s32 %v2976, 127
  %v2978 = vshll.u32 %v2977, 23
  %v2979 = vor.u32 4788187, %v2978
  %v2980 = vand.u32 2147483647, %v2979
  %v2982 = vcvt.s32.f32 %v2975
  %v2983 = vmul.f32 %v2982, %v2980
  %v2984 = vxor.u32 %v2983, 2147483648
  %v2985 = vsel %vm2864, %v2984, %v2983
  %v2986 = vsub.s32 4, %v2962
  %v2987 = vsel %vm2864, %v2986, %v2962
  %v2988 = vsel %vm2863, %v837, %v2985
  %v2989 = vsel %vm2863, 0, %v2987
  %v2990 = vmul.f32 %v2988, %v2988
  %v2991 = vmul.f32 %v2990, -0.001358992
  %v2992 = vadd.f32 %v2991, 0.041655596
  %v2993 = vmul.f32 %v2990, %v2992
  %v2994 = vadd.f32 %v2993, -0.4999988
  %v2995 = vmul.f32 %v2990, %v2994
  %v2996 = vadd.f32 1.0, %v2995
  %v2997 = vmul.f32 %v2988, %v2988
  %v2998 = vmul.f32 %v2997, -0.00019511016
  %v2999 = vadd.f32 %v2998, 0.008332121
  %v3000 = vmul.f32 %v2997, %v2999
  %v3001 = vadd.f32 %v3000, -0.16666654
  %v3002 = vmul.f32 %v2997, %v3001
  %v3003 = vadd.f32 %v3002, 1.0
  %v3004 = vmul.f32 %v3003, %v2988
  %vm3005 = vweird.f32 %v837
  %v3006 = vadd.s32 %v2989, 3
  %v3007 = vand.u32 %v3006, 3
  %vm3008 = vcmp.lt.s32.totalorder %v3007, 2
  %vm3009 = vcmp.eq.s32.totalorder %v3007, 0
  %v3010 = vxor.u32 %v3004, 2147483648
  %v3011 = vsel %vm3009, %v2996, %v3010
  %vm3012 = vcmp.eq.s32.totalorder %v3007, 2
  %v3013 = vxor.u32 %v2996, 2147483648
  %v3014 = vsel %vm3012, %v3013, %v3004
  %v3015 = vsel %vm3008, %v3011, %v3014
  %v3016 = vsel %vm3005, nan, %v3015
  %v3017 = vand.u32 2147483647, %v841
  %vm3018 = vcmp.le.f32.partialorder %v3017, 0.7853982
  %vm3019 = vcmp.lt.s32.totalorder %v841, 0
  %v3020 = vand.u32 %v841, 2139095040
  %v3021 = vshrl.u32 %v3020, 23
  %v3022 = vsub.s32 %v3021, 127
  %v3023 = vand.u32 2147483647, %v841
  %v3024 = vand.u32 %v3023, 8388607
  %v3025 = vor.u32 %v3024, 8388608
  %v3026 = vsub.s32 0, %v3025
  %v3027 = vadd.s32 %v3022, 1
  %vm3028 = vcmp.gt.s32.totalorder %v3027, 0
  %v3029 = vsel %vm3028, %v3027, 0
  %v3030 = vshrl.u32 %v3029, 5
  %v3031 = vand.u32 %v3029, 31
  %v3032 = vsub.s32 32, %v3031
  %v3033 = vshrl.u32 683565275, %v3032
  %v3034 = vshll.u32 683565275, %v3031
  %v3035 = vshrl.u32 2475754826, %v3032
  %v3036 = vor.u32 %v3034, %v3035
  %v3037 = vshll.u32 2475754826, %v3031
  %v3038 = vshrl.u32 2131351028, %v3032
  %v3039 = vor.u32 %v3037, %v3038
  %v3040 = vshll.u32 2131351028, %v3031
  %v3041 = vshrl.u32 2102212464, %v3032
  %v3042 = vor.u32 %v3040, %v3041
  %v3043 = vshll.u32 2102212464, %v3031
  %v3044 = vshrl.u32 920167782, %v3032
  %v3045 = vor.u32 %v3043, %v3044
  %v3046 = vshll.u32 920167782, %v3031
  %v3047 = vshrl.u32 1326507024, %v3032
  %v3048 = vor.u32 %v3046, %v3047
  %vm3049 = vcmp.lt.s32.totalorder %v3030, 1
  %vm3050 = vcmp.lt.s32.totalorder %v3030, 2
  %vm3051 = vcmp.lt.s32.totalorder %v3030, 3
  %vm3052 = vcmp.lt.s32.totalorder %v3030, 4
  %v3053 = vsel %vm3049, %v3033, %v3036
  %v3054 = vsel %vm3052, %v3042, 2102212464
  %v3055 = vsel %vm3051, %v3039, %v3054
  %v3056 = vsel %vm3050, %v3053, %v3055
  %v3057 = vsel %vm3049, %v3036, %v3039
  %v3058 = vsel %vm3052, %v3045, 920167782
  %v3059 = vsel %vm3051, %v3042, %v3058
  %v3060 = vsel %vm3050, %v3057, %v3059
  %v3061 = vsel %vm3049, %v3039, %v3042
  %v3062 = vsel %vm3052, %v3048, 1326507024
  %v3063 = vsel %vm3051, %v3045, %v3062
  %v3064 = vsel %vm3050, %v3061, %v3063
  %v3065 = vshll.u32 %v3025, 8
  %v3066 = vand.u32 %v3065, 65535
  %v3067 = vshrl.u32 %v3065, 16
  %v3068 = vand.u32 %v3064, 65535
  %v3069 = vshrl.u32 %v3064, 16
  %v3070 = vmul.u32 %v3066, %v3068
  %v3071 = vmul.u32 %v3066, %v3069
  %v3072 = vmul.u32 %v3067, %v3068
  %v3073 = vmul.u32 %v3067, %v3069
  %v3074 = vshll.u32 %v3071, 16
  %v3075 = vshrl.u32 %v3071, 16
  %v3076 = vshll.u32 %v3072, 16
  %v3077 = vshrl.u32 %v3072, 16
  %vm3078 = vc.u32 %v3070, %v3074
  %v3079 = vsel %vm3078, 1, 0
  %v3080 = vadd.s32 %v3070, %v3074
  %v3081 = vadd.s32 %v3073, %v3079
  %vm3082 = vc.u32 %v3080, %v3076
  %v3083 = vsel %vm3082, 1, 0
  %v3084 = vadd.s32 %v3080, %v3076
  %v3085 = vadd.s32 %v3081, %v3083
  %v3086 = vadd.s32 %v3085, %v3075
  %v3087 = vadd.s32 %v3086, %v3077
  %v3088 = vand.u32 %v3065, 65535
  %v3089 = vshrl.u32 %v3065, 16
  %v3090 = vand.u32 %v3060, 65535
  %v3091 = vshrl.u32 %v3060, 16
  %v3092 = vmul.u32 %v3088, %v3090
  %v3093 = vmul.u32 %v3088, %v3091
  %v3094 = vmul.u32 %v3089, %v3090
  %v3095 = vmul.u32 %v3089, %v3091
  %v3096 = vshll.u32 %v3093, 16
  %v3097 = vshrl.u32 %v3093, 16
  %v3098 = vshll.u32 %v3094, 16
  %v3099 = vshrl.u32 %v3094, 16
  %vm3100 = vc.u32 %v3092, %v3096
  %v3101 = vsel %vm3100, 1, 0
  %v3102 = vadd.s32 %v3092, %v3096
  %v3103 = vadd.s32 %v3095, %v3101
  %vm3104 = vc.u32 %v3102, %v3098
  %v3105 = vsel %vm3104, 1, 0
  %v3106 = vadd.s32 %v3102, %v3098
  %v3107 = vadd.s32 %v3103, %v3105
  %v3108 = vadd.s32 %v3107, %v3097
  %v3109 = vadd.s32 %v3108, %v3099
  %v3110 = vmul.u32 %v3065, %v3056
  %v3111 = vadd.s32 %v3087, %v3106
  %vm3112 = vc.u32 %v3087, %v3106
  %v3113 = vadd.s32 %v3109, 1
  %v3114 = vsel %vm3112, %v3113, %v3109
  %v3115 = vadd.s32 %v3110, %v3114
  %v3116 = vadd.s32 %v3115, 536870912
  %v3117 = vshrl.u32 %v3116, 30
  %v3118 = vshll.u32 %v3117, 30
  %v3119 = vsub.s32 %v3115, %v3118
  %vm3120 = vcmp.lt.s32.totalorder %v3119, 0
  %v3121 = vsub.s32 0, %v3119
  %v3122 = vsel %vm3120, %v3121, %v3119
  %v3123 = vclz %v3122
  %v3124 = vsub.s32 %v3123, 2
  %vm3125 = vcmp.gt.s32.totalorder 0, %v3124
  %v3126 = vsel %vm3125, 0, %v3124
  %v3127 = vsub.s32 32, %v3126
  %v3128 = vshll.u32 %v3119, %v3126
  %v3129 = vshrl.u32 %v3111, %v3127
  %v3130 = vor.u32 %v3128, %v3129
  %v3131 = vsub.s32 4294967266, %v3126
  %v3132 = vadd.s32 %v3131, 127
  %v3133 = vshll.u32 %v3132, 23
  %v3134 = vor.u32 4788187, %v3133
  %v3135 = vand.u32 2147483647, %v3134
  %v3137 = vcvt.s32.f32 %v3130
  %v3138 = vmul.f32 %v3137, %v3135
  %v3139 = vxor.u32 %v3138, 2147483648
  %v3140 = vsel %vm3019, %v3139, %v3138
  %v3141 = vsub.s32 4, %v3117
  %v3142 = vsel %vm3019, %v3141, %v3117
  %v3143 = vsel %vm3018, %v841, %v3140
  %v3144 = vsel %vm3018, 0, %v3142
  %v3145 = vmul.f32 %v3143, %v3143
  %v3146 = vmul.f32 %v3145, -0.001358992
  %v3147 = vadd.f32 %v3146, 0.041655596
  %v3148 = vmul.f32 %v3145, %v3147
  %v3149 = vadd.f32 %v3148, -0.4999988
  %v3150 = vmul.f32 %v3145, %v3149
  %v3151 = vadd.f32 1.0, %v3150
  %v3152 = vmul.f32 %v3143, %v3143
  %v3153 = vmul.f32 %v3152, -0.00019511016
  %v3154 = vadd.f32 %v3153, 0.008332121
  %v3155 = vmul.f32 %v3152, %v3154
  %v3156 = vadd.f32 %v3155, -0.16666654
  %v3157 = vmul.f32 %v3152, %v3156
  %v3158 = vadd.f32 %v3157, 1.0
  %v3159 = vmul.f32 %v3158, %v3143
  %vm3160 = vweird.f32 %v841
  %v3161 = vadd.s32 %v3144, 3
  %v3162 = vand.u32 %v3161, 3
  %vm3163 = vcmp.lt.s32.totalorder %v3162, 2
  %vm3164 = vcmp.eq.s32.totalorder %v3162, 0
  %v3165 = vxor.u32 %v3159, 2147483648
  %v3166 = vsel %vm3164, %v3151, %v3165
  %vm3167 = vcmp.eq.s32.totalorder %v3162, 2
  %v3168 = vxor.u32 %v3151, 2147483648
  %v3169 = vsel %vm3167, %v3168, %v3159
  %v3170 = vsel %vm3163, %v3166, %v3169
  %v3171 = vsel %vm3160, nan, %v3170
  %v3172 = vand.u32 2147483647, %v845
  %vm3173 = vcmp.le.f32.partialorder %v3172, 0.7853982
  %vm3174 = vcmp.lt.s32.totalorder %v845, 0
  %v3175 = vand.u32 %v845, 2139095040
  %v3176 = vshrl.u32 %v3175, 23
  %v3177 = vsub.s32 %v3176, 127
  %v3178 = vand.u32 2147483647, %v845
  %v3179 = vand.u32 %v3178, 8388607
  %v3180 = vor.u32 %v3179, 8388608
  %v3181 = vsub.s32 0, %v3180
  %v3182 = vadd.s32 %v3177, 1
  %vm3183 = vcmp.gt.s32.totalorder %v3182, 0
  %v3184 = vsel %vm3183, %v3182, 0
  %v3185 = vshrl.u32 %v3184, 5
  %v3186 = vand.u32 %v3184, 31
  %v3187 = vsub.s32 32, %v3186
  %v3188 = vshrl.u32 683565275, %v3187
  %v3189 = vshll.u32 683565275, %v3186
  %v3190 = vshrl.u32 2475754826, %v3187
  %v3191 = vor.u32 %v3189, %v3190
  %v3192 = vshll.u32 2475754826, %v3186
  %v3193 = vshrl.u32 2131351028, %v3187
  %v3194 = vor.u32 %v3192, %v3193
  %v3195 = vshll.u32 2131351028, %v3186
  %v3196 = vshrl.u32 2102212464, %v3187
  %v3197 = vor.u32 %v3195, %v3196
  %v3198 = vshll.u32 2102212464, %v3186
  %v3199 = vshrl.u32 920167782, %v3187
  %v3200 = vor.u32 %v3198, %v3199
  %v3201 = vshll.u32 920167782, %v3186
  %v3202 = vshrl.u32 1326507024, %v3187
  %v3203 = vor.u32 %v3201, %v3202
  %vm3204 = vcmp.lt.s32.totalorder %v3185, 1
  %vm3205 = vcmp.lt.s32.totalorder %v3185, 2
  %vm3206 = vcmp.lt.s32.totalorder %v3185, 3
  %vm3207 = vcmp.lt.s32.totalorder %v3185, 4
  %v3208 = vsel %vm3204, %v3188, %v3191
  %v3209 = vsel %vm3207, %v3197, 2102212464
  %v3210 = vsel %vm3206, %v3194, %v3209
  %v3211 = vsel %vm3205, %v3208, %v3210
  %v3212 = vsel %vm3204, %v3191, %v3194
  %v3213 = vsel %vm3207, %v3200, 920167782
  %v3214 = vsel %vm3206, %v3197, %v3213
  %v3215 = vsel %vm3205, %v3212, %v3214
  %v3216 = vsel %vm3204, %v3194, %v3197
  %v3217 = vsel %vm3207, %v3203, 1326507024
  %v3218 = vsel %vm3206, %v3200, %v3217
  %v3219 = vsel %vm3205, %v3216, %v3218
  %v3220 = vshll.u32 %v3180, 8
  %v3221 = vand.u32 %v3220, 65535
  %v3222 = vshrl.u32 %v3220, 16
  %v3223 = vand.u32 %v3219, 65535
  %v3224 = vshrl.u32 %v3219, 16
  %v3225 = vmul.u32 %v3221, %v3223
  %v3226 = vmul.u32 %v3221, %v3224
  %v3227 = vmul.u32 %v3222, %v3223
  %v3228 = vmul.u32 %v3222, %v3224
  %v3229 = vshll.u32 %v3226, 16
  %v3230 = vshrl.u32 %v3226, 16
  %v3231 = vshll.u32 %v3227, 16
  %v3232 = vshrl.u32 %v3227, 16
  %vm3233 = vc.u32 %v3225, %v3229
  %v3234 = vsel %vm3233, 1, 0
  %v3235 = vadd.s32 %v3225, %v3229
  %v3236 = vadd.s32 %v3228, %v3234
  %vm3237 = vc.u32 %v3235, %v3231
  %v3238 = vsel %vm3237, 1, 0
  %v3239 = vadd.s32 %v3235, %v3231
  %v3240 = vadd.s32 %v3236, %v3238
  %v3241 = vadd.s32 %v3240, %v3230
  %v3242 = vadd.s32 %v3241, %v3232
  %v3243 = vand.u32 %v3220, 65535
  %v3244 = vshrl.u32 %v3220, 16
  %v3245 = vand.u32 %v3215, 65535
  %v3246 = vshrl.u32 %v3215, 16
  %v3247 = vmul.u32 %v3243, %v3245
  %v3248 = vmul.u32 %v3243, %v3246
  %v3249 = vmul.u32 %v3244, %v3245
  %v3250 = vmul.u32 %v3244, %v3246
  %v3251 = vshll.u32 %v3248, 16
  %v3252 = vshrl.u32 %v3248, 16
  %v3253 = vshll.u32 %v3249, 16
  %v3254 = vshrl.u32 %v3249, 16
  %vm3255 = vc.u32 %v3247, %v3251
  %v3256 = vsel %vm3255, 1, 0
  %v3257 = vadd.s32 %v3247, %v3251
  %v3258 = vadd.s32 %v3250, %v3256
  %vm3259 = vc.u32 %v3257, %v3253
  %v3260 = vsel %vm3259, 1, 0
  %v3261 = vadd.s32 %v3257, %v3253
  %v3262 = vadd.s32 %v3258, %v3260
  %v3263 = vadd.s32 %v3262, %v3252
  %v3264 = vadd.s32 %v3263, %v3254
  %v3265 = vmul.u32 %v3220, %v3211
  %v3266 = vadd.s32 %v3242, %v3261
  %vm3267 = vc.u32 %v3242, %v3261
  %v3268 = vadd.s32 %v3264, 1
  %v3269 = vsel %vm3267, %v3268, %v3264
  %v3270 = vadd.s32 %v3265, %v3269
  %v3271 = vadd.s32 %v3270, 536870912
  %v3272 = vshrl.u32 %v3271, 30
  %v3273 = vshll.u32 %v3272, 30
  %v3274 = vsub.s32 %v3270, %v3273
  %vm3275 = vcmp.lt.s32.totalorder %v3274, 0
  %v3276 = vsub.s32 0, %v3274
  %v3277 = vsel %vm3275, %v3276, %v3274
  %v3278 = vclz %v3277
  %v3279 = vsub.s32 %v3278, 2
  %vm3280 = vcmp.gt.s32.totalorder 0, %v3279
  %v3281 = vsel %vm3280, 0, %v3279
  %v3282 = vsub.s32 32, %v3281
  %v3283 = vshll.u32 %v3274, %v3281
  %v3284 = vshrl.u32 %v3266, %v3282
  %v3285 = vor.u32 %v3283, %v3284
  %v3286 = vsub.s32 4294967266, %v3281
  %v3287 = vadd.s32 %v3286, 127
  %v3288 = vshll.u32 %v3287, 23
  %v3289 = vor.u32 4788187, %v3288
  %v3290 = vand.u32 2147483647, %v3289
  %v3292 = vcvt.s32.f32 %v3285
  %v3293 = vmul.f32 %v3292, %v3290
  %v3294 = vxor.u32 %v3293, 2147483648
  %v3295 = vsel %vm3174, %v3294, %v3293
  %v3296 = vsub.s32 4, %v3272
  %v3297 = vsel %vm3174, %v3296, %v3272
  %v3298 = vsel %vm3173, %v845, %v3295
  %v3299 = vsel %vm3173, 0, %v3297
  %v3300 = vmul.f32 %v3298, %v3298
  %v3301 = vmul.f32 %v3300, -0.001358992
  %v3302 = vadd.f32 %v3301, 0.041655596
  %v3303 = vmul.f32 %v3300, %v3302
  %v3304 = vadd.f32 %v3303, -0.4999988
  %v3305 = vmul.f32 %v3300, %v3304
  %v3306 = vadd.f32 1.0, %v3305
  %v3307 = vmul.f32 %v3298, %v3298
  %v3308 = vmul.f32 %v3307, -0.00019511016
  %v3309 = vadd.f32 %v3308, 0.008332121
  %v3310 = vmul.f32 %v3307, %v3309
  %v3311 = vadd.f32 %v3310, -0.16666654
  %v3312 = vmul.f32 %v3307, %v3311
  %v3313 = vadd.f32 %v3312, 1.0
  %v3314 = vmul.f32 %v3313, %v3298
  %vm3315 = vweird.f32 %v845
  %v3316 = vadd.s32 %v3299, 3
  %v3317 = vand.u32 %v3316, 3
  %vm3318 = vcmp.lt.s32.totalorder %v3317, 2
  %vm3319 = vcmp.eq.s32.totalorder %v3317, 0
  %v3320 = vxor.u32 %v3314, 2147483648
  %v3321 = vsel %vm3319, %v3306, %v3320
  %vm3322 = vcmp.eq.s32.totalorder %v3317, 2
  %v3323 = vxor.u32 %v3306, 2147483648
  %v3324 = vsel %vm3322, %v3323, %v3314
  %v3325 = vsel %vm3318, %v3321, %v3324
  %v3326 = vsel %vm3315, nan, %v3325
  %v3327 = vld [vmem:[%s3] sm:$0xff]
  %v3328 = vld [vmem:[%s3 + $0x8] sm:$0xff]
  %v3329 = vld [vmem:[%s3 + $0x10] sm:$0xff]
  %v3330 = vld [vmem:[%s3 + $0x18] sm:$0xff]
  %v3331 = vld [vmem:[%s3 + $0x20] sm:$0xff]
  %v3332 = vld [vmem:[%s3 + $0x28] sm:$0xff]
  %v3333 = vld [vmem:[%s3 + $0x30] sm:$0xff]
  %v3334 = vld [vmem:[%s3 + $0x38] sm:$0xff]
  %v3335 = vld [vmem:[%s3 + $0x40] sm:$0xff]
  %v3336 = vld [vmem:[%s3 + $0x48] sm:$0xff]
  %v3337 = vld [vmem:[%s3 + $0x50] sm:$0xff]
  %v3338 = vld [vmem:[%s3 + $0x58] sm:$0xff]
  %v3339 = vld [vmem:[%s3 + $0x60] sm:$0xff]
  %v3340 = vld [vmem:[%s3 + $0x68] sm:$0xff]
  %v3341 = vld [vmem:[%s3 + $0x70] sm:$0xff]
  %v3342 = vld [vmem:[%s3 + $0x78] sm:$0xff]
  %v3343 = vld [vmem:[%s4] sm:$0xff]
  %v3344 = vld [vmem:[%s4 + $0x8] sm:$0xff]
  %v3345 = vld [vmem:[%s4 + $0x10] sm:$0xff]
  %v3346 = vld [vmem:[%s4 + $0x18] sm:$0xff]
  %v3347 = vld [vmem:[%s4 + $0x20] sm:$0xff]
  %v3348 = vld [vmem:[%s4 + $0x28] sm:$0xff]
  %v3349 = vld [vmem:[%s4 + $0x30] sm:$0xff]
  %v3350 = vld [vmem:[%s4 + $0x38] sm:$0xff]
  %v3351 = vld [vmem:[%s4 + $0x40] sm:$0xff]
  %v3352 = vld [vmem:[%s4 + $0x48] sm:$0xff]
  %v3353 = vld [vmem:[%s4 + $0x50] sm:$0xff]
  %v3354 = vld [vmem:[%s4 + $0x58] sm:$0xff]
  %v3355 = vld [vmem:[%s4 + $0x60] sm:$0xff]
  %v3356 = vld [vmem:[%s4 + $0x68] sm:$0xff]
  %v3357 = vld [vmem:[%s4 + $0x70] sm:$0xff]
  %v3358 = vld [vmem:[%s4 + $0x78] sm:$0xff]
  %3360 = vset.pattern.permute.xlu0 0
  %3361 = vperm.xlu0 %3360, %v3343
  %v3362 = vpop.permute.xlu0 %3361
  %3365 = vset.pattern.permute.xlu0 0
  %3366 = vperm.xlu0 %3365, %v3344
  %v3367 = vpop.permute.xlu0 %3366
  %3370 = vset.pattern.permute.xlu0 0
  %3371 = vperm.xlu0 %3370, %v3345
  %v3372 = vpop.permute.xlu0 %3371
  %3375 = vset.pattern.permute.xlu0 0
  %3376 = vperm.xlu0 %3375, %v3346
  %v3377 = vpop.permute.xlu0 %3376
  %3380 = vset.pattern.permute.xlu0 0
  %3381 = vperm.xlu0 %3380, %v3347
  %v3382 = vpop.permute.xlu0 %3381
  %3385 = vset.pattern.permute.xlu0 0
  %3386 = vperm.xlu0 %3385, %v3348
  %v3387 = vpop.permute.xlu0 %3386
  %3390 = vset.pattern.permute.xlu0 0
  %3391 = vperm.xlu0 %3390, %v3349
  %v3392 = vpop.permute.xlu0 %3391
  %3395 = vset.pattern.permute.xlu0 0
  %3396 = vperm.xlu0 %3395, %v3350
  %v3397 = vpop.permute.xlu0 %3396
  %3400 = vset.pattern.permute.xlu0 0
  %3401 = vperm.xlu0 %3400, %v3351
  %v3402 = vpop.permute.xlu0 %3401
  %3405 = vset.pattern.permute.xlu0 0
  %3406 = vperm.xlu0 %3405, %v3352
  %v3407 = vpop.permute.xlu0 %3406
  %3410 = vset.pattern.permute.xlu0 0
  %3411 = vperm.xlu0 %3410, %v3353
  %v3412 = vpop.permute.xlu0 %3411
  %3415 = vset.pattern.permute.xlu0 0
  %3416 = vperm.xlu0 %3415, %v3354
  %v3417 = vpop.permute.xlu0 %3416
  %3420 = vset.pattern.permute.xlu0 0
  %3421 = vperm.xlu0 %3420, %v3355
  %v3422 = vpop.permute.xlu0 %3421
  %3425 = vset.pattern.permute.xlu0 0
  %3426 = vperm.xlu0 %3425, %v3356
  %v3427 = vpop.permute.xlu0 %3426
  %3430 = vset.pattern.permute.xlu0 0
  %3431 = vperm.xlu0 %3430, %v3357
  %v3432 = vpop.permute.xlu0 %3431
  %3435 = vset.pattern.permute.xlu0 0
  %3436 = vperm.xlu0 %3435, %v3358
  %v3437 = vpop.permute.xlu0 %3436
  %v3439 = vand.u32 %v3326, 4294901760
  %3440 = vmatpush.msra.mxu0 %v3439
  %v3441 = vand.u32 %v3171, 4294901760
  %3442 = vmatpush.msra.mxu0 %v3441
  %v3443 = vand.u32 %v3016, 4294901760
  %3444 = vmatpush.msra.mxu0 %v3443
  %v3445 = vand.u32 %v2861, 4294901760
  %3446 = vmatpush.msra.mxu0 %v3445
  %v3447 = vand.u32 %v2706, 4294901760
  %3448 = vmatpush.msra.mxu0 %v3447
  %v3449 = vand.u32 %v2551, 4294901760
  %3450 = vmatpush.msra.mxu0 %v3449
  %v3451 = vand.u32 %v2396, 4294901760
  %3452 = vmatpush.msra.mxu0 %v3451
  %v3453 = vand.u32 %v2241, 4294901760
  %3454 = vmatpush.msra.mxu0 %v3453
  %v3455 = vand.u32 %v2086, 4294901760
  %3456 = vmatpush.msra.mxu0 %v3455
  %v3457 = vand.u32 %v1931, 4294901760
  %3458 = vmatpush.msra.mxu0 %v3457
  %v3459 = vand.u32 %v1776, 4294901760
  %3460 = vmatpush.msra.mxu0 %v3459
  %v3461 = vand.u32 %v1621, 4294901760
  %3462 = vmatpush.msra.mxu0 %v3461
  %v3463 = vand.u32 %v1466, 4294901760
  %3464 = vmatpush.msra.mxu0 %v3463
  %v3465 = vand.u32 %v1311, 4294901760
  %3466 = vmatpush.msra.mxu0 %v3465
  %v3467 = vand.u32 %v1156, 4294901760
  %3468 = vmatpush.msra.mxu0 %v3467
  %v3469 = vand.u32 %v1001, 4294901760
  %3470 = vmatpush.msra.mxu0 %v3469
  %v3471 = vand.u32 %v3327, 4294901760
  %v3472 = vsub.f32 %v3327, %v3471
  %v3473 = vand.u32 %v3472, 4294901760
  %v3474 = vsub.f32 %v3472, %v3473
  %v3475 = vand.u32 %v3474, 4294901760
  %3476 = vmatmul.f32.gmra.mxu0 %v3475
  %v3477 = vpop.f32.mrf.mxu0
  %v3478 = vadd.f32 %v3362, %v3477
  %v3479 = vand.u32 %v3328, 4294901760
  %v3480 = vsub.f32 %v3328, %v3479
  %v3481 = vand.u32 %v3480, 4294901760
  %v3482 = vsub.f32 %v3480, %v3481
  %v3483 = vand.u32 %v3482, 4294901760
  %3484 = vmatmul.f32.gmra.mxu0 %v3483
  %v3485 = vpop.f32.mrf.mxu0
  %v3486 = vadd.f32 %v3367, %v3485
  %v3487 = vand.u32 %v3329, 4294901760
  %v3488 = vsub.f32 %v3329, %v3487
  %v3489 = vand.u32 %v3488, 4294901760
  %v3490 = vsub.f32 %v3488, %v3489
  %v3491 = vand.u32 %v3490, 4294901760
  %3492 = vmatmul.f32.gmra.mxu0 %v3491
  %v3493 = vpop.f32.mrf.mxu0
  %v3494 = vadd.f32 %v3372, %v3493
  %v3495 = vand.u32 %v3330, 4294901760
  %v3496 = vsub.f32 %v3330, %v3495
  %v3497 = vand.u32 %v3496, 4294901760
  %v3498 = vsub.f32 %v3496, %v3497
  %v3499 = vand.u32 %v3498, 4294901760
  %3500 = vmatmul.f32.gmra.mxu0 %v3499
  %v3501 = vpop.f32.mrf.mxu0
  %v3502 = vadd.f32 %v3377, %v3501
  %v3503 = vand.u32 %v3331, 4294901760
  %v3504 = vsub.f32 %v3331, %v3503
  %v3505 = vand.u32 %v3504, 4294901760
  %v3506 = vsub.f32 %v3504, %v3505
  %v3507 = vand.u32 %v3506, 4294901760
  %3508 = vmatmul.f32.gmra.mxu0 %v3507
  %v3509 = vpop.f32.mrf.mxu0
  %v3510 = vadd.f32 %v3382, %v3509
  %v3511 = vand.u32 %v3332, 4294901760
  %v3512 = vsub.f32 %v3332, %v3511
  %v3513 = vand.u32 %v3512, 4294901760
  %v3514 = vsub.f32 %v3512, %v3513
  %v3515 = vand.u32 %v3514, 4294901760
  %3516 = vmatmul.f32.gmra.mxu0 %v3515
  %v3517 = vpop.f32.mrf.mxu0
  %v3518 = vadd.f32 %v3387, %v3517
  %v3519 = vand.u32 %v3333, 4294901760
  %v3520 = vsub.f32 %v3333, %v3519
  %v3521 = vand.u32 %v3520, 4294901760
  %v3522 = vsub.f32 %v3520, %v3521
  %v3523 = vand.u32 %v3522, 4294901760
  %3524 = vmatmul.f32.gmra.mxu0 %v3523
  %v3525 = vpop.f32.mrf.mxu0
  %v3526 = vadd.f32 %v3392, %v3525
  %v3527 = vand.u32 %v3334, 4294901760
  %v3528 = vsub.f32 %v3334, %v3527
  %v3529 = vand.u32 %v3528, 4294901760
  %v3530 = vsub.f32 %v3528, %v3529
  %v3531 = vand.u32 %v3530, 4294901760
  %3532 = vmatmul.f32.gmra.mxu0 %v3531
  %v3533 = vpop.f32.mrf.mxu0
  %v3534 = vadd.f32 %v3397, %v3533
  %v3535 = vand.u32 %v3335, 4294901760
  %v3536 = vsub.f32 %v3335, %v3535
  %v3537 = vand.u32 %v3536, 4294901760
  %v3538 = vsub.f32 %v3536, %v3537
  %v3539 = vand.u32 %v3538, 4294901760
  %3540 = vmatmul.f32.gmra.mxu0 %v3539
  %v3541 = vpop.f32.mrf.mxu0
  %v3542 = vadd.f32 %v3402, %v3541
  %v3543 = vand.u32 %v3336, 4294901760
  %v3544 = vsub.f32 %v3336, %v3543
  %v3545 = vand.u32 %v3544, 4294901760
  %v3546 = vsub.f32 %v3544, %v3545
  %v3547 = vand.u32 %v3546, 4294901760
  %3548 = vmatmul.f32.gmra.mxu0 %v3547
  %v3549 = vpop.f32.mrf.mxu0
  %v3550 = vadd.f32 %v3407, %v3549
  %v3551 = vand.u32 %v3337, 4294901760
  %v3552 = vsub.f32 %v3337, %v3551
  %v3553 = vand.u32 %v3552, 4294901760
  %v3554 = vsub.f32 %v3552, %v3553
  %v3555 = vand.u32 %v3554, 4294901760
  %3556 = vmatmul.f32.gmra.mxu0 %v3555
  %v3557 = vpop.f32.mrf.mxu0
  %v3558 = vadd.f32 %v3412, %v3557
  %v3559 = vand.u32 %v3338, 4294901760
  %v3560 = vsub.f32 %v3338, %v3559
  %v3561 = vand.u32 %v3560, 4294901760
  %v3562 = vsub.f32 %v3560, %v3561
  %v3563 = vand.u32 %v3562, 4294901760
  %3564 = vmatmul.f32.gmra.mxu0 %v3563
  %v3565 = vpop.f32.mrf.mxu0
  %v3566 = vadd.f32 %v3417, %v3565
  %v3567 = vand.u32 %v3339, 4294901760
  %v3568 = vsub.f32 %v3339, %v3567
  %v3569 = vand.u32 %v3568, 4294901760
  %v3570 = vsub.f32 %v3568, %v3569
  %v3571 = vand.u32 %v3570, 4294901760
  %3572 = vmatmul.f32.gmra.mxu0 %v3571
  %v3573 = vpop.f32.mrf.mxu0
  %v3574 = vadd.f32 %v3422, %v3573
  %v3575 = vand.u32 %v3340, 4294901760
  %v3576 = vsub.f32 %v3340, %v3575
  %v3577 = vand.u32 %v3576, 4294901760
  %v3578 = vsub.f32 %v3576, %v3577
  %v3579 = vand.u32 %v3578, 4294901760
  %3580 = vmatmul.f32.gmra.mxu0 %v3579
  %v3581 = vpop.f32.mrf.mxu0
  %v3582 = vadd.f32 %v3427, %v3581
  %v3583 = vand.u32 %v3341, 4294901760
  %v3584 = vsub.f32 %v3341, %v3583
  %v3585 = vand.u32 %v3584, 4294901760
  %v3586 = vsub.f32 %v3584, %v3585
  %v3587 = vand.u32 %v3586, 4294901760
  %3588 = vmatmul.f32.gmra.mxu0 %v3587
  %v3589 = vpop.f32.mrf.mxu0
  %v3590 = vadd.f32 %v3432, %v3589
  %v3591 = vand.u32 %v3342, 4294901760
  %v3592 = vsub.f32 %v3342, %v3591
  %v3593 = vand.u32 %v3592, 4294901760
  %v3594 = vsub.f32 %v3592, %v3593
  %v3595 = vand.u32 %v3594, 4294901760
  %3596 = vmatmul.f32.gmra.mxu0 %v3595
  %v3597 = vpop.f32.mrf.mxu0
  %v3598 = vadd.f32 %v3437, %v3597
  %3599 = vdwg.mxu0
  %v3600 = vand.u32 %v3326, 4294901760
  %v3601 = vsub.f32 %v3326, %v3600
  %v3602 = vand.u32 %v3601, 4294901760
  %v3603 = vsub.f32 %v3601, %v3602
  %v3604 = vand.u32 %v3603, 4294901760
  %3605 = vmatpush.msra.mxu0 %v3604
  %v3606 = vand.u32 %v3171, 4294901760
  %v3607 = vsub.f32 %v3171, %v3606
  %v3608 = vand.u32 %v3607, 4294901760
  %v3609 = vsub.f32 %v3607, %v3608
  %v3610 = vand.u32 %v3609, 4294901760
  %3611 = vmatpush.msra.mxu0 %v3610
  %v3612 = vand.u32 %v3016, 4294901760
  %v3613 = vsub.f32 %v3016, %v3612
  %v3614 = vand.u32 %v3613, 4294901760
  %v3615 = vsub.f32 %v3613, %v3614
  %v3616 = vand.u32 %v3615, 4294901760
  %3617 = vmatpush.msra.mxu0 %v3616
  %v3618 = vand.u32 %v2861, 4294901760
  %v3619 = vsub.f32 %v2861, %v3618
  %v3620 = vand.u32 %v3619, 4294901760
  %v3621 = vsub.f32 %v3619, %v3620
  %v3622 = vand.u32 %v3621, 4294901760
  %3623 = vmatpush.msra.mxu0 %v3622
  %v3624 = vand.u32 %v2706, 4294901760
  %v3625 = vsub.f32 %v2706, %v3624
  %v3626 = vand.u32 %v3625, 4294901760
  %v3627 = vsub.f32 %v3625, %v3626
  %v3628 = vand.u32 %v3627, 4294901760
  %3629 = vmatpush.msra.mxu0 %v3628
  %v3630 = vand.u32 %v2551, 4294901760
  %v3631 = vsub.f32 %v2551, %v3630
  %v3632 = vand.u32 %v3631, 4294901760
  %v3633 = vsub.f32 %v3631, %v3632
  %v3634 = vand.u32 %v3633, 4294901760
  %3635 = vmatpush.msra.mxu0 %v3634
  %v3636 = vand.u32 %v2396, 4294901760
  %v3637 = vsub.f32 %v2396, %v3636
  %v3638 = vand.u32 %v3637, 4294901760
  %v3639 = vsub.f32 %v3637, %v3638
  %v3640 = vand.u32 %v3639, 4294901760
  %3641 = vmatpush.msra.mxu0 %v3640
  %v3642 = vand.u32 %v2241, 4294901760
  %v3643 = vsub.f32 %v2241, %v3642
  %v3644 = vand.u32 %v3643, 4294901760
  %v3645 = vsub.f32 %v3643, %v3644
  %v3646 = vand.u32 %v3645, 4294901760
  %3647 = vmatpush.msra.mxu0 %v3646
  %v3648 = vand.u32 %v2086, 4294901760
  %v3649 = vsub.f32 %v2086, %v3648
  %v3650 = vand.u32 %v3649, 4294901760
  %v3651 = vsub.f32 %v3649, %v3650
  %v3652 = vand.u32 %v3651, 4294901760
  %3653 = vmatpush.msra.mxu0 %v3652
  %v3654 = vand.u32 %v1931, 4294901760
  %v3655 = vsub.f32 %v1931, %v3654
  %v3656 = vand.u32 %v3655, 4294901760
  %v3657 = vsub.f32 %v3655, %v3656
  %v3658 = vand.u32 %v3657, 4294901760
  %3659 = vmatpush.msra.mxu0 %v3658
  %v3660 = vand.u32 %v1776, 4294901760
  %v3661 = vsub.f32 %v1776, %v3660
  %v3662 = vand.u32 %v3661, 4294901760
  %v3663 = vsub.f32 %v3661, %v3662
  %v3664 = vand.u32 %v3663, 4294901760
  %3665 = vmatpush.msra.mxu0 %v3664
  %v3666 = vand.u32 %v1621, 4294901760
  %v3667 = vsub.f32 %v1621, %v3666
  %v3668 = vand.u32 %v3667, 4294901760
  %v3669 = vsub.f32 %v3667, %v3668
  %v3670 = vand.u32 %v3669, 4294901760
  %3671 = vmatpush.msra.mxu0 %v3670
  %v3672 = vand.u32 %v1466, 4294901760
  %v3673 = vsub.f32 %v1466, %v3672
  %v3674 = vand.u32 %v3673, 4294901760
  %v3675 = vsub.f32 %v3673, %v3674
  %v3676 = vand.u32 %v3675, 4294901760
  %3677 = vmatpush.msra.mxu0 %v3676
  %v3678 = vand.u32 %v1311, 4294901760
  %v3679 = vsub.f32 %v1311, %v3678
  %v3680 = vand.u32 %v3679, 4294901760
  %v3681 = vsub.f32 %v3679, %v3680
  %v3682 = vand.u32 %v3681, 4294901760
  %3683 = vmatpush.msra.mxu0 %v3682
  %v3684 = vand.u32 %v1156, 4294901760
  %v3685 = vsub.f32 %v1156, %v3684
  %v3686 = vand.u32 %v3685, 4294901760
  %v3687 = vsub.f32 %v3685, %v3686
  %v3688 = vand.u32 %v3687, 4294901760
  %3689 = vmatpush.msra.mxu0 %v3688
  %v3690 = vand.u32 %v1001, 4294901760
  %v3691 = vsub.f32 %v1001, %v3690
  %v3692 = vand.u32 %v3691, 4294901760
  %v3693 = vsub.f32 %v3691, %v3692
  %v3694 = vand.u32 %v3693, 4294901760
  %3695 = vmatpush.msra.mxu0 %v3694
  %v3696 = vand.u32 %v3327, 4294901760
  %3697 = vmatmul.f32.gmra.mxu0 %v3696
  %v3698 = vpop.f32.mrf.mxu0
  %v3699 = vadd.f32 %v3478, %v3698
  %v3700 = vand.u32 %v3328, 4294901760
  %3701 = vmatmul.f32.gmra.mxu0 %v3700
  %v3702 = vpop.f32.mrf.mxu0
  %v3703 = vadd.f32 %v3486, %v3702
  %v3704 = vand.u32 %v3329, 4294901760
  %3705 = vmatmul.f32.gmra.mxu0 %v3704
  %v3706 = vpop.f32.mrf.mxu0
  %v3707 = vadd.f32 %v3494, %v3706
  %v3708 = vand.u32 %v3330, 4294901760
  %3709 = vmatmul.f32.gmra.mxu0 %v3708
  %v3710 = vpop.f32.mrf.mxu0
  %v3711 = vadd.f32 %v3502, %v3710
  %v3712 = vand.u32 %v3331, 4294901760
  %3713 = vmatmul.f32.gmra.mxu0 %v3712
  %v3714 = vpop.f32.mrf.mxu0
  %v3715 = vadd.f32 %v3510, %v3714
  %v3716 = vand.u32 %v3332, 4294901760
  %3717 = vmatmul.f32.gmra.mxu0 %v3716
  %v3718 = vpop.f32.mrf.mxu0
  %v3719 = vadd.f32 %v3518, %v3718
  %v3720 = vand.u32 %v3333, 4294901760
  %3721 = vmatmul.f32.gmra.mxu0 %v3720
  %v3722 = vpop.f32.mrf.mxu0
  %v3723 = vadd.f32 %v3526, %v3722
  %v3724 = vand.u32 %v3334, 4294901760
  %3725 = vmatmul.f32.gmra.mxu0 %v3724
  %v3726 = vpop.f32.mrf.mxu0
  %v3727 = vadd.f32 %v3534, %v3726
  %v3728 = vand.u32 %v3335, 4294901760
  %3729 = vmatmul.f32.gmra.mxu0 %v3728
  %v3730 = vpop.f32.mrf.mxu0
  %v3731 = vadd.f32 %v3542, %v3730
  %v3732 = vand.u32 %v3336, 4294901760
  %3733 = vmatmul.f32.gmra.mxu0 %v3732
  %v3734 = vpop.f32.mrf.mxu0
  %v3735 = vadd.f32 %v3550, %v3734
  %v3736 = vand.u32 %v3337, 4294901760
  %3737 = vmatmul.f32.gmra.mxu0 %v3736
  %v3738 = vpop.f32.mrf.mxu0
  %v3739 = vadd.f32 %v3558, %v3738
  %v3740 = vand.u32 %v3338, 4294901760
  %3741 = vmatmul.f32.gmra.mxu0 %v3740
  %v3742 = vpop.f32.mrf.mxu0
  %v3743 = vadd.f32 %v3566, %v3742
  %v3744 = vand.u32 %v3339, 4294901760
  %3745 = vmatmul.f32.gmra.mxu0 %v3744
  %v3746 = vpop.f32.mrf.mxu0
  %v3747 = vadd.f32 %v3574, %v3746
  %v3748 = vand.u32 %v3340, 4294901760
  %3749 = vmatmul.f32.gmra.mxu0 %v3748
  %v3750 = vpop.f32.mrf.mxu0
  %v3751 = vadd.f32 %v3582, %v3750
  %v3752 = vand.u32 %v3341, 4294901760
  %3753 = vmatmul.f32.gmra.mxu0 %v3752
  %v3754 = vpop.f32.mrf.mxu0
  %v3755 = vadd.f32 %v3590, %v3754
  %v3756 = vand.u32 %v3342, 4294901760
  %3757 = vmatmul.f32.gmra.mxu0 %v3756
  %v3758 = vpop.f32.mrf.mxu0
  %v3759 = vadd.f32 %v3598, %v3758
  %3760 = vdwg.mxu0
  %v3761 = vand.u32 %v3326, 4294901760
  %v3762 = vsub.f32 %v3326, %v3761
  %3763 = vmatpush.msra.mxu0 %v3762
  %v3764 = vand.u32 %v3171, 4294901760
  %v3765 = vsub.f32 %v3171, %v3764
  %3766 = vmatpush.msra.mxu0 %v3765
  %v3767 = vand.u32 %v3016, 4294901760
  %v3768 = vsub.f32 %v3016, %v3767
  %3769 = vmatpush.msra.mxu0 %v3768
  %v3770 = vand.u32 %v2861, 4294901760
  %v3771 = vsub.f32 %v2861, %v3770
  %3772 = vmatpush.msra.mxu0 %v3771
  %v3773 = vand.u32 %v2706, 4294901760
  %v3774 = vsub.f32 %v2706, %v3773
  %3775 = vmatpush.msra.mxu0 %v3774
  %v3776 = vand.u32 %v2551, 4294901760
  %v3777 = vsub.f32 %v2551, %v3776
  %3778 = vmatpush.msra.mxu0 %v3777
  %v3779 = vand.u32 %v2396, 4294901760
  %v3780 = vsub.f32 %v2396, %v3779
  %3781 = vmatpush.msra.mxu0 %v3780
  %v3782 = vand.u32 %v2241, 4294901760
  %v3783 = vsub.f32 %v2241, %v3782
  %3784 = vmatpush.msra.mxu0 %v3783
  %v3785 = vand.u32 %v2086, 4294901760
  %v3786 = vsub.f32 %v2086, %v3785
  %3787 = vmatpush.msra.mxu0 %v3786
  %v3788 = vand.u32 %v1931, 4294901760
  %v3789 = vsub.f32 %v1931, %v3788
  %3790 = vmatpush.msra.mxu0 %v3789
  %v3791 = vand.u32 %v1776, 4294901760
  %v3792 = vsub.f32 %v1776, %v3791
  %3793 = vmatpush.msra.mxu0 %v3792
  %v3794 = vand.u32 %v1621, 4294901760
  %v3795 = vsub.f32 %v1621, %v3794
  %3796 = vmatpush.msra.mxu0 %v3795
  %v3797 = vand.u32 %v1466, 4294901760
  %v3798 = vsub.f32 %v1466, %v3797
  %3799 = vmatpush.msra.mxu0 %v3798
  %v3800 = vand.u32 %v1311, 4294901760
  %v3801 = vsub.f32 %v1311, %v3800
  %3802 = vmatpush.msra.mxu0 %v3801
  %v3803 = vand.u32 %v1156, 4294901760
  %v3804 = vsub.f32 %v1156, %v3803
  %3805 = vmatpush.msra.mxu0 %v3804
  %v3806 = vand.u32 %v1001, 4294901760
  %v3807 = vsub.f32 %v1001, %v3806
  %3808 = vmatpush.msra.mxu0 %v3807
  %v3809 = vand.u32 %v3327, 4294901760
  %v3810 = vsub.f32 %v3327, %v3809
  %3811 = vmatmul.f32.gmra.mxu0 %v3810
  %v3812 = vpop.f32.mrf.mxu0
  %v3813 = vadd.f32 %v3699, %v3812
  %v3814 = vand.u32 %v3328, 4294901760
  %v3815 = vsub.f32 %v3328, %v3814
  %3816 = vmatmul.f32.gmra.mxu0 %v3815
  %v3817 = vpop.f32.mrf.mxu0
  %v3818 = vadd.f32 %v3703, %v3817
  %v3819 = vand.u32 %v3329, 4294901760
  %v3820 = vsub.f32 %v3329, %v3819
  %3821 = vmatmul.f32.gmra.mxu0 %v3820
  %v3822 = vpop.f32.mrf.mxu0
  %v3823 = vadd.f32 %v3707, %v3822
  %v3824 = vand.u32 %v3330, 4294901760
  %v3825 = vsub.f32 %v3330, %v3824
  %3826 = vmatmul.f32.gmra.mxu0 %v3825
  %v3827 = vpop.f32.mrf.mxu0
  %v3828 = vadd.f32 %v3711, %v3827
  %v3829 = vand.u32 %v3331, 4294901760
  %v3830 = vsub.f32 %v3331, %v3829
  %3831 = vmatmul.f32.gmra.mxu0 %v3830
  %v3832 = vpop.f32.mrf.mxu0
  %v3833 = vadd.f32 %v3715, %v3832
  %v3834 = vand.u32 %v3332, 4294901760
  %v3835 = vsub.f32 %v3332, %v3834
  %3836 = vmatmul.f32.gmra.mxu0 %v3835
  %v3837 = vpop.f32.mrf.mxu0
  %v3838 = vadd.f32 %v3719, %v3837
  %v3839 = vand.u32 %v3333, 4294901760
  %v3840 = vsub.f32 %v3333, %v3839
  %3841 = vmatmul.f32.gmra.mxu0 %v3840
  %v3842 = vpop.f32.mrf.mxu0
  %v3843 = vadd.f32 %v3723, %v3842
  %v3844 = vand.u32 %v3334, 4294901760
  %v3845 = vsub.f32 %v3334, %v3844
  %3846 = vmatmul.f32.gmra.mxu0 %v3845
  %v3847 = vpop.f32.mrf.mxu0
  %v3848 = vadd.f32 %v3727, %v3847
  %v3849 = vand.u32 %v3335, 4294901760
  %v3850 = vsub.f32 %v3335, %v3849
  %3851 = vmatmul.f32.gmra.mxu0 %v3850
  %v3852 = vpop.f32.mrf.mxu0
  %v3853 = vadd.f32 %v3731, %v3852
  %v3854 = vand.u32 %v3336, 4294901760
  %v3855 = vsub.f32 %v3336, %v3854
  %3856 = vmatmul.f32.gmra.mxu0 %v3855
  %v3857 = vpop.f32.mrf.mxu0
  %v3858 = vadd.f32 %v3735, %v3857
  %v3859 = vand.u32 %v3337, 4294901760
  %v3860 = vsub.f32 %v3337, %v3859
  %3861 = vmatmul.f32.gmra.mxu0 %v3860
  %v3862 = vpop.f32.mrf.mxu0
  %v3863 = vadd.f32 %v3739, %v3862
  %v3864 = vand.u32 %v3338, 4294901760
  %v3865 = vsub.f32 %v3338, %v3864
  %3866 = vmatmul.f32.gmra.mxu0 %v3865
  %v3867 = vpop.f32.mrf.mxu0
  %v3868 = vadd.f32 %v3743, %v3867
  %v3869 = vand.u32 %v3339, 4294901760
  %v3870 = vsub.f32 %v3339, %v3869
  %3871 = vmatmul.f32.gmra.mxu0 %v3870
  %v3872 = vpop.f32.mrf.mxu0
  %v3873 = vadd.f32 %v3747, %v3872
  %v3874 = vand.u32 %v3340, 4294901760
  %v3875 = vsub.f32 %v3340, %v3874
  %3876 = vmatmul.f32.gmra.mxu0 %v3875
  %v3877 = vpop.f32.mrf.mxu0
  %v3878 = vadd.f32 %v3751, %v3877
  %v3879 = vand.u32 %v3341, 4294901760
  %v3880 = vsub.f32 %v3341, %v3879
  %3881 = vmatmul.f32.gmra.mxu0 %v3880
  %v3882 = vpop.f32.mrf.mxu0
  %v3883 = vadd.f32 %v3755, %v3882
  %v3884 = vand.u32 %v3342, 4294901760
  %v3885 = vsub.f32 %v3342, %v3884
  %3886 = vmatmul.f32.gmra.mxu0 %v3885
  %v3887 = vpop.f32.mrf.mxu0
  %v3888 = vadd.f32 %v3759, %v3887
  %3889 = vdwg.mxu0
  %v3890 = vand.u32 %v3326, 4294901760
  %3891 = vmatpush.msra.mxu0 %v3890
  %v3892 = vand.u32 %v3171, 4294901760
  %3893 = vmatpush.msra.mxu0 %v3892
  %v3894 = vand.u32 %v3016, 4294901760
  %3895 = vmatpush.msra.mxu0 %v3894
  %v3896 = vand.u32 %v2861, 4294901760
  %3897 = vmatpush.msra.mxu0 %v3896
  %v3898 = vand.u32 %v2706, 4294901760
  %3899 = vmatpush.msra.mxu0 %v3898
  %v3900 = vand.u32 %v2551, 4294901760
  %3901 = vmatpush.msra.mxu0 %v3900
  %v3902 = vand.u32 %v2396, 4294901760
  %3903 = vmatpush.msra.mxu0 %v3902
  %v3904 = vand.u32 %v2241, 4294901760
  %3905 = vmatpush.msra.mxu0 %v3904
  %v3906 = vand.u32 %v2086, 4294901760
  %3907 = vmatpush.msra.mxu0 %v3906
  %v3908 = vand.u32 %v1931, 4294901760
  %3909 = vmatpush.msra.mxu0 %v3908
  %v3910 = vand.u32 %v1776, 4294901760
  %3911 = vmatpush.msra.mxu0 %v3910
  %v3912 = vand.u32 %v1621, 4294901760
  %3913 = vmatpush.msra.mxu0 %v3912
  %v3914 = vand.u32 %v1466, 4294901760
  %3915 = vmatpush.msra.mxu0 %v3914
  %v3916 = vand.u32 %v1311, 4294901760
  %3917 = vmatpush.msra.mxu0 %v3916
  %v3918 = vand.u32 %v1156, 4294901760
  %3919 = vmatpush.msra.mxu0 %v3918
  %v3920 = vand.u32 %v1001, 4294901760
  %3921 = vmatpush.msra.mxu0 %v3920
  %v3922 = vand.u32 %v3327, 4294901760
  %v3923 = vsub.f32 %v3327, %v3922
  %v3924 = vand.u32 %v3923, 4294901760
  %3925 = vmatmul.f32.gmra.mxu0 %v3924
  %v3926 = vpop.f32.mrf.mxu0
  %v3927 = vadd.f32 %v3813, %v3926
  %v3928 = vand.u32 %v3328, 4294901760
  %v3929 = vsub.f32 %v3328, %v3928
  %v3930 = vand.u32 %v3929, 4294901760
  %3931 = vmatmul.f32.gmra.mxu0 %v3930
  %v3932 = vpop.f32.mrf.mxu0
  %v3933 = vadd.f32 %v3818, %v3932
  %v3934 = vand.u32 %v3329, 4294901760
  %v3935 = vsub.f32 %v3329, %v3934
  %v3936 = vand.u32 %v3935, 4294901760
  %3937 = vmatmul.f32.gmra.mxu0 %v3936
  %v3938 = vpop.f32.mrf.mxu0
  %v3939 = vadd.f32 %v3823, %v3938
  %v3940 = vand.u32 %v3330, 4294901760
  %v3941 = vsub.f32 %v3330, %v3940
  %v3942 = vand.u32 %v3941, 4294901760
  %3943 = vmatmul.f32.gmra.mxu0 %v3942
  %v3944 = vpop.f32.mrf.mxu0
  %v3945 = vadd.f32 %v3828, %v3944
  %v3946 = vand.u32 %v3331, 4294901760
  %v3947 = vsub.f32 %v3331, %v3946
  %v3948 = vand.u32 %v3947, 4294901760
  %3949 = vmatmul.f32.gmra.mxu0 %v3948
  %v3950 = vpop.f32.mrf.mxu0
  %v3951 = vadd.f32 %v3833, %v3950
  %v3952 = vand.u32 %v3332, 4294901760
  %v3953 = vsub.f32 %v3332, %v3952
  %v3954 = vand.u32 %v3953, 4294901760
  %3955 = vmatmul.f32.gmra.mxu0 %v3954
  %v3956 = vpop.f32.mrf.mxu0
  %v3957 = vadd.f32 %v3838, %v3956
  %v3958 = vand.u32 %v3333, 4294901760
  %v3959 = vsub.f32 %v3333, %v3958
  %v3960 = vand.u32 %v3959, 4294901760
  %3961 = vmatmul.f32.gmra.mxu0 %v3960
  %v3962 = vpop.f32.mrf.mxu0
  %v3963 = vadd.f32 %v3843, %v3962
  %v3964 = vand.u32 %v3334, 4294901760
  %v3965 = vsub.f32 %v3334, %v3964
  %v3966 = vand.u32 %v3965, 4294901760
  %3967 = vmatmul.f32.gmra.mxu0 %v3966
  %v3968 = vpop.f32.mrf.mxu0
  %v3969 = vadd.f32 %v3848, %v3968
  %v3970 = vand.u32 %v3335, 4294901760
  %v3971 = vsub.f32 %v3335, %v3970
  %v3972 = vand.u32 %v3971, 4294901760
  %3973 = vmatmul.f32.gmra.mxu0 %v3972
  %v3974 = vpop.f32.mrf.mxu0
  %v3975 = vadd.f32 %v3853, %v3974
  %v3976 = vand.u32 %v3336, 4294901760
  %v3977 = vsub.f32 %v3336, %v3976
  %v3978 = vand.u32 %v3977, 4294901760
  %3979 = vmatmul.f32.gmra.mxu0 %v3978
  %v3980 = vpop.f32.mrf.mxu0
  %v3981 = vadd.f32 %v3858, %v3980
  %v3982 = vand.u32 %v3337, 4294901760
  %v3983 = vsub.f32 %v3337, %v3982
  %v3984 = vand.u32 %v3983, 4294901760
  %3985 = vmatmul.f32.gmra.mxu0 %v3984
  %v3986 = vpop.f32.mrf.mxu0
  %v3987 = vadd.f32 %v3863, %v3986
  %v3988 = vand.u32 %v3338, 4294901760
  %v3989 = vsub.f32 %v3338, %v3988
  %v3990 = vand.u32 %v3989, 4294901760
  %3991 = vmatmul.f32.gmra.mxu0 %v3990
  %v3992 = vpop.f32.mrf.mxu0
  %v3993 = vadd.f32 %v3868, %v3992
  %v3994 = vand.u32 %v3339, 4294901760
  %v3995 = vsub.f32 %v3339, %v3994
  %v3996 = vand.u32 %v3995, 4294901760
  %3997 = vmatmul.f32.gmra.mxu0 %v3996
  %v3998 = vpop.f32.mrf.mxu0
  %v3999 = vadd.f32 %v3873, %v3998
  %v4000 = vand.u32 %v3340, 4294901760
  %v4001 = vsub.f32 %v3340, %v4000
  %v4002 = vand.u32 %v4001, 4294901760
  %4003 = vmatmul.f32.gmra.mxu0 %v4002
  %v4004 = vpop.f32.mrf.mxu0
  %v4005 = vadd.f32 %v3878, %v4004
  %v4006 = vand.u32 %v3341, 4294901760
  %v4007 = vsub.f32 %v3341, %v4006
  %v4008 = vand.u32 %v4007, 4294901760
  %4009 = vmatmul.f32.gmra.mxu0 %v4008
  %v4010 = vpop.f32.mrf.mxu0
  %v4011 = vadd.f32 %v3883, %v4010
  %v4012 = vand.u32 %v3342, 4294901760
  %v4013 = vsub.f32 %v3342, %v4012
  %v4014 = vand.u32 %v4013, 4294901760
  %4015 = vmatmul.f32.gmra.mxu0 %v4014
  %v4016 = vpop.f32.mrf.mxu0
  %v4017 = vadd.f32 %v3888, %v4016
  %4018 = vdwg.mxu0
  %v4019 = vand.u32 %v3326, 4294901760
  %v4020 = vsub.f32 %v3326, %v4019
  %v4021 = vand.u32 %v4020, 4294901760
  %4022 = vmatpush.msra.mxu0 %v4021
  %v4023 = vand.u32 %v3171, 4294901760
  %v4024 = vsub.f32 %v3171, %v4023
  %v4025 = vand.u32 %v4024, 4294901760
  %4026 = vmatpush.msra.mxu0 %v4025
  %v4027 = vand.u32 %v3016, 4294901760
  %v4028 = vsub.f32 %v3016, %v4027
  %v4029 = vand.u32 %v4028, 4294901760
  %4030 = vmatpush.msra.mxu0 %v4029
  %v4031 = vand.u32 %v2861, 4294901760
  %v4032 = vsub.f32 %v2861, %v4031
  %v4033 = vand.u32 %v4032, 4294901760
  %4034 = vmatpush.msra.mxu0 %v4033
  %v4035 = vand.u32 %v2706, 4294901760
  %v4036 = vsub.f32 %v2706, %v4035
  %v4037 = vand.u32 %v4036, 4294901760
  %4038 = vmatpush.msra.mxu0 %v4037
  %v4039 = vand.u32 %v2551, 4294901760
  %v4040 = vsub.f32 %v2551, %v4039
  %v4041 = vand.u32 %v4040, 4294901760
  %4042 = vmatpush.msra.mxu0 %v4041
  %v4043 = vand.u32 %v2396, 4294901760
  %v4044 = vsub.f32 %v2396, %v4043
  %v4045 = vand.u32 %v4044, 4294901760
  %4046 = vmatpush.msra.mxu0 %v4045
  %v4047 = vand.u32 %v2241, 4294901760
  %v4048 = vsub.f32 %v2241, %v4047
  %v4049 = vand.u32 %v4048, 4294901760
  %4050 = vmatpush.msra.mxu0 %v4049
  %v4051 = vand.u32 %v2086, 4294901760
  %v4052 = vsub.f32 %v2086, %v4051
  %v4053 = vand.u32 %v4052, 4294901760
  %4054 = vmatpush.msra.mxu0 %v4053
  %v4055 = vand.u32 %v1931, 4294901760
  %v4056 = vsub.f32 %v1931, %v4055
  %v4057 = vand.u32 %v4056, 4294901760
  %4058 = vmatpush.msra.mxu0 %v4057
  %v4059 = vand.u32 %v1776, 4294901760
  %v4060 = vsub.f32 %v1776, %v4059
  %v4061 = vand.u32 %v4060, 4294901760
  %4062 = vmatpush.msra.mxu0 %v4061
  %v4063 = vand.u32 %v1621, 4294901760
  %v4064 = vsub.f32 %v1621, %v4063
  %v4065 = vand.u32 %v4064, 4294901760
  %4066 = vmatpush.msra.mxu0 %v4065
  %v4067 = vand.u32 %v1466, 4294901760
  %v4068 = vsub.f32 %v1466, %v4067
  %v4069 = vand.u32 %v4068, 4294901760
  %4070 = vmatpush.msra.mxu0 %v4069
  %v4071 = vand.u32 %v1311, 4294901760
  %v4072 = vsub.f32 %v1311, %v4071
  %v4073 = vand.u32 %v4072, 4294901760
  %4074 = vmatpush.msra.mxu0 %v4073
  %v4075 = vand.u32 %v1156, 4294901760
  %v4076 = vsub.f32 %v1156, %v4075
  %v4077 = vand.u32 %v4076, 4294901760
  %4078 = vmatpush.msra.mxu0 %v4077
  %v4079 = vand.u32 %v1001, 4294901760
  %v4080 = vsub.f32 %v1001, %v4079
  %v4081 = vand.u32 %v4080, 4294901760
  %4082 = vmatpush.msra.mxu0 %v4081
  %v4083 = vand.u32 %v3327, 4294901760
  %4084 = vmatmul.f32.gmra.mxu0 %v4083
  %v4085 = vpop.f32.mrf.mxu0
  %v4086 = vadd.f32 %v3927, %v4085
  %v4087 = vand.u32 %v3328, 4294901760
  %4088 = vmatmul.f32.gmra.mxu0 %v4087
  %v4089 = vpop.f32.mrf.mxu0
  %v4090 = vadd.f32 %v3933, %v4089
  %v4091 = vand.u32 %v3329, 4294901760
  %4092 = vmatmul.f32.gmra.mxu0 %v4091
  %v4093 = vpop.f32.mrf.mxu0
  %v4094 = vadd.f32 %v3939, %v4093
  %v4095 = vand.u32 %v3330, 4294901760
  %4096 = vmatmul.f32.gmra.mxu0 %v4095
  %v4097 = vpop.f32.mrf.mxu0
  %v4098 = vadd.f32 %v3945, %v4097
  %v4099 = vand.u32 %v3331, 4294901760
  %4100 = vmatmul.f32.gmra.mxu0 %v4099
  %v4101 = vpop.f32.mrf.mxu0
  %v4102 = vadd.f32 %v3951, %v4101
  %v4103 = vand.u32 %v3332, 4294901760
  %4104 = vmatmul.f32.gmra.mxu0 %v4103
  %v4105 = vpop.f32.mrf.mxu0
  %v4106 = vadd.f32 %v3957, %v4105
  %v4107 = vand.u32 %v3333, 4294901760
  %4108 = vmatmul.f32.gmra.mxu0 %v4107
  %v4109 = vpop.f32.mrf.mxu0
  %v4110 = vadd.f32 %v3963, %v4109
  %v4111 = vand.u32 %v3334, 4294901760
  %4112 = vmatmul.f32.gmra.mxu0 %v4111
  %v4113 = vpop.f32.mrf.mxu0
  %v4114 = vadd.f32 %v3969, %v4113
  %v4115 = vand.u32 %v3335, 4294901760
  %4116 = vmatmul.f32.gmra.mxu0 %v4115
  %v4117 = vpop.f32.mrf.mxu0
  %v4118 = vadd.f32 %v3975, %v4117
  %v4119 = vand.u32 %v3336, 4294901760
  %4120 = vmatmul.f32.gmra.mxu0 %v4119
  %v4121 = vpop.f32.mrf.mxu0
  %v4122 = vadd.f32 %v3981, %v4121
  %v4123 = vand.u32 %v3337, 4294901760
  %4124 = vmatmul.f32.gmra.mxu0 %v4123
  %v4125 = vpop.f32.mrf.mxu0
  %v4126 = vadd.f32 %v3987, %v4125
  %v4127 = vand.u32 %v3338, 4294901760
  %4128 = vmatmul.f32.gmra.mxu0 %v4127
  %v4129 = vpop.f32.mrf.mxu0
  %v4130 = vadd.f32 %v3993, %v4129
  %v4131 = vand.u32 %v3339, 4294901760
  %4132 = vmatmul.f32.gmra.mxu0 %v4131
  %v4133 = vpop.f32.mrf.mxu0
  %v4134 = vadd.f32 %v3999, %v4133
  %v4135 = vand.u32 %v3340, 4294901760
  %4136 = vmatmul.f32.gmra.mxu0 %v4135
  %v4137 = vpop.f32.mrf.mxu0
  %v4138 = vadd.f32 %v4005, %v4137
  %v4139 = vand.u32 %v3341, 4294901760
  %4140 = vmatmul.f32.gmra.mxu0 %v4139
  %v4141 = vpop.f32.mrf.mxu0
  %v4142 = vadd.f32 %v4011, %v4141
  %v4143 = vand.u32 %v3342, 4294901760
  %4144 = vmatmul.f32.gmra.mxu0 %v4143
  %v4145 = vpop.f32.mrf.mxu0
  %v4146 = vadd.f32 %v4017, %v4145
  %4147 = vdwg.mxu0
  %v4148 = vand.u32 %v3326, 4294901760
  %4149 = vmatpush.msra.mxu0 %v4148
  %v4150 = vand.u32 %v3171, 4294901760
  %4151 = vmatpush.msra.mxu0 %v4150
  %v4152 = vand.u32 %v3016, 4294901760
  %4153 = vmatpush.msra.mxu0 %v4152
  %v4154 = vand.u32 %v2861, 4294901760
  %4155 = vmatpush.msra.mxu0 %v4154
  %v4156 = vand.u32 %v2706, 4294901760
  %4157 = vmatpush.msra.mxu0 %v4156
  %v4158 = vand.u32 %v2551, 4294901760
  %4159 = vmatpush.msra.mxu0 %v4158
  %v4160 = vand.u32 %v2396, 4294901760
  %4161 = vmatpush.msra.mxu0 %v4160
  %v4162 = vand.u32 %v2241, 4294901760
  %4163 = vmatpush.msra.mxu0 %v4162
  %v4164 = vand.u32 %v2086, 4294901760
  %4165 = vmatpush.msra.mxu0 %v4164
  %v4166 = vand.u32 %v1931, 4294901760
  %4167 = vmatpush.msra.mxu0 %v4166
  %v4168 = vand.u32 %v1776, 4294901760
  %4169 = vmatpush.msra.mxu0 %v4168
  %v4170 = vand.u32 %v1621, 4294901760
  %4171 = vmatpush.msra.mxu0 %v4170
  %v4172 = vand.u32 %v1466, 4294901760
  %4173 = vmatpush.msra.mxu0 %v4172
  %v4174 = vand.u32 %v1311, 4294901760
  %4175 = vmatpush.msra.mxu0 %v4174
  %v4176 = vand.u32 %v1156, 4294901760
  %4177 = vmatpush.msra.mxu0 %v4176
  %v4178 = vand.u32 %v1001, 4294901760
  %4179 = vmatpush.msra.mxu0 %v4178
  %v4180 = vand.u32 %v3327, 4294901760
  %4181 = vmatmul.f32.gmra.mxu0 %v4180
  %v4182 = vpop.f32.mrf.mxu0
  %v4183 = vadd.f32 %v4086, %v4182
  %v4184 = vand.u32 %v3328, 4294901760
  %4185 = vmatmul.f32.gmra.mxu0 %v4184
  %v4186 = vpop.f32.mrf.mxu0
  %v4187 = vadd.f32 %v4090, %v4186
  %v4188 = vand.u32 %v3329, 4294901760
  %4189 = vmatmul.f32.gmra.mxu0 %v4188
  %v4190 = vpop.f32.mrf.mxu0
  %v4191 = vadd.f32 %v4094, %v4190
  %v4192 = vand.u32 %v3330, 4294901760
  %4193 = vmatmul.f32.gmra.mxu0 %v4192
  %v4194 = vpop.f32.mrf.mxu0
  %v4195 = vadd.f32 %v4098, %v4194
  %v4196 = vand.u32 %v3331, 4294901760
  %4197 = vmatmul.f32.gmra.mxu0 %v4196
  %v4198 = vpop.f32.mrf.mxu0
  %v4199 = vadd.f32 %v4102, %v4198
  %v4200 = vand.u32 %v3332, 4294901760
  %4201 = vmatmul.f32.gmra.mxu0 %v4200
  %v4202 = vpop.f32.mrf.mxu0
  %v4203 = vadd.f32 %v4106, %v4202
  %v4204 = vand.u32 %v3333, 4294901760
  %4205 = vmatmul.f32.gmra.mxu0 %v4204
  %v4206 = vpop.f32.mrf.mxu0
  %v4207 = vadd.f32 %v4110, %v4206
  %v4208 = vand.u32 %v3334, 4294901760
  %4209 = vmatmul.f32.gmra.mxu0 %v4208
  %v4210 = vpop.f32.mrf.mxu0
  %v4211 = vadd.f32 %v4114, %v4210
  %v4212 = vand.u32 %v3335, 4294901760
  %4213 = vmatmul.f32.gmra.mxu0 %v4212
  %v4214 = vpop.f32.mrf.mxu0
  %v4215 = vadd.f32 %v4118, %v4214
  %v4216 = vand.u32 %v3336, 4294901760
  %4217 = vmatmul.f32.gmra.mxu0 %v4216
  %v4218 = vpop.f32.mrf.mxu0
  %v4219 = vadd.f32 %v4122, %v4218
  %v4220 = vand.u32 %v3337, 4294901760
  %4221 = vmatmul.f32.gmra.mxu0 %v4220
  %v4222 = vpop.f32.mrf.mxu0
  %v4223 = vadd.f32 %v4126, %v4222
  %v4224 = vand.u32 %v3338, 4294901760
  %4225 = vmatmul.f32.gmra.mxu0 %v4224
  %v4226 = vpop.f32.mrf.mxu0
  %v4227 = vadd.f32 %v4130, %v4226
  %v4228 = vand.u32 %v3339, 4294901760
  %4229 = vmatmul.f32.gmra.mxu0 %v4228
  %v4230 = vpop.f32.mrf.mxu0
  %v4231 = vadd.f32 %v4134, %v4230
  %v4232 = vand.u32 %v3340, 4294901760
  %4233 = vmatmul.f32.gmra.mxu0 %v4232
  %v4234 = vpop.f32.mrf.mxu0
  %v4235 = vadd.f32 %v4138, %v4234
  %v4236 = vand.u32 %v3341, 4294901760
  %4237 = vmatmul.f32.gmra.mxu0 %v4236
  %v4238 = vpop.f32.mrf.mxu0
  %v4239 = vadd.f32 %v4142, %v4238
  %v4240 = vand.u32 %v3342, 4294901760
  %4241 = vmatmul.f32.gmra.mxu0 %v4240
  %v4242 = vpop.f32.mrf.mxu0
  %v4243 = vadd.f32 %v4146, %v4242
  %4244 = vdwg.mxu0
  %v4245 = vand.u32 2147483647, %v4183
  %vm4246 = vcmp.le.f32.partialorder %v4245, 0.7853982
  %vm4247 = vcmp.lt.s32.totalorder %v4183, 0
  %v4248 = vand.u32 %v4183, 2139095040
  %v4249 = vshrl.u32 %v4248, 23
  %v4250 = vsub.s32 %v4249, 127
  %v4251 = vand.u32 2147483647, %v4183
  %v4252 = vand.u32 %v4251, 8388607
  %v4253 = vor.u32 %v4252, 8388608
  %v4254 = vsub.s32 0, %v4253
  %v4255 = vadd.s32 %v4250, 1
  %vm4256 = vcmp.gt.s32.totalorder %v4255, 0
  %v4257 = vsel %vm4256, %v4255, 0
  %v4258 = vshrl.u32 %v4257, 5
  %v4259 = vand.u32 %v4257, 31
  %v4260 = vsub.s32 32, %v4259
  %v4261 = vshrl.u32 683565275, %v4260
  %v4262 = vshll.u32 683565275, %v4259
  %v4263 = vshrl.u32 2475754826, %v4260
  %v4264 = vor.u32 %v4262, %v4263
  %v4265 = vshll.u32 2475754826, %v4259
  %v4266 = vshrl.u32 2131351028, %v4260
  %v4267 = vor.u32 %v4265, %v4266
  %v4268 = vshll.u32 2131351028, %v4259
  %v4269 = vshrl.u32 2102212464, %v4260
  %v4270 = vor.u32 %v4268, %v4269
  %v4271 = vshll.u32 2102212464, %v4259
  %v4272 = vshrl.u32 920167782, %v4260
  %v4273 = vor.u32 %v4271, %v4272
  %v4274 = vshll.u32 920167782, %v4259
  %v4275 = vshrl.u32 1326507024, %v4260
  %v4276 = vor.u32 %v4274, %v4275
  %vm4277 = vcmp.lt.s32.totalorder %v4258, 1
  %vm4278 = vcmp.lt.s32.totalorder %v4258, 2
  %vm4279 = vcmp.lt.s32.totalorder %v4258, 3
  %vm4280 = vcmp.lt.s32.totalorder %v4258, 4
  %v4281 = vsel %vm4277, %v4261, %v4264
  %v4282 = vsel %vm4280, %v4270, 2102212464
  %v4283 = vsel %vm4279, %v4267, %v4282
  %v4284 = vsel %vm4278, %v4281, %v4283
  %v4285 = vsel %vm4277, %v4264, %v4267
  %v4286 = vsel %vm4280, %v4273, 920167782
  %v4287 = vsel %vm4279, %v4270, %v4286
  %v4288 = vsel %vm4278, %v4285, %v4287
  %v4289 = vsel %vm4277, %v4267, %v4270
  %v4290 = vsel %vm4280, %v4276, 1326507024
  %v4291 = vsel %vm4279, %v4273, %v4290
  %v4292 = vsel %vm4278, %v4289, %v4291
  %v4293 = vshll.u32 %v4253, 8
  %v4294 = vand.u32 %v4293, 65535
  %v4295 = vshrl.u32 %v4293, 16
  %v4296 = vand.u32 %v4292, 65535
  %v4297 = vshrl.u32 %v4292, 16
  %v4298 = vmul.u32 %v4294, %v4296
  %v4299 = vmul.u32 %v4294, %v4297
  %v4300 = vmul.u32 %v4295, %v4296
  %v4301 = vmul.u32 %v4295, %v4297
  %v4302 = vshll.u32 %v4299, 16
  %v4303 = vshrl.u32 %v4299, 16
  %v4304 = vshll.u32 %v4300, 16
  %v4305 = vshrl.u32 %v4300, 16
  %vm4306 = vc.u32 %v4298, %v4302
  %v4307 = vsel %vm4306, 1, 0
  %v4308 = vadd.s32 %v4298, %v4302
  %v4309 = vadd.s32 %v4301, %v4307
  %vm4310 = vc.u32 %v4308, %v4304
  %v4311 = vsel %vm4310, 1, 0
  %v4312 = vadd.s32 %v4308, %v4304
  %v4313 = vadd.s32 %v4309, %v4311
  %v4314 = vadd.s32 %v4313, %v4303
  %v4315 = vadd.s32 %v4314, %v4305
  %v4316 = vand.u32 %v4293, 65535
  %v4317 = vshrl.u32 %v4293, 16
  %v4318 = vand.u32 %v4288, 65535
  %v4319 = vshrl.u32 %v4288, 16
  %v4320 = vmul.u32 %v4316, %v4318
  %v4321 = vmul.u32 %v4316, %v4319
  %v4322 = vmul.u32 %v4317, %v4318
  %v4323 = vmul.u32 %v4317, %v4319
  %v4324 = vshll.u32 %v4321, 16
  %v4325 = vshrl.u32 %v4321, 16
  %v4326 = vshll.u32 %v4322, 16
  %v4327 = vshrl.u32 %v4322, 16
  %vm4328 = vc.u32 %v4320, %v4324
  %v4329 = vsel %vm4328, 1, 0
  %v4330 = vadd.s32 %v4320, %v4324
  %v4331 = vadd.s32 %v4323, %v4329
  %vm4332 = vc.u32 %v4330, %v4326
  %v4333 = vsel %vm4332, 1, 0
  %v4334 = vadd.s32 %v4330, %v4326
  %v4335 = vadd.s32 %v4331, %v4333
  %v4336 = vadd.s32 %v4335, %v4325
  %v4337 = vadd.s32 %v4336, %v4327
  %v4338 = vmul.u32 %v4293, %v4284
  %v4339 = vadd.s32 %v4315, %v4334
  %vm4340 = vc.u32 %v4315, %v4334
  %v4341 = vadd.s32 %v4337, 1
  %v4342 = vsel %vm4340, %v4341, %v4337
  %v4343 = vadd.s32 %v4338, %v4342
  %v4344 = vadd.s32 %v4343, 536870912
  %v4345 = vshrl.u32 %v4344, 30
  %v4346 = vshll.u32 %v4345, 30
  %v4347 = vsub.s32 %v4343, %v4346
  %vm4348 = vcmp.lt.s32.totalorder %v4347, 0
  %v4349 = vsub.s32 0, %v4347
  %v4350 = vsel %vm4348, %v4349, %v4347
  %v4351 = vclz %v4350
  %v4352 = vsub.s32 %v4351, 2
  %vm4353 = vcmp.gt.s32.totalorder 0, %v4352
  %v4354 = vsel %vm4353, 0, %v4352
  %v4355 = vsub.s32 32, %v4354
  %v4356 = vshll.u32 %v4347, %v4354
  %v4357 = vshrl.u32 %v4339, %v4355
  %v4358 = vor.u32 %v4356, %v4357
  %v4359 = vsub.s32 4294967266, %v4354
  %v4360 = vadd.s32 %v4359, 127
  %v4361 = vshll.u32 %v4360, 23
  %v4362 = vor.u32 4788187, %v4361
  %v4363 = vand.u32 2147483647, %v4362
  %v4365 = vcvt.s32.f32 %v4358
  %v4366 = vmul.f32 %v4365, %v4363
  %v4367 = vxor.u32 %v4366, 2147483648
  %v4368 = vsel %vm4247, %v4367, %v4366
  %v4369 = vsub.s32 4, %v4345
  %v4370 = vsel %vm4247, %v4369, %v4345
  %v4371 = vsel %vm4246, %v4183, %v4368
  %v4372 = vsel %vm4246, 0, %v4370
  %v4373 = vmul.f32 %v4371, %v4371
  %v4374 = vmul.f32 %v4373, -0.001358992
  %v4375 = vadd.f32 %v4374, 0.041655596
  %v4376 = vmul.f32 %v4373, %v4375
  %v4377 = vadd.f32 %v4376, -0.4999988
  %v4378 = vmul.f32 %v4373, %v4377
  %v4379 = vadd.f32 1.0, %v4378
  %v4380 = vmul.f32 %v4371, %v4371
  %v4381 = vmul.f32 %v4380, -0.00019511016
  %v4382 = vadd.f32 %v4381, 0.008332121
  %v4383 = vmul.f32 %v4380, %v4382
  %v4384 = vadd.f32 %v4383, -0.16666654
  %v4385 = vmul.f32 %v4380, %v4384
  %v4386 = vadd.f32 %v4385, 1.0
  %v4387 = vmul.f32 %v4386, %v4371
  %vm4388 = vweird.f32 %v4183
  %v4389 = vadd.s32 %v4372, 3
  %v4390 = vand.u32 %v4389, 3
  %vm4391 = vcmp.lt.s32.totalorder %v4390, 2
  %vm4392 = vcmp.eq.s32.totalorder %v4390, 0
  %v4393 = vxor.u32 %v4387, 2147483648
  %v4394 = vsel %vm4392, %v4379, %v4393
  %vm4395 = vcmp.eq.s32.totalorder %v4390, 2
  %v4396 = vxor.u32 %v4379, 2147483648
  %v4397 = vsel %vm4395, %v4396, %v4387
  %v4398 = vsel %vm4391, %v4394, %v4397
  %v4399 = vsel %vm4388, nan, %v4398
  %v4400 = vand.u32 2147483647, %v4187
  %vm4401 = vcmp.le.f32.partialorder %v4400, 0.7853982
  %vm4402 = vcmp.lt.s32.totalorder %v4187, 0
  %v4403 = vand.u32 %v4187, 2139095040
  %v4404 = vshrl.u32 %v4403, 23
  %v4405 = vsub.s32 %v4404, 127
  %v4406 = vand.u32 2147483647, %v4187
  %v4407 = vand.u32 %v4406, 8388607
  %v4408 = vor.u32 %v4407, 8388608
  %v4409 = vsub.s32 0, %v4408
  %v4410 = vadd.s32 %v4405, 1
  %vm4411 = vcmp.gt.s32.totalorder %v4410, 0
  %v4412 = vsel %vm4411, %v4410, 0
  %v4413 = vshrl.u32 %v4412, 5
  %v4414 = vand.u32 %v4412, 31
  %v4415 = vsub.s32 32, %v4414
  %v4416 = vshrl.u32 683565275, %v4415
  %v4417 = vshll.u32 683565275, %v4414
  %v4418 = vshrl.u32 2475754826, %v4415
  %v4419 = vor.u32 %v4417, %v4418
  %v4420 = vshll.u32 2475754826, %v4414
  %v4421 = vshrl.u32 2131351028, %v4415
  %v4422 = vor.u32 %v4420, %v4421
  %v4423 = vshll.u32 2131351028, %v4414
  %v4424 = vshrl.u32 2102212464, %v4415
  %v4425 = vor.u32 %v4423, %v4424
  %v4426 = vshll.u32 2102212464, %v4414
  %v4427 = vshrl.u32 920167782, %v4415
  %v4428 = vor.u32 %v4426, %v4427
  %v4429 = vshll.u32 920167782, %v4414
  %v4430 = vshrl.u32 1326507024, %v4415
  %v4431 = vor.u32 %v4429, %v4430
  %vm4432 = vcmp.lt.s32.totalorder %v4413, 1
  %vm4433 = vcmp.lt.s32.totalorder %v4413, 2
  %vm4434 = vcmp.lt.s32.totalorder %v4413, 3
  %vm4435 = vcmp.lt.s32.totalorder %v4413, 4
  %v4436 = vsel %vm4432, %v4416, %v4419
  %v4437 = vsel %vm4435, %v4425, 2102212464
  %v4438 = vsel %vm4434, %v4422, %v4437
  %v4439 = vsel %vm4433, %v4436, %v4438
  %v4440 = vsel %vm4432, %v4419, %v4422
  %v4441 = vsel %vm4435, %v4428, 920167782
  %v4442 = vsel %vm4434, %v4425, %v4441
  %v4443 = vsel %vm4433, %v4440, %v4442
  %v4444 = vsel %vm4432, %v4422, %v4425
  %v4445 = vsel %vm4435, %v4431, 1326507024
  %v4446 = vsel %vm4434, %v4428, %v4445
  %v4447 = vsel %vm4433, %v4444, %v4446
  %v4448 = vshll.u32 %v4408, 8
  %v4449 = vand.u32 %v4448, 65535
  %v4450 = vshrl.u32 %v4448, 16
  %v4451 = vand.u32 %v4447, 65535
  %v4452 = vshrl.u32 %v4447, 16
  %v4453 = vmul.u32 %v4449, %v4451
  %v4454 = vmul.u32 %v4449, %v4452
  %v4455 = vmul.u32 %v4450, %v4451
  %v4456 = vmul.u32 %v4450, %v4452
  %v4457 = vshll.u32 %v4454, 16
  %v4458 = vshrl.u32 %v4454, 16
  %v4459 = vshll.u32 %v4455, 16
  %v4460 = vshrl.u32 %v4455, 16
  %vm4461 = vc.u32 %v4453, %v4457
  %v4462 = vsel %vm4461, 1, 0
  %v4463 = vadd.s32 %v4453, %v4457
  %v4464 = vadd.s32 %v4456, %v4462
  %vm4465 = vc.u32 %v4463, %v4459
  %v4466 = vsel %vm4465, 1, 0
  %v4467 = vadd.s32 %v4463, %v4459
  %v4468 = vadd.s32 %v4464, %v4466
  %v4469 = vadd.s32 %v4468, %v4458
  %v4470 = vadd.s32 %v4469, %v4460
  %v4471 = vand.u32 %v4448, 65535
  %v4472 = vshrl.u32 %v4448, 16
  %v4473 = vand.u32 %v4443, 65535
  %v4474 = vshrl.u32 %v4443, 16
  %v4475 = vmul.u32 %v4471, %v4473
  %v4476 = vmul.u32 %v4471, %v4474
  %v4477 = vmul.u32 %v4472, %v4473
  %v4478 = vmul.u32 %v4472, %v4474
  %v4479 = vshll.u32 %v4476, 16
  %v4480 = vshrl.u32 %v4476, 16
  %v4481 = vshll.u32 %v4477, 16
  %v4482 = vshrl.u32 %v4477, 16
  %vm4483 = vc.u32 %v4475, %v4479
  %v4484 = vsel %vm4483, 1, 0
  %v4485 = vadd.s32 %v4475, %v4479
  %v4486 = vadd.s32 %v4478, %v4484
  %vm4487 = vc.u32 %v4485, %v4481
  %v4488 = vsel %vm4487, 1, 0
  %v4489 = vadd.s32 %v4485, %v4481
  %v4490 = vadd.s32 %v4486, %v4488
  %v4491 = vadd.s32 %v4490, %v4480
  %v4492 = vadd.s32 %v4491, %v4482
  %v4493 = vmul.u32 %v4448, %v4439
  %v4494 = vadd.s32 %v4470, %v4489
  %vm4495 = vc.u32 %v4470, %v4489
  %v4496 = vadd.s32 %v4492, 1
  %v4497 = vsel %vm4495, %v4496, %v4492
  %v4498 = vadd.s32 %v4493, %v4497
  %v4499 = vadd.s32 %v4498, 536870912
  %v4500 = vshrl.u32 %v4499, 30
  %v4501 = vshll.u32 %v4500, 30
  %v4502 = vsub.s32 %v4498, %v4501
  %vm4503 = vcmp.lt.s32.totalorder %v4502, 0
  %v4504 = vsub.s32 0, %v4502
  %v4505 = vsel %vm4503, %v4504, %v4502
  %v4506 = vclz %v4505
  %v4507 = vsub.s32 %v4506, 2
  %vm4508 = vcmp.gt.s32.totalorder 0, %v4507
  %v4509 = vsel %vm4508, 0, %v4507
  %v4510 = vsub.s32 32, %v4509
  %v4511 = vshll.u32 %v4502, %v4509
  %v4512 = vshrl.u32 %v4494, %v4510
  %v4513 = vor.u32 %v4511, %v4512
  %v4514 = vsub.s32 4294967266, %v4509
  %v4515 = vadd.s32 %v4514, 127
  %v4516 = vshll.u32 %v4515, 23
  %v4517 = vor.u32 4788187, %v4516
  %v4518 = vand.u32 2147483647, %v4517
  %v4520 = vcvt.s32.f32 %v4513
  %v4521 = vmul.f32 %v4520, %v4518
  %v4522 = vxor.u32 %v4521, 2147483648
  %v4523 = vsel %vm4402, %v4522, %v4521
  %v4524 = vsub.s32 4, %v4500
  %v4525 = vsel %vm4402, %v4524, %v4500
  %v4526 = vsel %vm4401, %v4187, %v4523
  %v4527 = vsel %vm4401, 0, %v4525
  %v4528 = vmul.f32 %v4526, %v4526
  %v4529 = vmul.f32 %v4528, -0.001358992
  %v4530 = vadd.f32 %v4529, 0.041655596
  %v4531 = vmul.f32 %v4528, %v4530
  %v4532 = vadd.f32 %v4531, -0.4999988
  %v4533 = vmul.f32 %v4528, %v4532
  %v4534 = vadd.f32 1.0, %v4533
  %v4535 = vmul.f32 %v4526, %v4526
  %v4536 = vmul.f32 %v4535, -0.00019511016
  %v4537 = vadd.f32 %v4536, 0.008332121
  %v4538 = vmul.f32 %v4535, %v4537
  %v4539 = vadd.f32 %v4538, -0.16666654
  %v4540 = vmul.f32 %v4535, %v4539
  %v4541 = vadd.f32 %v4540, 1.0
  %v4542 = vmul.f32 %v4541, %v4526
  %vm4543 = vweird.f32 %v4187
  %v4544 = vadd.s32 %v4527, 3
  %v4545 = vand.u32 %v4544, 3
  %vm4546 = vcmp.lt.s32.totalorder %v4545, 2
  %vm4547 = vcmp.eq.s32.totalorder %v4545, 0
  %v4548 = vxor.u32 %v4542, 2147483648
  %v4549 = vsel %vm4547, %v4534, %v4548
  %vm4550 = vcmp.eq.s32.totalorder %v4545, 2
  %v4551 = vxor.u32 %v4534, 2147483648
  %v4552 = vsel %vm4550, %v4551, %v4542
  %v4553 = vsel %vm4546, %v4549, %v4552
  %v4554 = vsel %vm4543, nan, %v4553
  %v4555 = vand.u32 2147483647, %v4191
  %vm4556 = vcmp.le.f32.partialorder %v4555, 0.7853982
  %vm4557 = vcmp.lt.s32.totalorder %v4191, 0
  %v4558 = vand.u32 %v4191, 2139095040
  %v4559 = vshrl.u32 %v4558, 23
  %v4560 = vsub.s32 %v4559, 127
  %v4561 = vand.u32 2147483647, %v4191
  %v4562 = vand.u32 %v4561, 8388607
  %v4563 = vor.u32 %v4562, 8388608
  %v4564 = vsub.s32 0, %v4563
  %v4565 = vadd.s32 %v4560, 1
  %vm4566 = vcmp.gt.s32.totalorder %v4565, 0
  %v4567 = vsel %vm4566, %v4565, 0
  %v4568 = vshrl.u32 %v4567, 5
  %v4569 = vand.u32 %v4567, 31
  %v4570 = vsub.s32 32, %v4569
  %v4571 = vshrl.u32 683565275, %v4570
  %v4572 = vshll.u32 683565275, %v4569
  %v4573 = vshrl.u32 2475754826, %v4570
  %v4574 = vor.u32 %v4572, %v4573
  %v4575 = vshll.u32 2475754826, %v4569
  %v4576 = vshrl.u32 2131351028, %v4570
  %v4577 = vor.u32 %v4575, %v4576
  %v4578 = vshll.u32 2131351028, %v4569
  %v4579 = vshrl.u32 2102212464, %v4570
  %v4580 = vor.u32 %v4578, %v4579
  %v4581 = vshll.u32 2102212464, %v4569
  %v4582 = vshrl.u32 920167782, %v4570
  %v4583 = vor.u32 %v4581, %v4582
  %v4584 = vshll.u32 920167782, %v4569
  %v4585 = vshrl.u32 1326507024, %v4570
  %v4586 = vor.u32 %v4584, %v4585
  %vm4587 = vcmp.lt.s32.totalorder %v4568, 1
  %vm4588 = vcmp.lt.s32.totalorder %v4568, 2
  %vm4589 = vcmp.lt.s32.totalorder %v4568, 3
  %vm4590 = vcmp.lt.s32.totalorder %v4568, 4
  %v4591 = vsel %vm4587, %v4571, %v4574
  %v4592 = vsel %vm4590, %v4580, 2102212464
  %v4593 = vsel %vm4589, %v4577, %v4592
  %v4594 = vsel %vm4588, %v4591, %v4593
  %v4595 = vsel %vm4587, %v4574, %v4577
  %v4596 = vsel %vm4590, %v4583, 920167782
  %v4597 = vsel %vm4589, %v4580, %v4596
  %v4598 = vsel %vm4588, %v4595, %v4597
  %v4599 = vsel %vm4587, %v4577, %v4580
  %v4600 = vsel %vm4590, %v4586, 1326507024
  %v4601 = vsel %vm4589, %v4583, %v4600
  %v4602 = vsel %vm4588, %v4599, %v4601
  %v4603 = vshll.u32 %v4563, 8
  %v4604 = vand.u32 %v4603, 65535
  %v4605 = vshrl.u32 %v4603, 16
  %v4606 = vand.u32 %v4602, 65535
  %v4607 = vshrl.u32 %v4602, 16
  %v4608 = vmul.u32 %v4604, %v4606
  %v4609 = vmul.u32 %v4604, %v4607
  %v4610 = vmul.u32 %v4605, %v4606
  %v4611 = vmul.u32 %v4605, %v4607
  %v4612 = vshll.u32 %v4609, 16
  %v4613 = vshrl.u32 %v4609, 16
  %v4614 = vshll.u32 %v4610, 16
  %v4615 = vshrl.u32 %v4610, 16
  %vm4616 = vc.u32 %v4608, %v4612
  %v4617 = vsel %vm4616, 1, 0
  %v4618 = vadd.s32 %v4608, %v4612
  %v4619 = vadd.s32 %v4611, %v4617
  %vm4620 = vc.u32 %v4618, %v4614
  %v4621 = vsel %vm4620, 1, 0
  %v4622 = vadd.s32 %v4618, %v4614
  %v4623 = vadd.s32 %v4619, %v4621
  %v4624 = vadd.s32 %v4623, %v4613
  %v4625 = vadd.s32 %v4624, %v4615
  %v4626 = vand.u32 %v4603, 65535
  %v4627 = vshrl.u32 %v4603, 16
  %v4628 = vand.u32 %v4598, 65535
  %v4629 = vshrl.u32 %v4598, 16
  %v4630 = vmul.u32 %v4626, %v4628
  %v4631 = vmul.u32 %v4626, %v4629
  %v4632 = vmul.u32 %v4627, %v4628
  %v4633 = vmul.u32 %v4627, %v4629
  %v4634 = vshll.u32 %v4631, 16
  %v4635 = vshrl.u32 %v4631, 16
  %v4636 = vshll.u32 %v4632, 16
  %v4637 = vshrl.u32 %v4632, 16
  %vm4638 = vc.u32 %v4630, %v4634
  %v4639 = vsel %vm4638, 1, 0
  %v4640 = vadd.s32 %v4630, %v4634
  %v4641 = vadd.s32 %v4633, %v4639
  %vm4642 = vc.u32 %v4640, %v4636
  %v4643 = vsel %vm4642, 1, 0
  %v4644 = vadd.s32 %v4640, %v4636
  %v4645 = vadd.s32 %v4641, %v4643
  %v4646 = vadd.s32 %v4645, %v4635
  %v4647 = vadd.s32 %v4646, %v4637
  %v4648 = vmul.u32 %v4603, %v4594
  %v4649 = vadd.s32 %v4625, %v4644
  %vm4650 = vc.u32 %v4625, %v4644
  %v4651 = vadd.s32 %v4647, 1
  %v4652 = vsel %vm4650, %v4651, %v4647
  %v4653 = vadd.s32 %v4648, %v4652
  %v4654 = vadd.s32 %v4653, 536870912
  %v4655 = vshrl.u32 %v4654, 30
  %v4656 = vshll.u32 %v4655, 30
  %v4657 = vsub.s32 %v4653, %v4656
  %vm4658 = vcmp.lt.s32.totalorder %v4657, 0
  %v4659 = vsub.s32 0, %v4657
  %v4660 = vsel %vm4658, %v4659, %v4657
  %v4661 = vclz %v4660
  %v4662 = vsub.s32 %v4661, 2
  %vm4663 = vcmp.gt.s32.totalorder 0, %v4662
  %v4664 = vsel %vm4663, 0, %v4662
  %v4665 = vsub.s32 32, %v4664
  %v4666 = vshll.u32 %v4657, %v4664
  %v4667 = vshrl.u32 %v4649, %v4665
  %v4668 = vor.u32 %v4666, %v4667
  %v4669 = vsub.s32 4294967266, %v4664
  %v4670 = vadd.s32 %v4669, 127
  %v4671 = vshll.u32 %v4670, 23
  %v4672 = vor.u32 4788187, %v4671
  %v4673 = vand.u32 2147483647, %v4672
  %v4675 = vcvt.s32.f32 %v4668
  %v4676 = vmul.f32 %v4675, %v4673
  %v4677 = vxor.u32 %v4676, 2147483648
  %v4678 = vsel %vm4557, %v4677, %v4676
  %v4679 = vsub.s32 4, %v4655
  %v4680 = vsel %vm4557, %v4679, %v4655
  %v4681 = vsel %vm4556, %v4191, %v4678
  %v4682 = vsel %vm4556, 0, %v4680
  %v4683 = vmul.f32 %v4681, %v4681
  %v4684 = vmul.f32 %v4683, -0.001358992
  %v4685 = vadd.f32 %v4684, 0.041655596
  %v4686 = vmul.f32 %v4683, %v4685
  %v4687 = vadd.f32 %v4686, -0.4999988
  %v4688 = vmul.f32 %v4683, %v4687
  %v4689 = vadd.f32 1.0, %v4688
  %v4690 = vmul.f32 %v4681, %v4681
  %v4691 = vmul.f32 %v4690, -0.00019511016
  %v4692 = vadd.f32 %v4691, 0.008332121
  %v4693 = vmul.f32 %v4690, %v4692
  %v4694 = vadd.f32 %v4693, -0.16666654
  %v4695 = vmul.f32 %v4690, %v4694
  %v4696 = vadd.f32 %v4695, 1.0
  %v4697 = vmul.f32 %v4696, %v4681
  %vm4698 = vweird.f32 %v4191
  %v4699 = vadd.s32 %v4682, 3
  %v4700 = vand.u32 %v4699, 3
  %vm4701 = vcmp.lt.s32.totalorder %v4700, 2
  %vm4702 = vcmp.eq.s32.totalorder %v4700, 0
  %v4703 = vxor.u32 %v4697, 2147483648
  %v4704 = vsel %vm4702, %v4689, %v4703
  %vm4705 = vcmp.eq.s32.totalorder %v4700, 2
  %v4706 = vxor.u32 %v4689, 2147483648
  %v4707 = vsel %vm4705, %v4706, %v4697
  %v4708 = vsel %vm4701, %v4704, %v4707
  %v4709 = vsel %vm4698, nan, %v4708
  %v4710 = vand.u32 2147483647, %v4195
  %vm4711 = vcmp.le.f32.partialorder %v4710, 0.7853982
  %vm4712 = vcmp.lt.s32.totalorder %v4195, 0
  %v4713 = vand.u32 %v4195, 2139095040
  %v4714 = vshrl.u32 %v4713, 23
  %v4715 = vsub.s32 %v4714, 127
  %v4716 = vand.u32 2147483647, %v4195
  %v4717 = vand.u32 %v4716, 8388607
  %v4718 = vor.u32 %v4717, 8388608
  %v4719 = vsub.s32 0, %v4718
  %v4720 = vadd.s32 %v4715, 1
  %vm4721 = vcmp.gt.s32.totalorder %v4720, 0
  %v4722 = vsel %vm4721, %v4720, 0
  %v4723 = vshrl.u32 %v4722, 5
  %v4724 = vand.u32 %v4722, 31
  %v4725 = vsub.s32 32, %v4724
  %v4726 = vshrl.u32 683565275, %v4725
  %v4727 = vshll.u32 683565275, %v4724
  %v4728 = vshrl.u32 2475754826, %v4725
  %v4729 = vor.u32 %v4727, %v4728
  %v4730 = vshll.u32 2475754826, %v4724
  %v4731 = vshrl.u32 2131351028, %v4725
  %v4732 = vor.u32 %v4730, %v4731
  %v4733 = vshll.u32 2131351028, %v4724
  %v4734 = vshrl.u32 2102212464, %v4725
  %v4735 = vor.u32 %v4733, %v4734
  %v4736 = vshll.u32 2102212464, %v4724
  %v4737 = vshrl.u32 920167782, %v4725
  %v4738 = vor.u32 %v4736, %v4737
  %v4739 = vshll.u32 920167782, %v4724
  %v4740 = vshrl.u32 1326507024, %v4725
  %v4741 = vor.u32 %v4739, %v4740
  %vm4742 = vcmp.lt.s32.totalorder %v4723, 1
  %vm4743 = vcmp.lt.s32.totalorder %v4723, 2
  %vm4744 = vcmp.lt.s32.totalorder %v4723, 3
  %vm4745 = vcmp.lt.s32.totalorder %v4723, 4
  %v4746 = vsel %vm4742, %v4726, %v4729
  %v4747 = vsel %vm4745, %v4735, 2102212464
  %v4748 = vsel %vm4744, %v4732, %v4747
  %v4749 = vsel %vm4743, %v4746, %v4748
  %v4750 = vsel %vm4742, %v4729, %v4732
  %v4751 = vsel %vm4745, %v4738, 920167782
  %v4752 = vsel %vm4744, %v4735, %v4751
  %v4753 = vsel %vm4743, %v4750, %v4752
  %v4754 = vsel %vm4742, %v4732, %v4735
  %v4755 = vsel %vm4745, %v4741, 1326507024
  %v4756 = vsel %vm4744, %v4738, %v4755
  %v4757 = vsel %vm4743, %v4754, %v4756
  %v4758 = vshll.u32 %v4718, 8
  %v4759 = vand.u32 %v4758, 65535
  %v4760 = vshrl.u32 %v4758, 16
  %v4761 = vand.u32 %v4757, 65535
  %v4762 = vshrl.u32 %v4757, 16
  %v4763 = vmul.u32 %v4759, %v4761
  %v4764 = vmul.u32 %v4759, %v4762
  %v4765 = vmul.u32 %v4760, %v4761
  %v4766 = vmul.u32 %v4760, %v4762
  %v4767 = vshll.u32 %v4764, 16
  %v4768 = vshrl.u32 %v4764, 16
  %v4769 = vshll.u32 %v4765, 16
  %v4770 = vshrl.u32 %v4765, 16
  %vm4771 = vc.u32 %v4763, %v4767
  %v4772 = vsel %vm4771, 1, 0
  %v4773 = vadd.s32 %v4763, %v4767
  %v4774 = vadd.s32 %v4766, %v4772
  %vm4775 = vc.u32 %v4773, %v4769
  %v4776 = vsel %vm4775, 1, 0
  %v4777 = vadd.s32 %v4773, %v4769
  %v4778 = vadd.s32 %v4774, %v4776
  %v4779 = vadd.s32 %v4778, %v4768
  %v4780 = vadd.s32 %v4779, %v4770
  %v4781 = vand.u32 %v4758, 65535
  %v4782 = vshrl.u32 %v4758, 16
  %v4783 = vand.u32 %v4753, 65535
  %v4784 = vshrl.u32 %v4753, 16
  %v4785 = vmul.u32 %v4781, %v4783
  %v4786 = vmul.u32 %v4781, %v4784
  %v4787 = vmul.u32 %v4782, %v4783
  %v4788 = vmul.u32 %v4782, %v4784
  %v4789 = vshll.u32 %v4786, 16
  %v4790 = vshrl.u32 %v4786, 16
  %v4791 = vshll.u32 %v4787, 16
  %v4792 = vshrl.u32 %v4787, 16
  %vm4793 = vc.u32 %v4785, %v4789
  %v4794 = vsel %vm4793, 1, 0
  %v4795 = vadd.s32 %v4785, %v4789
  %v4796 = vadd.s32 %v4788, %v4794
  %vm4797 = vc.u32 %v4795, %v4791
  %v4798 = vsel %vm4797, 1, 0
  %v4799 = vadd.s32 %v4795, %v4791
  %v4800 = vadd.s32 %v4796, %v4798
  %v4801 = vadd.s32 %v4800, %v4790
  %v4802 = vadd.s32 %v4801, %v4792
  %v4803 = vmul.u32 %v4758, %v4749
  %v4804 = vadd.s32 %v4780, %v4799
  %vm4805 = vc.u32 %v4780, %v4799
  %v4806 = vadd.s32 %v4802, 1
  %v4807 = vsel %vm4805, %v4806, %v4802
  %v4808 = vadd.s32 %v4803, %v4807
  %v4809 = vadd.s32 %v4808, 536870912
  %v4810 = vshrl.u32 %v4809, 30
  %v4811 = vshll.u32 %v4810, 30
  %v4812 = vsub.s32 %v4808, %v4811
  %vm4813 = vcmp.lt.s32.totalorder %v4812, 0
  %v4814 = vsub.s32 0, %v4812
  %v4815 = vsel %vm4813, %v4814, %v4812
  %v4816 = vclz %v4815
  %v4817 = vsub.s32 %v4816, 2
  %vm4818 = vcmp.gt.s32.totalorder 0, %v4817
  %v4819 = vsel %vm4818, 0, %v4817
  %v4820 = vsub.s32 32, %v4819
  %v4821 = vshll.u32 %v4812, %v4819
  %v4822 = vshrl.u32 %v4804, %v4820
  %v4823 = vor.u32 %v4821, %v4822
  %v4824 = vsub.s32 4294967266, %v4819
  %v4825 = vadd.s32 %v4824, 127
  %v4826 = vshll.u32 %v4825, 23
  %v4827 = vor.u32 4788187, %v4826
  %v4828 = vand.u32 2147483647, %v4827
  %v4830 = vcvt.s32.f32 %v4823
  %v4831 = vmul.f32 %v4830, %v4828
  %v4832 = vxor.u32 %v4831, 2147483648
  %v4833 = vsel %vm4712, %v4832, %v4831
  %v4834 = vsub.s32 4, %v4810
  %v4835 = vsel %vm4712, %v4834, %v4810
  %v4836 = vsel %vm4711, %v4195, %v4833
  %v4837 = vsel %vm4711, 0, %v4835
  %v4838 = vmul.f32 %v4836, %v4836
  %v4839 = vmul.f32 %v4838, -0.001358992
  %v4840 = vadd.f32 %v4839, 0.041655596
  %v4841 = vmul.f32 %v4838, %v4840
  %v4842 = vadd.f32 %v4841, -0.4999988
  %v4843 = vmul.f32 %v4838, %v4842
  %v4844 = vadd.f32 1.0, %v4843
  %v4845 = vmul.f32 %v4836, %v4836
  %v4846 = vmul.f32 %v4845, -0.00019511016
  %v4847 = vadd.f32 %v4846, 0.008332121
  %v4848 = vmul.f32 %v4845, %v4847
  %v4849 = vadd.f32 %v4848, -0.16666654
  %v4850 = vmul.f32 %v4845, %v4849
  %v4851 = vadd.f32 %v4850, 1.0
  %v4852 = vmul.f32 %v4851, %v4836
  %vm4853 = vweird.f32 %v4195
  %v4854 = vadd.s32 %v4837, 3
  %v4855 = vand.u32 %v4854, 3
  %vm4856 = vcmp.lt.s32.totalorder %v4855, 2
  %vm4857 = vcmp.eq.s32.totalorder %v4855, 0
  %v4858 = vxor.u32 %v4852, 2147483648
  %v4859 = vsel %vm4857, %v4844, %v4858
  %vm4860 = vcmp.eq.s32.totalorder %v4855, 2
  %v4861 = vxor.u32 %v4844, 2147483648
  %v4862 = vsel %vm4860, %v4861, %v4852
  %v4863 = vsel %vm4856, %v4859, %v4862
  %v4864 = vsel %vm4853, nan, %v4863
  %v4865 = vand.u32 2147483647, %v4199
  %vm4866 = vcmp.le.f32.partialorder %v4865, 0.7853982
  %vm4867 = vcmp.lt.s32.totalorder %v4199, 0
  %v4868 = vand.u32 %v4199, 2139095040
  %v4869 = vshrl.u32 %v4868, 23
  %v4870 = vsub.s32 %v4869, 127
  %v4871 = vand.u32 2147483647, %v4199
  %v4872 = vand.u32 %v4871, 8388607
  %v4873 = vor.u32 %v4872, 8388608
  %v4874 = vsub.s32 0, %v4873
  %v4875 = vadd.s32 %v4870, 1
  %vm4876 = vcmp.gt.s32.totalorder %v4875, 0
  %v4877 = vsel %vm4876, %v4875, 0
  %v4878 = vshrl.u32 %v4877, 5
  %v4879 = vand.u32 %v4877, 31
  %v4880 = vsub.s32 32, %v4879
  %v4881 = vshrl.u32 683565275, %v4880
  %v4882 = vshll.u32 683565275, %v4879
  %v4883 = vshrl.u32 2475754826, %v4880
  %v4884 = vor.u32 %v4882, %v4883
  %v4885 = vshll.u32 2475754826, %v4879
  %v4886 = vshrl.u32 2131351028, %v4880
  %v4887 = vor.u32 %v4885, %v4886
  %v4888 = vshll.u32 2131351028, %v4879
  %v4889 = vshrl.u32 2102212464, %v4880
  %v4890 = vor.u32 %v4888, %v4889
  %v4891 = vshll.u32 2102212464, %v4879
  %v4892 = vshrl.u32 920167782, %v4880
  %v4893 = vor.u32 %v4891, %v4892
  %v4894 = vshll.u32 920167782, %v4879
  %v4895 = vshrl.u32 1326507024, %v4880
  %v4896 = vor.u32 %v4894, %v4895
  %vm4897 = vcmp.lt.s32.totalorder %v4878, 1
  %vm4898 = vcmp.lt.s32.totalorder %v4878, 2
  %vm4899 = vcmp.lt.s32.totalorder %v4878, 3
  %vm4900 = vcmp.lt.s32.totalorder %v4878, 4
  %v4901 = vsel %vm4897, %v4881, %v4884
  %v4902 = vsel %vm4900, %v4890, 2102212464
  %v4903 = vsel %vm4899, %v4887, %v4902
  %v4904 = vsel %vm4898, %v4901, %v4903
  %v4905 = vsel %vm4897, %v4884, %v4887
  %v4906 = vsel %vm4900, %v4893, 920167782
  %v4907 = vsel %vm4899, %v4890, %v4906
  %v4908 = vsel %vm4898, %v4905, %v4907
  %v4909 = vsel %vm4897, %v4887, %v4890
  %v4910 = vsel %vm4900, %v4896, 1326507024
  %v4911 = vsel %vm4899, %v4893, %v4910
  %v4912 = vsel %vm4898, %v4909, %v4911
  %v4913 = vshll.u32 %v4873, 8
  %v4914 = vand.u32 %v4913, 65535
  %v4915 = vshrl.u32 %v4913, 16
  %v4916 = vand.u32 %v4912, 65535
  %v4917 = vshrl.u32 %v4912, 16
  %v4918 = vmul.u32 %v4914, %v4916
  %v4919 = vmul.u32 %v4914, %v4917
  %v4920 = vmul.u32 %v4915, %v4916
  %v4921 = vmul.u32 %v4915, %v4917
  %v4922 = vshll.u32 %v4919, 16
  %v4923 = vshrl.u32 %v4919, 16
  %v4924 = vshll.u32 %v4920, 16
  %v4925 = vshrl.u32 %v4920, 16
  %vm4926 = vc.u32 %v4918, %v4922
  %v4927 = vsel %vm4926, 1, 0
  %v4928 = vadd.s32 %v4918, %v4922
  %v4929 = vadd.s32 %v4921, %v4927
  %vm4930 = vc.u32 %v4928, %v4924
  %v4931 = vsel %vm4930, 1, 0
  %v4932 = vadd.s32 %v4928, %v4924
  %v4933 = vadd.s32 %v4929, %v4931
  %v4934 = vadd.s32 %v4933, %v4923
  %v4935 = vadd.s32 %v4934, %v4925
  %v4936 = vand.u32 %v4913, 65535
  %v4937 = vshrl.u32 %v4913, 16
  %v4938 = vand.u32 %v4908, 65535
  %v4939 = vshrl.u32 %v4908, 16
  %v4940 = vmul.u32 %v4936, %v4938
  %v4941 = vmul.u32 %v4936, %v4939
  %v4942 = vmul.u32 %v4937, %v4938
  %v4943 = vmul.u32 %v4937, %v4939
  %v4944 = vshll.u32 %v4941, 16
  %v4945 = vshrl.u32 %v4941, 16
  %v4946 = vshll.u32 %v4942, 16
  %v4947 = vshrl.u32 %v4942, 16
  %vm4948 = vc.u32 %v4940, %v4944
  %v4949 = vsel %vm4948, 1, 0
  %v4950 = vadd.s32 %v4940, %v4944
  %v4951 = vadd.s32 %v4943, %v4949
  %vm4952 = vc.u32 %v4950, %v4946
  %v4953 = vsel %vm4952, 1, 0
  %v4954 = vadd.s32 %v4950, %v4946
  %v4955 = vadd.s32 %v4951, %v4953
  %v4956 = vadd.s32 %v4955, %v4945
  %v4957 = vadd.s32 %v4956, %v4947
  %v4958 = vmul.u32 %v4913, %v4904
  %v4959 = vadd.s32 %v4935, %v4954
  %vm4960 = vc.u32 %v4935, %v4954
  %v4961 = vadd.s32 %v4957, 1
  %v4962 = vsel %vm4960, %v4961, %v4957
  %v4963 = vadd.s32 %v4958, %v4962
  %v4964 = vadd.s32 %v4963, 536870912
  %v4965 = vshrl.u32 %v4964, 30
  %v4966 = vshll.u32 %v4965, 30
  %v4967 = vsub.s32 %v4963, %v4966
  %vm4968 = vcmp.lt.s32.totalorder %v4967, 0
  %v4969 = vsub.s32 0, %v4967
  %v4970 = vsel %vm4968, %v4969, %v4967
  %v4971 = vclz %v4970
  %v4972 = vsub.s32 %v4971, 2
  %vm4973 = vcmp.gt.s32.totalorder 0, %v4972
  %v4974 = vsel %vm4973, 0, %v4972
  %v4975 = vsub.s32 32, %v4974
  %v4976 = vshll.u32 %v4967, %v4974
  %v4977 = vshrl.u32 %v4959, %v4975
  %v4978 = vor.u32 %v4976, %v4977
  %v4979 = vsub.s32 4294967266, %v4974
  %v4980 = vadd.s32 %v4979, 127
  %v4981 = vshll.u32 %v4980, 23
  %v4982 = vor.u32 4788187, %v4981
  %v4983 = vand.u32 2147483647, %v4982
  %v4985 = vcvt.s32.f32 %v4978
  %v4986 = vmul.f32 %v4985, %v4983
  %v4987 = vxor.u32 %v4986, 2147483648
  %v4988 = vsel %vm4867, %v4987, %v4986
  %v4989 = vsub.s32 4, %v4965
  %v4990 = vsel %vm4867, %v4989, %v4965
  %v4991 = vsel %vm4866, %v4199, %v4988
  %v4992 = vsel %vm4866, 0, %v4990
  %v4993 = vmul.f32 %v4991, %v4991
  %v4994 = vmul.f32 %v4993, -0.001358992
  %v4995 = vadd.f32 %v4994, 0.041655596
  %v4996 = vmul.f32 %v4993, %v4995
  %v4997 = vadd.f32 %v4996, -0.4999988
  %v4998 = vmul.f32 %v4993, %v4997
  %v4999 = vadd.f32 1.0, %v4998
  %v5000 = vmul.f32 %v4991, %v4991
  %v5001 = vmul.f32 %v5000, -0.00019511016
  %v5002 = vadd.f32 %v5001, 0.008332121
  %v5003 = vmul.f32 %v5000, %v5002
  %v5004 = vadd.f32 %v5003, -0.16666654
  %v5005 = vmul.f32 %v5000, %v5004
  %v5006 = vadd.f32 %v5005, 1.0
  %v5007 = vmul.f32 %v5006, %v4991
  %vm5008 = vweird.f32 %v4199
  %v5009 = vadd.s32 %v4992, 3
  %v5010 = vand.u32 %v5009, 3
  %vm5011 = vcmp.lt.s32.totalorder %v5010, 2
  %vm5012 = vcmp.eq.s32.totalorder %v5010, 0
  %v5013 = vxor.u32 %v5007, 2147483648
  %v5014 = vsel %vm5012, %v4999, %v5013
  %vm5015 = vcmp.eq.s32.totalorder %v5010, 2
  %v5016 = vxor.u32 %v4999, 2147483648
  %v5017 = vsel %vm5015, %v5016, %v5007
  %v5018 = vsel %vm5011, %v5014, %v5017
  %v5019 = vsel %vm5008, nan, %v5018
  %v5020 = vand.u32 2147483647, %v4203
  %vm5021 = vcmp.le.f32.partialorder %v5020, 0.7853982
  %vm5022 = vcmp.lt.s32.totalorder %v4203, 0
  %v5023 = vand.u32 %v4203, 2139095040
  %v5024 = vshrl.u32 %v5023, 23
  %v5025 = vsub.s32 %v5024, 127
  %v5026 = vand.u32 2147483647, %v4203
  %v5027 = vand.u32 %v5026, 8388607
  %v5028 = vor.u32 %v5027, 8388608
  %v5029 = vsub.s32 0, %v5028
  %v5030 = vadd.s32 %v5025, 1
  %vm5031 = vcmp.gt.s32.totalorder %v5030, 0
  %v5032 = vsel %vm5031, %v5030, 0
  %v5033 = vshrl.u32 %v5032, 5
  %v5034 = vand.u32 %v5032, 31
  %v5035 = vsub.s32 32, %v5034
  %v5036 = vshrl.u32 683565275, %v5035
  %v5037 = vshll.u32 683565275, %v5034
  %v5038 = vshrl.u32 2475754826, %v5035
  %v5039 = vor.u32 %v5037, %v5038
  %v5040 = vshll.u32 2475754826, %v5034
  %v5041 = vshrl.u32 2131351028, %v5035
  %v5042 = vor.u32 %v5040, %v5041
  %v5043 = vshll.u32 2131351028, %v5034
  %v5044 = vshrl.u32 2102212464, %v5035
  %v5045 = vor.u32 %v5043, %v5044
  %v5046 = vshll.u32 2102212464, %v5034
  %v5047 = vshrl.u32 920167782, %v5035
  %v5048 = vor.u32 %v5046, %v5047
  %v5049 = vshll.u32 920167782, %v5034
  %v5050 = vshrl.u32 1326507024, %v5035
  %v5051 = vor.u32 %v5049, %v5050
  %vm5052 = vcmp.lt.s32.totalorder %v5033, 1
  %vm5053 = vcmp.lt.s32.totalorder %v5033, 2
  %vm5054 = vcmp.lt.s32.totalorder %v5033, 3
  %vm5055 = vcmp.lt.s32.totalorder %v5033, 4
  %v5056 = vsel %vm5052, %v5036, %v5039
  %v5057 = vsel %vm5055, %v5045, 2102212464
  %v5058 = vsel %vm5054, %v5042, %v5057
  %v5059 = vsel %vm5053, %v5056, %v5058
  %v5060 = vsel %vm5052, %v5039, %v5042
  %v5061 = vsel %vm5055, %v5048, 920167782
  %v5062 = vsel %vm5054, %v5045, %v5061
  %v5063 = vsel %vm5053, %v5060, %v5062
  %v5064 = vsel %vm5052, %v5042, %v5045
  %v5065 = vsel %vm5055, %v5051, 1326507024
  %v5066 = vsel %vm5054, %v5048, %v5065
  %v5067 = vsel %vm5053, %v5064, %v5066
  %v5068 = vshll.u32 %v5028, 8
  %v5069 = vand.u32 %v5068, 65535
  %v5070 = vshrl.u32 %v5068, 16
  %v5071 = vand.u32 %v5067, 65535
  %v5072 = vshrl.u32 %v5067, 16
  %v5073 = vmul.u32 %v5069, %v5071
  %v5074 = vmul.u32 %v5069, %v5072
  %v5075 = vmul.u32 %v5070, %v5071
  %v5076 = vmul.u32 %v5070, %v5072
  %v5077 = vshll.u32 %v5074, 16
  %v5078 = vshrl.u32 %v5074, 16
  %v5079 = vshll.u32 %v5075, 16
  %v5080 = vshrl.u32 %v5075, 16
  %vm5081 = vc.u32 %v5073, %v5077
  %v5082 = vsel %vm5081, 1, 0
  %v5083 = vadd.s32 %v5073, %v5077
  %v5084 = vadd.s32 %v5076, %v5082
  %vm5085 = vc.u32 %v5083, %v5079
  %v5086 = vsel %vm5085, 1, 0
  %v5087 = vadd.s32 %v5083, %v5079
  %v5088 = vadd.s32 %v5084, %v5086
  %v5089 = vadd.s32 %v5088, %v5078
  %v5090 = vadd.s32 %v5089, %v5080
  %v5091 = vand.u32 %v5068, 65535
  %v5092 = vshrl.u32 %v5068, 16
  %v5093 = vand.u32 %v5063, 65535
  %v5094 = vshrl.u32 %v5063, 16
  %v5095 = vmul.u32 %v5091, %v5093
  %v5096 = vmul.u32 %v5091, %v5094
  %v5097 = vmul.u32 %v5092, %v5093
  %v5098 = vmul.u32 %v5092, %v5094
  %v5099 = vshll.u32 %v5096, 16
  %v5100 = vshrl.u32 %v5096, 16
  %v5101 = vshll.u32 %v5097, 16
  %v5102 = vshrl.u32 %v5097, 16
  %vm5103 = vc.u32 %v5095, %v5099
  %v5104 = vsel %vm5103, 1, 0
  %v5105 = vadd.s32 %v5095, %v5099
  %v5106 = vadd.s32 %v5098, %v5104
  %vm5107 = vc.u32 %v5105, %v5101
  %v5108 = vsel %vm5107, 1, 0
  %v5109 = vadd.s32 %v5105, %v5101
  %v5110 = vadd.s32 %v5106, %v5108
  %v5111 = vadd.s32 %v5110, %v5100
  %v5112 = vadd.s32 %v5111, %v5102
  %v5113 = vmul.u32 %v5068, %v5059
  %v5114 = vadd.s32 %v5090, %v5109
  %vm5115 = vc.u32 %v5090, %v5109
  %v5116 = vadd.s32 %v5112, 1
  %v5117 = vsel %vm5115, %v5116, %v5112
  %v5118 = vadd.s32 %v5113, %v5117
  %v5119 = vadd.s32 %v5118, 536870912
  %v5120 = vshrl.u32 %v5119, 30
  %v5121 = vshll.u32 %v5120, 30
  %v5122 = vsub.s32 %v5118, %v5121
  %vm5123 = vcmp.lt.s32.totalorder %v5122, 0
  %v5124 = vsub.s32 0, %v5122
  %v5125 = vsel %vm5123, %v5124, %v5122
  %v5126 = vclz %v5125
  %v5127 = vsub.s32 %v5126, 2
  %vm5128 = vcmp.gt.s32.totalorder 0, %v5127
  %v5129 = vsel %vm5128, 0, %v5127
  %v5130 = vsub.s32 32, %v5129
  %v5131 = vshll.u32 %v5122, %v5129
  %v5132 = vshrl.u32 %v5114, %v5130
  %v5133 = vor.u32 %v5131, %v5132
  %v5134 = vsub.s32 4294967266, %v5129
  %v5135 = vadd.s32 %v5134, 127
  %v5136 = vshll.u32 %v5135, 23
  %v5137 = vor.u32 4788187, %v5136
  %v5138 = vand.u32 2147483647, %v5137
  %v5140 = vcvt.s32.f32 %v5133
  %v5141 = vmul.f32 %v5140, %v5138
  %v5142 = vxor.u32 %v5141, 2147483648
  %v5143 = vsel %vm5022, %v5142, %v5141
  %v5144 = vsub.s32 4, %v5120
  %v5145 = vsel %vm5022, %v5144, %v5120
  %v5146 = vsel %vm5021, %v4203, %v5143
  %v5147 = vsel %vm5021, 0, %v5145
  %v5148 = vmul.f32 %v5146, %v5146
  %v5149 = vmul.f32 %v5148, -0.001358992
  %v5150 = vadd.f32 %v5149, 0.041655596
  %v5151 = vmul.f32 %v5148, %v5150
  %v5152 = vadd.f32 %v5151, -0.4999988
  %v5153 = vmul.f32 %v5148, %v5152
  %v5154 = vadd.f32 1.0, %v5153
  %v5155 = vmul.f32 %v5146, %v5146
  %v5156 = vmul.f32 %v5155, -0.00019511016
  %v5157 = vadd.f32 %v5156, 0.008332121
  %v5158 = vmul.f32 %v5155, %v5157
  %v5159 = vadd.f32 %v5158, -0.16666654
  %v5160 = vmul.f32 %v5155, %v5159
  %v5161 = vadd.f32 %v5160, 1.0
  %v5162 = vmul.f32 %v5161, %v5146
  %vm5163 = vweird.f32 %v4203
  %v5164 = vadd.s32 %v5147, 3
  %v5165 = vand.u32 %v5164, 3
  %vm5166 = vcmp.lt.s32.totalorder %v5165, 2
  %vm5167 = vcmp.eq.s32.totalorder %v5165, 0
  %v5168 = vxor.u32 %v5162, 2147483648
  %v5169 = vsel %vm5167, %v5154, %v5168
  %vm5170 = vcmp.eq.s32.totalorder %v5165, 2
  %v5171 = vxor.u32 %v5154, 2147483648
  %v5172 = vsel %vm5170, %v5171, %v5162
  %v5173 = vsel %vm5166, %v5169, %v5172
  %v5174 = vsel %vm5163, nan, %v5173
  %v5175 = vand.u32 2147483647, %v4207
  %vm5176 = vcmp.le.f32.partialorder %v5175, 0.7853982
  %vm5177 = vcmp.lt.s32.totalorder %v4207, 0
  %v5178 = vand.u32 %v4207, 2139095040
  %v5179 = vshrl.u32 %v5178, 23
  %v5180 = vsub.s32 %v5179, 127
  %v5181 = vand.u32 2147483647, %v4207
  %v5182 = vand.u32 %v5181, 8388607
  %v5183 = vor.u32 %v5182, 8388608
  %v5184 = vsub.s32 0, %v5183
  %v5185 = vadd.s32 %v5180, 1
  %vm5186 = vcmp.gt.s32.totalorder %v5185, 0
  %v5187 = vsel %vm5186, %v5185, 0
  %v5188 = vshrl.u32 %v5187, 5
  %v5189 = vand.u32 %v5187, 31
  %v5190 = vsub.s32 32, %v5189
  %v5191 = vshrl.u32 683565275, %v5190
  %v5192 = vshll.u32 683565275, %v5189
  %v5193 = vshrl.u32 2475754826, %v5190
  %v5194 = vor.u32 %v5192, %v5193
  %v5195 = vshll.u32 2475754826, %v5189
  %v5196 = vshrl.u32 2131351028, %v5190
  %v5197 = vor.u32 %v5195, %v5196
  %v5198 = vshll.u32 2131351028, %v5189
  %v5199 = vshrl.u32 2102212464, %v5190
  %v5200 = vor.u32 %v5198, %v5199
  %v5201 = vshll.u32 2102212464, %v5189
  %v5202 = vshrl.u32 920167782, %v5190
  %v5203 = vor.u32 %v5201, %v5202
  %v5204 = vshll.u32 920167782, %v5189
  %v5205 = vshrl.u32 1326507024, %v5190
  %v5206 = vor.u32 %v5204, %v5205
  %vm5207 = vcmp.lt.s32.totalorder %v5188, 1
  %vm5208 = vcmp.lt.s32.totalorder %v5188, 2
  %vm5209 = vcmp.lt.s32.totalorder %v5188, 3
  %vm5210 = vcmp.lt.s32.totalorder %v5188, 4
  %v5211 = vsel %vm5207, %v5191, %v5194
  %v5212 = vsel %vm5210, %v5200, 2102212464
  %v5213 = vsel %vm5209, %v5197, %v5212
  %v5214 = vsel %vm5208, %v5211, %v5213
  %v5215 = vsel %vm5207, %v5194, %v5197
  %v5216 = vsel %vm5210, %v5203, 920167782
  %v5217 = vsel %vm5209, %v5200, %v5216
  %v5218 = vsel %vm5208, %v5215, %v5217
  %v5219 = vsel %vm5207, %v5197, %v5200
  %v5220 = vsel %vm5210, %v5206, 1326507024
  %v5221 = vsel %vm5209, %v5203, %v5220
  %v5222 = vsel %vm5208, %v5219, %v5221
  %v5223 = vshll.u32 %v5183, 8
  %v5224 = vand.u32 %v5223, 65535
  %v5225 = vshrl.u32 %v5223, 16
  %v5226 = vand.u32 %v5222, 65535
  %v5227 = vshrl.u32 %v5222, 16
  %v5228 = vmul.u32 %v5224, %v5226
  %v5229 = vmul.u32 %v5224, %v5227
  %v5230 = vmul.u32 %v5225, %v5226
  %v5231 = vmul.u32 %v5225, %v5227
  %v5232 = vshll.u32 %v5229, 16
  %v5233 = vshrl.u32 %v5229, 16
  %v5234 = vshll.u32 %v5230, 16
  %v5235 = vshrl.u32 %v5230, 16
  %vm5236 = vc.u32 %v5228, %v5232
  %v5237 = vsel %vm5236, 1, 0
  %v5238 = vadd.s32 %v5228, %v5232
  %v5239 = vadd.s32 %v5231, %v5237
  %vm5240 = vc.u32 %v5238, %v5234
  %v5241 = vsel %vm5240, 1, 0
  %v5242 = vadd.s32 %v5238, %v5234
  %v5243 = vadd.s32 %v5239, %v5241
  %v5244 = vadd.s32 %v5243, %v5233
  %v5245 = vadd.s32 %v5244, %v5235
  %v5246 = vand.u32 %v5223, 65535
  %v5247 = vshrl.u32 %v5223, 16
  %v5248 = vand.u32 %v5218, 65535
  %v5249 = vshrl.u32 %v5218, 16
  %v5250 = vmul.u32 %v5246, %v5248
  %v5251 = vmul.u32 %v5246, %v5249
  %v5252 = vmul.u32 %v5247, %v5248
  %v5253 = vmul.u32 %v5247, %v5249
  %v5254 = vshll.u32 %v5251, 16
  %v5255 = vshrl.u32 %v5251, 16
  %v5256 = vshll.u32 %v5252, 16
  %v5257 = vshrl.u32 %v5252, 16
  %vm5258 = vc.u32 %v5250, %v5254
  %v5259 = vsel %vm5258, 1, 0
  %v5260 = vadd.s32 %v5250, %v5254
  %v5261 = vadd.s32 %v5253, %v5259
  %vm5262 = vc.u32 %v5260, %v5256
  %v5263 = vsel %vm5262, 1, 0
  %v5264 = vadd.s32 %v5260, %v5256
  %v5265 = vadd.s32 %v5261, %v5263
  %v5266 = vadd.s32 %v5265, %v5255
  %v5267 = vadd.s32 %v5266, %v5257
  %v5268 = vmul.u32 %v5223, %v5214
  %v5269 = vadd.s32 %v5245, %v5264
  %vm5270 = vc.u32 %v5245, %v5264
  %v5271 = vadd.s32 %v5267, 1
  %v5272 = vsel %vm5270, %v5271, %v5267
  %v5273 = vadd.s32 %v5268, %v5272
  %v5274 = vadd.s32 %v5273, 536870912
  %v5275 = vshrl.u32 %v5274, 30
  %v5276 = vshll.u32 %v5275, 30
  %v5277 = vsub.s32 %v5273, %v5276
  %vm5278 = vcmp.lt.s32.totalorder %v5277, 0
  %v5279 = vsub.s32 0, %v5277
  %v5280 = vsel %vm5278, %v5279, %v5277
  %v5281 = vclz %v5280
  %v5282 = vsub.s32 %v5281, 2
  %vm5283 = vcmp.gt.s32.totalorder 0, %v5282
  %v5284 = vsel %vm5283, 0, %v5282
  %v5285 = vsub.s32 32, %v5284
  %v5286 = vshll.u32 %v5277, %v5284
  %v5287 = vshrl.u32 %v5269, %v5285
  %v5288 = vor.u32 %v5286, %v5287
  %v5289 = vsub.s32 4294967266, %v5284
  %v5290 = vadd.s32 %v5289, 127
  %v5291 = vshll.u32 %v5290, 23
  %v5292 = vor.u32 4788187, %v5291
  %v5293 = vand.u32 2147483647, %v5292
  %v5295 = vcvt.s32.f32 %v5288
  %v5296 = vmul.f32 %v5295, %v5293
  %v5297 = vxor.u32 %v5296, 2147483648
  %v5298 = vsel %vm5177, %v5297, %v5296
  %v5299 = vsub.s32 4, %v5275
  %v5300 = vsel %vm5177, %v5299, %v5275
  %v5301 = vsel %vm5176, %v4207, %v5298
  %v5302 = vsel %vm5176, 0, %v5300
  %v5303 = vmul.f32 %v5301, %v5301
  %v5304 = vmul.f32 %v5303, -0.001358992
  %v5305 = vadd.f32 %v5304, 0.041655596
  %v5306 = vmul.f32 %v5303, %v5305
  %v5307 = vadd.f32 %v5306, -0.4999988
  %v5308 = vmul.f32 %v5303, %v5307
  %v5309 = vadd.f32 1.0, %v5308
  %v5310 = vmul.f32 %v5301, %v5301
  %v5311 = vmul.f32 %v5310, -0.00019511016
  %v5312 = vadd.f32 %v5311, 0.008332121
  %v5313 = vmul.f32 %v5310, %v5312
  %v5314 = vadd.f32 %v5313, -0.16666654
  %v5315 = vmul.f32 %v5310, %v5314
  %v5316 = vadd.f32 %v5315, 1.0
  %v5317 = vmul.f32 %v5316, %v5301
  %vm5318 = vweird.f32 %v4207
  %v5319 = vadd.s32 %v5302, 3
  %v5320 = vand.u32 %v5319, 3
  %vm5321 = vcmp.lt.s32.totalorder %v5320, 2
  %vm5322 = vcmp.eq.s32.totalorder %v5320, 0
  %v5323 = vxor.u32 %v5317, 2147483648
  %v5324 = vsel %vm5322, %v5309, %v5323
  %vm5325 = vcmp.eq.s32.totalorder %v5320, 2
  %v5326 = vxor.u32 %v5309, 2147483648
  %v5327 = vsel %vm5325, %v5326, %v5317
  %v5328 = vsel %vm5321, %v5324, %v5327
  %v5329 = vsel %vm5318, nan, %v5328
  %v5330 = vand.u32 2147483647, %v4211
  %vm5331 = vcmp.le.f32.partialorder %v5330, 0.7853982
  %vm5332 = vcmp.lt.s32.totalorder %v4211, 0
  %v5333 = vand.u32 %v4211, 2139095040
  %v5334 = vshrl.u32 %v5333, 23
  %v5335 = vsub.s32 %v5334, 127
  %v5336 = vand.u32 2147483647, %v4211
  %v5337 = vand.u32 %v5336, 8388607
  %v5338 = vor.u32 %v5337, 8388608
  %v5339 = vsub.s32 0, %v5338
  %v5340 = vadd.s32 %v5335, 1
  %vm5341 = vcmp.gt.s32.totalorder %v5340, 0
  %v5342 = vsel %vm5341, %v5340, 0
  %v5343 = vshrl.u32 %v5342, 5
  %v5344 = vand.u32 %v5342, 31
  %v5345 = vsub.s32 32, %v5344
  %v5346 = vshrl.u32 683565275, %v5345
  %v5347 = vshll.u32 683565275, %v5344
  %v5348 = vshrl.u32 2475754826, %v5345
  %v5349 = vor.u32 %v5347, %v5348
  %v5350 = vshll.u32 2475754826, %v5344
  %v5351 = vshrl.u32 2131351028, %v5345
  %v5352 = vor.u32 %v5350, %v5351
  %v5353 = vshll.u32 2131351028, %v5344
  %v5354 = vshrl.u32 2102212464, %v5345
  %v5355 = vor.u32 %v5353, %v5354
  %v5356 = vshll.u32 2102212464, %v5344
  %v5357 = vshrl.u32 920167782, %v5345
  %v5358 = vor.u32 %v5356, %v5357
  %v5359 = vshll.u32 920167782, %v5344
  %v5360 = vshrl.u32 1326507024, %v5345
  %v5361 = vor.u32 %v5359, %v5360
  %vm5362 = vcmp.lt.s32.totalorder %v5343, 1
  %vm5363 = vcmp.lt.s32.totalorder %v5343, 2
  %vm5364 = vcmp.lt.s32.totalorder %v5343, 3
  %vm5365 = vcmp.lt.s32.totalorder %v5343, 4
  %v5366 = vsel %vm5362, %v5346, %v5349
  %v5367 = vsel %vm5365, %v5355, 2102212464
  %v5368 = vsel %vm5364, %v5352, %v5367
  %v5369 = vsel %vm5363, %v5366, %v5368
  %v5370 = vsel %vm5362, %v5349, %v5352
  %v5371 = vsel %vm5365, %v5358, 920167782
  %v5372 = vsel %vm5364, %v5355, %v5371
  %v5373 = vsel %vm5363, %v5370, %v5372
  %v5374 = vsel %vm5362, %v5352, %v5355
  %v5375 = vsel %vm5365, %v5361, 1326507024
  %v5376 = vsel %vm5364, %v5358, %v5375
  %v5377 = vsel %vm5363, %v5374, %v5376
  %v5378 = vshll.u32 %v5338, 8
  %v5379 = vand.u32 %v5378, 65535
  %v5380 = vshrl.u32 %v5378, 16
  %v5381 = vand.u32 %v5377, 65535
  %v5382 = vshrl.u32 %v5377, 16
  %v5383 = vmul.u32 %v5379, %v5381
  %v5384 = vmul.u32 %v5379, %v5382
  %v5385 = vmul.u32 %v5380, %v5381
  %v5386 = vmul.u32 %v5380, %v5382
  %v5387 = vshll.u32 %v5384, 16
  %v5388 = vshrl.u32 %v5384, 16
  %v5389 = vshll.u32 %v5385, 16
  %v5390 = vshrl.u32 %v5385, 16
  %vm5391 = vc.u32 %v5383, %v5387
  %v5392 = vsel %vm5391, 1, 0
  %v5393 = vadd.s32 %v5383, %v5387
  %v5394 = vadd.s32 %v5386, %v5392
  %vm5395 = vc.u32 %v5393, %v5389
  %v5396 = vsel %vm5395, 1, 0
  %v5397 = vadd.s32 %v5393, %v5389
  %v5398 = vadd.s32 %v5394, %v5396
  %v5399 = vadd.s32 %v5398, %v5388
  %v5400 = vadd.s32 %v5399, %v5390
  %v5401 = vand.u32 %v5378, 65535
  %v5402 = vshrl.u32 %v5378, 16
  %v5403 = vand.u32 %v5373, 65535
  %v5404 = vshrl.u32 %v5373, 16
  %v5405 = vmul.u32 %v5401, %v5403
  %v5406 = vmul.u32 %v5401, %v5404
  %v5407 = vmul.u32 %v5402, %v5403
  %v5408 = vmul.u32 %v5402, %v5404
  %v5409 = vshll.u32 %v5406, 16
  %v5410 = vshrl.u32 %v5406, 16
  %v5411 = vshll.u32 %v5407, 16
  %v5412 = vshrl.u32 %v5407, 16
  %vm5413 = vc.u32 %v5405, %v5409
  %v5414 = vsel %vm5413, 1, 0
  %v5415 = vadd.s32 %v5405, %v5409
  %v5416 = vadd.s32 %v5408, %v5414
  %vm5417 = vc.u32 %v5415, %v5411
  %v5418 = vsel %vm5417, 1, 0
  %v5419 = vadd.s32 %v5415, %v5411
  %v5420 = vadd.s32 %v5416, %v5418
  %v5421 = vadd.s32 %v5420, %v5410
  %v5422 = vadd.s32 %v5421, %v5412
  %v5423 = vmul.u32 %v5378, %v5369
  %v5424 = vadd.s32 %v5400, %v5419
  %vm5425 = vc.u32 %v5400, %v5419
  %v5426 = vadd.s32 %v5422, 1
  %v5427 = vsel %vm5425, %v5426, %v5422
  %v5428 = vadd.s32 %v5423, %v5427
  %v5429 = vadd.s32 %v5428, 536870912
  %v5430 = vshrl.u32 %v5429, 30
  %v5431 = vshll.u32 %v5430, 30
  %v5432 = vsub.s32 %v5428, %v5431
  %vm5433 = vcmp.lt.s32.totalorder %v5432, 0
  %v5434 = vsub.s32 0, %v5432
  %v5435 = vsel %vm5433, %v5434, %v5432
  %v5436 = vclz %v5435
  %v5437 = vsub.s32 %v5436, 2
  %vm5438 = vcmp.gt.s32.totalorder 0, %v5437
  %v5439 = vsel %vm5438, 0, %v5437
  %v5440 = vsub.s32 32, %v5439
  %v5441 = vshll.u32 %v5432, %v5439
  %v5442 = vshrl.u32 %v5424, %v5440
  %v5443 = vor.u32 %v5441, %v5442
  %v5444 = vsub.s32 4294967266, %v5439
  %v5445 = vadd.s32 %v5444, 127
  %v5446 = vshll.u32 %v5445, 23
  %v5447 = vor.u32 4788187, %v5446
  %v5448 = vand.u32 2147483647, %v5447
  %v5450 = vcvt.s32.f32 %v5443
  %v5451 = vmul.f32 %v5450, %v5448
  %v5452 = vxor.u32 %v5451, 2147483648
  %v5453 = vsel %vm5332, %v5452, %v5451
  %v5454 = vsub.s32 4, %v5430
  %v5455 = vsel %vm5332, %v5454, %v5430
  %v5456 = vsel %vm5331, %v4211, %v5453
  %v5457 = vsel %vm5331, 0, %v5455
  %v5458 = vmul.f32 %v5456, %v5456
  %v5459 = vmul.f32 %v5458, -0.001358992
  %v5460 = vadd.f32 %v5459, 0.041655596
  %v5461 = vmul.f32 %v5458, %v5460
  %v5462 = vadd.f32 %v5461, -0.4999988
  %v5463 = vmul.f32 %v5458, %v5462
  %v5464 = vadd.f32 1.0, %v5463
  %v5465 = vmul.f32 %v5456, %v5456
  %v5466 = vmul.f32 %v5465, -0.00019511016
  %v5467 = vadd.f32 %v5466, 0.008332121
  %v5468 = vmul.f32 %v5465, %v5467
  %v5469 = vadd.f32 %v5468, -0.16666654
  %v5470 = vmul.f32 %v5465, %v5469
  %v5471 = vadd.f32 %v5470, 1.0
  %v5472 = vmul.f32 %v5471, %v5456
  %vm5473 = vweird.f32 %v4211
  %v5474 = vadd.s32 %v5457, 3
  %v5475 = vand.u32 %v5474, 3
  %vm5476 = vcmp.lt.s32.totalorder %v5475, 2
  %vm5477 = vcmp.eq.s32.totalorder %v5475, 0
  %v5478 = vxor.u32 %v5472, 2147483648
  %v5479 = vsel %vm5477, %v5464, %v5478
  %vm5480 = vcmp.eq.s32.totalorder %v5475, 2
  %v5481 = vxor.u32 %v5464, 2147483648
  %v5482 = vsel %vm5480, %v5481, %v5472
  %v5483 = vsel %vm5476, %v5479, %v5482
  %v5484 = vsel %vm5473, nan, %v5483
  %v5485 = vand.u32 2147483647, %v4215
  %vm5486 = vcmp.le.f32.partialorder %v5485, 0.7853982
  %vm5487 = vcmp.lt.s32.totalorder %v4215, 0
  %v5488 = vand.u32 %v4215, 2139095040
  %v5489 = vshrl.u32 %v5488, 23
  %v5490 = vsub.s32 %v5489, 127
  %v5491 = vand.u32 2147483647, %v4215
  %v5492 = vand.u32 %v5491, 8388607
  %v5493 = vor.u32 %v5492, 8388608
  %v5494 = vsub.s32 0, %v5493
  %v5495 = vadd.s32 %v5490, 1
  %vm5496 = vcmp.gt.s32.totalorder %v5495, 0
  %v5497 = vsel %vm5496, %v5495, 0
  %v5498 = vshrl.u32 %v5497, 5
  %v5499 = vand.u32 %v5497, 31
  %v5500 = vsub.s32 32, %v5499
  %v5501 = vshrl.u32 683565275, %v5500
  %v5502 = vshll.u32 683565275, %v5499
  %v5503 = vshrl.u32 2475754826, %v5500
  %v5504 = vor.u32 %v5502, %v5503
  %v5505 = vshll.u32 2475754826, %v5499
  %v5506 = vshrl.u32 2131351028, %v5500
  %v5507 = vor.u32 %v5505, %v5506
  %v5508 = vshll.u32 2131351028, %v5499
  %v5509 = vshrl.u32 2102212464, %v5500
  %v5510 = vor.u32 %v5508, %v5509
  %v5511 = vshll.u32 2102212464, %v5499
  %v5512 = vshrl.u32 920167782, %v5500
  %v5513 = vor.u32 %v5511, %v5512
  %v5514 = vshll.u32 920167782, %v5499
  %v5515 = vshrl.u32 1326507024, %v5500
  %v5516 = vor.u32 %v5514, %v5515
  %vm5517 = vcmp.lt.s32.totalorder %v5498, 1
  %vm5518 = vcmp.lt.s32.totalorder %v5498, 2
  %vm5519 = vcmp.lt.s32.totalorder %v5498, 3
  %vm5520 = vcmp.lt.s32.totalorder %v5498, 4
  %v5521 = vsel %vm5517, %v5501, %v5504
  %v5522 = vsel %vm5520, %v5510, 2102212464
  %v5523 = vsel %vm5519, %v5507, %v5522
  %v5524 = vsel %vm5518, %v5521, %v5523
  %v5525 = vsel %vm5517, %v5504, %v5507
  %v5526 = vsel %vm5520, %v5513, 920167782
  %v5527 = vsel %vm5519, %v5510, %v5526
  %v5528 = vsel %vm5518, %v5525, %v5527
  %v5529 = vsel %vm5517, %v5507, %v5510
  %v5530 = vsel %vm5520, %v5516, 1326507024
  %v5531 = vsel %vm5519, %v5513, %v5530
  %v5532 = vsel %vm5518, %v5529, %v5531
  %v5533 = vshll.u32 %v5493, 8
  %v5534 = vand.u32 %v5533, 65535
  %v5535 = vshrl.u32 %v5533, 16
  %v5536 = vand.u32 %v5532, 65535
  %v5537 = vshrl.u32 %v5532, 16
  %v5538 = vmul.u32 %v5534, %v5536
  %v5539 = vmul.u32 %v5534, %v5537
  %v5540 = vmul.u32 %v5535, %v5536
  %v5541 = vmul.u32 %v5535, %v5537
  %v5542 = vshll.u32 %v5539, 16
  %v5543 = vshrl.u32 %v5539, 16
  %v5544 = vshll.u32 %v5540, 16
  %v5545 = vshrl.u32 %v5540, 16
  %vm5546 = vc.u32 %v5538, %v5542
  %v5547 = vsel %vm5546, 1, 0
  %v5548 = vadd.s32 %v5538, %v5542
  %v5549 = vadd.s32 %v5541, %v5547
  %vm5550 = vc.u32 %v5548, %v5544
  %v5551 = vsel %vm5550, 1, 0
  %v5552 = vadd.s32 %v5548, %v5544
  %v5553 = vadd.s32 %v5549, %v5551
  %v5554 = vadd.s32 %v5553, %v5543
  %v5555 = vadd.s32 %v5554, %v5545
  %v5556 = vand.u32 %v5533, 65535
  %v5557 = vshrl.u32 %v5533, 16
  %v5558 = vand.u32 %v5528, 65535
  %v5559 = vshrl.u32 %v5528, 16
  %v5560 = vmul.u32 %v5556, %v5558
  %v5561 = vmul.u32 %v5556, %v5559
  %v5562 = vmul.u32 %v5557, %v5558
  %v5563 = vmul.u32 %v5557, %v5559
  %v5564 = vshll.u32 %v5561, 16
  %v5565 = vshrl.u32 %v5561, 16
  %v5566 = vshll.u32 %v5562, 16
  %v5567 = vshrl.u32 %v5562, 16
  %vm5568 = vc.u32 %v5560, %v5564
  %v5569 = vsel %vm5568, 1, 0
  %v5570 = vadd.s32 %v5560, %v5564
  %v5571 = vadd.s32 %v5563, %v5569
  %vm5572 = vc.u32 %v5570, %v5566
  %v5573 = vsel %vm5572, 1, 0
  %v5574 = vadd.s32 %v5570, %v5566
  %v5575 = vadd.s32 %v5571, %v5573
  %v5576 = vadd.s32 %v5575, %v5565
  %v5577 = vadd.s32 %v5576, %v5567
  %v5578 = vmul.u32 %v5533, %v5524
  %v5579 = vadd.s32 %v5555, %v5574
  %vm5580 = vc.u32 %v5555, %v5574
  %v5581 = vadd.s32 %v5577, 1
  %v5582 = vsel %vm5580, %v5581, %v5577
  %v5583 = vadd.s32 %v5578, %v5582
  %v5584 = vadd.s32 %v5583, 536870912
  %v5585 = vshrl.u32 %v5584, 30
  %v5586 = vshll.u32 %v5585, 30
  %v5587 = vsub.s32 %v5583, %v5586
  %vm5588 = vcmp.lt.s32.totalorder %v5587, 0
  %v5589 = vsub.s32 0, %v5587
  %v5590 = vsel %vm5588, %v5589, %v5587
  %v5591 = vclz %v5590
  %v5592 = vsub.s32 %v5591, 2
  %vm5593 = vcmp.gt.s32.totalorder 0, %v5592
  %v5594 = vsel %vm5593, 0, %v5592
  %v5595 = vsub.s32 32, %v5594
  %v5596 = vshll.u32 %v5587, %v5594
  %v5597 = vshrl.u32 %v5579, %v5595
  %v5598 = vor.u32 %v5596, %v5597
  %v5599 = vsub.s32 4294967266, %v5594
  %v5600 = vadd.s32 %v5599, 127
  %v5601 = vshll.u32 %v5600, 23
  %v5602 = vor.u32 4788187, %v5601
  %v5603 = vand.u32 2147483647, %v5602
  %v5605 = vcvt.s32.f32 %v5598
  %v5606 = vmul.f32 %v5605, %v5603
  %v5607 = vxor.u32 %v5606, 2147483648
  %v5608 = vsel %vm5487, %v5607, %v5606
  %v5609 = vsub.s32 4, %v5585
  %v5610 = vsel %vm5487, %v5609, %v5585
  %v5611 = vsel %vm5486, %v4215, %v5608
  %v5612 = vsel %vm5486, 0, %v5610
  %v5613 = vmul.f32 %v5611, %v5611
  %v5614 = vmul.f32 %v5613, -0.001358992
  %v5615 = vadd.f32 %v5614, 0.041655596
  %v5616 = vmul.f32 %v5613, %v5615
  %v5617 = vadd.f32 %v5616, -0.4999988
  %v5618 = vmul.f32 %v5613, %v5617
  %v5619 = vadd.f32 1.0, %v5618
  %v5620 = vmul.f32 %v5611, %v5611
  %v5621 = vmul.f32 %v5620, -0.00019511016
  %v5622 = vadd.f32 %v5621, 0.008332121
  %v5623 = vmul.f32 %v5620, %v5622
  %v5624 = vadd.f32 %v5623, -0.16666654
  %v5625 = vmul.f32 %v5620, %v5624
  %v5626 = vadd.f32 %v5625, 1.0
  %v5627 = vmul.f32 %v5626, %v5611
  %vm5628 = vweird.f32 %v4215
  %v5629 = vadd.s32 %v5612, 3
  %v5630 = vand.u32 %v5629, 3
  %vm5631 = vcmp.lt.s32.totalorder %v5630, 2
  %vm5632 = vcmp.eq.s32.totalorder %v5630, 0
  %v5633 = vxor.u32 %v5627, 2147483648
  %v5634 = vsel %vm5632, %v5619, %v5633
  %vm5635 = vcmp.eq.s32.totalorder %v5630, 2
  %v5636 = vxor.u32 %v5619, 2147483648
  %v5637 = vsel %vm5635, %v5636, %v5627
  %v5638 = vsel %vm5631, %v5634, %v5637
  %v5639 = vsel %vm5628, nan, %v5638
  %v5640 = vand.u32 2147483647, %v4219
  %vm5641 = vcmp.le.f32.partialorder %v5640, 0.7853982
  %vm5642 = vcmp.lt.s32.totalorder %v4219, 0
  %v5643 = vand.u32 %v4219, 2139095040
  %v5644 = vshrl.u32 %v5643, 23
  %v5645 = vsub.s32 %v5644, 127
  %v5646 = vand.u32 2147483647, %v4219
  %v5647 = vand.u32 %v5646, 8388607
  %v5648 = vor.u32 %v5647, 8388608
  %v5649 = vsub.s32 0, %v5648
  %v5650 = vadd.s32 %v5645, 1
  %vm5651 = vcmp.gt.s32.totalorder %v5650, 0
  %v5652 = vsel %vm5651, %v5650, 0
  %v5653 = vshrl.u32 %v5652, 5
  %v5654 = vand.u32 %v5652, 31
  %v5655 = vsub.s32 32, %v5654
  %v5656 = vshrl.u32 683565275, %v5655
  %v5657 = vshll.u32 683565275, %v5654
  %v5658 = vshrl.u32 2475754826, %v5655
  %v5659 = vor.u32 %v5657, %v5658
  %v5660 = vshll.u32 2475754826, %v5654
  %v5661 = vshrl.u32 2131351028, %v5655
  %v5662 = vor.u32 %v5660, %v5661
  %v5663 = vshll.u32 2131351028, %v5654
  %v5664 = vshrl.u32 2102212464, %v5655
  %v5665 = vor.u32 %v5663, %v5664
  %v5666 = vshll.u32 2102212464, %v5654
  %v5667 = vshrl.u32 920167782, %v5655
  %v5668 = vor.u32 %v5666, %v5667
  %v5669 = vshll.u32 920167782, %v5654
  %v5670 = vshrl.u32 1326507024, %v5655
  %v5671 = vor.u32 %v5669, %v5670
  %vm5672 = vcmp.lt.s32.totalorder %v5653, 1
  %vm5673 = vcmp.lt.s32.totalorder %v5653, 2
  %vm5674 = vcmp.lt.s32.totalorder %v5653, 3
  %vm5675 = vcmp.lt.s32.totalorder %v5653, 4
  %v5676 = vsel %vm5672, %v5656, %v5659
  %v5677 = vsel %vm5675, %v5665, 2102212464
  %v5678 = vsel %vm5674, %v5662, %v5677
  %v5679 = vsel %vm5673, %v5676, %v5678
  %v5680 = vsel %vm5672, %v5659, %v5662
  %v5681 = vsel %vm5675, %v5668, 920167782
  %v5682 = vsel %vm5674, %v5665, %v5681
  %v5683 = vsel %vm5673, %v5680, %v5682
  %v5684 = vsel %vm5672, %v5662, %v5665
  %v5685 = vsel %vm5675, %v5671, 1326507024
  %v5686 = vsel %vm5674, %v5668, %v5685
  %v5687 = vsel %vm5673, %v5684, %v5686
  %v5688 = vshll.u32 %v5648, 8
  %v5689 = vand.u32 %v5688, 65535
  %v5690 = vshrl.u32 %v5688, 16
  %v5691 = vand.u32 %v5687, 65535
  %v5692 = vshrl.u32 %v5687, 16
  %v5693 = vmul.u32 %v5689, %v5691
  %v5694 = vmul.u32 %v5689, %v5692
  %v5695 = vmul.u32 %v5690, %v5691
  %v5696 = vmul.u32 %v5690, %v5692
  %v5697 = vshll.u32 %v5694, 16
  %v5698 = vshrl.u32 %v5694, 16
  %v5699 = vshll.u32 %v5695, 16
  %v5700 = vshrl.u32 %v5695, 16
  %vm5701 = vc.u32 %v5693, %v5697
  %v5702 = vsel %vm5701, 1, 0
  %v5703 = vadd.s32 %v5693, %v5697
  %v5704 = vadd.s32 %v5696, %v5702
  %vm5705 = vc.u32 %v5703, %v5699
  %v5706 = vsel %vm5705, 1, 0
  %v5707 = vadd.s32 %v5703, %v5699
  %v5708 = vadd.s32 %v5704, %v5706
  %v5709 = vadd.s32 %v5708, %v5698
  %v5710 = vadd.s32 %v5709, %v5700
  %v5711 = vand.u32 %v5688, 65535
  %v5712 = vshrl.u32 %v5688, 16
  %v5713 = vand.u32 %v5683, 65535
  %v5714 = vshrl.u32 %v5683, 16
  %v5715 = vmul.u32 %v5711, %v5713
  %v5716 = vmul.u32 %v5711, %v5714
  %v5717 = vmul.u32 %v5712, %v5713
  %v5718 = vmul.u32 %v5712, %v5714
  %v5719 = vshll.u32 %v5716, 16
  %v5720 = vshrl.u32 %v5716, 16
  %v5721 = vshll.u32 %v5717, 16
  %v5722 = vshrl.u32 %v5717, 16
  %vm5723 = vc.u32 %v5715, %v5719
  %v5724 = vsel %vm5723, 1, 0
  %v5725 = vadd.s32 %v5715, %v5719
  %v5726 = vadd.s32 %v5718, %v5724
  %vm5727 = vc.u32 %v5725, %v5721
  %v5728 = vsel %vm5727, 1, 0
  %v5729 = vadd.s32 %v5725, %v5721
  %v5730 = vadd.s32 %v5726, %v5728
  %v5731 = vadd.s32 %v5730, %v5720
  %v5732 = vadd.s32 %v5731, %v5722
  %v5733 = vmul.u32 %v5688, %v5679
  %v5734 = vadd.s32 %v5710, %v5729
  %vm5735 = vc.u32 %v5710, %v5729
  %v5736 = vadd.s32 %v5732, 1
  %v5737 = vsel %vm5735, %v5736, %v5732
  %v5738 = vadd.s32 %v5733, %v5737
  %v5739 = vadd.s32 %v5738, 536870912
  %v5740 = vshrl.u32 %v5739, 30
  %v5741 = vshll.u32 %v5740, 30
  %v5742 = vsub.s32 %v5738, %v5741
  %vm5743 = vcmp.lt.s32.totalorder %v5742, 0
  %v5744 = vsub.s32 0, %v5742
  %v5745 = vsel %vm5743, %v5744, %v5742
  %v5746 = vclz %v5745
  %v5747 = vsub.s32 %v5746, 2
  %vm5748 = vcmp.gt.s32.totalorder 0, %v5747
  %v5749 = vsel %vm5748, 0, %v5747
  %v5750 = vsub.s32 32, %v5749
  %v5751 = vshll.u32 %v5742, %v5749
  %v5752 = vshrl.u32 %v5734, %v5750
  %v5753 = vor.u32 %v5751, %v5752
  %v5754 = vsub.s32 4294967266, %v5749
  %v5755 = vadd.s32 %v5754, 127
  %v5756 = vshll.u32 %v5755, 23
  %v5757 = vor.u32 4788187, %v5756
  %v5758 = vand.u32 2147483647, %v5757
  %v5760 = vcvt.s32.f32 %v5753
  %v5761 = vmul.f32 %v5760, %v5758
  %v5762 = vxor.u32 %v5761, 2147483648
  %v5763 = vsel %vm5642, %v5762, %v5761
  %v5764 = vsub.s32 4, %v5740
  %v5765 = vsel %vm5642, %v5764, %v5740
  %v5766 = vsel %vm5641, %v4219, %v5763
  %v5767 = vsel %vm5641, 0, %v5765
  %v5768 = vmul.f32 %v5766, %v5766
  %v5769 = vmul.f32 %v5768, -0.001358992
  %v5770 = vadd.f32 %v5769, 0.041655596
  %v5771 = vmul.f32 %v5768, %v5770
  %v5772 = vadd.f32 %v5771, -0.4999988
  %v5773 = vmul.f32 %v5768, %v5772
  %v5774 = vadd.f32 1.0, %v5773
  %v5775 = vmul.f32 %v5766, %v5766
  %v5776 = vmul.f32 %v5775, -0.00019511016
  %v5777 = vadd.f32 %v5776, 0.008332121
  %v5778 = vmul.f32 %v5775, %v5777
  %v5779 = vadd.f32 %v5778, -0.16666654
  %v5780 = vmul.f32 %v5775, %v5779
  %v5781 = vadd.f32 %v5780, 1.0
  %v5782 = vmul.f32 %v5781, %v5766
  %vm5783 = vweird.f32 %v4219
  %v5784 = vadd.s32 %v5767, 3
  %v5785 = vand.u32 %v5784, 3
  %vm5786 = vcmp.lt.s32.totalorder %v5785, 2
  %vm5787 = vcmp.eq.s32.totalorder %v5785, 0
  %v5788 = vxor.u32 %v5782, 2147483648
  %v5789 = vsel %vm5787, %v5774, %v5788
  %vm5790 = vcmp.eq.s32.totalorder %v5785, 2
  %v5791 = vxor.u32 %v5774, 2147483648
  %v5792 = vsel %vm5790, %v5791, %v5782
  %v5793 = vsel %vm5786, %v5789, %v5792
  %v5794 = vsel %vm5783, nan, %v5793
  %v5795 = vand.u32 2147483647, %v4223
  %vm5796 = vcmp.le.f32.partialorder %v5795, 0.7853982
  %vm5797 = vcmp.lt.s32.totalorder %v4223, 0
  %v5798 = vand.u32 %v4223, 2139095040
  %v5799 = vshrl.u32 %v5798, 23
  %v5800 = vsub.s32 %v5799, 127
  %v5801 = vand.u32 2147483647, %v4223
  %v5802 = vand.u32 %v5801, 8388607
  %v5803 = vor.u32 %v5802, 8388608
  %v5804 = vsub.s32 0, %v5803
  %v5805 = vadd.s32 %v5800, 1
  %vm5806 = vcmp.gt.s32.totalorder %v5805, 0
  %v5807 = vsel %vm5806, %v5805, 0
  %v5808 = vshrl.u32 %v5807, 5
  %v5809 = vand.u32 %v5807, 31
  %v5810 = vsub.s32 32, %v5809
  %v5811 = vshrl.u32 683565275, %v5810
  %v5812 = vshll.u32 683565275, %v5809
  %v5813 = vshrl.u32 2475754826, %v5810
  %v5814 = vor.u32 %v5812, %v5813
  %v5815 = vshll.u32 2475754826, %v5809
  %v5816 = vshrl.u32 2131351028, %v5810
  %v5817 = vor.u32 %v5815, %v5816
  %v5818 = vshll.u32 2131351028, %v5809
  %v5819 = vshrl.u32 2102212464, %v5810
  %v5820 = vor.u32 %v5818, %v5819
  %v5821 = vshll.u32 2102212464, %v5809
  %v5822 = vshrl.u32 920167782, %v5810
  %v5823 = vor.u32 %v5821, %v5822
  %v5824 = vshll.u32 920167782, %v5809
  %v5825 = vshrl.u32 1326507024, %v5810
  %v5826 = vor.u32 %v5824, %v5825
  %vm5827 = vcmp.lt.s32.totalorder %v5808, 1
  %vm5828 = vcmp.lt.s32.totalorder %v5808, 2
  %vm5829 = vcmp.lt.s32.totalorder %v5808, 3
  %vm5830 = vcmp.lt.s32.totalorder %v5808, 4
  %v5831 = vsel %vm5827, %v5811, %v5814
  %v5832 = vsel %vm5830, %v5820, 2102212464
  %v5833 = vsel %vm5829, %v5817, %v5832
  %v5834 = vsel %vm5828, %v5831, %v5833
  %v5835 = vsel %vm5827, %v5814, %v5817
  %v5836 = vsel %vm5830, %v5823, 920167782
  %v5837 = vsel %vm5829, %v5820, %v5836
  %v5838 = vsel %vm5828, %v5835, %v5837
  %v5839 = vsel %vm5827, %v5817, %v5820
  %v5840 = vsel %vm5830, %v5826, 1326507024
  %v5841 = vsel %vm5829, %v5823, %v5840
  %v5842 = vsel %vm5828, %v5839, %v5841
  %v5843 = vshll.u32 %v5803, 8
  %v5844 = vand.u32 %v5843, 65535
  %v5845 = vshrl.u32 %v5843, 16
  %v5846 = vand.u32 %v5842, 65535
  %v5847 = vshrl.u32 %v5842, 16
  %v5848 = vmul.u32 %v5844, %v5846
  %v5849 = vmul.u32 %v5844, %v5847
  %v5850 = vmul.u32 %v5845, %v5846
  %v5851 = vmul.u32 %v5845, %v5847
  %v5852 = vshll.u32 %v5849, 16
  %v5853 = vshrl.u32 %v5849, 16
  %v5854 = vshll.u32 %v5850, 16
  %v5855 = vshrl.u32 %v5850, 16
  %vm5856 = vc.u32 %v5848, %v5852
  %v5857 = vsel %vm5856, 1, 0
  %v5858 = vadd.s32 %v5848, %v5852
  %v5859 = vadd.s32 %v5851, %v5857
  %vm5860 = vc.u32 %v5858, %v5854
  %v5861 = vsel %vm5860, 1, 0
  %v5862 = vadd.s32 %v5858, %v5854
  %v5863 = vadd.s32 %v5859, %v5861
  %v5864 = vadd.s32 %v5863, %v5853
  %v5865 = vadd.s32 %v5864, %v5855
  %v5866 = vand.u32 %v5843, 65535
  %v5867 = vshrl.u32 %v5843, 16
  %v5868 = vand.u32 %v5838, 65535
  %v5869 = vshrl.u32 %v5838, 16
  %v5870 = vmul.u32 %v5866, %v5868
  %v5871 = vmul.u32 %v5866, %v5869
  %v5872 = vmul.u32 %v5867, %v5868
  %v5873 = vmul.u32 %v5867, %v5869
  %v5874 = vshll.u32 %v5871, 16
  %v5875 = vshrl.u32 %v5871, 16
  %v5876 = vshll.u32 %v5872, 16
  %v5877 = vshrl.u32 %v5872, 16
  %vm5878 = vc.u32 %v5870, %v5874
  %v5879 = vsel %vm5878, 1, 0
  %v5880 = vadd.s32 %v5870, %v5874
  %v5881 = vadd.s32 %v5873, %v5879
  %vm5882 = vc.u32 %v5880, %v5876
  %v5883 = vsel %vm5882, 1, 0
  %v5884 = vadd.s32 %v5880, %v5876
  %v5885 = vadd.s32 %v5881, %v5883
  %v5886 = vadd.s32 %v5885, %v5875
  %v5887 = vadd.s32 %v5886, %v5877
  %v5888 = vmul.u32 %v5843, %v5834
  %v5889 = vadd.s32 %v5865, %v5884
  %vm5890 = vc.u32 %v5865, %v5884
  %v5891 = vadd.s32 %v5887, 1
  %v5892 = vsel %vm5890, %v5891, %v5887
  %v5893 = vadd.s32 %v5888, %v5892
  %v5894 = vadd.s32 %v5893, 536870912
  %v5895 = vshrl.u32 %v5894, 30
  %v5896 = vshll.u32 %v5895, 30
  %v5897 = vsub.s32 %v5893, %v5896
  %vm5898 = vcmp.lt.s32.totalorder %v5897, 0
  %v5899 = vsub.s32 0, %v5897
  %v5900 = vsel %vm5898, %v5899, %v5897
  %v5901 = vclz %v5900
  %v5902 = vsub.s32 %v5901, 2
  %vm5903 = vcmp.gt.s32.totalorder 0, %v5902
  %v5904 = vsel %vm5903, 0, %v5902
  %v5905 = vsub.s32 32, %v5904
  %v5906 = vshll.u32 %v5897, %v5904
  %v5907 = vshrl.u32 %v5889, %v5905
  %v5908 = vor.u32 %v5906, %v5907
  %v5909 = vsub.s32 4294967266, %v5904
  %v5910 = vadd.s32 %v5909, 127
  %v5911 = vshll.u32 %v5910, 23
  %v5912 = vor.u32 4788187, %v5911
  %v5913 = vand.u32 2147483647, %v5912
  %v5915 = vcvt.s32.f32 %v5908
  %v5916 = vmul.f32 %v5915, %v5913
  %v5917 = vxor.u32 %v5916, 2147483648
  %v5918 = vsel %vm5797, %v5917, %v5916
  %v5919 = vsub.s32 4, %v5895
  %v5920 = vsel %vm5797, %v5919, %v5895
  %v5921 = vsel %vm5796, %v4223, %v5918
  %v5922 = vsel %vm5796, 0, %v5920
  %v5923 = vmul.f32 %v5921, %v5921
  %v5924 = vmul.f32 %v5923, -0.001358992
  %v5925 = vadd.f32 %v5924, 0.041655596
  %v5926 = vmul.f32 %v5923, %v5925
  %v5927 = vadd.f32 %v5926, -0.4999988
  %v5928 = vmul.f32 %v5923, %v5927
  %v5929 = vadd.f32 1.0, %v5928
  %v5930 = vmul.f32 %v5921, %v5921
  %v5931 = vmul.f32 %v5930, -0.00019511016
  %v5932 = vadd.f32 %v5931, 0.008332121
  %v5933 = vmul.f32 %v5930, %v5932
  %v5934 = vadd.f32 %v5933, -0.16666654
  %v5935 = vmul.f32 %v5930, %v5934
  %v5936 = vadd.f32 %v5935, 1.0
  %v5937 = vmul.f32 %v5936, %v5921
  %vm5938 = vweird.f32 %v4223
  %v5939 = vadd.s32 %v5922, 3
  %v5940 = vand.u32 %v5939, 3
  %vm5941 = vcmp.lt.s32.totalorder %v5940, 2
  %vm5942 = vcmp.eq.s32.totalorder %v5940, 0
  %v5943 = vxor.u32 %v5937, 2147483648
  %v5944 = vsel %vm5942, %v5929, %v5943
  %vm5945 = vcmp.eq.s32.totalorder %v5940, 2
  %v5946 = vxor.u32 %v5929, 2147483648
  %v5947 = vsel %vm5945, %v5946, %v5937
  %v5948 = vsel %vm5941, %v5944, %v5947
  %v5949 = vsel %vm5938, nan, %v5948
  %v5950 = vand.u32 2147483647, %v4227
  %vm5951 = vcmp.le.f32.partialorder %v5950, 0.7853982
  %vm5952 = vcmp.lt.s32.totalorder %v4227, 0
  %v5953 = vand.u32 %v4227, 2139095040
  %v5954 = vshrl.u32 %v5953, 23
  %v5955 = vsub.s32 %v5954, 127
  %v5956 = vand.u32 2147483647, %v4227
  %v5957 = vand.u32 %v5956, 8388607
  %v5958 = vor.u32 %v5957, 8388608
  %v5959 = vsub.s32 0, %v5958
  %v5960 = vadd.s32 %v5955, 1
  %vm5961 = vcmp.gt.s32.totalorder %v5960, 0
  %v5962 = vsel %vm5961, %v5960, 0
  %v5963 = vshrl.u32 %v5962, 5
  %v5964 = vand.u32 %v5962, 31
  %v5965 = vsub.s32 32, %v5964
  %v5966 = vshrl.u32 683565275, %v5965
  %v5967 = vshll.u32 683565275, %v5964
  %v5968 = vshrl.u32 2475754826, %v5965
  %v5969 = vor.u32 %v5967, %v5968
  %v5970 = vshll.u32 2475754826, %v5964
  %v5971 = vshrl.u32 2131351028, %v5965
  %v5972 = vor.u32 %v5970, %v5971
  %v5973 = vshll.u32 2131351028, %v5964
  %v5974 = vshrl.u32 2102212464, %v5965
  %v5975 = vor.u32 %v5973, %v5974
  %v5976 = vshll.u32 2102212464, %v5964
  %v5977 = vshrl.u32 920167782, %v5965
  %v5978 = vor.u32 %v5976, %v5977
  %v5979 = vshll.u32 920167782, %v5964
  %v5980 = vshrl.u32 1326507024, %v5965
  %v5981 = vor.u32 %v5979, %v5980
  %vm5982 = vcmp.lt.s32.totalorder %v5963, 1
  %vm5983 = vcmp.lt.s32.totalorder %v5963, 2
  %vm5984 = vcmp.lt.s32.totalorder %v5963, 3
  %vm5985 = vcmp.lt.s32.totalorder %v5963, 4
  %v5986 = vsel %vm5982, %v5966, %v5969
  %v5987 = vsel %vm5985, %v5975, 2102212464
  %v5988 = vsel %vm5984, %v5972, %v5987
  %v5989 = vsel %vm5983, %v5986, %v5988
  %v5990 = vsel %vm5982, %v5969, %v5972
  %v5991 = vsel %vm5985, %v5978, 920167782
  %v5992 = vsel %vm5984, %v5975, %v5991
  %v5993 = vsel %vm5983, %v5990, %v5992
  %v5994 = vsel %vm5982, %v5972, %v5975
  %v5995 = vsel %vm5985, %v5981, 1326507024
  %v5996 = vsel %vm5984, %v5978, %v5995
  %v5997 = vsel %vm5983, %v5994, %v5996
  %v5998 = vshll.u32 %v5958, 8
  %v5999 = vand.u32 %v5998, 65535
  %v6000 = vshrl.u32 %v5998, 16
  %v6001 = vand.u32 %v5997, 65535
  %v6002 = vshrl.u32 %v5997, 16
  %v6003 = vmul.u32 %v5999, %v6001
  %v6004 = vmul.u32 %v5999, %v6002
  %v6005 = vmul.u32 %v6000, %v6001
  %v6006 = vmul.u32 %v6000, %v6002
  %v6007 = vshll.u32 %v6004, 16
  %v6008 = vshrl.u32 %v6004, 16
  %v6009 = vshll.u32 %v6005, 16
  %v6010 = vshrl.u32 %v6005, 16
  %vm6011 = vc.u32 %v6003, %v6007
  %v6012 = vsel %vm6011, 1, 0
  %v6013 = vadd.s32 %v6003, %v6007
  %v6014 = vadd.s32 %v6006, %v6012
  %vm6015 = vc.u32 %v6013, %v6009
  %v6016 = vsel %vm6015, 1, 0
  %v6017 = vadd.s32 %v6013, %v6009
  %v6018 = vadd.s32 %v6014, %v6016
  %v6019 = vadd.s32 %v6018, %v6008
  %v6020 = vadd.s32 %v6019, %v6010
  %v6021 = vand.u32 %v5998, 65535
  %v6022 = vshrl.u32 %v5998, 16
  %v6023 = vand.u32 %v5993, 65535
  %v6024 = vshrl.u32 %v5993, 16
  %v6025 = vmul.u32 %v6021, %v6023
  %v6026 = vmul.u32 %v6021, %v6024
  %v6027 = vmul.u32 %v6022, %v6023
  %v6028 = vmul.u32 %v6022, %v6024
  %v6029 = vshll.u32 %v6026, 16
  %v6030 = vshrl.u32 %v6026, 16
  %v6031 = vshll.u32 %v6027, 16
  %v6032 = vshrl.u32 %v6027, 16
  %vm6033 = vc.u32 %v6025, %v6029
  %v6034 = vsel %vm6033, 1, 0
  %v6035 = vadd.s32 %v6025, %v6029
  %v6036 = vadd.s32 %v6028, %v6034
  %vm6037 = vc.u32 %v6035, %v6031
  %v6038 = vsel %vm6037, 1, 0
  %v6039 = vadd.s32 %v6035, %v6031
  %v6040 = vadd.s32 %v6036, %v6038
  %v6041 = vadd.s32 %v6040, %v6030
  %v6042 = vadd.s32 %v6041, %v6032
  %v6043 = vmul.u32 %v5998, %v5989
  %v6044 = vadd.s32 %v6020, %v6039
  %vm6045 = vc.u32 %v6020, %v6039
  %v6046 = vadd.s32 %v6042, 1
  %v6047 = vsel %vm6045, %v6046, %v6042
  %v6048 = vadd.s32 %v6043, %v6047
  %v6049 = vadd.s32 %v6048, 536870912
  %v6050 = vshrl.u32 %v6049, 30
  %v6051 = vshll.u32 %v6050, 30
  %v6052 = vsub.s32 %v6048, %v6051
  %vm6053 = vcmp.lt.s32.totalorder %v6052, 0
  %v6054 = vsub.s32 0, %v6052
  %v6055 = vsel %vm6053, %v6054, %v6052
  %v6056 = vclz %v6055
  %v6057 = vsub.s32 %v6056, 2
  %vm6058 = vcmp.gt.s32.totalorder 0, %v6057
  %v6059 = vsel %vm6058, 0, %v6057
  %v6060 = vsub.s32 32, %v6059
  %v6061 = vshll.u32 %v6052, %v6059
  %v6062 = vshrl.u32 %v6044, %v6060
  %v6063 = vor.u32 %v6061, %v6062
  %v6064 = vsub.s32 4294967266, %v6059
  %v6065 = vadd.s32 %v6064, 127
  %v6066 = vshll.u32 %v6065, 23
  %v6067 = vor.u32 4788187, %v6066
  %v6068 = vand.u32 2147483647, %v6067
  %v6070 = vcvt.s32.f32 %v6063
  %v6071 = vmul.f32 %v6070, %v6068
  %v6072 = vxor.u32 %v6071, 2147483648
  %v6073 = vsel %vm5952, %v6072, %v6071
  %v6074 = vsub.s32 4, %v6050
  %v6075 = vsel %vm5952, %v6074, %v6050
  %v6076 = vsel %vm5951, %v4227, %v6073
  %v6077 = vsel %vm5951, 0, %v6075
  %v6078 = vmul.f32 %v6076, %v6076
  %v6079 = vmul.f32 %v6078, -0.001358992
  %v6080 = vadd.f32 %v6079, 0.041655596
  %v6081 = vmul.f32 %v6078, %v6080
  %v6082 = vadd.f32 %v6081, -0.4999988
  %v6083 = vmul.f32 %v6078, %v6082
  %v6084 = vadd.f32 1.0, %v6083
  %v6085 = vmul.f32 %v6076, %v6076
  %v6086 = vmul.f32 %v6085, -0.00019511016
  %v6087 = vadd.f32 %v6086, 0.008332121
  %v6088 = vmul.f32 %v6085, %v6087
  %v6089 = vadd.f32 %v6088, -0.16666654
  %v6090 = vmul.f32 %v6085, %v6089
  %v6091 = vadd.f32 %v6090, 1.0
  %v6092 = vmul.f32 %v6091, %v6076
  %vm6093 = vweird.f32 %v4227
  %v6094 = vadd.s32 %v6077, 3
  %v6095 = vand.u32 %v6094, 3
  %vm6096 = vcmp.lt.s32.totalorder %v6095, 2
  %vm6097 = vcmp.eq.s32.totalorder %v6095, 0
  %v6098 = vxor.u32 %v6092, 2147483648
  %v6099 = vsel %vm6097, %v6084, %v6098
  %vm6100 = vcmp.eq.s32.totalorder %v6095, 2
  %v6101 = vxor.u32 %v6084, 2147483648
  %v6102 = vsel %vm6100, %v6101, %v6092
  %v6103 = vsel %vm6096, %v6099, %v6102
  %v6104 = vsel %vm6093, nan, %v6103
  %v6105 = vand.u32 2147483647, %v4231
  %vm6106 = vcmp.le.f32.partialorder %v6105, 0.7853982
  %vm6107 = vcmp.lt.s32.totalorder %v4231, 0
  %v6108 = vand.u32 %v4231, 2139095040
  %v6109 = vshrl.u32 %v6108, 23
  %v6110 = vsub.s32 %v6109, 127
  %v6111 = vand.u32 2147483647, %v4231
  %v6112 = vand.u32 %v6111, 8388607
  %v6113 = vor.u32 %v6112, 8388608
  %v6114 = vsub.s32 0, %v6113
  %v6115 = vadd.s32 %v6110, 1
  %vm6116 = vcmp.gt.s32.totalorder %v6115, 0
  %v6117 = vsel %vm6116, %v6115, 0
  %v6118 = vshrl.u32 %v6117, 5
  %v6119 = vand.u32 %v6117, 31
  %v6120 = vsub.s32 32, %v6119
  %v6121 = vshrl.u32 683565275, %v6120
  %v6122 = vshll.u32 683565275, %v6119
  %v6123 = vshrl.u32 2475754826, %v6120
  %v6124 = vor.u32 %v6122, %v6123
  %v6125 = vshll.u32 2475754826, %v6119
  %v6126 = vshrl.u32 2131351028, %v6120
  %v6127 = vor.u32 %v6125, %v6126
  %v6128 = vshll.u32 2131351028, %v6119
  %v6129 = vshrl.u32 2102212464, %v6120
  %v6130 = vor.u32 %v6128, %v6129
  %v6131 = vshll.u32 2102212464, %v6119
  %v6132 = vshrl.u32 920167782, %v6120
  %v6133 = vor.u32 %v6131, %v6132
  %v6134 = vshll.u32 920167782, %v6119
  %v6135 = vshrl.u32 1326507024, %v6120
  %v6136 = vor.u32 %v6134, %v6135
  %vm6137 = vcmp.lt.s32.totalorder %v6118, 1
  %vm6138 = vcmp.lt.s32.totalorder %v6118, 2
  %vm6139 = vcmp.lt.s32.totalorder %v6118, 3
  %vm6140 = vcmp.lt.s32.totalorder %v6118, 4
  %v6141 = vsel %vm6137, %v6121, %v6124
  %v6142 = vsel %vm6140, %v6130, 2102212464
  %v6143 = vsel %vm6139, %v6127, %v6142
  %v6144 = vsel %vm6138, %v6141, %v6143
  %v6145 = vsel %vm6137, %v6124, %v6127
  %v6146 = vsel %vm6140, %v6133, 920167782
  %v6147 = vsel %vm6139, %v6130, %v6146
  %v6148 = vsel %vm6138, %v6145, %v6147
  %v6149 = vsel %vm6137, %v6127, %v6130
  %v6150 = vsel %vm6140, %v6136, 1326507024
  %v6151 = vsel %vm6139, %v6133, %v6150
  %v6152 = vsel %vm6138, %v6149, %v6151
  %v6153 = vshll.u32 %v6113, 8
  %v6154 = vand.u32 %v6153, 65535
  %v6155 = vshrl.u32 %v6153, 16
  %v6156 = vand.u32 %v6152, 65535
  %v6157 = vshrl.u32 %v6152, 16
  %v6158 = vmul.u32 %v6154, %v6156
  %v6159 = vmul.u32 %v6154, %v6157
  %v6160 = vmul.u32 %v6155, %v6156
  %v6161 = vmul.u32 %v6155, %v6157
  %v6162 = vshll.u32 %v6159, 16
  %v6163 = vshrl.u32 %v6159, 16
  %v6164 = vshll.u32 %v6160, 16
  %v6165 = vshrl.u32 %v6160, 16
  %vm6166 = vc.u32 %v6158, %v6162
  %v6167 = vsel %vm6166, 1, 0
  %v6168 = vadd.s32 %v6158, %v6162
  %v6169 = vadd.s32 %v6161, %v6167
  %vm6170 = vc.u32 %v6168, %v6164
  %v6171 = vsel %vm6170, 1, 0
  %v6172 = vadd.s32 %v6168, %v6164
  %v6173 = vadd.s32 %v6169, %v6171
  %v6174 = vadd.s32 %v6173, %v6163
  %v6175 = vadd.s32 %v6174, %v6165
  %v6176 = vand.u32 %v6153, 65535
  %v6177 = vshrl.u32 %v6153, 16
  %v6178 = vand.u32 %v6148, 65535
  %v6179 = vshrl.u32 %v6148, 16
  %v6180 = vmul.u32 %v6176, %v6178
  %v6181 = vmul.u32 %v6176, %v6179
  %v6182 = vmul.u32 %v6177, %v6178
  %v6183 = vmul.u32 %v6177, %v6179
  %v6184 = vshll.u32 %v6181, 16
  %v6185 = vshrl.u32 %v6181, 16
  %v6186 = vshll.u32 %v6182, 16
  %v6187 = vshrl.u32 %v6182, 16
  %vm6188 = vc.u32 %v6180, %v6184
  %v6189 = vsel %vm6188, 1, 0
  %v6190 = vadd.s32 %v6180, %v6184
  %v6191 = vadd.s32 %v6183, %v6189
  %vm6192 = vc.u32 %v6190, %v6186
  %v6193 = vsel %vm6192, 1, 0
  %v6194 = vadd.s32 %v6190, %v6186
  %v6195 = vadd.s32 %v6191, %v6193
  %v6196 = vadd.s32 %v6195, %v6185
  %v6197 = vadd.s32 %v6196, %v6187
  %v6198 = vmul.u32 %v6153, %v6144
  %v6199 = vadd.s32 %v6175, %v6194
  %vm6200 = vc.u32 %v6175, %v6194
  %v6201 = vadd.s32 %v6197, 1
  %v6202 = vsel %vm6200, %v6201, %v6197
  %v6203 = vadd.s32 %v6198, %v6202
  %v6204 = vadd.s32 %v6203, 536870912
  %v6205 = vshrl.u32 %v6204, 30
  %v6206 = vshll.u32 %v6205, 30
  %v6207 = vsub.s32 %v6203, %v6206
  %vm6208 = vcmp.lt.s32.totalorder %v6207, 0
  %v6209 = vsub.s32 0, %v6207
  %v6210 = vsel %vm6208, %v6209, %v6207
  %v6211 = vclz %v6210
  %v6212 = vsub.s32 %v6211, 2
  %vm6213 = vcmp.gt.s32.totalorder 0, %v6212
  %v6214 = vsel %vm6213, 0, %v6212
  %v6215 = vsub.s32 32, %v6214
  %v6216 = vshll.u32 %v6207, %v6214
  %v6217 = vshrl.u32 %v6199, %v6215
  %v6218 = vor.u32 %v6216, %v6217
  %v6219 = vsub.s32 4294967266, %v6214
  %v6220 = vadd.s32 %v6219, 127
  %v6221 = vshll.u32 %v6220, 23
  %v6222 = vor.u32 4788187, %v6221
  %v6223 = vand.u32 2147483647, %v6222
  %v6225 = vcvt.s32.f32 %v6218
  %v6226 = vmul.f32 %v6225, %v6223
  %v6227 = vxor.u32 %v6226, 2147483648
  %v6228 = vsel %vm6107, %v6227, %v6226
  %v6229 = vsub.s32 4, %v6205
  %v6230 = vsel %vm6107, %v6229, %v6205
  %v6231 = vsel %vm6106, %v4231, %v6228
  %v6232 = vsel %vm6106, 0, %v6230
  %v6233 = vmul.f32 %v6231, %v6231
  %v6234 = vmul.f32 %v6233, -0.001358992
  %v6235 = vadd.f32 %v6234, 0.041655596
  %v6236 = vmul.f32 %v6233, %v6235
  %v6237 = vadd.f32 %v6236, -0.4999988
  %v6238 = vmul.f32 %v6233, %v6237
  %v6239 = vadd.f32 1.0, %v6238
  %v6240 = vmul.f32 %v6231, %v6231
  %v6241 = vmul.f32 %v6240, -0.00019511016
  %v6242 = vadd.f32 %v6241, 0.008332121
  %v6243 = vmul.f32 %v6240, %v6242
  %v6244 = vadd.f32 %v6243, -0.16666654
  %v6245 = vmul.f32 %v6240, %v6244
  %v6246 = vadd.f32 %v6245, 1.0
  %v6247 = vmul.f32 %v6246, %v6231
  %vm6248 = vweird.f32 %v4231
  %v6249 = vadd.s32 %v6232, 3
  %v6250 = vand.u32 %v6249, 3
  %vm6251 = vcmp.lt.s32.totalorder %v6250, 2
  %vm6252 = vcmp.eq.s32.totalorder %v6250, 0
  %v6253 = vxor.u32 %v6247, 2147483648
  %v6254 = vsel %vm6252, %v6239, %v6253
  %vm6255 = vcmp.eq.s32.totalorder %v6250, 2
  %v6256 = vxor.u32 %v6239, 2147483648
  %v6257 = vsel %vm6255, %v6256, %v6247
  %v6258 = vsel %vm6251, %v6254, %v6257
  %v6259 = vsel %vm6248, nan, %v6258
  %v6260 = vand.u32 2147483647, %v4235
  %vm6261 = vcmp.le.f32.partialorder %v6260, 0.7853982
  %vm6262 = vcmp.lt.s32.totalorder %v4235, 0
  %v6263 = vand.u32 %v4235, 2139095040
  %v6264 = vshrl.u32 %v6263, 23
  %v6265 = vsub.s32 %v6264, 127
  %v6266 = vand.u32 2147483647, %v4235
  %v6267 = vand.u32 %v6266, 8388607
  %v6268 = vor.u32 %v6267, 8388608
  %v6269 = vsub.s32 0, %v6268
  %v6270 = vadd.s32 %v6265, 1
  %vm6271 = vcmp.gt.s32.totalorder %v6270, 0
  %v6272 = vsel %vm6271, %v6270, 0
  %v6273 = vshrl.u32 %v6272, 5
  %v6274 = vand.u32 %v6272, 31
  %v6275 = vsub.s32 32, %v6274
  %v6276 = vshrl.u32 683565275, %v6275
  %v6277 = vshll.u32 683565275, %v6274
  %v6278 = vshrl.u32 2475754826, %v6275
  %v6279 = vor.u32 %v6277, %v6278
  %v6280 = vshll.u32 2475754826, %v6274
  %v6281 = vshrl.u32 2131351028, %v6275
  %v6282 = vor.u32 %v6280, %v6281
  %v6283 = vshll.u32 2131351028, %v6274
  %v6284 = vshrl.u32 2102212464, %v6275
  %v6285 = vor.u32 %v6283, %v6284
  %v6286 = vshll.u32 2102212464, %v6274
  %v6287 = vshrl.u32 920167782, %v6275
  %v6288 = vor.u32 %v6286, %v6287
  %v6289 = vshll.u32 920167782, %v6274
  %v6290 = vshrl.u32 1326507024, %v6275
  %v6291 = vor.u32 %v6289, %v6290
  %vm6292 = vcmp.lt.s32.totalorder %v6273, 1
  %vm6293 = vcmp.lt.s32.totalorder %v6273, 2
  %vm6294 = vcmp.lt.s32.totalorder %v6273, 3
  %vm6295 = vcmp.lt.s32.totalorder %v6273, 4
  %v6296 = vsel %vm6292, %v6276, %v6279
  %v6297 = vsel %vm6295, %v6285, 2102212464
  %v6298 = vsel %vm6294, %v6282, %v6297
  %v6299 = vsel %vm6293, %v6296, %v6298
  %v6300 = vsel %vm6292, %v6279, %v6282
  %v6301 = vsel %vm6295, %v6288, 920167782
  %v6302 = vsel %vm6294, %v6285, %v6301
  %v6303 = vsel %vm6293, %v6300, %v6302
  %v6304 = vsel %vm6292, %v6282, %v6285
  %v6305 = vsel %vm6295, %v6291, 1326507024
  %v6306 = vsel %vm6294, %v6288, %v6305
  %v6307 = vsel %vm6293, %v6304, %v6306
  %v6308 = vshll.u32 %v6268, 8
  %v6309 = vand.u32 %v6308, 65535
  %v6310 = vshrl.u32 %v6308, 16
  %v6311 = vand.u32 %v6307, 65535
  %v6312 = vshrl.u32 %v6307, 16
  %v6313 = vmul.u32 %v6309, %v6311
  %v6314 = vmul.u32 %v6309, %v6312
  %v6315 = vmul.u32 %v6310, %v6311
  %v6316 = vmul.u32 %v6310, %v6312
  %v6317 = vshll.u32 %v6314, 16
  %v6318 = vshrl.u32 %v6314, 16
  %v6319 = vshll.u32 %v6315, 16
  %v6320 = vshrl.u32 %v6315, 16
  %vm6321 = vc.u32 %v6313, %v6317
  %v6322 = vsel %vm6321, 1, 0
  %v6323 = vadd.s32 %v6313, %v6317
  %v6324 = vadd.s32 %v6316, %v6322
  %vm6325 = vc.u32 %v6323, %v6319
  %v6326 = vsel %vm6325, 1, 0
  %v6327 = vadd.s32 %v6323, %v6319
  %v6328 = vadd.s32 %v6324, %v6326
  %v6329 = vadd.s32 %v6328, %v6318
  %v6330 = vadd.s32 %v6329, %v6320
  %v6331 = vand.u32 %v6308, 65535
  %v6332 = vshrl.u32 %v6308, 16
  %v6333 = vand.u32 %v6303, 65535
  %v6334 = vshrl.u32 %v6303, 16
  %v6335 = vmul.u32 %v6331, %v6333
  %v6336 = vmul.u32 %v6331, %v6334
  %v6337 = vmul.u32 %v6332, %v6333
  %v6338 = vmul.u32 %v6332, %v6334
  %v6339 = vshll.u32 %v6336, 16
  %v6340 = vshrl.u32 %v6336, 16
  %v6341 = vshll.u32 %v6337, 16
  %v6342 = vshrl.u32 %v6337, 16
  %vm6343 = vc.u32 %v6335, %v6339
  %v6344 = vsel %vm6343, 1, 0
  %v6345 = vadd.s32 %v6335, %v6339
  %v6346 = vadd.s32 %v6338, %v6344
  %vm6347 = vc.u32 %v6345, %v6341
  %v6348 = vsel %vm6347, 1, 0
  %v6349 = vadd.s32 %v6345, %v6341
  %v6350 = vadd.s32 %v6346, %v6348
  %v6351 = vadd.s32 %v6350, %v6340
  %v6352 = vadd.s32 %v6351, %v6342
  %v6353 = vmul.u32 %v6308, %v6299
  %v6354 = vadd.s32 %v6330, %v6349
  %vm6355 = vc.u32 %v6330, %v6349
  %v6356 = vadd.s32 %v6352, 1
  %v6357 = vsel %vm6355, %v6356, %v6352
  %v6358 = vadd.s32 %v6353, %v6357
  %v6359 = vadd.s32 %v6358, 536870912
  %v6360 = vshrl.u32 %v6359, 30
  %v6361 = vshll.u32 %v6360, 30
  %v6362 = vsub.s32 %v6358, %v6361
  %vm6363 = vcmp.lt.s32.totalorder %v6362, 0
  %v6364 = vsub.s32 0, %v6362
  %v6365 = vsel %vm6363, %v6364, %v6362
  %v6366 = vclz %v6365
  %v6367 = vsub.s32 %v6366, 2
  %vm6368 = vcmp.gt.s32.totalorder 0, %v6367
  %v6369 = vsel %vm6368, 0, %v6367
  %v6370 = vsub.s32 32, %v6369
  %v6371 = vshll.u32 %v6362, %v6369
  %v6372 = vshrl.u32 %v6354, %v6370
  %v6373 = vor.u32 %v6371, %v6372
  %v6374 = vsub.s32 4294967266, %v6369
  %v6375 = vadd.s32 %v6374, 127
  %v6376 = vshll.u32 %v6375, 23
  %v6377 = vor.u32 4788187, %v6376
  %v6378 = vand.u32 2147483647, %v6377
  %v6380 = vcvt.s32.f32 %v6373
  %v6381 = vmul.f32 %v6380, %v6378
  %v6382 = vxor.u32 %v6381, 2147483648
  %v6383 = vsel %vm6262, %v6382, %v6381
  %v6384 = vsub.s32 4, %v6360
  %v6385 = vsel %vm6262, %v6384, %v6360
  %v6386 = vsel %vm6261, %v4235, %v6383
  %v6387 = vsel %vm6261, 0, %v6385
  %v6388 = vmul.f32 %v6386, %v6386
  %v6389 = vmul.f32 %v6388, -0.001358992
  %v6390 = vadd.f32 %v6389, 0.041655596
  %v6391 = vmul.f32 %v6388, %v6390
  %v6392 = vadd.f32 %v6391, -0.4999988
  %v6393 = vmul.f32 %v6388, %v6392
  %v6394 = vadd.f32 1.0, %v6393
  %v6395 = vmul.f32 %v6386, %v6386
  %v6396 = vmul.f32 %v6395, -0.00019511016
  %v6397 = vadd.f32 %v6396, 0.008332121
  %v6398 = vmul.f32 %v6395, %v6397
  %v6399 = vadd.f32 %v6398, -0.16666654
  %v6400 = vmul.f32 %v6395, %v6399
  %v6401 = vadd.f32 %v6400, 1.0
  %v6402 = vmul.f32 %v6401, %v6386
  %vm6403 = vweird.f32 %v4235
  %v6404 = vadd.s32 %v6387, 3
  %v6405 = vand.u32 %v6404, 3
  %vm6406 = vcmp.lt.s32.totalorder %v6405, 2
  %vm6407 = vcmp.eq.s32.totalorder %v6405, 0
  %v6408 = vxor.u32 %v6402, 2147483648
  %v6409 = vsel %vm6407, %v6394, %v6408
  %vm6410 = vcmp.eq.s32.totalorder %v6405, 2
  %v6411 = vxor.u32 %v6394, 2147483648
  %v6412 = vsel %vm6410, %v6411, %v6402
  %v6413 = vsel %vm6406, %v6409, %v6412
  %v6414 = vsel %vm6403, nan, %v6413
  %v6415 = vand.u32 2147483647, %v4239
  %vm6416 = vcmp.le.f32.partialorder %v6415, 0.7853982
  %vm6417 = vcmp.lt.s32.totalorder %v4239, 0
  %v6418 = vand.u32 %v4239, 2139095040
  %v6419 = vshrl.u32 %v6418, 23
  %v6420 = vsub.s32 %v6419, 127
  %v6421 = vand.u32 2147483647, %v4239
  %v6422 = vand.u32 %v6421, 8388607
  %v6423 = vor.u32 %v6422, 8388608
  %v6424 = vsub.s32 0, %v6423
  %v6425 = vadd.s32 %v6420, 1
  %vm6426 = vcmp.gt.s32.totalorder %v6425, 0
  %v6427 = vsel %vm6426, %v6425, 0
  %v6428 = vshrl.u32 %v6427, 5
  %v6429 = vand.u32 %v6427, 31
  %v6430 = vsub.s32 32, %v6429
  %v6431 = vshrl.u32 683565275, %v6430
  %v6432 = vshll.u32 683565275, %v6429
  %v6433 = vshrl.u32 2475754826, %v6430
  %v6434 = vor.u32 %v6432, %v6433
  %v6435 = vshll.u32 2475754826, %v6429
  %v6436 = vshrl.u32 2131351028, %v6430
  %v6437 = vor.u32 %v6435, %v6436
  %v6438 = vshll.u32 2131351028, %v6429
  %v6439 = vshrl.u32 2102212464, %v6430
  %v6440 = vor.u32 %v6438, %v6439
  %v6441 = vshll.u32 2102212464, %v6429
  %v6442 = vshrl.u32 920167782, %v6430
  %v6443 = vor.u32 %v6441, %v6442
  %v6444 = vshll.u32 920167782, %v6429
  %v6445 = vshrl.u32 1326507024, %v6430
  %v6446 = vor.u32 %v6444, %v6445
  %vm6447 = vcmp.lt.s32.totalorder %v6428, 1
  %vm6448 = vcmp.lt.s32.totalorder %v6428, 2
  %vm6449 = vcmp.lt.s32.totalorder %v6428, 3
  %vm6450 = vcmp.lt.s32.totalorder %v6428, 4
  %v6451 = vsel %vm6447, %v6431, %v6434
  %v6452 = vsel %vm6450, %v6440, 2102212464
  %v6453 = vsel %vm6449, %v6437, %v6452
  %v6454 = vsel %vm6448, %v6451, %v6453
  %v6455 = vsel %vm6447, %v6434, %v6437
  %v6456 = vsel %vm6450, %v6443, 920167782
  %v6457 = vsel %vm6449, %v6440, %v6456
  %v6458 = vsel %vm6448, %v6455, %v6457
  %v6459 = vsel %vm6447, %v6437, %v6440
  %v6460 = vsel %vm6450, %v6446, 1326507024
  %v6461 = vsel %vm6449, %v6443, %v6460
  %v6462 = vsel %vm6448, %v6459, %v6461
  %v6463 = vshll.u32 %v6423, 8
  %v6464 = vand.u32 %v6463, 65535
  %v6465 = vshrl.u32 %v6463, 16
  %v6466 = vand.u32 %v6462, 65535
  %v6467 = vshrl.u32 %v6462, 16
  %v6468 = vmul.u32 %v6464, %v6466
  %v6469 = vmul.u32 %v6464, %v6467
  %v6470 = vmul.u32 %v6465, %v6466
  %v6471 = vmul.u32 %v6465, %v6467
  %v6472 = vshll.u32 %v6469, 16
  %v6473 = vshrl.u32 %v6469, 16
  %v6474 = vshll.u32 %v6470, 16
  %v6475 = vshrl.u32 %v6470, 16
  %vm6476 = vc.u32 %v6468, %v6472
  %v6477 = vsel %vm6476, 1, 0
  %v6478 = vadd.s32 %v6468, %v6472
  %v6479 = vadd.s32 %v6471, %v6477
  %vm6480 = vc.u32 %v6478, %v6474
  %v6481 = vsel %vm6480, 1, 0
  %v6482 = vadd.s32 %v6478, %v6474
  %v6483 = vadd.s32 %v6479, %v6481
  %v6484 = vadd.s32 %v6483, %v6473
  %v6485 = vadd.s32 %v6484, %v6475
  %v6486 = vand.u32 %v6463, 65535
  %v6487 = vshrl.u32 %v6463, 16
  %v6488 = vand.u32 %v6458, 65535
  %v6489 = vshrl.u32 %v6458, 16
  %v6490 = vmul.u32 %v6486, %v6488
  %v6491 = vmul.u32 %v6486, %v6489
  %v6492 = vmul.u32 %v6487, %v6488
  %v6493 = vmul.u32 %v6487, %v6489
  %v6494 = vshll.u32 %v6491, 16
  %v6495 = vshrl.u32 %v6491, 16
  %v6496 = vshll.u32 %v6492, 16
  %v6497 = vshrl.u32 %v6492, 16
  %vm6498 = vc.u32 %v6490, %v6494
  %v6499 = vsel %vm6498, 1, 0
  %v6500 = vadd.s32 %v6490, %v6494
  %v6501 = vadd.s32 %v6493, %v6499
  %vm6502 = vc.u32 %v6500, %v6496
  %v6503 = vsel %vm6502, 1, 0
  %v6504 = vadd.s32 %v6500, %v6496
  %v6505 = vadd.s32 %v6501, %v6503
  %v6506 = vadd.s32 %v6505, %v6495
  %v6507 = vadd.s32 %v6506, %v6497
  %v6508 = vmul.u32 %v6463, %v6454
  %v6509 = vadd.s32 %v6485, %v6504
  %vm6510 = vc.u32 %v6485, %v6504
  %v6511 = vadd.s32 %v6507, 1
  %v6512 = vsel %vm6510, %v6511, %v6507
  %v6513 = vadd.s32 %v6508, %v6512
  %v6514 = vadd.s32 %v6513, 536870912
  %v6515 = vshrl.u32 %v6514, 30
  %v6516 = vshll.u32 %v6515, 30
  %v6517 = vsub.s32 %v6513, %v6516
  %vm6518 = vcmp.lt.s32.totalorder %v6517, 0
  %v6519 = vsub.s32 0, %v6517
  %v6520 = vsel %vm6518, %v6519, %v6517
  %v6521 = vclz %v6520
  %v6522 = vsub.s32 %v6521, 2
  %vm6523 = vcmp.gt.s32.totalorder 0, %v6522
  %v6524 = vsel %vm6523, 0, %v6522
  %v6525 = vsub.s32 32, %v6524
  %v6526 = vshll.u32 %v6517, %v6524
  %v6527 = vshrl.u32 %v6509, %v6525
  %v6528 = vor.u32 %v6526, %v6527
  %v6529 = vsub.s32 4294967266, %v6524
  %v6530 = vadd.s32 %v6529, 127
  %v6531 = vshll.u32 %v6530, 23
  %v6532 = vor.u32 4788187, %v6531
  %v6533 = vand.u32 2147483647, %v6532
  %v6535 = vcvt.s32.f32 %v6528
  %v6536 = vmul.f32 %v6535, %v6533
  %v6537 = vxor.u32 %v6536, 2147483648
  %v6538 = vsel %vm6417, %v6537, %v6536
  %v6539 = vsub.s32 4, %v6515
  %v6540 = vsel %vm6417, %v6539, %v6515
  %v6541 = vsel %vm6416, %v4239, %v6538
  %v6542 = vsel %vm6416, 0, %v6540
  %v6543 = vmul.f32 %v6541, %v6541
  %v6544 = vmul.f32 %v6543, -0.001358992
  %v6545 = vadd.f32 %v6544, 0.041655596
  %v6546 = vmul.f32 %v6543, %v6545
  %v6547 = vadd.f32 %v6546, -0.4999988
  %v6548 = vmul.f32 %v6543, %v6547
  %v6549 = vadd.f32 1.0, %v6548
  %v6550 = vmul.f32 %v6541, %v6541
  %v6551 = vmul.f32 %v6550, -0.00019511016
  %v6552 = vadd.f32 %v6551, 0.008332121
  %v6553 = vmul.f32 %v6550, %v6552
  %v6554 = vadd.f32 %v6553, -0.16666654
  %v6555 = vmul.f32 %v6550, %v6554
  %v6556 = vadd.f32 %v6555, 1.0
  %v6557 = vmul.f32 %v6556, %v6541
  %vm6558 = vweird.f32 %v4239
  %v6559 = vadd.s32 %v6542, 3
  %v6560 = vand.u32 %v6559, 3
  %vm6561 = vcmp.lt.s32.totalorder %v6560, 2
  %vm6562 = vcmp.eq.s32.totalorder %v6560, 0
  %v6563 = vxor.u32 %v6557, 2147483648
  %v6564 = vsel %vm6562, %v6549, %v6563
  %vm6565 = vcmp.eq.s32.totalorder %v6560, 2
  %v6566 = vxor.u32 %v6549, 2147483648
  %v6567 = vsel %vm6565, %v6566, %v6557
  %v6568 = vsel %vm6561, %v6564, %v6567
  %v6569 = vsel %vm6558, nan, %v6568
  %v6570 = vand.u32 2147483647, %v4243
  %vm6571 = vcmp.le.f32.partialorder %v6570, 0.7853982
  %vm6572 = vcmp.lt.s32.totalorder %v4243, 0
  %v6573 = vand.u32 %v4243, 2139095040
  %v6574 = vshrl.u32 %v6573, 23
  %v6575 = vsub.s32 %v6574, 127
  %v6576 = vand.u32 2147483647, %v4243
  %v6577 = vand.u32 %v6576, 8388607
  %v6578 = vor.u32 %v6577, 8388608
  %v6579 = vsub.s32 0, %v6578
  %v6580 = vadd.s32 %v6575, 1
  %vm6581 = vcmp.gt.s32.totalorder %v6580, 0
  %v6582 = vsel %vm6581, %v6580, 0
  %v6583 = vshrl.u32 %v6582, 5
  %v6584 = vand.u32 %v6582, 31
  %v6585 = vsub.s32 32, %v6584
  %v6586 = vshrl.u32 683565275, %v6585
  %v6587 = vshll.u32 683565275, %v6584
  %v6588 = vshrl.u32 2475754826, %v6585
  %v6589 = vor.u32 %v6587, %v6588
  %v6590 = vshll.u32 2475754826, %v6584
  %v6591 = vshrl.u32 2131351028, %v6585
  %v6592 = vor.u32 %v6590, %v6591
  %v6593 = vshll.u32 2131351028, %v6584
  %v6594 = vshrl.u32 2102212464, %v6585
  %v6595 = vor.u32 %v6593, %v6594
  %v6596 = vshll.u32 2102212464, %v6584
  %v6597 = vshrl.u32 920167782, %v6585
  %v6598 = vor.u32 %v6596, %v6597
  %v6599 = vshll.u32 920167782, %v6584
  %v6600 = vshrl.u32 1326507024, %v6585
  %v6601 = vor.u32 %v6599, %v6600
  %vm6602 = vcmp.lt.s32.totalorder %v6583, 1
  %vm6603 = vcmp.lt.s32.totalorder %v6583, 2
  %vm6604 = vcmp.lt.s32.totalorder %v6583, 3
  %vm6605 = vcmp.lt.s32.totalorder %v6583, 4
  %v6606 = vsel %vm6602, %v6586, %v6589
  %v6607 = vsel %vm6605, %v6595, 2102212464
  %v6608 = vsel %vm6604, %v6592, %v6607
  %v6609 = vsel %vm6603, %v6606, %v6608
  %v6610 = vsel %vm6602, %v6589, %v6592
  %v6611 = vsel %vm6605, %v6598, 920167782
  %v6612 = vsel %vm6604, %v6595, %v6611
  %v6613 = vsel %vm6603, %v6610, %v6612
  %v6614 = vsel %vm6602, %v6592, %v6595
  %v6615 = vsel %vm6605, %v6601, 1326507024
  %v6616 = vsel %vm6604, %v6598, %v6615
  %v6617 = vsel %vm6603, %v6614, %v6616
  %v6618 = vshll.u32 %v6578, 8
  %v6619 = vand.u32 %v6618, 65535
  %v6620 = vshrl.u32 %v6618, 16
  %v6621 = vand.u32 %v6617, 65535
  %v6622 = vshrl.u32 %v6617, 16
  %v6623 = vmul.u32 %v6619, %v6621
  %v6624 = vmul.u32 %v6619, %v6622
  %v6625 = vmul.u32 %v6620, %v6621
  %v6626 = vmul.u32 %v6620, %v6622
  %v6627 = vshll.u32 %v6624, 16
  %v6628 = vshrl.u32 %v6624, 16
  %v6629 = vshll.u32 %v6625, 16
  %v6630 = vshrl.u32 %v6625, 16
  %vm6631 = vc.u32 %v6623, %v6627
  %v6632 = vsel %vm6631, 1, 0
  %v6633 = vadd.s32 %v6623, %v6627
  %v6634 = vadd.s32 %v6626, %v6632
  %vm6635 = vc.u32 %v6633, %v6629
  %v6636 = vsel %vm6635, 1, 0
  %v6637 = vadd.s32 %v6633, %v6629
  %v6638 = vadd.s32 %v6634, %v6636
  %v6639 = vadd.s32 %v6638, %v6628
  %v6640 = vadd.s32 %v6639, %v6630
  %v6641 = vand.u32 %v6618, 65535
  %v6642 = vshrl.u32 %v6618, 16
  %v6643 = vand.u32 %v6613, 65535
  %v6644 = vshrl.u32 %v6613, 16
  %v6645 = vmul.u32 %v6641, %v6643
  %v6646 = vmul.u32 %v6641, %v6644
  %v6647 = vmul.u32 %v6642, %v6643
  %v6648 = vmul.u32 %v6642, %v6644
  %v6649 = vshll.u32 %v6646, 16
  %v6650 = vshrl.u32 %v6646, 16
  %v6651 = vshll.u32 %v6647, 16
  %v6652 = vshrl.u32 %v6647, 16
  %vm6653 = vc.u32 %v6645, %v6649
  %v6654 = vsel %vm6653, 1, 0
  %v6655 = vadd.s32 %v6645, %v6649
  %v6656 = vadd.s32 %v6648, %v6654
  %vm6657 = vc.u32 %v6655, %v6651
  %v6658 = vsel %vm6657, 1, 0
  %v6659 = vadd.s32 %v6655, %v6651
  %v6660 = vadd.s32 %v6656, %v6658
  %v6661 = vadd.s32 %v6660, %v6650
  %v6662 = vadd.s32 %v6661, %v6652
  %v6663 = vmul.u32 %v6618, %v6609
  %v6664 = vadd.s32 %v6640, %v6659
  %vm6665 = vc.u32 %v6640, %v6659
  %v6666 = vadd.s32 %v6662, 1
  %v6667 = vsel %vm6665, %v6666, %v6662
  %v6668 = vadd.s32 %v6663, %v6667
  %v6669 = vadd.s32 %v6668, 536870912
  %v6670 = vshrl.u32 %v6669, 30
  %v6671 = vshll.u32 %v6670, 30
  %v6672 = vsub.s32 %v6668, %v6671
  %vm6673 = vcmp.lt.s32.totalorder %v6672, 0
  %v6674 = vsub.s32 0, %v6672
  %v6675 = vsel %vm6673, %v6674, %v6672
  %v6676 = vclz %v6675
  %v6677 = vsub.s32 %v6676, 2
  %vm6678 = vcmp.gt.s32.totalorder 0, %v6677
  %v6679 = vsel %vm6678, 0, %v6677
  %v6680 = vsub.s32 32, %v6679
  %v6681 = vshll.u32 %v6672, %v6679
  %v6682 = vshrl.u32 %v6664, %v6680
  %v6683 = vor.u32 %v6681, %v6682
  %v6684 = vsub.s32 4294967266, %v6679
  %v6685 = vadd.s32 %v6684, 127
  %v6686 = vshll.u32 %v6685, 23
  %v6687 = vor.u32 4788187, %v6686
  %v6688 = vand.u32 2147483647, %v6687
  %v6690 = vcvt.s32.f32 %v6683
  %v6691 = vmul.f32 %v6690, %v6688
  %v6692 = vxor.u32 %v6691, 2147483648
  %v6693 = vsel %vm6572, %v6692, %v6691
  %v6694 = vsub.s32 4, %v6670
  %v6695 = vsel %vm6572, %v6694, %v6670
  %v6696 = vsel %vm6571, %v4243, %v6693
  %v6697 = vsel %vm6571, 0, %v6695
  %v6698 = vmul.f32 %v6696, %v6696
  %v6699 = vmul.f32 %v6698, -0.001358992
  %v6700 = vadd.f32 %v6699, 0.041655596
  %v6701 = vmul.f32 %v6698, %v6700
  %v6702 = vadd.f32 %v6701, -0.4999988
  %v6703 = vmul.f32 %v6698, %v6702
  %v6704 = vadd.f32 1.0, %v6703
  %v6705 = vmul.f32 %v6696, %v6696
  %v6706 = vmul.f32 %v6705, -0.00019511016
  %v6707 = vadd.f32 %v6706, 0.008332121
  %v6708 = vmul.f32 %v6705, %v6707
  %v6709 = vadd.f32 %v6708, -0.16666654
  %v6710 = vmul.f32 %v6705, %v6709
  %v6711 = vadd.f32 %v6710, 1.0
  %v6712 = vmul.f32 %v6711, %v6696
  %vm6713 = vweird.f32 %v4243
  %v6714 = vadd.s32 %v6697, 3
  %v6715 = vand.u32 %v6714, 3
  %vm6716 = vcmp.lt.s32.totalorder %v6715, 2
  %vm6717 = vcmp.eq.s32.totalorder %v6715, 0
  %v6718 = vxor.u32 %v6712, 2147483648
  %v6719 = vsel %vm6717, %v6704, %v6718
  %vm6720 = vcmp.eq.s32.totalorder %v6715, 2
  %v6721 = vxor.u32 %v6704, 2147483648
  %v6722 = vsel %vm6720, %v6721, %v6712
  %v6723 = vsel %vm6716, %v6719, %v6722
  %v6724 = vsel %vm6713, nan, %v6723
  %6725 = vst [vmem:[#allocation2] sm:$0xff] %v4399
  %6726 = vst [vmem:[#allocation2 + $0x8] sm:$0xff] %v4554
  %6727 = vst [vmem:[#allocation2 + $0x10] sm:$0xff] %v4709
  %6728 = vst [vmem:[#allocation2 + $0x18] sm:$0xff] %v4864
  %6729 = vst [vmem:[#allocation2 + $0x20] sm:$0xff] %v5019
  %6730 = vst [vmem:[#allocation2 + $0x28] sm:$0xff] %v5174
  %6731 = vst [vmem:[#allocation2 + $0x30] sm:$0xff] %v5329
  %6732 = vst [vmem:[#allocation2 + $0x38] sm:$0xff] %v5484
  %6733 = vst [vmem:[#allocation2 + $0x40] sm:$0xff] %v5639
  %6734 = vst [vmem:[#allocation2 + $0x48] sm:$0xff] %v5794
  %6735 = vst [vmem:[#allocation2 + $0x50] sm:$0xff] %v5949
  %6736 = vst [vmem:[#allocation2 + $0x58] sm:$0xff] %v6104
  %6737 = vst [vmem:[#allocation2 + $0x60] sm:$0xff] %v6259
  %6738 = vst [vmem:[#allocation2 + $0x68] sm:$0xff] %v6414
  %6739 = vst [vmem:[#allocation2 + $0x70] sm:$0xff] %v6569
  %6740 = vst [vmem:[#allocation2 + $0x78] sm:$0xff] %v6724
  %6741 = vst [vmem:[#allocation2 + $0x80] sm:$0xff] %v32
  %6742 = vst [vmem:[#allocation2 + $0x88] sm:$0xff] %v33
  %6743 = vst [vmem:[#allocation2 + $0x90] sm:$0xff] %v34
  %6744 = vst [vmem:[#allocation2 + $0x98] sm:$0xff] %v35
  %v6745 = vld [vmem:[%s5] sm:$0xff]
  %v6746 = vld [vmem:[%s5 + $0x8] sm:$0xff]
  %v6747 = vld [vmem:[%s5 + $0x10] sm:$0xff]
  %v6748 = vld [vmem:[%s5 + $0x18] sm:$0xff]
  %v6749 = vld [vmem:[%s5 + $0x20] sm:$0xff]
  %v6750 = vld [vmem:[%s5 + $0x28] sm:$0xff]
  %v6751 = vld [vmem:[%s5 + $0x30] sm:$0xff]
  %v6752 = vld [vmem:[%s5 + $0x38] sm:$0xff]
  %v6753 = vld [vmem:[%s5 + $0x40] sm:$0xff]
  %v6754 = vld [vmem:[%s5 + $0x48] sm:$0xff]
  %v6755 = vld [vmem:[%s5 + $0x50] sm:$0xff]
  %v6756 = vld [vmem:[%s5 + $0x58] sm:$0xff]
  %v6757 = vld [vmem:[%s5 + $0x60] sm:$0xff]
  %v6758 = vld [vmem:[%s5 + $0x68] sm:$0xff]
  %v6759 = vld [vmem:[%s5 + $0x70] sm:$0xff]
  %v6760 = vld [vmem:[%s5 + $0x78] sm:$0xff]
  %v6761 = vld [vmem:[%s5 + $0x80] sm:$0xff]
  %v6762 = vld [vmem:[%s5 + $0x88] sm:$0xff]
  %v6763 = vld [vmem:[%s5 + $0x90] sm:$0xff]
  %v6764 = vld [vmem:[%s5 + $0x98] sm:$0xff]
  %v6765 = vld [vmem:[%s5 + $0xa0] sm:$0xff]
  %v6766 = vld [vmem:[%s5 + $0xa8] sm:$0xff]
  %v6767 = vld [vmem:[%s5 + $0xb0] sm:$0xff]
  %v6768 = vld [vmem:[%s5 + $0xb8] sm:$0xff]
  %v6769 = vld [vmem:[%s5 + $0xc0] sm:$0xff]
  %v6770 = vld [vmem:[%s5 + $0xc8] sm:$0xff]
  %v6771 = vld [vmem:[%s5 + $0xd0] sm:$0xff]
  %v6772 = vld [vmem:[%s5 + $0xd8] sm:$0xff]
  %v6773 = vld [vmem:[%s5 + $0xe0] sm:$0xff]
  %v6774 = vld [vmem:[%s5 + $0xe8] sm:$0xff]
  %v6775 = vld [vmem:[%s5 + $0xf0] sm:$0xff]
  %v6776 = vld [vmem:[%s5 + $0xf8] sm:$0xff]
  %v6777 = vld [vmem:[#allocation2] sm:$0xff]
  %v6778 = vld [vmem:[#allocation2 + $0x8] sm:$0xff]
  %v6779 = vld [vmem:[#allocation2 + $0x10] sm:$0xff]
  %v6780 = vld [vmem:[#allocation2 + $0x18] sm:$0xff]
  %v6781 = vld [vmem:[#allocation2 + $0x20] sm:$0xff]
  %v6782 = vld [vmem:[#allocation2 + $0x28] sm:$0xff]
  %v6783 = vld [vmem:[#allocation2 + $0x30] sm:$0xff]
  %v6784 = vld [vmem:[#allocation2 + $0x38] sm:$0xff]
  %v6785 = vld [vmem:[#allocation2 + $0x40] sm:$0xff]
  %v6786 = vld [vmem:[#allocation2 + $0x48] sm:$0xff]
  %v6787 = vld [vmem:[#allocation2 + $0x50] sm:$0xff]
  %v6788 = vld [vmem:[#allocation2 + $0x58] sm:$0xff]
  %v6789 = vld [vmem:[#allocation2 + $0x60] sm:$0xff]
  %v6790 = vld [vmem:[#allocation2 + $0x68] sm:$0xff]
  %v6791 = vld [vmem:[#allocation2 + $0x70] sm:$0xff]
  %v6792 = vld [vmem:[#allocation2 + $0x78] sm:$0xff]
  %v6793 = vld [vmem:[#allocation2 + $0x80] sm:$0xff]
  %v6794 = vld [vmem:[#allocation2 + $0x88] sm:$0xff]
  %v6795 = vld [vmem:[#allocation2 + $0x90] sm:$0xff]
  %v6796 = vld [vmem:[#allocation2 + $0x98] sm:$0xff]
  %v6797 = vld [vmem:[%s6] sm:$0xff]
  %v6798 = vld [vmem:[%s6 + $0x8] sm:$0xff]
  %v6799 = vld [vmem:[%s6 + $0x10] sm:$0xff]
  %v6800 = vld [vmem:[%s6 + $0x18] sm:$0xff]
  %v6801 = vld [vmem:[%s6 + $0x20] sm:$0xff]
  %v6802 = vld [vmem:[%s6 + $0x28] sm:$0xff]
  %v6803 = vld [vmem:[%s6 + $0x30] sm:$0xff]
  %v6804 = vld [vmem:[%s6 + $0x38] sm:$0xff]
  %v6805 = vld [vmem:[%s6 + $0x40] sm:$0xff]
  %v6806 = vld [vmem:[%s6 + $0x48] sm:$0xff]
  %v6807 = vld [vmem:[%s6 + $0x50] sm:$0xff]
  %v6808 = vld [vmem:[%s6 + $0x58] sm:$0xff]
  %v6809 = vld [vmem:[%s6 + $0x60] sm:$0xff]
  %v6810 = vld [vmem:[%s6 + $0x68] sm:$0xff]
  %v6811 = vld [vmem:[%s6 + $0x70] sm:$0xff]
  %v6812 = vld [vmem:[%s6 + $0x78] sm:$0xff]
  %6814 = vset.pattern.permute.xlu0 0
  %6815 = vperm.xlu0 %6814, %v6797
  %v6816 = vpop.permute.xlu0 %6815
  %6819 = vset.pattern.permute.xlu0 0
  %6820 = vperm.xlu0 %6819, %v6798
  %v6821 = vpop.permute.xlu0 %6820
  %6824 = vset.pattern.permute.xlu0 0
  %6825 = vperm.xlu0 %6824, %v6799
  %v6826 = vpop.permute.xlu0 %6825
  %6829 = vset.pattern.permute.xlu0 0
  %6830 = vperm.xlu0 %6829, %v6800
  %v6831 = vpop.permute.xlu0 %6830
  %6834 = vset.pattern.permute.xlu0 0
  %6835 = vperm.xlu0 %6834, %v6801
  %v6836 = vpop.permute.xlu0 %6835
  %6839 = vset.pattern.permute.xlu0 0
  %6840 = vperm.xlu0 %6839, %v6802
  %v6841 = vpop.permute.xlu0 %6840
  %6844 = vset.pattern.permute.xlu0 0
  %6845 = vperm.xlu0 %6844, %v6803
  %v6846 = vpop.permute.xlu0 %6845
  %6849 = vset.pattern.permute.xlu0 0
  %6850 = vperm.xlu0 %6849, %v6804
  %v6851 = vpop.permute.xlu0 %6850
  %6854 = vset.pattern.permute.xlu0 0
  %6855 = vperm.xlu0 %6854, %v6805
  %v6856 = vpop.permute.xlu0 %6855
  %6859 = vset.pattern.permute.xlu0 0
  %6860 = vperm.xlu0 %6859, %v6806
  %v6861 = vpop.permute.xlu0 %6860
  %6864 = vset.pattern.permute.xlu0 0
  %6865 = vperm.xlu0 %6864, %v6807
  %v6866 = vpop.permute.xlu0 %6865
  %6869 = vset.pattern.permute.xlu0 0
  %6870 = vperm.xlu0 %6869, %v6808
  %v6871 = vpop.permute.xlu0 %6870
  %6874 = vset.pattern.permute.xlu0 0
  %6875 = vperm.xlu0 %6874, %v6809
  %v6876 = vpop.permute.xlu0 %6875
  %6879 = vset.pattern.permute.xlu0 0
  %6880 = vperm.xlu0 %6879, %v6810
  %v6881 = vpop.permute.xlu0 %6880
  %6884 = vset.pattern.permute.xlu0 0
  %6885 = vperm.xlu0 %6884, %v6811
  %v6886 = vpop.permute.xlu0 %6885
  %6889 = vset.pattern.permute.xlu0 0
  %6890 = vperm.xlu0 %6889, %v6812
  %v6891 = vpop.permute.xlu0 %6890
  %v6894 = vsel %vm148, %v6746, 0
  %v6897 = vsel %vm148, %v6748, 0
  %v6900 = vsel %vm148, %v6750, 0
  %v6903 = vsel %vm148, %v6752, 0
  %v6906 = vsel %vm148, %v6754, 0
  %v6909 = vsel %vm148, %v6756, 0
  %v6912 = vsel %vm148, %v6758, 0
  %v6915 = vsel %vm148, %v6760, 0
  %v6918 = vsel %vm148, %v6762, 0
  %v6921 = vsel %vm148, %v6764, 0
  %v6924 = vsel %vm148, %v6766, 0
  %v6927 = vsel %vm148, %v6768, 0
  %v6930 = vsel %vm148, %v6770, 0
  %v6933 = vsel %vm148, %v6772, 0
  %v6936 = vsel %vm148, %v6774, 0
  %v6939 = vsel %vm148, %v6776, 0
  %v6941 = vand.u32 %v6792, 4294901760
  %6942 = vmatpush.msra.mxu0 %v6941
  %v6943 = vand.u32 %v6791, 4294901760
  %6944 = vmatpush.msra.mxu0 %v6943
  %v6945 = vand.u32 %v6790, 4294901760
  %6946 = vmatpush.msra.mxu0 %v6945
  %v6947 = vand.u32 %v6789, 4294901760
  %6948 = vmatpush.msra.mxu0 %v6947
  %v6949 = vand.u32 %v6788, 4294901760
  %6950 = vmatpush.msra.mxu0 %v6949
  %v6951 = vand.u32 %v6787, 4294901760
  %6952 = vmatpush.msra.mxu0 %v6951
  %v6953 = vand.u32 %v6786, 4294901760
  %6954 = vmatpush.msra.mxu0 %v6953
  %v6955 = vand.u32 %v6785, 4294901760
  %6956 = vmatpush.msra.mxu0 %v6955
  %v6957 = vand.u32 %v6784, 4294901760
  %6958 = vmatpush.msra.mxu0 %v6957
  %v6959 = vand.u32 %v6783, 4294901760
  %6960 = vmatpush.msra.mxu0 %v6959
  %v6961 = vand.u32 %v6782, 4294901760
  %6962 = vmatpush.msra.mxu0 %v6961
  %v6963 = vand.u32 %v6781, 4294901760
  %6964 = vmatpush.msra.mxu0 %v6963
  %v6965 = vand.u32 %v6780, 4294901760
  %6966 = vmatpush.msra.mxu0 %v6965
  %v6967 = vand.u32 %v6779, 4294901760
  %6968 = vmatpush.msra.mxu0 %v6967
  %v6969 = vand.u32 %v6778, 4294901760
  %6970 = vmatpush.msra.mxu0 %v6969
  %v6971 = vand.u32 %v6777, 4294901760
  %6972 = vmatpush.msra.mxu0 %v6971
  %v6973 = vand.u32 %v6745, 4294901760
  %v6974 = vsub.f32 %v6745, %v6973
  %v6975 = vand.u32 %v6974, 4294901760
  %v6976 = vsub.f32 %v6974, %v6975
  %v6977 = vand.u32 %v6976, 4294901760
  %6978 = vmatmul.f32.gmra.mxu0 %v6977
  %v6979 = vpop.f32.mrf.mxu0
  %v6980 = vadd.f32 %v6816, %v6979
  %v6981 = vand.u32 %v6747, 4294901760
  %v6982 = vsub.f32 %v6747, %v6981
  %v6983 = vand.u32 %v6982, 4294901760
  %v6984 = vsub.f32 %v6982, %v6983
  %v6985 = vand.u32 %v6984, 4294901760
  %6986 = vmatmul.f32.gmra.mxu0 %v6985
  %v6987 = vpop.f32.mrf.mxu0
  %v6988 = vadd.f32 %v6821, %v6987
  %v6989 = vand.u32 %v6749, 4294901760
  %v6990 = vsub.f32 %v6749, %v6989
  %v6991 = vand.u32 %v6990, 4294901760
  %v6992 = vsub.f32 %v6990, %v6991
  %v6993 = vand.u32 %v6992, 4294901760
  %6994 = vmatmul.f32.gmra.mxu0 %v6993
  %v6995 = vpop.f32.mrf.mxu0
  %v6996 = vadd.f32 %v6826, %v6995
  %v6997 = vand.u32 %v6751, 4294901760
  %v6998 = vsub.f32 %v6751, %v6997
  %v6999 = vand.u32 %v6998, 4294901760
  %v7000 = vsub.f32 %v6998, %v6999
  %v7001 = vand.u32 %v7000, 4294901760
  %7002 = vmatmul.f32.gmra.mxu0 %v7001
  %v7003 = vpop.f32.mrf.mxu0
  %v7004 = vadd.f32 %v6831, %v7003
  %v7005 = vand.u32 %v6753, 4294901760
  %v7006 = vsub.f32 %v6753, %v7005
  %v7007 = vand.u32 %v7006, 4294901760
  %v7008 = vsub.f32 %v7006, %v7007
  %v7009 = vand.u32 %v7008, 4294901760
  %7010 = vmatmul.f32.gmra.mxu0 %v7009
  %v7011 = vpop.f32.mrf.mxu0
  %v7012 = vadd.f32 %v6836, %v7011
  %v7013 = vand.u32 %v6755, 4294901760
  %v7014 = vsub.f32 %v6755, %v7013
  %v7015 = vand.u32 %v7014, 4294901760
  %v7016 = vsub.f32 %v7014, %v7015
  %v7017 = vand.u32 %v7016, 4294901760
  %7018 = vmatmul.f32.gmra.mxu0 %v7017
  %v7019 = vpop.f32.mrf.mxu0
  %v7020 = vadd.f32 %v6841, %v7019
  %v7021 = vand.u32 %v6757, 4294901760
  %v7022 = vsub.f32 %v6757, %v7021
  %v7023 = vand.u32 %v7022, 4294901760
  %v7024 = vsub.f32 %v7022, %v7023
  %v7025 = vand.u32 %v7024, 4294901760
  %7026 = vmatmul.f32.gmra.mxu0 %v7025
  %v7027 = vpop.f32.mrf.mxu0
  %v7028 = vadd.f32 %v6846, %v7027
  %v7029 = vand.u32 %v6759, 4294901760
  %v7030 = vsub.f32 %v6759, %v7029
  %v7031 = vand.u32 %v7030, 4294901760
  %v7032 = vsub.f32 %v7030, %v7031
  %v7033 = vand.u32 %v7032, 4294901760
  %7034 = vmatmul.f32.gmra.mxu0 %v7033
  %v7035 = vpop.f32.mrf.mxu0
  %v7036 = vadd.f32 %v6851, %v7035
  %v7037 = vand.u32 %v6761, 4294901760
  %v7038 = vsub.f32 %v6761, %v7037
  %v7039 = vand.u32 %v7038, 4294901760
  %v7040 = vsub.f32 %v7038, %v7039
  %v7041 = vand.u32 %v7040, 4294901760
  %7042 = vmatmul.f32.gmra.mxu0 %v7041
  %v7043 = vpop.f32.mrf.mxu0
  %v7044 = vadd.f32 %v6856, %v7043
  %v7045 = vand.u32 %v6763, 4294901760
  %v7046 = vsub.f32 %v6763, %v7045
  %v7047 = vand.u32 %v7046, 4294901760
  %v7048 = vsub.f32 %v7046, %v7047
  %v7049 = vand.u32 %v7048, 4294901760
  %7050 = vmatmul.f32.gmra.mxu0 %v7049
  %v7051 = vpop.f32.mrf.mxu0
  %v7052 = vadd.f32 %v6861, %v7051
  %v7053 = vand.u32 %v6765, 4294901760
  %v7054 = vsub.f32 %v6765, %v7053
  %v7055 = vand.u32 %v7054, 4294901760
  %v7056 = vsub.f32 %v7054, %v7055
  %v7057 = vand.u32 %v7056, 4294901760
  %7058 = vmatmul.f32.gmra.mxu0 %v7057
  %v7059 = vpop.f32.mrf.mxu0
  %v7060 = vadd.f32 %v6866, %v7059
  %v7061 = vand.u32 %v6767, 4294901760
  %v7062 = vsub.f32 %v6767, %v7061
  %v7063 = vand.u32 %v7062, 4294901760
  %v7064 = vsub.f32 %v7062, %v7063
  %v7065 = vand.u32 %v7064, 4294901760
  %7066 = vmatmul.f32.gmra.mxu0 %v7065
  %v7067 = vpop.f32.mrf.mxu0
  %v7068 = vadd.f32 %v6871, %v7067
  %v7069 = vand.u32 %v6769, 4294901760
  %v7070 = vsub.f32 %v6769, %v7069
  %v7071 = vand.u32 %v7070, 4294901760
  %v7072 = vsub.f32 %v7070, %v7071
  %v7073 = vand.u32 %v7072, 4294901760
  %7074 = vmatmul.f32.gmra.mxu0 %v7073
  %v7075 = vpop.f32.mrf.mxu0
  %v7076 = vadd.f32 %v6876, %v7075
  %v7077 = vand.u32 %v6771, 4294901760
  %v7078 = vsub.f32 %v6771, %v7077
  %v7079 = vand.u32 %v7078, 4294901760
  %v7080 = vsub.f32 %v7078, %v7079
  %v7081 = vand.u32 %v7080, 4294901760
  %7082 = vmatmul.f32.gmra.mxu0 %v7081
  %v7083 = vpop.f32.mrf.mxu0
  %v7084 = vadd.f32 %v6881, %v7083
  %v7085 = vand.u32 %v6773, 4294901760
  %v7086 = vsub.f32 %v6773, %v7085
  %v7087 = vand.u32 %v7086, 4294901760
  %v7088 = vsub.f32 %v7086, %v7087
  %v7089 = vand.u32 %v7088, 4294901760
  %7090 = vmatmul.f32.gmra.mxu0 %v7089
  %v7091 = vpop.f32.mrf.mxu0
  %v7092 = vadd.f32 %v6886, %v7091
  %v7093 = vand.u32 %v6775, 4294901760
  %v7094 = vsub.f32 %v6775, %v7093
  %v7095 = vand.u32 %v7094, 4294901760
  %v7096 = vsub.f32 %v7094, %v7095
  %v7097 = vand.u32 %v7096, 4294901760
  %7098 = vmatmul.f32.gmra.mxu0 %v7097
  %v7099 = vpop.f32.mrf.mxu0
  %v7100 = vadd.f32 %v6891, %v7099
  %7101 = vdwg.mxu0
  %v7102 = vand.u32 %v6792, 4294901760
  %v7103 = vsub.f32 %v6792, %v7102
  %v7104 = vand.u32 %v7103, 4294901760
  %v7105 = vsub.f32 %v7103, %v7104
  %v7106 = vand.u32 %v7105, 4294901760
  %7107 = vmatpush.msra.mxu0 %v7106
  %v7108 = vand.u32 %v6791, 4294901760
  %v7109 = vsub.f32 %v6791, %v7108
  %v7110 = vand.u32 %v7109, 4294901760
  %v7111 = vsub.f32 %v7109, %v7110
  %v7112 = vand.u32 %v7111, 4294901760
  %7113 = vmatpush.msra.mxu0 %v7112
  %v7114 = vand.u32 %v6790, 4294901760
  %v7115 = vsub.f32 %v6790, %v7114
  %v7116 = vand.u32 %v7115, 4294901760
  %v7117 = vsub.f32 %v7115, %v7116
  %v7118 = vand.u32 %v7117, 4294901760
  %7119 = vmatpush.msra.mxu0 %v7118
  %v7120 = vand.u32 %v6789, 4294901760
  %v7121 = vsub.f32 %v6789, %v7120
  %v7122 = vand.u32 %v7121, 4294901760
  %v7123 = vsub.f32 %v7121, %v7122
  %v7124 = vand.u32 %v7123, 4294901760
  %7125 = vmatpush.msra.mxu0 %v7124
  %v7126 = vand.u32 %v6788, 4294901760
  %v7127 = vsub.f32 %v6788, %v7126
  %v7128 = vand.u32 %v7127, 4294901760
  %v7129 = vsub.f32 %v7127, %v7128
  %v7130 = vand.u32 %v7129, 4294901760
  %7131 = vmatpush.msra.mxu0 %v7130
  %v7132 = vand.u32 %v6787, 4294901760
  %v7133 = vsub.f32 %v6787, %v7132
  %v7134 = vand.u32 %v7133, 4294901760
  %v7135 = vsub.f32 %v7133, %v7134
  %v7136 = vand.u32 %v7135, 4294901760
  %7137 = vmatpush.msra.mxu0 %v7136
  %v7138 = vand.u32 %v6786, 4294901760
  %v7139 = vsub.f32 %v6786, %v7138
  %v7140 = vand.u32 %v7139, 4294901760
  %v7141 = vsub.f32 %v7139, %v7140
  %v7142 = vand.u32 %v7141, 4294901760
  %7143 = vmatpush.msra.mxu0 %v7142
  %v7144 = vand.u32 %v6785, 4294901760
  %v7145 = vsub.f32 %v6785, %v7144
  %v7146 = vand.u32 %v7145, 4294901760
  %v7147 = vsub.f32 %v7145, %v7146
  %v7148 = vand.u32 %v7147, 4294901760
  %7149 = vmatpush.msra.mxu0 %v7148
  %v7150 = vand.u32 %v6784, 4294901760
  %v7151 = vsub.f32 %v6784, %v7150
  %v7152 = vand.u32 %v7151, 4294901760
  %v7153 = vsub.f32 %v7151, %v7152
  %v7154 = vand.u32 %v7153, 4294901760
  %7155 = vmatpush.msra.mxu0 %v7154
  %v7156 = vand.u32 %v6783, 4294901760
  %v7157 = vsub.f32 %v6783, %v7156
  %v7158 = vand.u32 %v7157, 4294901760
  %v7159 = vsub.f32 %v7157, %v7158
  %v7160 = vand.u32 %v7159, 4294901760
  %7161 = vmatpush.msra.mxu0 %v7160
  %v7162 = vand.u32 %v6782, 4294901760
  %v7163 = vsub.f32 %v6782, %v7162
  %v7164 = vand.u32 %v7163, 4294901760
  %v7165 = vsub.f32 %v7163, %v7164
  %v7166 = vand.u32 %v7165, 4294901760
  %7167 = vmatpush.msra.mxu0 %v7166
  %v7168 = vand.u32 %v6781, 4294901760
  %v7169 = vsub.f32 %v6781, %v7168
  %v7170 = vand.u32 %v7169, 4294901760
  %v7171 = vsub.f32 %v7169, %v7170
  %v7172 = vand.u32 %v7171, 4294901760
  %7173 = vmatpush.msra.mxu0 %v7172
  %v7174 = vand.u32 %v6780, 4294901760
  %v7175 = vsub.f32 %v6780, %v7174
  %v7176 = vand.u32 %v7175, 4294901760
  %v7177 = vsub.f32 %v7175, %v7176
  %v7178 = vand.u32 %v7177, 4294901760
  %7179 = vmatpush.msra.mxu0 %v7178
  %v7180 = vand.u32 %v6779, 4294901760
  %v7181 = vsub.f32 %v6779, %v7180
  %v7182 = vand.u32 %v7181, 4294901760
  %v7183 = vsub.f32 %v7181, %v7182
  %v7184 = vand.u32 %v7183, 4294901760
  %7185 = vmatpush.msra.mxu0 %v7184
  %v7186 = vand.u32 %v6778, 4294901760
  %v7187 = vsub.f32 %v6778, %v7186
  %v7188 = vand.u32 %v7187, 4294901760
  %v7189 = vsub.f32 %v7187, %v7188
  %v7190 = vand.u32 %v7189, 4294901760
  %7191 = vmatpush.msra.mxu0 %v7190
  %v7192 = vand.u32 %v6777, 4294901760
  %v7193 = vsub.f32 %v6777, %v7192
  %v7194 = vand.u32 %v7193, 4294901760
  %v7195 = vsub.f32 %v7193, %v7194
  %v7196 = vand.u32 %v7195, 4294901760
  %7197 = vmatpush.msra.mxu0 %v7196
  %v7198 = vand.u32 %v6745, 4294901760
  %7199 = vmatmul.f32.gmra.mxu0 %v7198
  %v7200 = vpop.f32.mrf.mxu0
  %v7201 = vadd.f32 %v6980, %v7200
  %v7202 = vand.u32 %v6747, 4294901760
  %7203 = vmatmul.f32.gmra.mxu0 %v7202
  %v7204 = vpop.f32.mrf.mxu0
  %v7205 = vadd.f32 %v6988, %v7204
  %v7206 = vand.u32 %v6749, 4294901760
  %7207 = vmatmul.f32.gmra.mxu0 %v7206
  %v7208 = vpop.f32.mrf.mxu0
  %v7209 = vadd.f32 %v6996, %v7208
  %v7210 = vand.u32 %v6751, 4294901760
  %7211 = vmatmul.f32.gmra.mxu0 %v7210
  %v7212 = vpop.f32.mrf.mxu0
  %v7213 = vadd.f32 %v7004, %v7212
  %v7214 = vand.u32 %v6753, 4294901760
  %7215 = vmatmul.f32.gmra.mxu0 %v7214
  %v7216 = vpop.f32.mrf.mxu0
  %v7217 = vadd.f32 %v7012, %v7216
  %v7218 = vand.u32 %v6755, 4294901760
  %7219 = vmatmul.f32.gmra.mxu0 %v7218
  %v7220 = vpop.f32.mrf.mxu0
  %v7221 = vadd.f32 %v7020, %v7220
  %v7222 = vand.u32 %v6757, 4294901760
  %7223 = vmatmul.f32.gmra.mxu0 %v7222
  %v7224 = vpop.f32.mrf.mxu0
  %v7225 = vadd.f32 %v7028, %v7224
  %v7226 = vand.u32 %v6759, 4294901760
  %7227 = vmatmul.f32.gmra.mxu0 %v7226
  %v7228 = vpop.f32.mrf.mxu0
  %v7229 = vadd.f32 %v7036, %v7228
  %v7230 = vand.u32 %v6761, 4294901760
  %7231 = vmatmul.f32.gmra.mxu0 %v7230
  %v7232 = vpop.f32.mrf.mxu0
  %v7233 = vadd.f32 %v7044, %v7232
  %v7234 = vand.u32 %v6763, 4294901760
  %7235 = vmatmul.f32.gmra.mxu0 %v7234
  %v7236 = vpop.f32.mrf.mxu0
  %v7237 = vadd.f32 %v7052, %v7236
  %v7238 = vand.u32 %v6765, 4294901760
  %7239 = vmatmul.f32.gmra.mxu0 %v7238
  %v7240 = vpop.f32.mrf.mxu0
  %v7241 = vadd.f32 %v7060, %v7240
  %v7242 = vand.u32 %v6767, 4294901760
  %7243 = vmatmul.f32.gmra.mxu0 %v7242
  %v7244 = vpop.f32.mrf.mxu0
  %v7245 = vadd.f32 %v7068, %v7244
  %v7246 = vand.u32 %v6769, 4294901760
  %7247 = vmatmul.f32.gmra.mxu0 %v7246
  %v7248 = vpop.f32.mrf.mxu0
  %v7249 = vadd.f32 %v7076, %v7248
  %v7250 = vand.u32 %v6771, 4294901760
  %7251 = vmatmul.f32.gmra.mxu0 %v7250
  %v7252 = vpop.f32.mrf.mxu0
  %v7253 = vadd.f32 %v7084, %v7252
  %v7254 = vand.u32 %v6773, 4294901760
  %7255 = vmatmul.f32.gmra.mxu0 %v7254
  %v7256 = vpop.f32.mrf.mxu0
  %v7257 = vadd.f32 %v7092, %v7256
  %v7258 = vand.u32 %v6775, 4294901760
  %7259 = vmatmul.f32.gmra.mxu0 %v7258
  %v7260 = vpop.f32.mrf.mxu0
  %v7261 = vadd.f32 %v7100, %v7260
  %7262 = vdwg.mxu0
  %v7263 = vand.u32 %v6792, 4294901760
  %v7264 = vsub.f32 %v6792, %v7263
  %7265 = vmatpush.msra.mxu0 %v7264
  %v7266 = vand.u32 %v6791, 4294901760
  %v7267 = vsub.f32 %v6791, %v7266
  %7268 = vmatpush.msra.mxu0 %v7267
  %v7269 = vand.u32 %v6790, 4294901760
  %v7270 = vsub.f32 %v6790, %v7269
  %7271 = vmatpush.msra.mxu0 %v7270
  %v7272 = vand.u32 %v6789, 4294901760
  %v7273 = vsub.f32 %v6789, %v7272
  %7274 = vmatpush.msra.mxu0 %v7273
  %v7275 = vand.u32 %v6788, 4294901760
  %v7276 = vsub.f32 %v6788, %v7275
  %7277 = vmatpush.msra.mxu0 %v7276
  %v7278 = vand.u32 %v6787, 4294901760
  %v7279 = vsub.f32 %v6787, %v7278
  %7280 = vmatpush.msra.mxu0 %v7279
  %v7281 = vand.u32 %v6786, 4294901760
  %v7282 = vsub.f32 %v6786, %v7281
  %7283 = vmatpush.msra.mxu0 %v7282
  %v7284 = vand.u32 %v6785, 4294901760
  %v7285 = vsub.f32 %v6785, %v7284
  %7286 = vmatpush.msra.mxu0 %v7285
  %v7287 = vand.u32 %v6784, 4294901760
  %v7288 = vsub.f32 %v6784, %v7287
  %7289 = vmatpush.msra.mxu0 %v7288
  %v7290 = vand.u32 %v6783, 4294901760
  %v7291 = vsub.f32 %v6783, %v7290
  %7292 = vmatpush.msra.mxu0 %v7291
  %v7293 = vand.u32 %v6782, 4294901760
  %v7294 = vsub.f32 %v6782, %v7293
  %7295 = vmatpush.msra.mxu0 %v7294
  %v7296 = vand.u32 %v6781, 4294901760
  %v7297 = vsub.f32 %v6781, %v7296
  %7298 = vmatpush.msra.mxu0 %v7297
  %v7299 = vand.u32 %v6780, 4294901760
  %v7300 = vsub.f32 %v6780, %v7299
  %7301 = vmatpush.msra.mxu0 %v7300
  %v7302 = vand.u32 %v6779, 4294901760
  %v7303 = vsub.f32 %v6779, %v7302
  %7304 = vmatpush.msra.mxu0 %v7303
  %v7305 = vand.u32 %v6778, 4294901760
  %v7306 = vsub.f32 %v6778, %v7305
  %7307 = vmatpush.msra.mxu0 %v7306
  %v7308 = vand.u32 %v6777, 4294901760
  %v7309 = vsub.f32 %v6777, %v7308
  %7310 = vmatpush.msra.mxu0 %v7309
  %v7311 = vand.u32 %v6745, 4294901760
  %v7312 = vsub.f32 %v6745, %v7311
  %7313 = vmatmul.f32.gmra.mxu0 %v7312
  %v7314 = vpop.f32.mrf.mxu0
  %v7315 = vadd.f32 %v7201, %v7314
  %v7316 = vand.u32 %v6747, 4294901760
  %v7317 = vsub.f32 %v6747, %v7316
  %7318 = vmatmul.f32.gmra.mxu0 %v7317
  %v7319 = vpop.f32.mrf.mxu0
  %v7320 = vadd.f32 %v7205, %v7319
  %v7321 = vand.u32 %v6749, 4294901760
  %v7322 = vsub.f32 %v6749, %v7321
  %7323 = vmatmul.f32.gmra.mxu0 %v7322
  %v7324 = vpop.f32.mrf.mxu0
  %v7325 = vadd.f32 %v7209, %v7324
  %v7326 = vand.u32 %v6751, 4294901760
  %v7327 = vsub.f32 %v6751, %v7326
  %7328 = vmatmul.f32.gmra.mxu0 %v7327
  %v7329 = vpop.f32.mrf.mxu0
  %v7330 = vadd.f32 %v7213, %v7329
  %v7331 = vand.u32 %v6753, 4294901760
  %v7332 = vsub.f32 %v6753, %v7331
  %7333 = vmatmul.f32.gmra.mxu0 %v7332
  %v7334 = vpop.f32.mrf.mxu0
  %v7335 = vadd.f32 %v7217, %v7334
  %v7336 = vand.u32 %v6755, 4294901760
  %v7337 = vsub.f32 %v6755, %v7336
  %7338 = vmatmul.f32.gmra.mxu0 %v7337
  %v7339 = vpop.f32.mrf.mxu0
  %v7340 = vadd.f32 %v7221, %v7339
  %v7341 = vand.u32 %v6757, 4294901760
  %v7342 = vsub.f32 %v6757, %v7341
  %7343 = vmatmul.f32.gmra.mxu0 %v7342
  %v7344 = vpop.f32.mrf.mxu0
  %v7345 = vadd.f32 %v7225, %v7344
  %v7346 = vand.u32 %v6759, 4294901760
  %v7347 = vsub.f32 %v6759, %v7346
  %7348 = vmatmul.f32.gmra.mxu0 %v7347
  %v7349 = vpop.f32.mrf.mxu0
  %v7350 = vadd.f32 %v7229, %v7349
  %v7351 = vand.u32 %v6761, 4294901760
  %v7352 = vsub.f32 %v6761, %v7351
  %7353 = vmatmul.f32.gmra.mxu0 %v7352
  %v7354 = vpop.f32.mrf.mxu0
  %v7355 = vadd.f32 %v7233, %v7354
  %v7356 = vand.u32 %v6763, 4294901760
  %v7357 = vsub.f32 %v6763, %v7356
  %7358 = vmatmul.f32.gmra.mxu0 %v7357
  %v7359 = vpop.f32.mrf.mxu0
  %v7360 = vadd.f32 %v7237, %v7359
  %v7361 = vand.u32 %v6765, 4294901760
  %v7362 = vsub.f32 %v6765, %v7361
  %7363 = vmatmul.f32.gmra.mxu0 %v7362
  %v7364 = vpop.f32.mrf.mxu0
  %v7365 = vadd.f32 %v7241, %v7364
  %v7366 = vand.u32 %v6767, 4294901760
  %v7367 = vsub.f32 %v6767, %v7366
  %7368 = vmatmul.f32.gmra.mxu0 %v7367
  %v7369 = vpop.f32.mrf.mxu0
  %v7370 = vadd.f32 %v7245, %v7369
  %v7371 = vand.u32 %v6769, 4294901760
  %v7372 = vsub.f32 %v6769, %v7371
  %7373 = vmatmul.f32.gmra.mxu0 %v7372
  %v7374 = vpop.f32.mrf.mxu0
  %v7375 = vadd.f32 %v7249, %v7374
  %v7376 = vand.u32 %v6771, 4294901760
  %v7377 = vsub.f32 %v6771, %v7376
  %7378 = vmatmul.f32.gmra.mxu0 %v7377
  %v7379 = vpop.f32.mrf.mxu0
  %v7380 = vadd.f32 %v7253, %v7379
  %v7381 = vand.u32 %v6773, 4294901760
  %v7382 = vsub.f32 %v6773, %v7381
  %7383 = vmatmul.f32.gmra.mxu0 %v7382
  %v7384 = vpop.f32.mrf.mxu0
  %v7385 = vadd.f32 %v7257, %v7384
  %v7386 = vand.u32 %v6775, 4294901760
  %v7387 = vsub.f32 %v6775, %v7386
  %7388 = vmatmul.f32.gmra.mxu0 %v7387
  %v7389 = vpop.f32.mrf.mxu0
  %v7390 = vadd.f32 %v7261, %v7389
  %7391 = vdwg.mxu0
  %v7392 = vand.u32 %v6792, 4294901760
  %7393 = vmatpush.msra.mxu0 %v7392
  %v7394 = vand.u32 %v6791, 4294901760
  %7395 = vmatpush.msra.mxu0 %v7394
  %v7396 = vand.u32 %v6790, 4294901760
  %7397 = vmatpush.msra.mxu0 %v7396
  %v7398 = vand.u32 %v6789, 4294901760
  %7399 = vmatpush.msra.mxu0 %v7398
  %v7400 = vand.u32 %v6788, 4294901760
  %7401 = vmatpush.msra.mxu0 %v7400
  %v7402 = vand.u32 %v6787, 4294901760
  %7403 = vmatpush.msra.mxu0 %v7402
  %v7404 = vand.u32 %v6786, 4294901760
  %7405 = vmatpush.msra.mxu0 %v7404
  %v7406 = vand.u32 %v6785, 4294901760
  %7407 = vmatpush.msra.mxu0 %v7406
  %v7408 = vand.u32 %v6784, 4294901760
  %7409 = vmatpush.msra.mxu0 %v7408
  %v7410 = vand.u32 %v6783, 4294901760
  %7411 = vmatpush.msra.mxu0 %v7410
  %v7412 = vand.u32 %v6782, 4294901760
  %7413 = vmatpush.msra.mxu0 %v7412
  %v7414 = vand.u32 %v6781, 4294901760
  %7415 = vmatpush.msra.mxu0 %v7414
  %v7416 = vand.u32 %v6780, 4294901760
  %7417 = vmatpush.msra.mxu0 %v7416
  %v7418 = vand.u32 %v6779, 4294901760
  %7419 = vmatpush.msra.mxu0 %v7418
  %v7420 = vand.u32 %v6778, 4294901760
  %7421 = vmatpush.msra.mxu0 %v7420
  %v7422 = vand.u32 %v6777, 4294901760
  %7423 = vmatpush.msra.mxu0 %v7422
  %v7424 = vand.u32 %v6745, 4294901760
  %v7425 = vsub.f32 %v6745, %v7424
  %v7426 = vand.u32 %v7425, 4294901760
  %7427 = vmatmul.f32.gmra.mxu0 %v7426
  %v7428 = vpop.f32.mrf.mxu0
  %v7429 = vadd.f32 %v7315, %v7428
  %v7430 = vand.u32 %v6747, 4294901760
  %v7431 = vsub.f32 %v6747, %v7430
  %v7432 = vand.u32 %v7431, 4294901760
  %7433 = vmatmul.f32.gmra.mxu0 %v7432
  %v7434 = vpop.f32.mrf.mxu0
  %v7435 = vadd.f32 %v7320, %v7434
  %v7436 = vand.u32 %v6749, 4294901760
  %v7437 = vsub.f32 %v6749, %v7436
  %v7438 = vand.u32 %v7437, 4294901760
  %7439 = vmatmul.f32.gmra.mxu0 %v7438
  %v7440 = vpop.f32.mrf.mxu0
  %v7441 = vadd.f32 %v7325, %v7440
  %v7442 = vand.u32 %v6751, 4294901760
  %v7443 = vsub.f32 %v6751, %v7442
  %v7444 = vand.u32 %v7443, 4294901760
  %7445 = vmatmul.f32.gmra.mxu0 %v7444
  %v7446 = vpop.f32.mrf.mxu0
  %v7447 = vadd.f32 %v7330, %v7446
  %v7448 = vand.u32 %v6753, 4294901760
  %v7449 = vsub.f32 %v6753, %v7448
  %v7450 = vand.u32 %v7449, 4294901760
  %7451 = vmatmul.f32.gmra.mxu0 %v7450
  %v7452 = vpop.f32.mrf.mxu0
  %v7453 = vadd.f32 %v7335, %v7452
  %v7454 = vand.u32 %v6755, 4294901760
  %v7455 = vsub.f32 %v6755, %v7454
  %v7456 = vand.u32 %v7455, 4294901760
  %7457 = vmatmul.f32.gmra.mxu0 %v7456
  %v7458 = vpop.f32.mrf.mxu0
  %v7459 = vadd.f32 %v7340, %v7458
  %v7460 = vand.u32 %v6757, 4294901760
  %v7461 = vsub.f32 %v6757, %v7460
  %v7462 = vand.u32 %v7461, 4294901760
  %7463 = vmatmul.f32.gmra.mxu0 %v7462
  %v7464 = vpop.f32.mrf.mxu0
  %v7465 = vadd.f32 %v7345, %v7464
  %v7466 = vand.u32 %v6759, 4294901760
  %v7467 = vsub.f32 %v6759, %v7466
  %v7468 = vand.u32 %v7467, 4294901760
  %7469 = vmatmul.f32.gmra.mxu0 %v7468
  %v7470 = vpop.f32.mrf.mxu0
  %v7471 = vadd.f32 %v7350, %v7470
  %v7472 = vand.u32 %v6761, 4294901760
  %v7473 = vsub.f32 %v6761, %v7472
  %v7474 = vand.u32 %v7473, 4294901760
  %7475 = vmatmul.f32.gmra.mxu0 %v7474
  %v7476 = vpop.f32.mrf.mxu0
  %v7477 = vadd.f32 %v7355, %v7476
  %v7478 = vand.u32 %v6763, 4294901760
  %v7479 = vsub.f32 %v6763, %v7478
  %v7480 = vand.u32 %v7479, 4294901760
  %7481 = vmatmul.f32.gmra.mxu0 %v7480
  %v7482 = vpop.f32.mrf.mxu0
  %v7483 = vadd.f32 %v7360, %v7482
  %v7484 = vand.u32 %v6765, 4294901760
  %v7485 = vsub.f32 %v6765, %v7484
  %v7486 = vand.u32 %v7485, 4294901760
  %7487 = vmatmul.f32.gmra.mxu0 %v7486
  %v7488 = vpop.f32.mrf.mxu0
  %v7489 = vadd.f32 %v7365, %v7488
  %v7490 = vand.u32 %v6767, 4294901760
  %v7491 = vsub.f32 %v6767, %v7490
  %v7492 = vand.u32 %v7491, 4294901760
  %7493 = vmatmul.f32.gmra.mxu0 %v7492
  %v7494 = vpop.f32.mrf.mxu0
  %v7495 = vadd.f32 %v7370, %v7494
  %v7496 = vand.u32 %v6769, 4294901760
  %v7497 = vsub.f32 %v6769, %v7496
  %v7498 = vand.u32 %v7497, 4294901760
  %7499 = vmatmul.f32.gmra.mxu0 %v7498
  %v7500 = vpop.f32.mrf.mxu0
  %v7501 = vadd.f32 %v7375, %v7500
  %v7502 = vand.u32 %v6771, 4294901760
  %v7503 = vsub.f32 %v6771, %v7502
  %v7504 = vand.u32 %v7503, 4294901760
  %7505 = vmatmul.f32.gmra.mxu0 %v7504
  %v7506 = vpop.f32.mrf.mxu0
  %v7507 = vadd.f32 %v7380, %v7506
  %v7508 = vand.u32 %v6773, 4294901760
  %v7509 = vsub.f32 %v6773, %v7508
  %v7510 = vand.u32 %v7509, 4294901760
  %7511 = vmatmul.f32.gmra.mxu0 %v7510
  %v7512 = vpop.f32.mrf.mxu0
  %v7513 = vadd.f32 %v7385, %v7512
  %v7514 = vand.u32 %v6775, 4294901760
  %v7515 = vsub.f32 %v6775, %v7514
  %v7516 = vand.u32 %v7515, 4294901760
  %7517 = vmatmul.f32.gmra.mxu0 %v7516
  %v7518 = vpop.f32.mrf.mxu0
  %v7519 = vadd.f32 %v7390, %v7518
  %7520 = vdwg.mxu0
  %v7521 = vand.u32 %v6792, 4294901760
  %v7522 = vsub.f32 %v6792, %v7521
  %v7523 = vand.u32 %v7522, 4294901760
  %7524 = vmatpush.msra.mxu0 %v7523
  %v7525 = vand.u32 %v6791, 4294901760
  %v7526 = vsub.f32 %v6791, %v7525
  %v7527 = vand.u32 %v7526, 4294901760
  %7528 = vmatpush.msra.mxu0 %v7527
  %v7529 = vand.u32 %v6790, 4294901760
  %v7530 = vsub.f32 %v6790, %v7529
  %v7531 = vand.u32 %v7530, 4294901760
  %7532 = vmatpush.msra.mxu0 %v7531
  %v7533 = vand.u32 %v6789, 4294901760
  %v7534 = vsub.f32 %v6789, %v7533
  %v7535 = vand.u32 %v7534, 4294901760
  %7536 = vmatpush.msra.mxu0 %v7535
  %v7537 = vand.u32 %v6788, 4294901760
  %v7538 = vsub.f32 %v6788, %v7537
  %v7539 = vand.u32 %v7538, 4294901760
  %7540 = vmatpush.msra.mxu0 %v7539
  %v7541 = vand.u32 %v6787, 4294901760
  %v7542 = vsub.f32 %v6787, %v7541
  %v7543 = vand.u32 %v7542, 4294901760
  %7544 = vmatpush.msra.mxu0 %v7543
  %v7545 = vand.u32 %v6786, 4294901760
  %v7546 = vsub.f32 %v6786, %v7545
  %v7547 = vand.u32 %v7546, 4294901760
  %7548 = vmatpush.msra.mxu0 %v7547
  %v7549 = vand.u32 %v6785, 4294901760
  %v7550 = vsub.f32 %v6785, %v7549
  %v7551 = vand.u32 %v7550, 4294901760
  %7552 = vmatpush.msra.mxu0 %v7551
  %v7553 = vand.u32 %v6784, 4294901760
  %v7554 = vsub.f32 %v6784, %v7553
  %v7555 = vand.u32 %v7554, 4294901760
  %7556 = vmatpush.msra.mxu0 %v7555
  %v7557 = vand.u32 %v6783, 4294901760
  %v7558 = vsub.f32 %v6783, %v7557
  %v7559 = vand.u32 %v7558, 4294901760
  %7560 = vmatpush.msra.mxu0 %v7559
  %v7561 = vand.u32 %v6782, 4294901760
  %v7562 = vsub.f32 %v6782, %v7561
  %v7563 = vand.u32 %v7562, 4294901760
  %7564 = vmatpush.msra.mxu0 %v7563
  %v7565 = vand.u32 %v6781, 4294901760
  %v7566 = vsub.f32 %v6781, %v7565
  %v7567 = vand.u32 %v7566, 4294901760
  %7568 = vmatpush.msra.mxu0 %v7567
  %v7569 = vand.u32 %v6780, 4294901760
  %v7570 = vsub.f32 %v6780, %v7569
  %v7571 = vand.u32 %v7570, 4294901760
  %7572 = vmatpush.msra.mxu0 %v7571
  %v7573 = vand.u32 %v6779, 4294901760
  %v7574 = vsub.f32 %v6779, %v7573
  %v7575 = vand.u32 %v7574, 4294901760
  %7576 = vmatpush.msra.mxu0 %v7575
  %v7577 = vand.u32 %v6778, 4294901760
  %v7578 = vsub.f32 %v6778, %v7577
  %v7579 = vand.u32 %v7578, 4294901760
  %7580 = vmatpush.msra.mxu0 %v7579
  %v7581 = vand.u32 %v6777, 4294901760
  %v7582 = vsub.f32 %v6777, %v7581
  %v7583 = vand.u32 %v7582, 4294901760
  %7584 = vmatpush.msra.mxu0 %v7583
  %v7585 = vand.u32 %v6745, 4294901760
  %7586 = vmatmul.f32.gmra.mxu0 %v7585
  %v7587 = vpop.f32.mrf.mxu0
  %v7588 = vadd.f32 %v7429, %v7587
  %v7589 = vand.u32 %v6747, 4294901760
  %7590 = vmatmul.f32.gmra.mxu0 %v7589
  %v7591 = vpop.f32.mrf.mxu0
  %v7592 = vadd.f32 %v7435, %v7591
  %v7593 = vand.u32 %v6749, 4294901760
  %7594 = vmatmul.f32.gmra.mxu0 %v7593
  %v7595 = vpop.f32.mrf.mxu0
  %v7596 = vadd.f32 %v7441, %v7595
  %v7597 = vand.u32 %v6751, 4294901760
  %7598 = vmatmul.f32.gmra.mxu0 %v7597
  %v7599 = vpop.f32.mrf.mxu0
  %v7600 = vadd.f32 %v7447, %v7599
  %v7601 = vand.u32 %v6753, 4294901760
  %7602 = vmatmul.f32.gmra.mxu0 %v7601
  %v7603 = vpop.f32.mrf.mxu0
  %v7604 = vadd.f32 %v7453, %v7603
  %v7605 = vand.u32 %v6755, 4294901760
  %7606 = vmatmul.f32.gmra.mxu0 %v7605
  %v7607 = vpop.f32.mrf.mxu0
  %v7608 = vadd.f32 %v7459, %v7607
  %v7609 = vand.u32 %v6757, 4294901760
  %7610 = vmatmul.f32.gmra.mxu0 %v7609
  %v7611 = vpop.f32.mrf.mxu0
  %v7612 = vadd.f32 %v7465, %v7611
  %v7613 = vand.u32 %v6759, 4294901760
  %7614 = vmatmul.f32.gmra.mxu0 %v7613
  %v7615 = vpop.f32.mrf.mxu0
  %v7616 = vadd.f32 %v7471, %v7615
  %v7617 = vand.u32 %v6761, 4294901760
  %7618 = vmatmul.f32.gmra.mxu0 %v7617
  %v7619 = vpop.f32.mrf.mxu0
  %v7620 = vadd.f32 %v7477, %v7619
  %v7621 = vand.u32 %v6763, 4294901760
  %7622 = vmatmul.f32.gmra.mxu0 %v7621
  %v7623 = vpop.f32.mrf.mxu0
  %v7624 = vadd.f32 %v7483, %v7623
  %v7625 = vand.u32 %v6765, 4294901760
  %7626 = vmatmul.f32.gmra.mxu0 %v7625
  %v7627 = vpop.f32.mrf.mxu0
  %v7628 = vadd.f32 %v7489, %v7627
  %v7629 = vand.u32 %v6767, 4294901760
  %7630 = vmatmul.f32.gmra.mxu0 %v7629
  %v7631 = vpop.f32.mrf.mxu0
  %v7632 = vadd.f32 %v7495, %v7631
  %v7633 = vand.u32 %v6769, 4294901760
  %7634 = vmatmul.f32.gmra.mxu0 %v7633
  %v7635 = vpop.f32.mrf.mxu0
  %v7636 = vadd.f32 %v7501, %v7635
  %v7637 = vand.u32 %v6771, 4294901760
  %7638 = vmatmul.f32.gmra.mxu0 %v7637
  %v7639 = vpop.f32.mrf.mxu0
  %v7640 = vadd.f32 %v7507, %v7639
  %v7641 = vand.u32 %v6773, 4294901760
  %7642 = vmatmul.f32.gmra.mxu0 %v7641
  %v7643 = vpop.f32.mrf.mxu0
  %v7644 = vadd.f32 %v7513, %v7643
  %v7645 = vand.u32 %v6775, 4294901760
  %7646 = vmatmul.f32.gmra.mxu0 %v7645
  %v7647 = vpop.f32.mrf.mxu0
  %v7648 = vadd.f32 %v7519, %v7647
  %7649 = vdwg.mxu0
  %v7650 = vand.u32 %v6792, 4294901760
  %7651 = vmatpush.msra.mxu0 %v7650
  %v7652 = vand.u32 %v6791, 4294901760
  %7653 = vmatpush.msra.mxu0 %v7652
  %v7654 = vand.u32 %v6790, 4294901760
  %7655 = vmatpush.msra.mxu0 %v7654
  %v7656 = vand.u32 %v6789, 4294901760
  %7657 = vmatpush.msra.mxu0 %v7656
  %v7658 = vand.u32 %v6788, 4294901760
  %7659 = vmatpush.msra.mxu0 %v7658
  %v7660 = vand.u32 %v6787, 4294901760
  %7661 = vmatpush.msra.mxu0 %v7660
  %v7662 = vand.u32 %v6786, 4294901760
  %7663 = vmatpush.msra.mxu0 %v7662
  %v7664 = vand.u32 %v6785, 4294901760
  %7665 = vmatpush.msra.mxu0 %v7664
  %v7666 = vand.u32 %v6784, 4294901760
  %7667 = vmatpush.msra.mxu0 %v7666
  %v7668 = vand.u32 %v6783, 4294901760
  %7669 = vmatpush.msra.mxu0 %v7668
  %v7670 = vand.u32 %v6782, 4294901760
  %7671 = vmatpush.msra.mxu0 %v7670
  %v7672 = vand.u32 %v6781, 4294901760
  %7673 = vmatpush.msra.mxu0 %v7672
  %v7674 = vand.u32 %v6780, 4294901760
  %7675 = vmatpush.msra.mxu0 %v7674
  %v7676 = vand.u32 %v6779, 4294901760
  %7677 = vmatpush.msra.mxu0 %v7676
  %v7678 = vand.u32 %v6778, 4294901760
  %7679 = vmatpush.msra.mxu0 %v7678
  %v7680 = vand.u32 %v6777, 4294901760
  %7681 = vmatpush.msra.mxu0 %v7680
  %v7682 = vand.u32 %v6745, 4294901760
  %7683 = vmatmul.f32.gmra.mxu0 %v7682
  %v7684 = vpop.f32.mrf.mxu0
  %v7685 = vadd.f32 %v7588, %v7684
  %v7686 = vand.u32 %v6747, 4294901760
  %7687 = vmatmul.f32.gmra.mxu0 %v7686
  %v7688 = vpop.f32.mrf.mxu0
  %v7689 = vadd.f32 %v7592, %v7688
  %v7690 = vand.u32 %v6749, 4294901760
  %7691 = vmatmul.f32.gmra.mxu0 %v7690
  %v7692 = vpop.f32.mrf.mxu0
  %v7693 = vadd.f32 %v7596, %v7692
  %v7694 = vand.u32 %v6751, 4294901760
  %7695 = vmatmul.f32.gmra.mxu0 %v7694
  %v7696 = vpop.f32.mrf.mxu0
  %v7697 = vadd.f32 %v7600, %v7696
  %v7698 = vand.u32 %v6753, 4294901760
  %7699 = vmatmul.f32.gmra.mxu0 %v7698
  %v7700 = vpop.f32.mrf.mxu0
  %v7701 = vadd.f32 %v7604, %v7700
  %v7702 = vand.u32 %v6755, 4294901760
  %7703 = vmatmul.f32.gmra.mxu0 %v7702
  %v7704 = vpop.f32.mrf.mxu0
  %v7705 = vadd.f32 %v7608, %v7704
  %v7706 = vand.u32 %v6757, 4294901760
  %7707 = vmatmul.f32.gmra.mxu0 %v7706
  %v7708 = vpop.f32.mrf.mxu0
  %v7709 = vadd.f32 %v7612, %v7708
  %v7710 = vand.u32 %v6759, 4294901760
  %7711 = vmatmul.f32.gmra.mxu0 %v7710
  %v7712 = vpop.f32.mrf.mxu0
  %v7713 = vadd.f32 %v7616, %v7712
  %v7714 = vand.u32 %v6761, 4294901760
  %7715 = vmatmul.f32.gmra.mxu0 %v7714
  %v7716 = vpop.f32.mrf.mxu0
  %v7717 = vadd.f32 %v7620, %v7716
  %v7718 = vand.u32 %v6763, 4294901760
  %7719 = vmatmul.f32.gmra.mxu0 %v7718
  %v7720 = vpop.f32.mrf.mxu0
  %v7721 = vadd.f32 %v7624, %v7720
  %v7722 = vand.u32 %v6765, 4294901760
  %7723 = vmatmul.f32.gmra.mxu0 %v7722
  %v7724 = vpop.f32.mrf.mxu0
  %v7725 = vadd.f32 %v7628, %v7724
  %v7726 = vand.u32 %v6767, 4294901760
  %7727 = vmatmul.f32.gmra.mxu0 %v7726
  %v7728 = vpop.f32.mrf.mxu0
  %v7729 = vadd.f32 %v7632, %v7728
  %v7730 = vand.u32 %v6769, 4294901760
  %7731 = vmatmul.f32.gmra.mxu0 %v7730
  %v7732 = vpop.f32.mrf.mxu0
  %v7733 = vadd.f32 %v7636, %v7732
  %v7734 = vand.u32 %v6771, 4294901760
  %7735 = vmatmul.f32.gmra.mxu0 %v7734
  %v7736 = vpop.f32.mrf.mxu0
  %v7737 = vadd.f32 %v7640, %v7736
  %v7738 = vand.u32 %v6773, 4294901760
  %7739 = vmatmul.f32.gmra.mxu0 %v7738
  %v7740 = vpop.f32.mrf.mxu0
  %v7741 = vadd.f32 %v7644, %v7740
  %v7742 = vand.u32 %v6775, 4294901760
  %7743 = vmatmul.f32.gmra.mxu0 %v7742
  %v7744 = vpop.f32.mrf.mxu0
  %v7745 = vadd.f32 %v7648, %v7744
  %7746 = vdwg.mxu0
  %7747 = vmatpush.msra.mxu0 0.0
  %7748 = vmatpush.msra.mxu0 0.0
  %7749 = vmatpush.msra.mxu0 0.0
  %7750 = vmatpush.msra.mxu0 0.0
  %7751 = vmatpush.msra.mxu0 0.0
  %7752 = vmatpush.msra.mxu0 0.0
  %7753 = vmatpush.msra.mxu0 0.0
  %7754 = vmatpush.msra.mxu0 0.0
  %7755 = vmatpush.msra.mxu0 0.0
  %7756 = vmatpush.msra.mxu0 0.0
  %7757 = vmatpush.msra.mxu0 0.0
  %7758 = vmatpush.msra.mxu0 0.0
  %v7759 = vand.u32 %v6796, 4294901760
  %7760 = vmatpush.msra.mxu0 %v7759
  %v7761 = vand.u32 %v6795, 4294901760
  %7762 = vmatpush.msra.mxu0 %v7761
  %v7763 = vand.u32 %v6794, 4294901760
  %7764 = vmatpush.msra.mxu0 %v7763
  %v7765 = vand.u32 %v6793, 4294901760
  %7766 = vmatpush.msra.mxu0 %v7765
  %v7767 = vand.u32 %v6894, 4294901760
  %v7768 = vsub.f32 %v6894, %v7767
  %v7769 = vand.u32 %v7768, 4294901760
  %v7770 = vsub.f32 %v7768, %v7769
  %v7771 = vand.u32 %v7770, 4294901760
  %7772 = vmatmul.f32.gmra.mxu0 %v7771
  %v7773 = vpop.f32.mrf.mxu0
  %v7774 = vadd.f32 %v7685, %v7773
  %v7775 = vand.u32 %v6897, 4294901760
  %v7776 = vsub.f32 %v6897, %v7775
  %v7777 = vand.u32 %v7776, 4294901760
  %v7778 = vsub.f32 %v7776, %v7777
  %v7779 = vand.u32 %v7778, 4294901760
  %7780 = vmatmul.f32.gmra.mxu0 %v7779
  %v7781 = vpop.f32.mrf.mxu0
  %v7782 = vadd.f32 %v7689, %v7781
  %v7783 = vand.u32 %v6900, 4294901760
  %v7784 = vsub.f32 %v6900, %v7783
  %v7785 = vand.u32 %v7784, 4294901760
  %v7786 = vsub.f32 %v7784, %v7785
  %v7787 = vand.u32 %v7786, 4294901760
  %7788 = vmatmul.f32.gmra.mxu0 %v7787
  %v7789 = vpop.f32.mrf.mxu0
  %v7790 = vadd.f32 %v7693, %v7789
  %v7791 = vand.u32 %v6903, 4294901760
  %v7792 = vsub.f32 %v6903, %v7791
  %v7793 = vand.u32 %v7792, 4294901760
  %v7794 = vsub.f32 %v7792, %v7793
  %v7795 = vand.u32 %v7794, 4294901760
  %7796 = vmatmul.f32.gmra.mxu0 %v7795
  %v7797 = vpop.f32.mrf.mxu0
  %v7798 = vadd.f32 %v7697, %v7797
  %v7799 = vand.u32 %v6906, 4294901760
  %v7800 = vsub.f32 %v6906, %v7799
  %v7801 = vand.u32 %v7800, 4294901760
  %v7802 = vsub.f32 %v7800, %v7801
  %v7803 = vand.u32 %v7802, 4294901760
  %7804 = vmatmul.f32.gmra.mxu0 %v7803
  %v7805 = vpop.f32.mrf.mxu0
  %v7806 = vadd.f32 %v7701, %v7805
  %v7807 = vand.u32 %v6909, 4294901760
  %v7808 = vsub.f32 %v6909, %v7807
  %v7809 = vand.u32 %v7808, 4294901760
  %v7810 = vsub.f32 %v7808, %v7809
  %v7811 = vand.u32 %v7810, 4294901760
  %7812 = vmatmul.f32.gmra.mxu0 %v7811
  %v7813 = vpop.f32.mrf.mxu0
  %v7814 = vadd.f32 %v7705, %v7813
  %v7815 = vand.u32 %v6912, 4294901760
  %v7816 = vsub.f32 %v6912, %v7815
  %v7817 = vand.u32 %v7816, 4294901760
  %v7818 = vsub.f32 %v7816, %v7817
  %v7819 = vand.u32 %v7818, 4294901760
  %7820 = vmatmul.f32.gmra.mxu0 %v7819
  %v7821 = vpop.f32.mrf.mxu0
  %v7822 = vadd.f32 %v7709, %v7821
  %v7823 = vand.u32 %v6915, 4294901760
  %v7824 = vsub.f32 %v6915, %v7823
  %v7825 = vand.u32 %v7824, 4294901760
  %v7826 = vsub.f32 %v7824, %v7825
  %v7827 = vand.u32 %v7826, 4294901760
  %7828 = vmatmul.f32.gmra.mxu0 %v7827
  %v7829 = vpop.f32.mrf.mxu0
  %v7830 = vadd.f32 %v7713, %v7829
  %v7831 = vand.u32 %v6918, 4294901760
  %v7832 = vsub.f32 %v6918, %v7831
  %v7833 = vand.u32 %v7832, 4294901760
  %v7834 = vsub.f32 %v7832, %v7833
  %v7835 = vand.u32 %v7834, 4294901760
  %7836 = vmatmul.f32.gmra.mxu0 %v7835
  %v7837 = vpop.f32.mrf.mxu0
  %v7838 = vadd.f32 %v7717, %v7837
  %v7839 = vand.u32 %v6921, 4294901760
  %v7840 = vsub.f32 %v6921, %v7839
  %v7841 = vand.u32 %v7840, 4294901760
  %v7842 = vsub.f32 %v7840, %v7841
  %v7843 = vand.u32 %v7842, 4294901760
  %7844 = vmatmul.f32.gmra.mxu0 %v7843
  %v7845 = vpop.f32.mrf.mxu0
  %v7846 = vadd.f32 %v7721, %v7845
  %v7847 = vand.u32 %v6924, 4294901760
  %v7848 = vsub.f32 %v6924, %v7847
  %v7849 = vand.u32 %v7848, 4294901760
  %v7850 = vsub.f32 %v7848, %v7849
  %v7851 = vand.u32 %v7850, 4294901760
  %7852 = vmatmul.f32.gmra.mxu0 %v7851
  %v7853 = vpop.f32.mrf.mxu0
  %v7854 = vadd.f32 %v7725, %v7853
  %v7855 = vand.u32 %v6927, 4294901760
  %v7856 = vsub.f32 %v6927, %v7855
  %v7857 = vand.u32 %v7856, 4294901760
  %v7858 = vsub.f32 %v7856, %v7857
  %v7859 = vand.u32 %v7858, 4294901760
  %7860 = vmatmul.f32.gmra.mxu0 %v7859
  %v7861 = vpop.f32.mrf.mxu0
  %v7862 = vadd.f32 %v7729, %v7861
  %v7863 = vand.u32 %v6930, 4294901760
  %v7864 = vsub.f32 %v6930, %v7863
  %v7865 = vand.u32 %v7864, 4294901760
  %v7866 = vsub.f32 %v7864, %v7865
  %v7867 = vand.u32 %v7866, 4294901760
  %7868 = vmatmul.f32.gmra.mxu0 %v7867
  %v7869 = vpop.f32.mrf.mxu0
  %v7870 = vadd.f32 %v7733, %v7869
  %v7871 = vand.u32 %v6933, 4294901760
  %v7872 = vsub.f32 %v6933, %v7871
  %v7873 = vand.u32 %v7872, 4294901760
  %v7874 = vsub.f32 %v7872, %v7873
  %v7875 = vand.u32 %v7874, 4294901760
  %7876 = vmatmul.f32.gmra.mxu0 %v7875
  %v7877 = vpop.f32.mrf.mxu0
  %v7878 = vadd.f32 %v7737, %v7877
  %v7879 = vand.u32 %v6936, 4294901760
  %v7880 = vsub.f32 %v6936, %v7879
  %v7881 = vand.u32 %v7880, 4294901760
  %v7882 = vsub.f32 %v7880, %v7881
  %v7883 = vand.u32 %v7882, 4294901760
  %7884 = vmatmul.f32.gmra.mxu0 %v7883
  %v7885 = vpop.f32.mrf.mxu0
  %v7886 = vadd.f32 %v7741, %v7885
  %v7887 = vand.u32 %v6939, 4294901760
  %v7888 = vsub.f32 %v6939, %v7887
  %v7889 = vand.u32 %v7888, 4294901760
  %v7890 = vsub.f32 %v7888, %v7889
  %v7891 = vand.u32 %v7890, 4294901760
  %7892 = vmatmul.f32.gmra.mxu0 %v7891
  %v7893 = vpop.f32.mrf.mxu0
  %v7894 = vadd.f32 %v7745, %v7893
  %7895 = vdwg.mxu0
  %7896 = vmatpush.msra.mxu0 0.0
  %7897 = vmatpush.msra.mxu0 0.0
  %7898 = vmatpush.msra.mxu0 0.0
  %7899 = vmatpush.msra.mxu0 0.0
  %7900 = vmatpush.msra.mxu0 0.0
  %7901 = vmatpush.msra.mxu0 0.0
  %7902 = vmatpush.msra.mxu0 0.0
  %7903 = vmatpush.msra.mxu0 0.0
  %7904 = vmatpush.msra.mxu0 0.0
  %7905 = vmatpush.msra.mxu0 0.0
  %7906 = vmatpush.msra.mxu0 0.0
  %7907 = vmatpush.msra.mxu0 0.0
  %v7908 = vand.u32 %v6796, 4294901760
  %v7909 = vsub.f32 %v6796, %v7908
  %v7910 = vand.u32 %v7909, 4294901760
  %v7911 = vsub.f32 %v7909, %v7910
  %v7912 = vand.u32 %v7911, 4294901760
  %7913 = vmatpush.msra.mxu0 %v7912
  %v7914 = vand.u32 %v6795, 4294901760
  %v7915 = vsub.f32 %v6795, %v7914
  %v7916 = vand.u32 %v7915, 4294901760
  %v7917 = vsub.f32 %v7915, %v7916
  %v7918 = vand.u32 %v7917, 4294901760
  %7919 = vmatpush.msra.mxu0 %v7918
  %v7920 = vand.u32 %v6794, 4294901760
  %v7921 = vsub.f32 %v6794, %v7920
  %v7922 = vand.u32 %v7921, 4294901760
  %v7923 = vsub.f32 %v7921, %v7922
  %v7924 = vand.u32 %v7923, 4294901760
  %7925 = vmatpush.msra.mxu0 %v7924
  %v7926 = vand.u32 %v6793, 4294901760
  %v7927 = vsub.f32 %v6793, %v7926
  %v7928 = vand.u32 %v7927, 4294901760
  %v7929 = vsub.f32 %v7927, %v7928
  %v7930 = vand.u32 %v7929, 4294901760
  %7931 = vmatpush.msra.mxu0 %v7930
  %v7932 = vand.u32 %v6894, 4294901760
  %7933 = vmatmul.f32.gmra.mxu0 %v7932
  %v7934 = vpop.f32.mrf.mxu0
  %v7935 = vadd.f32 %v7774, %v7934
  %v7936 = vand.u32 %v6897, 4294901760
  %7937 = vmatmul.f32.gmra.mxu0 %v7936
  %v7938 = vpop.f32.mrf.mxu0
  %v7939 = vadd.f32 %v7782, %v7938
  %v7940 = vand.u32 %v6900, 4294901760
  %7941 = vmatmul.f32.gmra.mxu0 %v7940
  %v7942 = vpop.f32.mrf.mxu0
  %v7943 = vadd.f32 %v7790, %v7942
  %v7944 = vand.u32 %v6903, 4294901760
  %7945 = vmatmul.f32.gmra.mxu0 %v7944
  %v7946 = vpop.f32.mrf.mxu0
  %v7947 = vadd.f32 %v7798, %v7946
  %v7948 = vand.u32 %v6906, 4294901760
  %7949 = vmatmul.f32.gmra.mxu0 %v7948
  %v7950 = vpop.f32.mrf.mxu0
  %v7951 = vadd.f32 %v7806, %v7950
  %v7952 = vand.u32 %v6909, 4294901760
  %7953 = vmatmul.f32.gmra.mxu0 %v7952
  %v7954 = vpop.f32.mrf.mxu0
  %v7955 = vadd.f32 %v7814, %v7954
  %v7956 = vand.u32 %v6912, 4294901760
  %7957 = vmatmul.f32.gmra.mxu0 %v7956
  %v7958 = vpop.f32.mrf.mxu0
  %v7959 = vadd.f32 %v7822, %v7958
  %v7960 = vand.u32 %v6915, 4294901760
  %7961 = vmatmul.f32.gmra.mxu0 %v7960
  %v7962 = vpop.f32.mrf.mxu0
  %v7963 = vadd.f32 %v7830, %v7962
  %v7964 = vand.u32 %v6918, 4294901760
  %7965 = vmatmul.f32.gmra.mxu0 %v7964
  %v7966 = vpop.f32.mrf.mxu0
  %v7967 = vadd.f32 %v7838, %v7966
  %v7968 = vand.u32 %v6921, 4294901760
  %7969 = vmatmul.f32.gmra.mxu0 %v7968
  %v7970 = vpop.f32.mrf.mxu0
  %v7971 = vadd.f32 %v7846, %v7970
  %v7972 = vand.u32 %v6924, 4294901760
  %7973 = vmatmul.f32.gmra.mxu0 %v7972
  %v7974 = vpop.f32.mrf.mxu0
  %v7975 = vadd.f32 %v7854, %v7974
  %v7976 = vand.u32 %v6927, 4294901760
  %7977 = vmatmul.f32.gmra.mxu0 %v7976
  %v7978 = vpop.f32.mrf.mxu0
  %v7979 = vadd.f32 %v7862, %v7978
  %v7980 = vand.u32 %v6930, 4294901760
  %7981 = vmatmul.f32.gmra.mxu0 %v7980
  %v7982 = vpop.f32.mrf.mxu0
  %v7983 = vadd.f32 %v7870, %v7982
  %v7984 = vand.u32 %v6933, 4294901760
  %7985 = vmatmul.f32.gmra.mxu0 %v7984
  %v7986 = vpop.f32.mrf.mxu0
  %v7987 = vadd.f32 %v7878, %v7986
  %v7988 = vand.u32 %v6936, 4294901760
  %7989 = vmatmul.f32.gmra.mxu0 %v7988
  %v7990 = vpop.f32.mrf.mxu0
  %v7991 = vadd.f32 %v7886, %v7990
  %v7992 = vand.u32 %v6939, 4294901760
  %7993 = vmatmul.f32.gmra.mxu0 %v7992
  %v7994 = vpop.f32.mrf.mxu0
  %v7995 = vadd.f32 %v7894, %v7994
  %7996 = vdwg.mxu0
  %7997 = vmatpush.msra.mxu0 0.0
  %7998 = vmatpush.msra.mxu0 0.0
  %7999 = vmatpush.msra.mxu0 0.0
  %8000 = vmatpush.msra.mxu0 0.0
  %8001 = vmatpush.msra.mxu0 0.0
  %8002 = vmatpush.msra.mxu0 0.0
  %8003 = vmatpush.msra.mxu0 0.0
  %8004 = vmatpush.msra.mxu0 0.0
  %8005 = vmatpush.msra.mxu0 0.0
  %8006 = vmatpush.msra.mxu0 0.0
  %8007 = vmatpush.msra.mxu0 0.0
  %8008 = vmatpush.msra.mxu0 0.0
  %v8009 = vand.u32 %v6796, 4294901760
  %v8010 = vsub.f32 %v6796, %v8009
  %8011 = vmatpush.msra.mxu0 %v8010
  %v8012 = vand.u32 %v6795, 4294901760
  %v8013 = vsub.f32 %v6795, %v8012
  %8014 = vmatpush.msra.mxu0 %v8013
  %v8015 = vand.u32 %v6794, 4294901760
  %v8016 = vsub.f32 %v6794, %v8015
  %8017 = vmatpush.msra.mxu0 %v8016
  %v8018 = vand.u32 %v6793, 4294901760
  %v8019 = vsub.f32 %v6793, %v8018
  %8020 = vmatpush.msra.mxu0 %v8019
  %v8021 = vand.u32 %v6894, 4294901760
  %v8022 = vsub.f32 %v6894, %v8021
  %8023 = vmatmul.f32.gmra.mxu0 %v8022
  %v8024 = vpop.f32.mrf.mxu0
  %v8025 = vadd.f32 %v7935, %v8024
  %v8026 = vand.u32 %v6897, 4294901760
  %v8027 = vsub.f32 %v6897, %v8026
  %8028 = vmatmul.f32.gmra.mxu0 %v8027
  %v8029 = vpop.f32.mrf.mxu0
  %v8030 = vadd.f32 %v7939, %v8029
  %v8031 = vand.u32 %v6900, 4294901760
  %v8032 = vsub.f32 %v6900, %v8031
  %8033 = vmatmul.f32.gmra.mxu0 %v8032
  %v8034 = vpop.f32.mrf.mxu0
  %v8035 = vadd.f32 %v7943, %v8034
  %v8036 = vand.u32 %v6903, 4294901760
  %v8037 = vsub.f32 %v6903, %v8036
  %8038 = vmatmul.f32.gmra.mxu0 %v8037
  %v8039 = vpop.f32.mrf.mxu0
  %v8040 = vadd.f32 %v7947, %v8039
  %v8041 = vand.u32 %v6906, 4294901760
  %v8042 = vsub.f32 %v6906, %v8041
  %8043 = vmatmul.f32.gmra.mxu0 %v8042
  %v8044 = vpop.f32.mrf.mxu0
  %v8045 = vadd.f32 %v7951, %v8044
  %v8046 = vand.u32 %v6909, 4294901760
  %v8047 = vsub.f32 %v6909, %v8046
  %8048 = vmatmul.f32.gmra.mxu0 %v8047
  %v8049 = vpop.f32.mrf.mxu0
  %v8050 = vadd.f32 %v7955, %v8049
  %v8051 = vand.u32 %v6912, 4294901760
  %v8052 = vsub.f32 %v6912, %v8051
  %8053 = vmatmul.f32.gmra.mxu0 %v8052
  %v8054 = vpop.f32.mrf.mxu0
  %v8055 = vadd.f32 %v7959, %v8054
  %v8056 = vand.u32 %v6915, 4294901760
  %v8057 = vsub.f32 %v6915, %v8056
  %8058 = vmatmul.f32.gmra.mxu0 %v8057
  %v8059 = vpop.f32.mrf.mxu0
  %v8060 = vadd.f32 %v7963, %v8059
  %v8061 = vand.u32 %v6918, 4294901760
  %v8062 = vsub.f32 %v6918, %v8061
  %8063 = vmatmul.f32.gmra.mxu0 %v8062
  %v8064 = vpop.f32.mrf.mxu0
  %v8065 = vadd.f32 %v7967, %v8064
  %v8066 = vand.u32 %v6921, 4294901760
  %v8067 = vsub.f32 %v6921, %v8066
  %8068 = vmatmul.f32.gmra.mxu0 %v8067
  %v8069 = vpop.f32.mrf.mxu0
  %v8070 = vadd.f32 %v7971, %v8069
  %v8071 = vand.u32 %v6924, 4294901760
  %v8072 = vsub.f32 %v6924, %v8071
  %8073 = vmatmul.f32.gmra.mxu0 %v8072
  %v8074 = vpop.f32.mrf.mxu0
  %v8075 = vadd.f32 %v7975, %v8074
  %v8076 = vand.u32 %v6927, 4294901760
  %v8077 = vsub.f32 %v6927, %v8076
  %8078 = vmatmul.f32.gmra.mxu0 %v8077
  %v8079 = vpop.f32.mrf.mxu0
  %v8080 = vadd.f32 %v7979, %v8079
  %v8081 = vand.u32 %v6930, 4294901760
  %v8082 = vsub.f32 %v6930, %v8081
  %8083 = vmatmul.f32.gmra.mxu0 %v8082
  %v8084 = vpop.f32.mrf.mxu0
  %v8085 = vadd.f32 %v7983, %v8084
  %v8086 = vand.u32 %v6933, 4294901760
  %v8087 = vsub.f32 %v6933, %v8086
  %8088 = vmatmul.f32.gmra.mxu0 %v8087
  %v8089 = vpop.f32.mrf.mxu0
  %v8090 = vadd.f32 %v7987, %v8089
  %v8091 = vand.u32 %v6936, 4294901760
  %v8092 = vsub.f32 %v6936, %v8091
  %8093 = vmatmul.f32.gmra.mxu0 %v8092
  %v8094 = vpop.f32.mrf.mxu0
  %v8095 = vadd.f32 %v7991, %v8094
  %v8096 = vand.u32 %v6939, 4294901760
  %v8097 = vsub.f32 %v6939, %v8096
  %8098 = vmatmul.f32.gmra.mxu0 %v8097
  %v8099 = vpop.f32.mrf.mxu0
  %v8100 = vadd.f32 %v7995, %v8099
  %8101 = vdwg.mxu0
  %8102 = vmatpush.msra.mxu0 0.0
  %8103 = vmatpush.msra.mxu0 0.0
  %8104 = vmatpush.msra.mxu0 0.0
  %8105 = vmatpush.msra.mxu0 0.0
  %8106 = vmatpush.msra.mxu0 0.0
  %8107 = vmatpush.msra.mxu0 0.0
  %8108 = vmatpush.msra.mxu0 0.0
  %8109 = vmatpush.msra.mxu0 0.0
  %8110 = vmatpush.msra.mxu0 0.0
  %8111 = vmatpush.msra.mxu0 0.0
  %8112 = vmatpush.msra.mxu0 0.0
  %8113 = vmatpush.msra.mxu0 0.0
  %v8114 = vand.u32 %v6796, 4294901760
  %8115 = vmatpush.msra.mxu0 %v8114
  %v8116 = vand.u32 %v6795, 4294901760
  %8117 = vmatpush.msra.mxu0 %v8116
  %v8118 = vand.u32 %v6794, 4294901760
  %8119 = vmatpush.msra.mxu0 %v8118
  %v8120 = vand.u32 %v6793, 4294901760
  %8121 = vmatpush.msra.mxu0 %v8120
  %v8122 = vand.u32 %v6894, 4294901760
  %v8123 = vsub.f32 %v6894, %v8122
  %v8124 = vand.u32 %v8123, 4294901760
  %8125 = vmatmul.f32.gmra.mxu0 %v8124
  %v8126 = vpop.f32.mrf.mxu0
  %v8127 = vadd.f32 %v8025, %v8126
  %v8128 = vand.u32 %v6897, 4294901760
  %v8129 = vsub.f32 %v6897, %v8128
  %v8130 = vand.u32 %v8129, 4294901760
  %8131 = vmatmul.f32.gmra.mxu0 %v8130
  %v8132 = vpop.f32.mrf.mxu0
  %v8133 = vadd.f32 %v8030, %v8132
  %v8134 = vand.u32 %v6900, 4294901760
  %v8135 = vsub.f32 %v6900, %v8134
  %v8136 = vand.u32 %v8135, 4294901760
  %8137 = vmatmul.f32.gmra.mxu0 %v8136
  %v8138 = vpop.f32.mrf.mxu0
  %v8139 = vadd.f32 %v8035, %v8138
  %v8140 = vand.u32 %v6903, 4294901760
  %v8141 = vsub.f32 %v6903, %v8140
  %v8142 = vand.u32 %v8141, 4294901760
  %8143 = vmatmul.f32.gmra.mxu0 %v8142
  %v8144 = vpop.f32.mrf.mxu0
  %v8145 = vadd.f32 %v8040, %v8144
  %v8146 = vand.u32 %v6906, 4294901760
  %v8147 = vsub.f32 %v6906, %v8146
  %v8148 = vand.u32 %v8147, 4294901760
  %8149 = vmatmul.f32.gmra.mxu0 %v8148
  %v8150 = vpop.f32.mrf.mxu0
  %v8151 = vadd.f32 %v8045, %v8150
  %v8152 = vand.u32 %v6909, 4294901760
  %v8153 = vsub.f32 %v6909, %v8152
  %v8154 = vand.u32 %v8153, 4294901760
  %8155 = vmatmul.f32.gmra.mxu0 %v8154
  %v8156 = vpop.f32.mrf.mxu0
  %v8157 = vadd.f32 %v8050, %v8156
  %v8158 = vand.u32 %v6912, 4294901760
  %v8159 = vsub.f32 %v6912, %v8158
  %v8160 = vand.u32 %v8159, 4294901760
  %8161 = vmatmul.f32.gmra.mxu0 %v8160
  %v8162 = vpop.f32.mrf.mxu0
  %v8163 = vadd.f32 %v8055, %v8162
  %v8164 = vand.u32 %v6915, 4294901760
  %v8165 = vsub.f32 %v6915, %v8164
  %v8166 = vand.u32 %v8165, 4294901760
  %8167 = vmatmul.f32.gmra.mxu0 %v8166
  %v8168 = vpop.f32.mrf.mxu0
  %v8169 = vadd.f32 %v8060, %v8168
  %v8170 = vand.u32 %v6918, 4294901760
  %v8171 = vsub.f32 %v6918, %v8170
  %v8172 = vand.u32 %v8171, 4294901760
  %8173 = vmatmul.f32.gmra.mxu0 %v8172
  %v8174 = vpop.f32.mrf.mxu0
  %v8175 = vadd.f32 %v8065, %v8174
  %v8176 = vand.u32 %v6921, 4294901760
  %v8177 = vsub.f32 %v6921, %v8176
  %v8178 = vand.u32 %v8177, 4294901760
  %8179 = vmatmul.f32.gmra.mxu0 %v8178
  %v8180 = vpop.f32.mrf.mxu0
  %v8181 = vadd.f32 %v8070, %v8180
  %v8182 = vand.u32 %v6924, 4294901760
  %v8183 = vsub.f32 %v6924, %v8182
  %v8184 = vand.u32 %v8183, 4294901760
  %8185 = vmatmul.f32.gmra.mxu0 %v8184
  %v8186 = vpop.f32.mrf.mxu0
  %v8187 = vadd.f32 %v8075, %v8186
  %v8188 = vand.u32 %v6927, 4294901760
  %v8189 = vsub.f32 %v6927, %v8188
  %v8190 = vand.u32 %v8189, 4294901760
  %8191 = vmatmul.f32.gmra.mxu0 %v8190
  %v8192 = vpop.f32.mrf.mxu0
  %v8193 = vadd.f32 %v8080, %v8192
  %v8194 = vand.u32 %v6930, 4294901760
  %v8195 = vsub.f32 %v6930, %v8194
  %v8196 = vand.u32 %v8195, 4294901760
  %8197 = vmatmul.f32.gmra.mxu0 %v8196
  %v8198 = vpop.f32.mrf.mxu0
  %v8199 = vadd.f32 %v8085, %v8198
  %v8200 = vand.u32 %v6933, 4294901760
  %v8201 = vsub.f32 %v6933, %v8200
  %v8202 = vand.u32 %v8201, 4294901760
  %8203 = vmatmul.f32.gmra.mxu0 %v8202
  %v8204 = vpop.f32.mrf.mxu0
  %v8205 = vadd.f32 %v8090, %v8204
  %v8206 = vand.u32 %v6936, 4294901760
  %v8207 = vsub.f32 %v6936, %v8206
  %v8208 = vand.u32 %v8207, 4294901760
  %8209 = vmatmul.f32.gmra.mxu0 %v8208
  %v8210 = vpop.f32.mrf.mxu0
  %v8211 = vadd.f32 %v8095, %v8210
  %v8212 = vand.u32 %v6939, 4294901760
  %v8213 = vsub.f32 %v6939, %v8212
  %v8214 = vand.u32 %v8213, 4294901760
  %8215 = vmatmul.f32.gmra.mxu0 %v8214
  %v8216 = vpop.f32.mrf.mxu0
  %v8217 = vadd.f32 %v8100, %v8216
  %8218 = vdwg.mxu0
  %8219 = vmatpush.msra.mxu0 0.0
  %8220 = vmatpush.msra.mxu0 0.0
  %8221 = vmatpush.msra.mxu0 0.0
  %8222 = vmatpush.msra.mxu0 0.0
  %8223 = vmatpush.msra.mxu0 0.0
  %8224 = vmatpush.msra.mxu0 0.0
  %8225 = vmatpush.msra.mxu0 0.0
  %8226 = vmatpush.msra.mxu0 0.0
  %8227 = vmatpush.msra.mxu0 0.0
  %8228 = vmatpush.msra.mxu0 0.0
  %8229 = vmatpush.msra.mxu0 0.0
  %8230 = vmatpush.msra.mxu0 0.0
  %v8231 = vand.u32 %v6796, 4294901760
  %v8232 = vsub.f32 %v6796, %v8231
  %v8233 = vand.u32 %v8232, 4294901760
  %8234 = vmatpush.msra.mxu0 %v8233
  %v8235 = vand.u32 %v6795, 4294901760
  %v8236 = vsub.f32 %v6795, %v8235
  %v8237 = vand.u32 %v8236, 4294901760
  %8238 = vmatpush.msra.mxu0 %v8237
  %v8239 = vand.u32 %v6794, 4294901760
  %v8240 = vsub.f32 %v6794, %v8239
  %v8241 = vand.u32 %v8240, 4294901760
  %8242 = vmatpush.msra.mxu0 %v8241
  %v8243 = vand.u32 %v6793, 4294901760
  %v8244 = vsub.f32 %v6793, %v8243
  %v8245 = vand.u32 %v8244, 4294901760
  %8246 = vmatpush.msra.mxu0 %v8245
  %v8247 = vand.u32 %v6894, 4294901760
  %8248 = vmatmul.f32.gmra.mxu0 %v8247
  %v8249 = vpop.f32.mrf.mxu0
  %v8250 = vadd.f32 %v8127, %v8249
  %v8251 = vand.u32 %v6897, 4294901760
  %8252 = vmatmul.f32.gmra.mxu0 %v8251
  %v8253 = vpop.f32.mrf.mxu0
  %v8254 = vadd.f32 %v8133, %v8253
  %v8255 = vand.u32 %v6900, 4294901760
  %8256 = vmatmul.f32.gmra.mxu0 %v8255
  %v8257 = vpop.f32.mrf.mxu0
  %v8258 = vadd.f32 %v8139, %v8257
  %v8259 = vand.u32 %v6903, 4294901760
  %8260 = vmatmul.f32.gmra.mxu0 %v8259
  %v8261 = vpop.f32.mrf.mxu0
  %v8262 = vadd.f32 %v8145, %v8261
  %v8263 = vand.u32 %v6906, 4294901760
  %8264 = vmatmul.f32.gmra.mxu0 %v8263
  %v8265 = vpop.f32.mrf.mxu0
  %v8266 = vadd.f32 %v8151, %v8265
  %v8267 = vand.u32 %v6909, 4294901760
  %8268 = vmatmul.f32.gmra.mxu0 %v8267
  %v8269 = vpop.f32.mrf.mxu0
  %v8270 = vadd.f32 %v8157, %v8269
  %v8271 = vand.u32 %v6912, 4294901760
  %8272 = vmatmul.f32.gmra.mxu0 %v8271
  %v8273 = vpop.f32.mrf.mxu0
  %v8274 = vadd.f32 %v8163, %v8273
  %v8275 = vand.u32 %v6915, 4294901760
  %8276 = vmatmul.f32.gmra.mxu0 %v8275
  %v8277 = vpop.f32.mrf.mxu0
  %v8278 = vadd.f32 %v8169, %v8277
  %v8279 = vand.u32 %v6918, 4294901760
  %8280 = vmatmul.f32.gmra.mxu0 %v8279
  %v8281 = vpop.f32.mrf.mxu0
  %v8282 = vadd.f32 %v8175, %v8281
  %v8283 = vand.u32 %v6921, 4294901760
  %8284 = vmatmul.f32.gmra.mxu0 %v8283
  %v8285 = vpop.f32.mrf.mxu0
  %v8286 = vadd.f32 %v8181, %v8285
  %v8287 = vand.u32 %v6924, 4294901760
  %8288 = vmatmul.f32.gmra.mxu0 %v8287
  %v8289 = vpop.f32.mrf.mxu0
  %v8290 = vadd.f32 %v8187, %v8289
  %v8291 = vand.u32 %v6927, 4294901760
  %8292 = vmatmul.f32.gmra.mxu0 %v8291
  %v8293 = vpop.f32.mrf.mxu0
  %v8294 = vadd.f32 %v8193, %v8293
  %v8295 = vand.u32 %v6930, 4294901760
  %8296 = vmatmul.f32.gmra.mxu0 %v8295
  %v8297 = vpop.f32.mrf.mxu0
  %v8298 = vadd.f32 %v8199, %v8297
  %v8299 = vand.u32 %v6933, 4294901760
  %8300 = vmatmul.f32.gmra.mxu0 %v8299
  %v8301 = vpop.f32.mrf.mxu0
  %v8302 = vadd.f32 %v8205, %v8301
  %v8303 = vand.u32 %v6936, 4294901760
  %8304 = vmatmul.f32.gmra.mxu0 %v8303
  %v8305 = vpop.f32.mrf.mxu0
  %v8306 = vadd.f32 %v8211, %v8305
  %v8307 = vand.u32 %v6939, 4294901760
  %8308 = vmatmul.f32.gmra.mxu0 %v8307
  %v8309 = vpop.f32.mrf.mxu0
  %v8310 = vadd.f32 %v8217, %v8309
  %8311 = vdwg.mxu0
  %8312 = vmatpush.msra.mxu0 0.0
  %8313 = vmatpush.msra.mxu0 0.0
  %8314 = vmatpush.msra.mxu0 0.0
  %8315 = vmatpush.msra.mxu0 0.0
  %8316 = vmatpush.msra.mxu0 0.0
  %8317 = vmatpush.msra.mxu0 0.0
  %8318 = vmatpush.msra.mxu0 0.0
  %8319 = vmatpush.msra.mxu0 0.0
  %8320 = vmatpush.msra.mxu0 0.0
  %8321 = vmatpush.msra.mxu0 0.0
  %8322 = vmatpush.msra.mxu0 0.0
  %8323 = vmatpush.msra.mxu0 0.0
  %v8324 = vand.u32 %v6796, 4294901760
  %8325 = vmatpush.msra.mxu0 %v8324
  %v8326 = vand.u32 %v6795, 4294901760
  %8327 = vmatpush.msra.mxu0 %v8326
  %v8328 = vand.u32 %v6794, 4294901760
  %8329 = vmatpush.msra.mxu0 %v8328
  %v8330 = vand.u32 %v6793, 4294901760
  %8331 = vmatpush.msra.mxu0 %v8330
  %v8332 = vand.u32 %v6894, 4294901760
  %8333 = vmatmul.f32.gmra.mxu0 %v8332
  %v8334 = vpop.f32.mrf.mxu0
  %v8335 = vadd.f32 %v8250, %v8334
  %v8336 = vand.u32 %v6897, 4294901760
  %8337 = vmatmul.f32.gmra.mxu0 %v8336
  %v8338 = vpop.f32.mrf.mxu0
  %v8339 = vadd.f32 %v8254, %v8338
  %v8340 = vand.u32 %v6900, 4294901760
  %8341 = vmatmul.f32.gmra.mxu0 %v8340
  %v8342 = vpop.f32.mrf.mxu0
  %v8343 = vadd.f32 %v8258, %v8342
  %v8344 = vand.u32 %v6903, 4294901760
  %8345 = vmatmul.f32.gmra.mxu0 %v8344
  %v8346 = vpop.f32.mrf.mxu0
  %v8347 = vadd.f32 %v8262, %v8346
  %v8348 = vand.u32 %v6906, 4294901760
  %8349 = vmatmul.f32.gmra.mxu0 %v8348
  %v8350 = vpop.f32.mrf.mxu0
  %v8351 = vadd.f32 %v8266, %v8350
  %v8352 = vand.u32 %v6909, 4294901760
  %8353 = vmatmul.f32.gmra.mxu0 %v8352
  %v8354 = vpop.f32.mrf.mxu0
  %v8355 = vadd.f32 %v8270, %v8354
  %v8356 = vand.u32 %v6912, 4294901760
  %8357 = vmatmul.f32.gmra.mxu0 %v8356
  %v8358 = vpop.f32.mrf.mxu0
  %v8359 = vadd.f32 %v8274, %v8358
  %v8360 = vand.u32 %v6915, 4294901760
  %8361 = vmatmul.f32.gmra.mxu0 %v8360
  %v8362 = vpop.f32.mrf.mxu0
  %v8363 = vadd.f32 %v8278, %v8362
  %v8364 = vand.u32 %v6918, 4294901760
  %8365 = vmatmul.f32.gmra.mxu0 %v8364
  %v8366 = vpop.f32.mrf.mxu0
  %v8367 = vadd.f32 %v8282, %v8366
  %v8368 = vand.u32 %v6921, 4294901760
  %8369 = vmatmul.f32.gmra.mxu0 %v8368
  %v8370 = vpop.f32.mrf.mxu0
  %v8371 = vadd.f32 %v8286, %v8370
  %v8372 = vand.u32 %v6924, 4294901760
  %8373 = vmatmul.f32.gmra.mxu0 %v8372
  %v8374 = vpop.f32.mrf.mxu0
  %v8375 = vadd.f32 %v8290, %v8374
  %v8376 = vand.u32 %v6927, 4294901760
  %8377 = vmatmul.f32.gmra.mxu0 %v8376
  %v8378 = vpop.f32.mrf.mxu0
  %v8379 = vadd.f32 %v8294, %v8378
  %v8380 = vand.u32 %v6930, 4294901760
  %8381 = vmatmul.f32.gmra.mxu0 %v8380
  %v8382 = vpop.f32.mrf.mxu0
  %v8383 = vadd.f32 %v8298, %v8382
  %v8384 = vand.u32 %v6933, 4294901760
  %8385 = vmatmul.f32.gmra.mxu0 %v8384
  %v8386 = vpop.f32.mrf.mxu0
  %v8387 = vadd.f32 %v8302, %v8386
  %v8388 = vand.u32 %v6936, 4294901760
  %8389 = vmatmul.f32.gmra.mxu0 %v8388
  %v8390 = vpop.f32.mrf.mxu0
  %v8391 = vadd.f32 %v8306, %v8390
  %v8392 = vand.u32 %v6939, 4294901760
  %8393 = vmatmul.f32.gmra.mxu0 %v8392
  %v8394 = vpop.f32.mrf.mxu0
  %v8395 = vadd.f32 %v8310, %v8394
  %8396 = vdwg.mxu0
  %v8397 = vand.u32 2147483647, %v8335
  %vm8398 = vcmp.le.f32.partialorder %v8397, 0.7853982
  %vm8399 = vcmp.lt.s32.totalorder %v8335, 0
  %v8400 = vand.u32 %v8335, 2139095040
  %v8401 = vshrl.u32 %v8400, 23
  %v8402 = vsub.s32 %v8401, 127
  %v8403 = vand.u32 2147483647, %v8335
  %v8404 = vand.u32 %v8403, 8388607
  %v8405 = vor.u32 %v8404, 8388608
  %v8406 = vsub.s32 0, %v8405
  %v8407 = vadd.s32 %v8402, 1
  %vm8408 = vcmp.gt.s32.totalorder %v8407, 0
  %v8409 = vsel %vm8408, %v8407, 0
  %v8410 = vshrl.u32 %v8409, 5
  %v8411 = vand.u32 %v8409, 31
  %v8412 = vsub.s32 32, %v8411
  %v8413 = vshrl.u32 683565275, %v8412
  %v8414 = vshll.u32 683565275, %v8411
  %v8415 = vshrl.u32 2475754826, %v8412
  %v8416 = vor.u32 %v8414, %v8415
  %v8417 = vshll.u32 2475754826, %v8411
  %v8418 = vshrl.u32 2131351028, %v8412
  %v8419 = vor.u32 %v8417, %v8418
  %v8420 = vshll.u32 2131351028, %v8411
  %v8421 = vshrl.u32 2102212464, %v8412
  %v8422 = vor.u32 %v8420, %v8421
  %v8423 = vshll.u32 2102212464, %v8411
  %v8424 = vshrl.u32 920167782, %v8412
  %v8425 = vor.u32 %v8423, %v8424
  %v8426 = vshll.u32 920167782, %v8411
  %v8427 = vshrl.u32 1326507024, %v8412
  %v8428 = vor.u32 %v8426, %v8427
  %vm8429 = vcmp.lt.s32.totalorder %v8410, 1
  %vm8430 = vcmp.lt.s32.totalorder %v8410, 2
  %vm8431 = vcmp.lt.s32.totalorder %v8410, 3
  %vm8432 = vcmp.lt.s32.totalorder %v8410, 4
  %v8433 = vsel %vm8429, %v8413, %v8416
  %v8434 = vsel %vm8432, %v8422, 2102212464
  %v8435 = vsel %vm8431, %v8419, %v8434
  %v8436 = vsel %vm8430, %v8433, %v8435
  %v8437 = vsel %vm8429, %v8416, %v8419
  %v8438 = vsel %vm8432, %v8425, 920167782
  %v8439 = vsel %vm8431, %v8422, %v8438
  %v8440 = vsel %vm8430, %v8437, %v8439
  %v8441 = vsel %vm8429, %v8419, %v8422
  %v8442 = vsel %vm8432, %v8428, 1326507024
  %v8443 = vsel %vm8431, %v8425, %v8442
  %v8444 = vsel %vm8430, %v8441, %v8443
  %v8445 = vshll.u32 %v8405, 8
  %v8446 = vand.u32 %v8445, 65535
  %v8447 = vshrl.u32 %v8445, 16
  %v8448 = vand.u32 %v8444, 65535
  %v8449 = vshrl.u32 %v8444, 16
  %v8450 = vmul.u32 %v8446, %v8448
  %v8451 = vmul.u32 %v8446, %v8449
  %v8452 = vmul.u32 %v8447, %v8448
  %v8453 = vmul.u32 %v8447, %v8449
  %v8454 = vshll.u32 %v8451, 16
  %v8455 = vshrl.u32 %v8451, 16
  %v8456 = vshll.u32 %v8452, 16
  %v8457 = vshrl.u32 %v8452, 16
  %vm8458 = vc.u32 %v8450, %v8454
  %v8459 = vsel %vm8458, 1, 0
  %v8460 = vadd.s32 %v8450, %v8454
  %v8461 = vadd.s32 %v8453, %v8459
  %vm8462 = vc.u32 %v8460, %v8456
  %v8463 = vsel %vm8462, 1, 0
  %v8464 = vadd.s32 %v8460, %v8456
  %v8465 = vadd.s32 %v8461, %v8463
  %v8466 = vadd.s32 %v8465, %v8455
  %v8467 = vadd.s32 %v8466, %v8457
  %v8468 = vand.u32 %v8445, 65535
  %v8469 = vshrl.u32 %v8445, 16
  %v8470 = vand.u32 %v8440, 65535
  %v8471 = vshrl.u32 %v8440, 16
  %v8472 = vmul.u32 %v8468, %v8470
  %v8473 = vmul.u32 %v8468, %v8471
  %v8474 = vmul.u32 %v8469, %v8470
  %v8475 = vmul.u32 %v8469, %v8471
  %v8476 = vshll.u32 %v8473, 16
  %v8477 = vshrl.u32 %v8473, 16
  %v8478 = vshll.u32 %v8474, 16
  %v8479 = vshrl.u32 %v8474, 16
  %vm8480 = vc.u32 %v8472, %v8476
  %v8481 = vsel %vm8480, 1, 0
  %v8482 = vadd.s32 %v8472, %v8476
  %v8483 = vadd.s32 %v8475, %v8481
  %vm8484 = vc.u32 %v8482, %v8478
  %v8485 = vsel %vm8484, 1, 0
  %v8486 = vadd.s32 %v8482, %v8478
  %v8487 = vadd.s32 %v8483, %v8485
  %v8488 = vadd.s32 %v8487, %v8477
  %v8489 = vadd.s32 %v8488, %v8479
  %v8490 = vmul.u32 %v8445, %v8436
  %v8491 = vadd.s32 %v8467, %v8486
  %vm8492 = vc.u32 %v8467, %v8486
  %v8493 = vadd.s32 %v8489, 1
  %v8494 = vsel %vm8492, %v8493, %v8489
  %v8495 = vadd.s32 %v8490, %v8494
  %v8496 = vadd.s32 %v8495, 536870912
  %v8497 = vshrl.u32 %v8496, 30
  %v8498 = vshll.u32 %v8497, 30
  %v8499 = vsub.s32 %v8495, %v8498
  %vm8500 = vcmp.lt.s32.totalorder %v8499, 0
  %v8501 = vsub.s32 0, %v8499
  %v8502 = vsel %vm8500, %v8501, %v8499
  %v8503 = vclz %v8502
  %v8504 = vsub.s32 %v8503, 2
  %vm8505 = vcmp.gt.s32.totalorder 0, %v8504
  %v8506 = vsel %vm8505, 0, %v8504
  %v8507 = vsub.s32 32, %v8506
  %v8508 = vshll.u32 %v8499, %v8506
  %v8509 = vshrl.u32 %v8491, %v8507
  %v8510 = vor.u32 %v8508, %v8509
  %v8511 = vsub.s32 4294967266, %v8506
  %v8512 = vadd.s32 %v8511, 127
  %v8513 = vshll.u32 %v8512, 23
  %v8514 = vor.u32 4788187, %v8513
  %v8515 = vand.u32 2147483647, %v8514
  %v8517 = vcvt.s32.f32 %v8510
  %v8518 = vmul.f32 %v8517, %v8515
  %v8519 = vxor.u32 %v8518, 2147483648
  %v8520 = vsel %vm8399, %v8519, %v8518
  %v8521 = vsub.s32 4, %v8497
  %v8522 = vsel %vm8399, %v8521, %v8497
  %v8523 = vsel %vm8398, %v8335, %v8520
  %v8524 = vsel %vm8398, 0, %v8522
  %v8525 = vmul.f32 %v8523, %v8523
  %v8526 = vmul.f32 %v8525, -0.001358992
  %v8527 = vadd.f32 %v8526, 0.041655596
  %v8528 = vmul.f32 %v8525, %v8527
  %v8529 = vadd.f32 %v8528, -0.4999988
  %v8530 = vmul.f32 %v8525, %v8529
  %v8531 = vadd.f32 1.0, %v8530
  %v8532 = vmul.f32 %v8523, %v8523
  %v8533 = vmul.f32 %v8532, -0.00019511016
  %v8534 = vadd.f32 %v8533, 0.008332121
  %v8535 = vmul.f32 %v8532, %v8534
  %v8536 = vadd.f32 %v8535, -0.16666654
  %v8537 = vmul.f32 %v8532, %v8536
  %v8538 = vadd.f32 %v8537, 1.0
  %v8539 = vmul.f32 %v8538, %v8523
  %vm8540 = vweird.f32 %v8335
  %v8541 = vadd.s32 %v8524, 3
  %v8542 = vand.u32 %v8541, 3
  %vm8543 = vcmp.lt.s32.totalorder %v8542, 2
  %vm8544 = vcmp.eq.s32.totalorder %v8542, 0
  %v8545 = vxor.u32 %v8539, 2147483648
  %v8546 = vsel %vm8544, %v8531, %v8545
  %vm8547 = vcmp.eq.s32.totalorder %v8542, 2
  %v8548 = vxor.u32 %v8531, 2147483648
  %v8549 = vsel %vm8547, %v8548, %v8539
  %v8550 = vsel %vm8543, %v8546, %v8549
  %v8551 = vsel %vm8540, nan, %v8550
  %v8552 = vand.u32 2147483647, %v8339
  %vm8553 = vcmp.le.f32.partialorder %v8552, 0.7853982
  %vm8554 = vcmp.lt.s32.totalorder %v8339, 0
  %v8555 = vand.u32 %v8339, 2139095040
  %v8556 = vshrl.u32 %v8555, 23
  %v8557 = vsub.s32 %v8556, 127
  %v8558 = vand.u32 2147483647, %v8339
  %v8559 = vand.u32 %v8558, 8388607
  %v8560 = vor.u32 %v8559, 8388608
  %v8561 = vsub.s32 0, %v8560
  %v8562 = vadd.s32 %v8557, 1
  %vm8563 = vcmp.gt.s32.totalorder %v8562, 0
  %v8564 = vsel %vm8563, %v8562, 0
  %v8565 = vshrl.u32 %v8564, 5
  %v8566 = vand.u32 %v8564, 31
  %v8567 = vsub.s32 32, %v8566
  %v8568 = vshrl.u32 683565275, %v8567
  %v8569 = vshll.u32 683565275, %v8566
  %v8570 = vshrl.u32 2475754826, %v8567
  %v8571 = vor.u32 %v8569, %v8570
  %v8572 = vshll.u32 2475754826, %v8566
  %v8573 = vshrl.u32 2131351028, %v8567
  %v8574 = vor.u32 %v8572, %v8573
  %v8575 = vshll.u32 2131351028, %v8566
  %v8576 = vshrl.u32 2102212464, %v8567
  %v8577 = vor.u32 %v8575, %v8576
  %v8578 = vshll.u32 2102212464, %v8566
  %v8579 = vshrl.u32 920167782, %v8567
  %v8580 = vor.u32 %v8578, %v8579
  %v8581 = vshll.u32 920167782, %v8566
  %v8582 = vshrl.u32 1326507024, %v8567
  %v8583 = vor.u32 %v8581, %v8582
  %vm8584 = vcmp.lt.s32.totalorder %v8565, 1
  %vm8585 = vcmp.lt.s32.totalorder %v8565, 2
  %vm8586 = vcmp.lt.s32.totalorder %v8565, 3
  %vm8587 = vcmp.lt.s32.totalorder %v8565, 4
  %v8588 = vsel %vm8584, %v8568, %v8571
  %v8589 = vsel %vm8587, %v8577, 2102212464
  %v8590 = vsel %vm8586, %v8574, %v8589
  %v8591 = vsel %vm8585, %v8588, %v8590
  %v8592 = vsel %vm8584, %v8571, %v8574
  %v8593 = vsel %vm8587, %v8580, 920167782
  %v8594 = vsel %vm8586, %v8577, %v8593
  %v8595 = vsel %vm8585, %v8592, %v8594
  %v8596 = vsel %vm8584, %v8574, %v8577
  %v8597 = vsel %vm8587, %v8583, 1326507024
  %v8598 = vsel %vm8586, %v8580, %v8597
  %v8599 = vsel %vm8585, %v8596, %v8598
  %v8600 = vshll.u32 %v8560, 8
  %v8601 = vand.u32 %v8600, 65535
  %v8602 = vshrl.u32 %v8600, 16
  %v8603 = vand.u32 %v8599, 65535
  %v8604 = vshrl.u32 %v8599, 16
  %v8605 = vmul.u32 %v8601, %v8603
  %v8606 = vmul.u32 %v8601, %v8604
  %v8607 = vmul.u32 %v8602, %v8603
  %v8608 = vmul.u32 %v8602, %v8604
  %v8609 = vshll.u32 %v8606, 16
  %v8610 = vshrl.u32 %v8606, 16
  %v8611 = vshll.u32 %v8607, 16
  %v8612 = vshrl.u32 %v8607, 16
  %vm8613 = vc.u32 %v8605, %v8609
  %v8614 = vsel %vm8613, 1, 0
  %v8615 = vadd.s32 %v8605, %v8609
  %v8616 = vadd.s32 %v8608, %v8614
  %vm8617 = vc.u32 %v8615, %v8611
  %v8618 = vsel %vm8617, 1, 0
  %v8619 = vadd.s32 %v8615, %v8611
  %v8620 = vadd.s32 %v8616, %v8618
  %v8621 = vadd.s32 %v8620, %v8610
  %v8622 = vadd.s32 %v8621, %v8612
  %v8623 = vand.u32 %v8600, 65535
  %v8624 = vshrl.u32 %v8600, 16
  %v8625 = vand.u32 %v8595, 65535
  %v8626 = vshrl.u32 %v8595, 16
  %v8627 = vmul.u32 %v8623, %v8625
  %v8628 = vmul.u32 %v8623, %v8626
  %v8629 = vmul.u32 %v8624, %v8625
  %v8630 = vmul.u32 %v8624, %v8626
  %v8631 = vshll.u32 %v8628, 16
  %v8632 = vshrl.u32 %v8628, 16
  %v8633 = vshll.u32 %v8629, 16
  %v8634 = vshrl.u32 %v8629, 16
  %vm8635 = vc.u32 %v8627, %v8631
  %v8636 = vsel %vm8635, 1, 0
  %v8637 = vadd.s32 %v8627, %v8631
  %v8638 = vadd.s32 %v8630, %v8636
  %vm8639 = vc.u32 %v8637, %v8633
  %v8640 = vsel %vm8639, 1, 0
  %v8641 = vadd.s32 %v8637, %v8633
  %v8642 = vadd.s32 %v8638, %v8640
  %v8643 = vadd.s32 %v8642, %v8632
  %v8644 = vadd.s32 %v8643, %v8634
  %v8645 = vmul.u32 %v8600, %v8591
  %v8646 = vadd.s32 %v8622, %v8641
  %vm8647 = vc.u32 %v8622, %v8641
  %v8648 = vadd.s32 %v8644, 1
  %v8649 = vsel %vm8647, %v8648, %v8644
  %v8650 = vadd.s32 %v8645, %v8649
  %v8651 = vadd.s32 %v8650, 536870912
  %v8652 = vshrl.u32 %v8651, 30
  %v8653 = vshll.u32 %v8652, 30
  %v8654 = vsub.s32 %v8650, %v8653
  %vm8655 = vcmp.lt.s32.totalorder %v8654, 0
  %v8656 = vsub.s32 0, %v8654
  %v8657 = vsel %vm8655, %v8656, %v8654
  %v8658 = vclz %v8657
  %v8659 = vsub.s32 %v8658, 2
  %vm8660 = vcmp.gt.s32.totalorder 0, %v8659
  %v8661 = vsel %vm8660, 0, %v8659
  %v8662 = vsub.s32 32, %v8661
  %v8663 = vshll.u32 %v8654, %v8661
  %v8664 = vshrl.u32 %v8646, %v8662
  %v8665 = vor.u32 %v8663, %v8664
  %v8666 = vsub.s32 4294967266, %v8661
  %v8667 = vadd.s32 %v8666, 127
  %v8668 = vshll.u32 %v8667, 23
  %v8669 = vor.u32 4788187, %v8668
  %v8670 = vand.u32 2147483647, %v8669
  %v8672 = vcvt.s32.f32 %v8665
  %v8673 = vmul.f32 %v8672, %v8670
  %v8674 = vxor.u32 %v8673, 2147483648
  %v8675 = vsel %vm8554, %v8674, %v8673
  %v8676 = vsub.s32 4, %v8652
  %v8677 = vsel %vm8554, %v8676, %v8652
  %v8678 = vsel %vm8553, %v8339, %v8675
  %v8679 = vsel %vm8553, 0, %v8677
  %v8680 = vmul.f32 %v8678, %v8678
  %v8681 = vmul.f32 %v8680, -0.001358992
  %v8682 = vadd.f32 %v8681, 0.041655596
  %v8683 = vmul.f32 %v8680, %v8682
  %v8684 = vadd.f32 %v8683, -0.4999988
  %v8685 = vmul.f32 %v8680, %v8684
  %v8686 = vadd.f32 1.0, %v8685
  %v8687 = vmul.f32 %v8678, %v8678
  %v8688 = vmul.f32 %v8687, -0.00019511016
  %v8689 = vadd.f32 %v8688, 0.008332121
  %v8690 = vmul.f32 %v8687, %v8689
  %v8691 = vadd.f32 %v8690, -0.16666654
  %v8692 = vmul.f32 %v8687, %v8691
  %v8693 = vadd.f32 %v8692, 1.0
  %v8694 = vmul.f32 %v8693, %v8678
  %vm8695 = vweird.f32 %v8339
  %v8696 = vadd.s32 %v8679, 3
  %v8697 = vand.u32 %v8696, 3
  %vm8698 = vcmp.lt.s32.totalorder %v8697, 2
  %vm8699 = vcmp.eq.s32.totalorder %v8697, 0
  %v8700 = vxor.u32 %v8694, 2147483648
  %v8701 = vsel %vm8699, %v8686, %v8700
  %vm8702 = vcmp.eq.s32.totalorder %v8697, 2
  %v8703 = vxor.u32 %v8686, 2147483648
  %v8704 = vsel %vm8702, %v8703, %v8694
  %v8705 = vsel %vm8698, %v8701, %v8704
  %v8706 = vsel %vm8695, nan, %v8705
  %v8707 = vand.u32 2147483647, %v8343
  %vm8708 = vcmp.le.f32.partialorder %v8707, 0.7853982
  %vm8709 = vcmp.lt.s32.totalorder %v8343, 0
  %v8710 = vand.u32 %v8343, 2139095040
  %v8711 = vshrl.u32 %v8710, 23
  %v8712 = vsub.s32 %v8711, 127
  %v8713 = vand.u32 2147483647, %v8343
  %v8714 = vand.u32 %v8713, 8388607
  %v8715 = vor.u32 %v8714, 8388608
  %v8716 = vsub.s32 0, %v8715
  %v8717 = vadd.s32 %v8712, 1
  %vm8718 = vcmp.gt.s32.totalorder %v8717, 0
  %v8719 = vsel %vm8718, %v8717, 0
  %v8720 = vshrl.u32 %v8719, 5
  %v8721 = vand.u32 %v8719, 31
  %v8722 = vsub.s32 32, %v8721
  %v8723 = vshrl.u32 683565275, %v8722
  %v8724 = vshll.u32 683565275, %v8721
  %v8725 = vshrl.u32 2475754826, %v8722
  %v8726 = vor.u32 %v8724, %v8725
  %v8727 = vshll.u32 2475754826, %v8721
  %v8728 = vshrl.u32 2131351028, %v8722
  %v8729 = vor.u32 %v8727, %v8728
  %v8730 = vshll.u32 2131351028, %v8721
  %v8731 = vshrl.u32 2102212464, %v8722
  %v8732 = vor.u32 %v8730, %v8731
  %v8733 = vshll.u32 2102212464, %v8721
  %v8734 = vshrl.u32 920167782, %v8722
  %v8735 = vor.u32 %v8733, %v8734
  %v8736 = vshll.u32 920167782, %v8721
  %v8737 = vshrl.u32 1326507024, %v8722
  %v8738 = vor.u32 %v8736, %v8737
  %vm8739 = vcmp.lt.s32.totalorder %v8720, 1
  %vm8740 = vcmp.lt.s32.totalorder %v8720, 2
  %vm8741 = vcmp.lt.s32.totalorder %v8720, 3
  %vm8742 = vcmp.lt.s32.totalorder %v8720, 4
  %v8743 = vsel %vm8739, %v8723, %v8726
  %v8744 = vsel %vm8742, %v8732, 2102212464
  %v8745 = vsel %vm8741, %v8729, %v8744
  %v8746 = vsel %vm8740, %v8743, %v8745
  %v8747 = vsel %vm8739, %v8726, %v8729
  %v8748 = vsel %vm8742, %v8735, 920167782
  %v8749 = vsel %vm8741, %v8732, %v8748
  %v8750 = vsel %vm8740, %v8747, %v8749
  %v8751 = vsel %vm8739, %v8729, %v8732
  %v8752 = vsel %vm8742, %v8738, 1326507024
  %v8753 = vsel %vm8741, %v8735, %v8752
  %v8754 = vsel %vm8740, %v8751, %v8753
  %v8755 = vshll.u32 %v8715, 8
  %v8756 = vand.u32 %v8755, 65535
  %v8757 = vshrl.u32 %v8755, 16
  %v8758 = vand.u32 %v8754, 65535
  %v8759 = vshrl.u32 %v8754, 16
  %v8760 = vmul.u32 %v8756, %v8758
  %v8761 = vmul.u32 %v8756, %v8759
  %v8762 = vmul.u32 %v8757, %v8758
  %v8763 = vmul.u32 %v8757, %v8759
  %v8764 = vshll.u32 %v8761, 16
  %v8765 = vshrl.u32 %v8761, 16
  %v8766 = vshll.u32 %v8762, 16
  %v8767 = vshrl.u32 %v8762, 16
  %vm8768 = vc.u32 %v8760, %v8764
  %v8769 = vsel %vm8768, 1, 0
  %v8770 = vadd.s32 %v8760, %v8764
  %v8771 = vadd.s32 %v8763, %v8769
  %vm8772 = vc.u32 %v8770, %v8766
  %v8773 = vsel %vm8772, 1, 0
  %v8774 = vadd.s32 %v8770, %v8766
  %v8775 = vadd.s32 %v8771, %v8773
  %v8776 = vadd.s32 %v8775, %v8765
  %v8777 = vadd.s32 %v8776, %v8767
  %v8778 = vand.u32 %v8755, 65535
  %v8779 = vshrl.u32 %v8755, 16
  %v8780 = vand.u32 %v8750, 65535
  %v8781 = vshrl.u32 %v8750, 16
  %v8782 = vmul.u32 %v8778, %v8780
  %v8783 = vmul.u32 %v8778, %v8781
  %v8784 = vmul.u32 %v8779, %v8780
  %v8785 = vmul.u32 %v8779, %v8781
  %v8786 = vshll.u32 %v8783, 16
  %v8787 = vshrl.u32 %v8783, 16
  %v8788 = vshll.u32 %v8784, 16
  %v8789 = vshrl.u32 %v8784, 16
  %vm8790 = vc.u32 %v8782, %v8786
  %v8791 = vsel %vm8790, 1, 0
  %v8792 = vadd.s32 %v8782, %v8786
  %v8793 = vadd.s32 %v8785, %v8791
  %vm8794 = vc.u32 %v8792, %v8788
  %v8795 = vsel %vm8794, 1, 0
  %v8796 = vadd.s32 %v8792, %v8788
  %v8797 = vadd.s32 %v8793, %v8795
  %v8798 = vadd.s32 %v8797, %v8787
  %v8799 = vadd.s32 %v8798, %v8789
  %v8800 = vmul.u32 %v8755, %v8746
  %v8801 = vadd.s32 %v8777, %v8796
  %vm8802 = vc.u32 %v8777, %v8796
  %v8803 = vadd.s32 %v8799, 1
  %v8804 = vsel %vm8802, %v8803, %v8799
  %v8805 = vadd.s32 %v8800, %v8804
  %v8806 = vadd.s32 %v8805, 536870912
  %v8807 = vshrl.u32 %v8806, 30
  %v8808 = vshll.u32 %v8807, 30
  %v8809 = vsub.s32 %v8805, %v8808
  %vm8810 = vcmp.lt.s32.totalorder %v8809, 0
  %v8811 = vsub.s32 0, %v8809
  %v8812 = vsel %vm8810, %v8811, %v8809
  %v8813 = vclz %v8812
  %v8814 = vsub.s32 %v8813, 2
  %vm8815 = vcmp.gt.s32.totalorder 0, %v8814
  %v8816 = vsel %vm8815, 0, %v8814
  %v8817 = vsub.s32 32, %v8816
  %v8818 = vshll.u32 %v8809, %v8816
  %v8819 = vshrl.u32 %v8801, %v8817
  %v8820 = vor.u32 %v8818, %v8819
  %v8821 = vsub.s32 4294967266, %v8816
  %v8822 = vadd.s32 %v8821, 127
  %v8823 = vshll.u32 %v8822, 23
  %v8824 = vor.u32 4788187, %v8823
  %v8825 = vand.u32 2147483647, %v8824
  %v8827 = vcvt.s32.f32 %v8820
  %v8828 = vmul.f32 %v8827, %v8825
  %v8829 = vxor.u32 %v8828, 2147483648
  %v8830 = vsel %vm8709, %v8829, %v8828
  %v8831 = vsub.s32 4, %v8807
  %v8832 = vsel %vm8709, %v8831, %v8807
  %v8833 = vsel %vm8708, %v8343, %v8830
  %v8834 = vsel %vm8708, 0, %v8832
  %v8835 = vmul.f32 %v8833, %v8833
  %v8836 = vmul.f32 %v8835, -0.001358992
  %v8837 = vadd.f32 %v8836, 0.041655596
  %v8838 = vmul.f32 %v8835, %v8837
  %v8839 = vadd.f32 %v8838, -0.4999988
  %v8840 = vmul.f32 %v8835, %v8839
  %v8841 = vadd.f32 1.0, %v8840
  %v8842 = vmul.f32 %v8833, %v8833
  %v8843 = vmul.f32 %v8842, -0.00019511016
  %v8844 = vadd.f32 %v8843, 0.008332121
  %v8845 = vmul.f32 %v8842, %v8844
  %v8846 = vadd.f32 %v8845, -0.16666654
  %v8847 = vmul.f32 %v8842, %v8846
  %v8848 = vadd.f32 %v8847, 1.0
  %v8849 = vmul.f32 %v8848, %v8833
  %vm8850 = vweird.f32 %v8343
  %v8851 = vadd.s32 %v8834, 3
  %v8852 = vand.u32 %v8851, 3
  %vm8853 = vcmp.lt.s32.totalorder %v8852, 2
  %vm8854 = vcmp.eq.s32.totalorder %v8852, 0
  %v8855 = vxor.u32 %v8849, 2147483648
  %v8856 = vsel %vm8854, %v8841, %v8855
  %vm8857 = vcmp.eq.s32.totalorder %v8852, 2
  %v8858 = vxor.u32 %v8841, 2147483648
  %v8859 = vsel %vm8857, %v8858, %v8849
  %v8860 = vsel %vm8853, %v8856, %v8859
  %v8861 = vsel %vm8850, nan, %v8860
  %v8862 = vand.u32 2147483647, %v8347
  %vm8863 = vcmp.le.f32.partialorder %v8862, 0.7853982
  %vm8864 = vcmp.lt.s32.totalorder %v8347, 0
  %v8865 = vand.u32 %v8347, 2139095040
  %v8866 = vshrl.u32 %v8865, 23
  %v8867 = vsub.s32 %v8866, 127
  %v8868 = vand.u32 2147483647, %v8347
  %v8869 = vand.u32 %v8868, 8388607
  %v8870 = vor.u32 %v8869, 8388608
  %v8871 = vsub.s32 0, %v8870
  %v8872 = vadd.s32 %v8867, 1
  %vm8873 = vcmp.gt.s32.totalorder %v8872, 0
  %v8874 = vsel %vm8873, %v8872, 0
  %v8875 = vshrl.u32 %v8874, 5
  %v8876 = vand.u32 %v8874, 31
  %v8877 = vsub.s32 32, %v8876
  %v8878 = vshrl.u32 683565275, %v8877
  %v8879 = vshll.u32 683565275, %v8876
  %v8880 = vshrl.u32 2475754826, %v8877
  %v8881 = vor.u32 %v8879, %v8880
  %v8882 = vshll.u32 2475754826, %v8876
  %v8883 = vshrl.u32 2131351028, %v8877
  %v8884 = vor.u32 %v8882, %v8883
  %v8885 = vshll.u32 2131351028, %v8876
  %v8886 = vshrl.u32 2102212464, %v8877
  %v8887 = vor.u32 %v8885, %v8886
  %v8888 = vshll.u32 2102212464, %v8876
  %v8889 = vshrl.u32 920167782, %v8877
  %v8890 = vor.u32 %v8888, %v8889
  %v8891 = vshll.u32 920167782, %v8876
  %v8892 = vshrl.u32 1326507024, %v8877
  %v8893 = vor.u32 %v8891, %v8892
  %vm8894 = vcmp.lt.s32.totalorder %v8875, 1
  %vm8895 = vcmp.lt.s32.totalorder %v8875, 2
  %vm8896 = vcmp.lt.s32.totalorder %v8875, 3
  %vm8897 = vcmp.lt.s32.totalorder %v8875, 4
  %v8898 = vsel %vm8894, %v8878, %v8881
  %v8899 = vsel %vm8897, %v8887, 2102212464
  %v8900 = vsel %vm8896, %v8884, %v8899
  %v8901 = vsel %vm8895, %v8898, %v8900
  %v8902 = vsel %vm8894, %v8881, %v8884
  %v8903 = vsel %vm8897, %v8890, 920167782
  %v8904 = vsel %vm8896, %v8887, %v8903
  %v8905 = vsel %vm8895, %v8902, %v8904
  %v8906 = vsel %vm8894, %v8884, %v8887
  %v8907 = vsel %vm8897, %v8893, 1326507024
  %v8908 = vsel %vm8896, %v8890, %v8907
  %v8909 = vsel %vm8895, %v8906, %v8908
  %v8910 = vshll.u32 %v8870, 8
  %v8911 = vand.u32 %v8910, 65535
  %v8912 = vshrl.u32 %v8910, 16
  %v8913 = vand.u32 %v8909, 65535
  %v8914 = vshrl.u32 %v8909, 16
  %v8915 = vmul.u32 %v8911, %v8913
  %v8916 = vmul.u32 %v8911, %v8914
  %v8917 = vmul.u32 %v8912, %v8913
  %v8918 = vmul.u32 %v8912, %v8914
  %v8919 = vshll.u32 %v8916, 16
  %v8920 = vshrl.u32 %v8916, 16
  %v8921 = vshll.u32 %v8917, 16
  %v8922 = vshrl.u32 %v8917, 16
  %vm8923 = vc.u32 %v8915, %v8919
  %v8924 = vsel %vm8923, 1, 0
  %v8925 = vadd.s32 %v8915, %v8919
  %v8926 = vadd.s32 %v8918, %v8924
  %vm8927 = vc.u32 %v8925, %v8921
  %v8928 = vsel %vm8927, 1, 0
  %v8929 = vadd.s32 %v8925, %v8921
  %v8930 = vadd.s32 %v8926, %v8928
  %v8931 = vadd.s32 %v8930, %v8920
  %v8932 = vadd.s32 %v8931, %v8922
  %v8933 = vand.u32 %v8910, 65535
  %v8934 = vshrl.u32 %v8910, 16
  %v8935 = vand.u32 %v8905, 65535
  %v8936 = vshrl.u32 %v8905, 16
  %v8937 = vmul.u32 %v8933, %v8935
  %v8938 = vmul.u32 %v8933, %v8936
  %v8939 = vmul.u32 %v8934, %v8935
  %v8940 = vmul.u32 %v8934, %v8936
  %v8941 = vshll.u32 %v8938, 16
  %v8942 = vshrl.u32 %v8938, 16
  %v8943 = vshll.u32 %v8939, 16
  %v8944 = vshrl.u32 %v8939, 16
  %vm8945 = vc.u32 %v8937, %v8941
  %v8946 = vsel %vm8945, 1, 0
  %v8947 = vadd.s32 %v8937, %v8941
  %v8948 = vadd.s32 %v8940, %v8946
  %vm8949 = vc.u32 %v8947, %v8943
  %v8950 = vsel %vm8949, 1, 0
  %v8951 = vadd.s32 %v8947, %v8943
  %v8952 = vadd.s32 %v8948, %v8950
  %v8953 = vadd.s32 %v8952, %v8942
  %v8954 = vadd.s32 %v8953, %v8944
  %v8955 = vmul.u32 %v8910, %v8901
  %v8956 = vadd.s32 %v8932, %v8951
  %vm8957 = vc.u32 %v8932, %v8951
  %v8958 = vadd.s32 %v8954, 1
  %v8959 = vsel %vm8957, %v8958, %v8954
  %v8960 = vadd.s32 %v8955, %v8959
  %v8961 = vadd.s32 %v8960, 536870912
  %v8962 = vshrl.u32 %v8961, 30
  %v8963 = vshll.u32 %v8962, 30
  %v8964 = vsub.s32 %v8960, %v8963
  %vm8965 = vcmp.lt.s32.totalorder %v8964, 0
  %v8966 = vsub.s32 0, %v8964
  %v8967 = vsel %vm8965, %v8966, %v8964
  %v8968 = vclz %v8967
  %v8969 = vsub.s32 %v8968, 2
  %vm8970 = vcmp.gt.s32.totalorder 0, %v8969
  %v8971 = vsel %vm8970, 0, %v8969
  %v8972 = vsub.s32 32, %v8971
  %v8973 = vshll.u32 %v8964, %v8971
  %v8974 = vshrl.u32 %v8956, %v8972
  %v8975 = vor.u32 %v8973, %v8974
  %v8976 = vsub.s32 4294967266, %v8971
  %v8977 = vadd.s32 %v8976, 127
  %v8978 = vshll.u32 %v8977, 23
  %v8979 = vor.u32 4788187, %v8978
  %v8980 = vand.u32 2147483647, %v8979
  %v8982 = vcvt.s32.f32 %v8975
  %v8983 = vmul.f32 %v8982, %v8980
  %v8984 = vxor.u32 %v8983, 2147483648
  %v8985 = vsel %vm8864, %v8984, %v8983
  %v8986 = vsub.s32 4, %v8962
  %v8987 = vsel %vm8864, %v8986, %v8962
  %v8988 = vsel %vm8863, %v8347, %v8985
  %v8989 = vsel %vm8863, 0, %v8987
  %v8990 = vmul.f32 %v8988, %v8988
  %v8991 = vmul.f32 %v8990, -0.001358992
  %v8992 = vadd.f32 %v8991, 0.041655596
  %v8993 = vmul.f32 %v8990, %v8992
  %v8994 = vadd.f32 %v8993, -0.4999988
  %v8995 = vmul.f32 %v8990, %v8994
  %v8996 = vadd.f32 1.0, %v8995
  %v8997 = vmul.f32 %v8988, %v8988
  %v8998 = vmul.f32 %v8997, -0.00019511016
  %v8999 = vadd.f32 %v8998, 0.008332121
  %v9000 = vmul.f32 %v8997, %v8999
  %v9001 = vadd.f32 %v9000, -0.16666654
  %v9002 = vmul.f32 %v8997, %v9001
  %v9003 = vadd.f32 %v9002, 1.0
  %v9004 = vmul.f32 %v9003, %v8988
  %vm9005 = vweird.f32 %v8347
  %v9006 = vadd.s32 %v8989, 3
  %v9007 = vand.u32 %v9006, 3
  %vm9008 = vcmp.lt.s32.totalorder %v9007, 2
  %vm9009 = vcmp.eq.s32.totalorder %v9007, 0
  %v9010 = vxor.u32 %v9004, 2147483648
  %v9011 = vsel %vm9009, %v8996, %v9010
  %vm9012 = vcmp.eq.s32.totalorder %v9007, 2
  %v9013 = vxor.u32 %v8996, 2147483648
  %v9014 = vsel %vm9012, %v9013, %v9004
  %v9015 = vsel %vm9008, %v9011, %v9014
  %v9016 = vsel %vm9005, nan, %v9015
  %v9017 = vand.u32 2147483647, %v8351
  %vm9018 = vcmp.le.f32.partialorder %v9017, 0.7853982
  %vm9019 = vcmp.lt.s32.totalorder %v8351, 0
  %v9020 = vand.u32 %v8351, 2139095040
  %v9021 = vshrl.u32 %v9020, 23
  %v9022 = vsub.s32 %v9021, 127
  %v9023 = vand.u32 2147483647, %v8351
  %v9024 = vand.u32 %v9023, 8388607
  %v9025 = vor.u32 %v9024, 8388608
  %v9026 = vsub.s32 0, %v9025
  %v9027 = vadd.s32 %v9022, 1
  %vm9028 = vcmp.gt.s32.totalorder %v9027, 0
  %v9029 = vsel %vm9028, %v9027, 0
  %v9030 = vshrl.u32 %v9029, 5
  %v9031 = vand.u32 %v9029, 31
  %v9032 = vsub.s32 32, %v9031
  %v9033 = vshrl.u32 683565275, %v9032
  %v9034 = vshll.u32 683565275, %v9031
  %v9035 = vshrl.u32 2475754826, %v9032
  %v9036 = vor.u32 %v9034, %v9035
  %v9037 = vshll.u32 2475754826, %v9031
  %v9038 = vshrl.u32 2131351028, %v9032
  %v9039 = vor.u32 %v9037, %v9038
  %v9040 = vshll.u32 2131351028, %v9031
  %v9041 = vshrl.u32 2102212464, %v9032
  %v9042 = vor.u32 %v9040, %v9041
  %v9043 = vshll.u32 2102212464, %v9031
  %v9044 = vshrl.u32 920167782, %v9032
  %v9045 = vor.u32 %v9043, %v9044
  %v9046 = vshll.u32 920167782, %v9031
  %v9047 = vshrl.u32 1326507024, %v9032
  %v9048 = vor.u32 %v9046, %v9047
  %vm9049 = vcmp.lt.s32.totalorder %v9030, 1
  %vm9050 = vcmp.lt.s32.totalorder %v9030, 2
  %vm9051 = vcmp.lt.s32.totalorder %v9030, 3
  %vm9052 = vcmp.lt.s32.totalorder %v9030, 4
  %v9053 = vsel %vm9049, %v9033, %v9036
  %v9054 = vsel %vm9052, %v9042, 2102212464
  %v9055 = vsel %vm9051, %v9039, %v9054
  %v9056 = vsel %vm9050, %v9053, %v9055
  %v9057 = vsel %vm9049, %v9036, %v9039
  %v9058 = vsel %vm9052, %v9045, 920167782
  %v9059 = vsel %vm9051, %v9042, %v9058
  %v9060 = vsel %vm9050, %v9057, %v9059
  %v9061 = vsel %vm9049, %v9039, %v9042
  %v9062 = vsel %vm9052, %v9048, 1326507024
  %v9063 = vsel %vm9051, %v9045, %v9062
  %v9064 = vsel %vm9050, %v9061, %v9063
  %v9065 = vshll.u32 %v9025, 8
  %v9066 = vand.u32 %v9065, 65535
  %v9067 = vshrl.u32 %v9065, 16
  %v9068 = vand.u32 %v9064, 65535
  %v9069 = vshrl.u32 %v9064, 16
  %v9070 = vmul.u32 %v9066, %v9068
  %v9071 = vmul.u32 %v9066, %v9069
  %v9072 = vmul.u32 %v9067, %v9068
  %v9073 = vmul.u32 %v9067, %v9069
  %v9074 = vshll.u32 %v9071, 16
  %v9075 = vshrl.u32 %v9071, 16
  %v9076 = vshll.u32 %v9072, 16
  %v9077 = vshrl.u32 %v9072, 16
  %vm9078 = vc.u32 %v9070, %v9074
  %v9079 = vsel %vm9078, 1, 0
  %v9080 = vadd.s32 %v9070, %v9074
  %v9081 = vadd.s32 %v9073, %v9079
  %vm9082 = vc.u32 %v9080, %v9076
  %v9083 = vsel %vm9082, 1, 0
  %v9084 = vadd.s32 %v9080, %v9076
  %v9085 = vadd.s32 %v9081, %v9083
  %v9086 = vadd.s32 %v9085, %v9075
  %v9087 = vadd.s32 %v9086, %v9077
  %v9088 = vand.u32 %v9065, 65535
  %v9089 = vshrl.u32 %v9065, 16
  %v9090 = vand.u32 %v9060, 65535
  %v9091 = vshrl.u32 %v9060, 16
  %v9092 = vmul.u32 %v9088, %v9090
  %v9093 = vmul.u32 %v9088, %v9091
  %v9094 = vmul.u32 %v9089, %v9090
  %v9095 = vmul.u32 %v9089, %v9091
  %v9096 = vshll.u32 %v9093, 16
  %v9097 = vshrl.u32 %v9093, 16
  %v9098 = vshll.u32 %v9094, 16
  %v9099 = vshrl.u32 %v9094, 16
  %vm9100 = vc.u32 %v9092, %v9096
  %v9101 = vsel %vm9100, 1, 0
  %v9102 = vadd.s32 %v9092, %v9096
  %v9103 = vadd.s32 %v9095, %v9101
  %vm9104 = vc.u32 %v9102, %v9098
  %v9105 = vsel %vm9104, 1, 0
  %v9106 = vadd.s32 %v9102, %v9098
  %v9107 = vadd.s32 %v9103, %v9105
  %v9108 = vadd.s32 %v9107, %v9097
  %v9109 = vadd.s32 %v9108, %v9099
  %v9110 = vmul.u32 %v9065, %v9056
  %v9111 = vadd.s32 %v9087, %v9106
  %vm9112 = vc.u32 %v9087, %v9106
  %v9113 = vadd.s32 %v9109, 1
  %v9114 = vsel %vm9112, %v9113, %v9109
  %v9115 = vadd.s32 %v9110, %v9114
  %v9116 = vadd.s32 %v9115, 536870912
  %v9117 = vshrl.u32 %v9116, 30
  %v9118 = vshll.u32 %v9117, 30
  %v9119 = vsub.s32 %v9115, %v9118
  %vm9120 = vcmp.lt.s32.totalorder %v9119, 0
  %v9121 = vsub.s32 0, %v9119
  %v9122 = vsel %vm9120, %v9121, %v9119
  %v9123 = vclz %v9122
  %v9124 = vsub.s32 %v9123, 2
  %vm9125 = vcmp.gt.s32.totalorder 0, %v9124
  %v9126 = vsel %vm9125, 0, %v9124
  %v9127 = vsub.s32 32, %v9126
  %v9128 = vshll.u32 %v9119, %v9126
  %v9129 = vshrl.u32 %v9111, %v9127
  %v9130 = vor.u32 %v9128, %v9129
  %v9131 = vsub.s32 4294967266, %v9126
  %v9132 = vadd.s32 %v9131, 127
  %v9133 = vshll.u32 %v9132, 23
  %v9134 = vor.u32 4788187, %v9133
  %v9135 = vand.u32 2147483647, %v9134
  %v9137 = vcvt.s32.f32 %v9130
  %v9138 = vmul.f32 %v9137, %v9135
  %v9139 = vxor.u32 %v9138, 2147483648
  %v9140 = vsel %vm9019, %v9139, %v9138
  %v9141 = vsub.s32 4, %v9117
  %v9142 = vsel %vm9019, %v9141, %v9117
  %v9143 = vsel %vm9018, %v8351, %v9140
  %v9144 = vsel %vm9018, 0, %v9142
  %v9145 = vmul.f32 %v9143, %v9143
  %v9146 = vmul.f32 %v9145, -0.001358992
  %v9147 = vadd.f32 %v9146, 0.041655596
  %v9148 = vmul.f32 %v9145, %v9147
  %v9149 = vadd.f32 %v9148, -0.4999988
  %v9150 = vmul.f32 %v9145, %v9149
  %v9151 = vadd.f32 1.0, %v9150
  %v9152 = vmul.f32 %v9143, %v9143
  %v9153 = vmul.f32 %v9152, -0.00019511016
  %v9154 = vadd.f32 %v9153, 0.008332121
  %v9155 = vmul.f32 %v9152, %v9154
  %v9156 = vadd.f32 %v9155, -0.16666654
  %v9157 = vmul.f32 %v9152, %v9156
  %v9158 = vadd.f32 %v9157, 1.0
  %v9159 = vmul.f32 %v9158, %v9143
  %vm9160 = vweird.f32 %v8351
  %v9161 = vadd.s32 %v9144, 3
  %v9162 = vand.u32 %v9161, 3
  %vm9163 = vcmp.lt.s32.totalorder %v9162, 2
  %vm9164 = vcmp.eq.s32.totalorder %v9162, 0
  %v9165 = vxor.u32 %v9159, 2147483648
  %v9166 = vsel %vm9164, %v9151, %v9165
  %vm9167 = vcmp.eq.s32.totalorder %v9162, 2
  %v9168 = vxor.u32 %v9151, 2147483648
  %v9169 = vsel %vm9167, %v9168, %v9159
  %v9170 = vsel %vm9163, %v9166, %v9169
  %v9171 = vsel %vm9160, nan, %v9170
  %v9172 = vand.u32 2147483647, %v8355
  %vm9173 = vcmp.le.f32.partialorder %v9172, 0.7853982
  %vm9174 = vcmp.lt.s32.totalorder %v8355, 0
  %v9175 = vand.u32 %v8355, 2139095040
  %v9176 = vshrl.u32 %v9175, 23
  %v9177 = vsub.s32 %v9176, 127
  %v9178 = vand.u32 2147483647, %v8355
  %v9179 = vand.u32 %v9178, 8388607
  %v9180 = vor.u32 %v9179, 8388608
  %v9181 = vsub.s32 0, %v9180
  %v9182 = vadd.s32 %v9177, 1
  %vm9183 = vcmp.gt.s32.totalorder %v9182, 0
  %v9184 = vsel %vm9183, %v9182, 0
  %v9185 = vshrl.u32 %v9184, 5
  %v9186 = vand.u32 %v9184, 31
  %v9187 = vsub.s32 32, %v9186
  %v9188 = vshrl.u32 683565275, %v9187
  %v9189 = vshll.u32 683565275, %v9186
  %v9190 = vshrl.u32 2475754826, %v9187
  %v9191 = vor.u32 %v9189, %v9190
  %v9192 = vshll.u32 2475754826, %v9186
  %v9193 = vshrl.u32 2131351028, %v9187
  %v9194 = vor.u32 %v9192, %v9193
  %v9195 = vshll.u32 2131351028, %v9186
  %v9196 = vshrl.u32 2102212464, %v9187
  %v9197 = vor.u32 %v9195, %v9196
  %v9198 = vshll.u32 2102212464, %v9186
  %v9199 = vshrl.u32 920167782, %v9187
  %v9200 = vor.u32 %v9198, %v9199
  %v9201 = vshll.u32 920167782, %v9186
  %v9202 = vshrl.u32 1326507024, %v9187
  %v9203 = vor.u32 %v9201, %v9202
  %vm9204 = vcmp.lt.s32.totalorder %v9185, 1
  %vm9205 = vcmp.lt.s32.totalorder %v9185, 2
  %vm9206 = vcmp.lt.s32.totalorder %v9185, 3
  %vm9207 = vcmp.lt.s32.totalorder %v9185, 4
  %v9208 = vsel %vm9204, %v9188, %v9191
  %v9209 = vsel %vm9207, %v9197, 2102212464
  %v9210 = vsel %vm9206, %v9194, %v9209
  %v9211 = vsel %vm9205, %v9208, %v9210
  %v9212 = vsel %vm9204, %v9191, %v9194
  %v9213 = vsel %vm9207, %v9200, 920167782
  %v9214 = vsel %vm9206, %v9197, %v9213
  %v9215 = vsel %vm9205, %v9212, %v9214
  %v9216 = vsel %vm9204, %v9194, %v9197
  %v9217 = vsel %vm9207, %v9203, 1326507024
  %v9218 = vsel %vm9206, %v9200, %v9217
  %v9219 = vsel %vm9205, %v9216, %v9218
  %v9220 = vshll.u32 %v9180, 8
  %v9221 = vand.u32 %v9220, 65535
  %v9222 = vshrl.u32 %v9220, 16
  %v9223 = vand.u32 %v9219, 65535
  %v9224 = vshrl.u32 %v9219, 16
  %v9225 = vmul.u32 %v9221, %v9223
  %v9226 = vmul.u32 %v9221, %v9224
  %v9227 = vmul.u32 %v9222, %v9223
  %v9228 = vmul.u32 %v9222, %v9224
  %v9229 = vshll.u32 %v9226, 16
  %v9230 = vshrl.u32 %v9226, 16
  %v9231 = vshll.u32 %v9227, 16
  %v9232 = vshrl.u32 %v9227, 16
  %vm9233 = vc.u32 %v9225, %v9229
  %v9234 = vsel %vm9233, 1, 0
  %v9235 = vadd.s32 %v9225, %v9229
  %v9236 = vadd.s32 %v9228, %v9234
  %vm9237 = vc.u32 %v9235, %v9231
  %v9238 = vsel %vm9237, 1, 0
  %v9239 = vadd.s32 %v9235, %v9231
  %v9240 = vadd.s32 %v9236, %v9238
  %v9241 = vadd.s32 %v9240, %v9230
  %v9242 = vadd.s32 %v9241, %v9232
  %v9243 = vand.u32 %v9220, 65535
  %v9244 = vshrl.u32 %v9220, 16
  %v9245 = vand.u32 %v9215, 65535
  %v9246 = vshrl.u32 %v9215, 16
  %v9247 = vmul.u32 %v9243, %v9245
  %v9248 = vmul.u32 %v9243, %v9246
  %v9249 = vmul.u32 %v9244, %v9245
  %v9250 = vmul.u32 %v9244, %v9246
  %v9251 = vshll.u32 %v9248, 16
  %v9252 = vshrl.u32 %v9248, 16
  %v9253 = vshll.u32 %v9249, 16
  %v9254 = vshrl.u32 %v9249, 16
  %vm9255 = vc.u32 %v9247, %v9251
  %v9256 = vsel %vm9255, 1, 0
  %v9257 = vadd.s32 %v9247, %v9251
  %v9258 = vadd.s32 %v9250, %v9256
  %vm9259 = vc.u32 %v9257, %v9253
  %v9260 = vsel %vm9259, 1, 0
  %v9261 = vadd.s32 %v9257, %v9253
  %v9262 = vadd.s32 %v9258, %v9260
  %v9263 = vadd.s32 %v9262, %v9252
  %v9264 = vadd.s32 %v9263, %v9254
  %v9265 = vmul.u32 %v9220, %v9211
  %v9266 = vadd.s32 %v9242, %v9261
  %vm9267 = vc.u32 %v9242, %v9261
  %v9268 = vadd.s32 %v9264, 1
  %v9269 = vsel %vm9267, %v9268, %v9264
  %v9270 = vadd.s32 %v9265, %v9269
  %v9271 = vadd.s32 %v9270, 536870912
  %v9272 = vshrl.u32 %v9271, 30
  %v9273 = vshll.u32 %v9272, 30
  %v9274 = vsub.s32 %v9270, %v9273
  %vm9275 = vcmp.lt.s32.totalorder %v9274, 0
  %v9276 = vsub.s32 0, %v9274
  %v9277 = vsel %vm9275, %v9276, %v9274
  %v9278 = vclz %v9277
  %v9279 = vsub.s32 %v9278, 2
  %vm9280 = vcmp.gt.s32.totalorder 0, %v9279
  %v9281 = vsel %vm9280, 0, %v9279
  %v9282 = vsub.s32 32, %v9281
  %v9283 = vshll.u32 %v9274, %v9281
  %v9284 = vshrl.u32 %v9266, %v9282
  %v9285 = vor.u32 %v9283, %v9284
  %v9286 = vsub.s32 4294967266, %v9281
  %v9287 = vadd.s32 %v9286, 127
  %v9288 = vshll.u32 %v9287, 23
  %v9289 = vor.u32 4788187, %v9288
  %v9290 = vand.u32 2147483647, %v9289
  %v9292 = vcvt.s32.f32 %v9285
  %v9293 = vmul.f32 %v9292, %v9290
  %v9294 = vxor.u32 %v9293, 2147483648
  %v9295 = vsel %vm9174, %v9294, %v9293
  %v9296 = vsub.s32 4, %v9272
  %v9297 = vsel %vm9174, %v9296, %v9272
  %v9298 = vsel %vm9173, %v8355, %v9295
  %v9299 = vsel %vm9173, 0, %v9297
  %v9300 = vmul.f32 %v9298, %v9298
  %v9301 = vmul.f32 %v9300, -0.001358992
  %v9302 = vadd.f32 %v9301, 0.041655596
  %v9303 = vmul.f32 %v9300, %v9302
  %v9304 = vadd.f32 %v9303, -0.4999988
  %v9305 = vmul.f32 %v9300, %v9304
  %v9306 = vadd.f32 1.0, %v9305
  %v9307 = vmul.f32 %v9298, %v9298
  %v9308 = vmul.f32 %v9307, -0.00019511016
  %v9309 = vadd.f32 %v9308, 0.008332121
  %v9310 = vmul.f32 %v9307, %v9309
  %v9311 = vadd.f32 %v9310, -0.16666654
  %v9312 = vmul.f32 %v9307, %v9311
  %v9313 = vadd.f32 %v9312, 1.0
  %v9314 = vmul.f32 %v9313, %v9298
  %vm9315 = vweird.f32 %v8355
  %v9316 = vadd.s32 %v9299, 3
  %v9317 = vand.u32 %v9316, 3
  %vm9318 = vcmp.lt.s32.totalorder %v9317, 2
  %vm9319 = vcmp.eq.s32.totalorder %v9317, 0
  %v9320 = vxor.u32 %v9314, 2147483648
  %v9321 = vsel %vm9319, %v9306, %v9320
  %vm9322 = vcmp.eq.s32.totalorder %v9317, 2
  %v9323 = vxor.u32 %v9306, 2147483648
  %v9324 = vsel %vm9322, %v9323, %v9314
  %v9325 = vsel %vm9318, %v9321, %v9324
  %v9326 = vsel %vm9315, nan, %v9325
  %v9327 = vand.u32 2147483647, %v8359
  %vm9328 = vcmp.le.f32.partialorder %v9327, 0.7853982
  %vm9329 = vcmp.lt.s32.totalorder %v8359, 0
  %v9330 = vand.u32 %v8359, 2139095040
  %v9331 = vshrl.u32 %v9330, 23
  %v9332 = vsub.s32 %v9331, 127
  %v9333 = vand.u32 2147483647, %v8359
  %v9334 = vand.u32 %v9333, 8388607
  %v9335 = vor.u32 %v9334, 8388608
  %v9336 = vsub.s32 0, %v9335
  %v9337 = vadd.s32 %v9332, 1
  %vm9338 = vcmp.gt.s32.totalorder %v9337, 0
  %v9339 = vsel %vm9338, %v9337, 0
  %v9340 = vshrl.u32 %v9339, 5
  %v9341 = vand.u32 %v9339, 31
  %v9342 = vsub.s32 32, %v9341
  %v9343 = vshrl.u32 683565275, %v9342
  %v9344 = vshll.u32 683565275, %v9341
  %v9345 = vshrl.u32 2475754826, %v9342
  %v9346 = vor.u32 %v9344, %v9345
  %v9347 = vshll.u32 2475754826, %v9341
  %v9348 = vshrl.u32 2131351028, %v9342
  %v9349 = vor.u32 %v9347, %v9348
  %v9350 = vshll.u32 2131351028, %v9341
  %v9351 = vshrl.u32 2102212464, %v9342
  %v9352 = vor.u32 %v9350, %v9351
  %v9353 = vshll.u32 2102212464, %v9341
  %v9354 = vshrl.u32 920167782, %v9342
  %v9355 = vor.u32 %v9353, %v9354
  %v9356 = vshll.u32 920167782, %v9341
  %v9357 = vshrl.u32 1326507024, %v9342
  %v9358 = vor.u32 %v9356, %v9357
  %vm9359 = vcmp.lt.s32.totalorder %v9340, 1
  %vm9360 = vcmp.lt.s32.totalorder %v9340, 2
  %vm9361 = vcmp.lt.s32.totalorder %v9340, 3
  %vm9362 = vcmp.lt.s32.totalorder %v9340, 4
  %v9363 = vsel %vm9359, %v9343, %v9346
  %v9364 = vsel %vm9362, %v9352, 2102212464
  %v9365 = vsel %vm9361, %v9349, %v9364
  %v9366 = vsel %vm9360, %v9363, %v9365
  %v9367 = vsel %vm9359, %v9346, %v9349
  %v9368 = vsel %vm9362, %v9355, 920167782
  %v9369 = vsel %vm9361, %v9352, %v9368
  %v9370 = vsel %vm9360, %v9367, %v9369
  %v9371 = vsel %vm9359, %v9349, %v9352
  %v9372 = vsel %vm9362, %v9358, 1326507024
  %v9373 = vsel %vm9361, %v9355, %v9372
  %v9374 = vsel %vm9360, %v9371, %v9373
  %v9375 = vshll.u32 %v9335, 8
  %v9376 = vand.u32 %v9375, 65535
  %v9377 = vshrl.u32 %v9375, 16
  %v9378 = vand.u32 %v9374, 65535
  %v9379 = vshrl.u32 %v9374, 16
  %v9380 = vmul.u32 %v9376, %v9378
  %v9381 = vmul.u32 %v9376, %v9379
  %v9382 = vmul.u32 %v9377, %v9378
  %v9383 = vmul.u32 %v9377, %v9379
  %v9384 = vshll.u32 %v9381, 16
  %v9385 = vshrl.u32 %v9381, 16
  %v9386 = vshll.u32 %v9382, 16
  %v9387 = vshrl.u32 %v9382, 16
  %vm9388 = vc.u32 %v9380, %v9384
  %v9389 = vsel %vm9388, 1, 0
  %v9390 = vadd.s32 %v9380, %v9384
  %v9391 = vadd.s32 %v9383, %v9389
  %vm9392 = vc.u32 %v9390, %v9386
  %v9393 = vsel %vm9392, 1, 0
  %v9394 = vadd.s32 %v9390, %v9386
  %v9395 = vadd.s32 %v9391, %v9393
  %v9396 = vadd.s32 %v9395, %v9385
  %v9397 = vadd.s32 %v9396, %v9387
  %v9398 = vand.u32 %v9375, 65535
  %v9399 = vshrl.u32 %v9375, 16
  %v9400 = vand.u32 %v9370, 65535
  %v9401 = vshrl.u32 %v9370, 16
  %v9402 = vmul.u32 %v9398, %v9400
  %v9403 = vmul.u32 %v9398, %v9401
  %v9404 = vmul.u32 %v9399, %v9400
  %v9405 = vmul.u32 %v9399, %v9401
  %v9406 = vshll.u32 %v9403, 16
  %v9407 = vshrl.u32 %v9403, 16
  %v9408 = vshll.u32 %v9404, 16
  %v9409 = vshrl.u32 %v9404, 16
  %vm9410 = vc.u32 %v9402, %v9406
  %v9411 = vsel %vm9410, 1, 0
  %v9412 = vadd.s32 %v9402, %v9406
  %v9413 = vadd.s32 %v9405, %v9411
  %vm9414 = vc.u32 %v9412, %v9408
  %v9415 = vsel %vm9414, 1, 0
  %v9416 = vadd.s32 %v9412, %v9408
  %v9417 = vadd.s32 %v9413, %v9415
  %v9418 = vadd.s32 %v9417, %v9407
  %v9419 = vadd.s32 %v9418, %v9409
  %v9420 = vmul.u32 %v9375, %v9366
  %v9421 = vadd.s32 %v9397, %v9416
  %vm9422 = vc.u32 %v9397, %v9416
  %v9423 = vadd.s32 %v9419, 1
  %v9424 = vsel %vm9422, %v9423, %v9419
  %v9425 = vadd.s32 %v9420, %v9424
  %v9426 = vadd.s32 %v9425, 536870912
  %v9427 = vshrl.u32 %v9426, 30
  %v9428 = vshll.u32 %v9427, 30
  %v9429 = vsub.s32 %v9425, %v9428
  %vm9430 = vcmp.lt.s32.totalorder %v9429, 0
  %v9431 = vsub.s32 0, %v9429
  %v9432 = vsel %vm9430, %v9431, %v9429
  %v9433 = vclz %v9432
  %v9434 = vsub.s32 %v9433, 2
  %vm9435 = vcmp.gt.s32.totalorder 0, %v9434
  %v9436 = vsel %vm9435, 0, %v9434
  %v9437 = vsub.s32 32, %v9436
  %v9438 = vshll.u32 %v9429, %v9436
  %v9439 = vshrl.u32 %v9421, %v9437
  %v9440 = vor.u32 %v9438, %v9439
  %v9441 = vsub.s32 4294967266, %v9436
  %v9442 = vadd.s32 %v9441, 127
  %v9443 = vshll.u32 %v9442, 23
  %v9444 = vor.u32 4788187, %v9443
  %v9445 = vand.u32 2147483647, %v9444
  %v9447 = vcvt.s32.f32 %v9440
  %v9448 = vmul.f32 %v9447, %v9445
  %v9449 = vxor.u32 %v9448, 2147483648
  %v9450 = vsel %vm9329, %v9449, %v9448
  %v9451 = vsub.s32 4, %v9427
  %v9452 = vsel %vm9329, %v9451, %v9427
  %v9453 = vsel %vm9328, %v8359, %v9450
  %v9454 = vsel %vm9328, 0, %v9452
  %v9455 = vmul.f32 %v9453, %v9453
  %v9456 = vmul.f32 %v9455, -0.001358992
  %v9457 = vadd.f32 %v9456, 0.041655596
  %v9458 = vmul.f32 %v9455, %v9457
  %v9459 = vadd.f32 %v9458, -0.4999988
  %v9460 = vmul.f32 %v9455, %v9459
  %v9461 = vadd.f32 1.0, %v9460
  %v9462 = vmul.f32 %v9453, %v9453
  %v9463 = vmul.f32 %v9462, -0.00019511016
  %v9464 = vadd.f32 %v9463, 0.008332121
  %v9465 = vmul.f32 %v9462, %v9464
  %v9466 = vadd.f32 %v9465, -0.16666654
  %v9467 = vmul.f32 %v9462, %v9466
  %v9468 = vadd.f32 %v9467, 1.0
  %v9469 = vmul.f32 %v9468, %v9453
  %vm9470 = vweird.f32 %v8359
  %v9471 = vadd.s32 %v9454, 3
  %v9472 = vand.u32 %v9471, 3
  %vm9473 = vcmp.lt.s32.totalorder %v9472, 2
  %vm9474 = vcmp.eq.s32.totalorder %v9472, 0
  %v9475 = vxor.u32 %v9469, 2147483648
  %v9476 = vsel %vm9474, %v9461, %v9475
  %vm9477 = vcmp.eq.s32.totalorder %v9472, 2
  %v9478 = vxor.u32 %v9461, 2147483648
  %v9479 = vsel %vm9477, %v9478, %v9469
  %v9480 = vsel %vm9473, %v9476, %v9479
  %v9481 = vsel %vm9470, nan, %v9480
  %v9482 = vand.u32 2147483647, %v8363
  %vm9483 = vcmp.le.f32.partialorder %v9482, 0.7853982
  %vm9484 = vcmp.lt.s32.totalorder %v8363, 0
  %v9485 = vand.u32 %v8363, 2139095040
  %v9486 = vshrl.u32 %v9485, 23
  %v9487 = vsub.s32 %v9486, 127
  %v9488 = vand.u32 2147483647, %v8363
  %v9489 = vand.u32 %v9488, 8388607
  %v9490 = vor.u32 %v9489, 8388608
  %v9491 = vsub.s32 0, %v9490
  %v9492 = vadd.s32 %v9487, 1
  %vm9493 = vcmp.gt.s32.totalorder %v9492, 0
  %v9494 = vsel %vm9493, %v9492, 0
  %v9495 = vshrl.u32 %v9494, 5
  %v9496 = vand.u32 %v9494, 31
  %v9497 = vsub.s32 32, %v9496
  %v9498 = vshrl.u32 683565275, %v9497
  %v9499 = vshll.u32 683565275, %v9496
  %v9500 = vshrl.u32 2475754826, %v9497
  %v9501 = vor.u32 %v9499, %v9500
  %v9502 = vshll.u32 2475754826, %v9496
  %v9503 = vshrl.u32 2131351028, %v9497
  %v9504 = vor.u32 %v9502, %v9503
  %v9505 = vshll.u32 2131351028, %v9496
  %v9506 = vshrl.u32 2102212464, %v9497
  %v9507 = vor.u32 %v9505, %v9506
  %v9508 = vshll.u32 2102212464, %v9496
  %v9509 = vshrl.u32 920167782, %v9497
  %v9510 = vor.u32 %v9508, %v9509
  %v9511 = vshll.u32 920167782, %v9496
  %v9512 = vshrl.u32 1326507024, %v9497
  %v9513 = vor.u32 %v9511, %v9512
  %vm9514 = vcmp.lt.s32.totalorder %v9495, 1
  %vm9515 = vcmp.lt.s32.totalorder %v9495, 2
  %vm9516 = vcmp.lt.s32.totalorder %v9495, 3
  %vm9517 = vcmp.lt.s32.totalorder %v9495, 4
  %v9518 = vsel %vm9514, %v9498, %v9501
  %v9519 = vsel %vm9517, %v9507, 2102212464
  %v9520 = vsel %vm9516, %v9504, %v9519
  %v9521 = vsel %vm9515, %v9518, %v9520
  %v9522 = vsel %vm9514, %v9501, %v9504
  %v9523 = vsel %vm9517, %v9510, 920167782
  %v9524 = vsel %vm9516, %v9507, %v9523
  %v9525 = vsel %vm9515, %v9522, %v9524
  %v9526 = vsel %vm9514, %v9504, %v9507
  %v9527 = vsel %vm9517, %v9513, 1326507024
  %v9528 = vsel %vm9516, %v9510, %v9527
  %v9529 = vsel %vm9515, %v9526, %v9528
  %v9530 = vshll.u32 %v9490, 8
  %v9531 = vand.u32 %v9530, 65535
  %v9532 = vshrl.u32 %v9530, 16
  %v9533 = vand.u32 %v9529, 65535
  %v9534 = vshrl.u32 %v9529, 16
  %v9535 = vmul.u32 %v9531, %v9533
  %v9536 = vmul.u32 %v9531, %v9534
  %v9537 = vmul.u32 %v9532, %v9533
  %v9538 = vmul.u32 %v9532, %v9534
  %v9539 = vshll.u32 %v9536, 16
  %v9540 = vshrl.u32 %v9536, 16
  %v9541 = vshll.u32 %v9537, 16
  %v9542 = vshrl.u32 %v9537, 16
  %vm9543 = vc.u32 %v9535, %v9539
  %v9544 = vsel %vm9543, 1, 0
  %v9545 = vadd.s32 %v9535, %v9539
  %v9546 = vadd.s32 %v9538, %v9544
  %vm9547 = vc.u32 %v9545, %v9541
  %v9548 = vsel %vm9547, 1, 0
  %v9549 = vadd.s32 %v9545, %v9541
  %v9550 = vadd.s32 %v9546, %v9548
  %v9551 = vadd.s32 %v9550, %v9540
  %v9552 = vadd.s32 %v9551, %v9542
  %v9553 = vand.u32 %v9530, 65535
  %v9554 = vshrl.u32 %v9530, 16
  %v9555 = vand.u32 %v9525, 65535
  %v9556 = vshrl.u32 %v9525, 16
  %v9557 = vmul.u32 %v9553, %v9555
  %v9558 = vmul.u32 %v9553, %v9556
  %v9559 = vmul.u32 %v9554, %v9555
  %v9560 = vmul.u32 %v9554, %v9556
  %v9561 = vshll.u32 %v9558, 16
  %v9562 = vshrl.u32 %v9558, 16
  %v9563 = vshll.u32 %v9559, 16
  %v9564 = vshrl.u32 %v9559, 16
  %vm9565 = vc.u32 %v9557, %v9561
  %v9566 = vsel %vm9565, 1, 0
  %v9567 = vadd.s32 %v9557, %v9561
  %v9568 = vadd.s32 %v9560, %v9566
  %vm9569 = vc.u32 %v9567, %v9563
  %v9570 = vsel %vm9569, 1, 0
  %v9571 = vadd.s32 %v9567, %v9563
  %v9572 = vadd.s32 %v9568, %v9570
  %v9573 = vadd.s32 %v9572, %v9562
  %v9574 = vadd.s32 %v9573, %v9564
  %v9575 = vmul.u32 %v9530, %v9521
  %v9576 = vadd.s32 %v9552, %v9571
  %vm9577 = vc.u32 %v9552, %v9571
  %v9578 = vadd.s32 %v9574, 1
  %v9579 = vsel %vm9577, %v9578, %v9574
  %v9580 = vadd.s32 %v9575, %v9579
  %v9581 = vadd.s32 %v9580, 536870912
  %v9582 = vshrl.u32 %v9581, 30
  %v9583 = vshll.u32 %v9582, 30
  %v9584 = vsub.s32 %v9580, %v9583
  %vm9585 = vcmp.lt.s32.totalorder %v9584, 0
  %v9586 = vsub.s32 0, %v9584
  %v9587 = vsel %vm9585, %v9586, %v9584
  %v9588 = vclz %v9587
  %v9589 = vsub.s32 %v9588, 2
  %vm9590 = vcmp.gt.s32.totalorder 0, %v9589
  %v9591 = vsel %vm9590, 0, %v9589
  %v9592 = vsub.s32 32, %v9591
  %v9593 = vshll.u32 %v9584, %v9591
  %v9594 = vshrl.u32 %v9576, %v9592
  %v9595 = vor.u32 %v9593, %v9594
  %v9596 = vsub.s32 4294967266, %v9591
  %v9597 = vadd.s32 %v9596, 127
  %v9598 = vshll.u32 %v9597, 23
  %v9599 = vor.u32 4788187, %v9598
  %v9600 = vand.u32 2147483647, %v9599
  %v9602 = vcvt.s32.f32 %v9595
  %v9603 = vmul.f32 %v9602, %v9600
  %v9604 = vxor.u32 %v9603, 2147483648
  %v9605 = vsel %vm9484, %v9604, %v9603
  %v9606 = vsub.s32 4, %v9582
  %v9607 = vsel %vm9484, %v9606, %v9582
  %v9608 = vsel %vm9483, %v8363, %v9605
  %v9609 = vsel %vm9483, 0, %v9607
  %v9610 = vmul.f32 %v9608, %v9608
  %v9611 = vmul.f32 %v9610, -0.001358992
  %v9612 = vadd.f32 %v9611, 0.041655596
  %v9613 = vmul.f32 %v9610, %v9612
  %v9614 = vadd.f32 %v9613, -0.4999988
  %v9615 = vmul.f32 %v9610, %v9614
  %v9616 = vadd.f32 1.0, %v9615
  %v9617 = vmul.f32 %v9608, %v9608
  %v9618 = vmul.f32 %v9617, -0.00019511016
  %v9619 = vadd.f32 %v9618, 0.008332121
  %v9620 = vmul.f32 %v9617, %v9619
  %v9621 = vadd.f32 %v9620, -0.16666654
  %v9622 = vmul.f32 %v9617, %v9621
  %v9623 = vadd.f32 %v9622, 1.0
  %v9624 = vmul.f32 %v9623, %v9608
  %vm9625 = vweird.f32 %v8363
  %v9626 = vadd.s32 %v9609, 3
  %v9627 = vand.u32 %v9626, 3
  %vm9628 = vcmp.lt.s32.totalorder %v9627, 2
  %vm9629 = vcmp.eq.s32.totalorder %v9627, 0
  %v9630 = vxor.u32 %v9624, 2147483648
  %v9631 = vsel %vm9629, %v9616, %v9630
  %vm9632 = vcmp.eq.s32.totalorder %v9627, 2
  %v9633 = vxor.u32 %v9616, 2147483648
  %v9634 = vsel %vm9632, %v9633, %v9624
  %v9635 = vsel %vm9628, %v9631, %v9634
  %v9636 = vsel %vm9625, nan, %v9635
  %v9637 = vand.u32 2147483647, %v8367
  %vm9638 = vcmp.le.f32.partialorder %v9637, 0.7853982
  %vm9639 = vcmp.lt.s32.totalorder %v8367, 0
  %v9640 = vand.u32 %v8367, 2139095040
  %v9641 = vshrl.u32 %v9640, 23
  %v9642 = vsub.s32 %v9641, 127
  %v9643 = vand.u32 2147483647, %v8367
  %v9644 = vand.u32 %v9643, 8388607
  %v9645 = vor.u32 %v9644, 8388608
  %v9646 = vsub.s32 0, %v9645
  %v9647 = vadd.s32 %v9642, 1
  %vm9648 = vcmp.gt.s32.totalorder %v9647, 0
  %v9649 = vsel %vm9648, %v9647, 0
  %v9650 = vshrl.u32 %v9649, 5
  %v9651 = vand.u32 %v9649, 31
  %v9652 = vsub.s32 32, %v9651
  %v9653 = vshrl.u32 683565275, %v9652
  %v9654 = vshll.u32 683565275, %v9651
  %v9655 = vshrl.u32 2475754826, %v9652
  %v9656 = vor.u32 %v9654, %v9655
  %v9657 = vshll.u32 2475754826, %v9651
  %v9658 = vshrl.u32 2131351028, %v9652
  %v9659 = vor.u32 %v9657, %v9658
  %v9660 = vshll.u32 2131351028, %v9651
  %v9661 = vshrl.u32 2102212464, %v9652
  %v9662 = vor.u32 %v9660, %v9661
  %v9663 = vshll.u32 2102212464, %v9651
  %v9664 = vshrl.u32 920167782, %v9652
  %v9665 = vor.u32 %v9663, %v9664
  %v9666 = vshll.u32 920167782, %v9651
  %v9667 = vshrl.u32 1326507024, %v9652
  %v9668 = vor.u32 %v9666, %v9667
  %vm9669 = vcmp.lt.s32.totalorder %v9650, 1
  %vm9670 = vcmp.lt.s32.totalorder %v9650, 2
  %vm9671 = vcmp.lt.s32.totalorder %v9650, 3
  %vm9672 = vcmp.lt.s32.totalorder %v9650, 4
  %v9673 = vsel %vm9669, %v9653, %v9656
  %v9674 = vsel %vm9672, %v9662, 2102212464
  %v9675 = vsel %vm9671, %v9659, %v9674
  %v9676 = vsel %vm9670, %v9673, %v9675
  %v9677 = vsel %vm9669, %v9656, %v9659
  %v9678 = vsel %vm9672, %v9665, 920167782
  %v9679 = vsel %vm9671, %v9662, %v9678
  %v9680 = vsel %vm9670, %v9677, %v9679
  %v9681 = vsel %vm9669, %v9659, %v9662
  %v9682 = vsel %vm9672, %v9668, 1326507024
  %v9683 = vsel %vm9671, %v9665, %v9682
  %v9684 = vsel %vm9670, %v9681, %v9683
  %v9685 = vshll.u32 %v9645, 8
  %v9686 = vand.u32 %v9685, 65535
  %v9687 = vshrl.u32 %v9685, 16
  %v9688 = vand.u32 %v9684, 65535
  %v9689 = vshrl.u32 %v9684, 16
  %v9690 = vmul.u32 %v9686, %v9688
  %v9691 = vmul.u32 %v9686, %v9689
  %v9692 = vmul.u32 %v9687, %v9688
  %v9693 = vmul.u32 %v9687, %v9689
  %v9694 = vshll.u32 %v9691, 16
  %v9695 = vshrl.u32 %v9691, 16
  %v9696 = vshll.u32 %v9692, 16
  %v9697 = vshrl.u32 %v9692, 16
  %vm9698 = vc.u32 %v9690, %v9694
  %v9699 = vsel %vm9698, 1, 0
  %v9700 = vadd.s32 %v9690, %v9694
  %v9701 = vadd.s32 %v9693, %v9699
  %vm9702 = vc.u32 %v9700, %v9696
  %v9703 = vsel %vm9702, 1, 0
  %v9704 = vadd.s32 %v9700, %v9696
  %v9705 = vadd.s32 %v9701, %v9703
  %v9706 = vadd.s32 %v9705, %v9695
  %v9707 = vadd.s32 %v9706, %v9697
  %v9708 = vand.u32 %v9685, 65535
  %v9709 = vshrl.u32 %v9685, 16
  %v9710 = vand.u32 %v9680, 65535
  %v9711 = vshrl.u32 %v9680, 16
  %v9712 = vmul.u32 %v9708, %v9710
  %v9713 = vmul.u32 %v9708, %v9711
  %v9714 = vmul.u32 %v9709, %v9710
  %v9715 = vmul.u32 %v9709, %v9711
  %v9716 = vshll.u32 %v9713, 16
  %v9717 = vshrl.u32 %v9713, 16
  %v9718 = vshll.u32 %v9714, 16
  %v9719 = vshrl.u32 %v9714, 16
  %vm9720 = vc.u32 %v9712, %v9716
  %v9721 = vsel %vm9720, 1, 0
  %v9722 = vadd.s32 %v9712, %v9716
  %v9723 = vadd.s32 %v9715, %v9721
  %vm9724 = vc.u32 %v9722, %v9718
  %v9725 = vsel %vm9724, 1, 0
  %v9726 = vadd.s32 %v9722, %v9718
  %v9727 = vadd.s32 %v9723, %v9725
  %v9728 = vadd.s32 %v9727, %v9717
  %v9729 = vadd.s32 %v9728, %v9719
  %v9730 = vmul.u32 %v9685, %v9676
  %v9731 = vadd.s32 %v9707, %v9726
  %vm9732 = vc.u32 %v9707, %v9726
  %v9733 = vadd.s32 %v9729, 1
  %v9734 = vsel %vm9732, %v9733, %v9729
  %v9735 = vadd.s32 %v9730, %v9734
  %v9736 = vadd.s32 %v9735, 536870912
  %v9737 = vshrl.u32 %v9736, 30
  %v9738 = vshll.u32 %v9737, 30
  %v9739 = vsub.s32 %v9735, %v9738
  %vm9740 = vcmp.lt.s32.totalorder %v9739, 0
  %v9741 = vsub.s32 0, %v9739
  %v9742 = vsel %vm9740, %v9741, %v9739
  %v9743 = vclz %v9742
  %v9744 = vsub.s32 %v9743, 2
  %vm9745 = vcmp.gt.s32.totalorder 0, %v9744
  %v9746 = vsel %vm9745, 0, %v9744
  %v9747 = vsub.s32 32, %v9746
  %v9748 = vshll.u32 %v9739, %v9746
  %v9749 = vshrl.u32 %v9731, %v9747
  %v9750 = vor.u32 %v9748, %v9749
  %v9751 = vsub.s32 4294967266, %v9746
  %v9752 = vadd.s32 %v9751, 127
  %v9753 = vshll.u32 %v9752, 23
  %v9754 = vor.u32 4788187, %v9753
  %v9755 = vand.u32 2147483647, %v9754
  %v9757 = vcvt.s32.f32 %v9750
  %v9758 = vmul.f32 %v9757, %v9755
  %v9759 = vxor.u32 %v9758, 2147483648
  %v9760 = vsel %vm9639, %v9759, %v9758
  %v9761 = vsub.s32 4, %v9737
  %v9762 = vsel %vm9639, %v9761, %v9737
  %v9763 = vsel %vm9638, %v8367, %v9760
  %v9764 = vsel %vm9638, 0, %v9762
  %v9765 = vmul.f32 %v9763, %v9763
  %v9766 = vmul.f32 %v9765, -0.001358992
  %v9767 = vadd.f32 %v9766, 0.041655596
  %v9768 = vmul.f32 %v9765, %v9767
  %v9769 = vadd.f32 %v9768, -0.4999988
  %v9770 = vmul.f32 %v9765, %v9769
  %v9771 = vadd.f32 1.0, %v9770
  %v9772 = vmul.f32 %v9763, %v9763
  %v9773 = vmul.f32 %v9772, -0.00019511016
  %v9774 = vadd.f32 %v9773, 0.008332121
  %v9775 = vmul.f32 %v9772, %v9774
  %v9776 = vadd.f32 %v9775, -0.16666654
  %v9777 = vmul.f32 %v9772, %v9776
  %v9778 = vadd.f32 %v9777, 1.0
  %v9779 = vmul.f32 %v9778, %v9763
  %vm9780 = vweird.f32 %v8367
  %v9781 = vadd.s32 %v9764, 3
  %v9782 = vand.u32 %v9781, 3
  %vm9783 = vcmp.lt.s32.totalorder %v9782, 2
  %vm9784 = vcmp.eq.s32.totalorder %v9782, 0
  %v9785 = vxor.u32 %v9779, 2147483648
  %v9786 = vsel %vm9784, %v9771, %v9785
  %vm9787 = vcmp.eq.s32.totalorder %v9782, 2
  %v9788 = vxor.u32 %v9771, 2147483648
  %v9789 = vsel %vm9787, %v9788, %v9779
  %v9790 = vsel %vm9783, %v9786, %v9789
  %v9791 = vsel %vm9780, nan, %v9790
  %v9792 = vand.u32 2147483647, %v8371
  %vm9793 = vcmp.le.f32.partialorder %v9792, 0.7853982
  %vm9794 = vcmp.lt.s32.totalorder %v8371, 0
  %v9795 = vand.u32 %v8371, 2139095040
  %v9796 = vshrl.u32 %v9795, 23
  %v9797 = vsub.s32 %v9796, 127
  %v9798 = vand.u32 2147483647, %v8371
  %v9799 = vand.u32 %v9798, 8388607
  %v9800 = vor.u32 %v9799, 8388608
  %v9801 = vsub.s32 0, %v9800
  %v9802 = vadd.s32 %v9797, 1
  %vm9803 = vcmp.gt.s32.totalorder %v9802, 0
  %v9804 = vsel %vm9803, %v9802, 0
  %v9805 = vshrl.u32 %v9804, 5
  %v9806 = vand.u32 %v9804, 31
  %v9807 = vsub.s32 32, %v9806
  %v9808 = vshrl.u32 683565275, %v9807
  %v9809 = vshll.u32 683565275, %v9806
  %v9810 = vshrl.u32 2475754826, %v9807
  %v9811 = vor.u32 %v9809, %v9810
  %v9812 = vshll.u32 2475754826, %v9806
  %v9813 = vshrl.u32 2131351028, %v9807
  %v9814 = vor.u32 %v9812, %v9813
  %v9815 = vshll.u32 2131351028, %v9806
  %v9816 = vshrl.u32 2102212464, %v9807
  %v9817 = vor.u32 %v9815, %v9816
  %v9818 = vshll.u32 2102212464, %v9806
  %v9819 = vshrl.u32 920167782, %v9807
  %v9820 = vor.u32 %v9818, %v9819
  %v9821 = vshll.u32 920167782, %v9806
  %v9822 = vshrl.u32 1326507024, %v9807
  %v9823 = vor.u32 %v9821, %v9822
  %vm9824 = vcmp.lt.s32.totalorder %v9805, 1
  %vm9825 = vcmp.lt.s32.totalorder %v9805, 2
  %vm9826 = vcmp.lt.s32.totalorder %v9805, 3
  %vm9827 = vcmp.lt.s32.totalorder %v9805, 4
  %v9828 = vsel %vm9824, %v9808, %v9811
  %v9829 = vsel %vm9827, %v9817, 2102212464
  %v9830 = vsel %vm9826, %v9814, %v9829
  %v9831 = vsel %vm9825, %v9828, %v9830
  %v9832 = vsel %vm9824, %v9811, %v9814
  %v9833 = vsel %vm9827, %v9820, 920167782
  %v9834 = vsel %vm9826, %v9817, %v9833
  %v9835 = vsel %vm9825, %v9832, %v9834
  %v9836 = vsel %vm9824, %v9814, %v9817
  %v9837 = vsel %vm9827, %v9823, 1326507024
  %v9838 = vsel %vm9826, %v9820, %v9837
  %v9839 = vsel %vm9825, %v9836, %v9838
  %v9840 = vshll.u32 %v9800, 8
  %v9841 = vand.u32 %v9840, 65535
  %v9842 = vshrl.u32 %v9840, 16
  %v9843 = vand.u32 %v9839, 65535
  %v9844 = vshrl.u32 %v9839, 16
  %v9845 = vmul.u32 %v9841, %v9843
  %v9846 = vmul.u32 %v9841, %v9844
  %v9847 = vmul.u32 %v9842, %v9843
  %v9848 = vmul.u32 %v9842, %v9844
  %v9849 = vshll.u32 %v9846, 16
  %v9850 = vshrl.u32 %v9846, 16
  %v9851 = vshll.u32 %v9847, 16
  %v9852 = vshrl.u32 %v9847, 16
  %vm9853 = vc.u32 %v9845, %v9849
  %v9854 = vsel %vm9853, 1, 0
  %v9855 = vadd.s32 %v9845, %v9849
  %v9856 = vadd.s32 %v9848, %v9854
  %vm9857 = vc.u32 %v9855, %v9851
  %v9858 = vsel %vm9857, 1, 0
  %v9859 = vadd.s32 %v9855, %v9851
  %v9860 = vadd.s32 %v9856, %v9858
  %v9861 = vadd.s32 %v9860, %v9850
  %v9862 = vadd.s32 %v9861, %v9852
  %v9863 = vand.u32 %v9840, 65535
  %v9864 = vshrl.u32 %v9840, 16
  %v9865 = vand.u32 %v9835, 65535
  %v9866 = vshrl.u32 %v9835, 16
  %v9867 = vmul.u32 %v9863, %v9865
  %v9868 = vmul.u32 %v9863, %v9866
  %v9869 = vmul.u32 %v9864, %v9865
  %v9870 = vmul.u32 %v9864, %v9866
  %v9871 = vshll.u32 %v9868, 16
  %v9872 = vshrl.u32 %v9868, 16
  %v9873 = vshll.u32 %v9869, 16
  %v9874 = vshrl.u32 %v9869, 16
  %vm9875 = vc.u32 %v9867, %v9871
  %v9876 = vsel %vm9875, 1, 0
  %v9877 = vadd.s32 %v9867, %v9871
  %v9878 = vadd.s32 %v9870, %v9876
  %vm9879 = vc.u32 %v9877, %v9873
  %v9880 = vsel %vm9879, 1, 0
  %v9881 = vadd.s32 %v9877, %v9873
  %v9882 = vadd.s32 %v9878, %v9880
  %v9883 = vadd.s32 %v9882, %v9872
  %v9884 = vadd.s32 %v9883, %v9874
  %v9885 = vmul.u32 %v9840, %v9831
  %v9886 = vadd.s32 %v9862, %v9881
  %vm9887 = vc.u32 %v9862, %v9881
  %v9888 = vadd.s32 %v9884, 1
  %v9889 = vsel %vm9887, %v9888, %v9884
  %v9890 = vadd.s32 %v9885, %v9889
  %v9891 = vadd.s32 %v9890, 536870912
  %v9892 = vshrl.u32 %v9891, 30
  %v9893 = vshll.u32 %v9892, 30
  %v9894 = vsub.s32 %v9890, %v9893
  %vm9895 = vcmp.lt.s32.totalorder %v9894, 0
  %v9896 = vsub.s32 0, %v9894
  %v9897 = vsel %vm9895, %v9896, %v9894
  %v9898 = vclz %v9897
  %v9899 = vsub.s32 %v9898, 2
  %vm9900 = vcmp.gt.s32.totalorder 0, %v9899
  %v9901 = vsel %vm9900, 0, %v9899
  %v9902 = vsub.s32 32, %v9901
  %v9903 = vshll.u32 %v9894, %v9901
  %v9904 = vshrl.u32 %v9886, %v9902
  %v9905 = vor.u32 %v9903, %v9904
  %v9906 = vsub.s32 4294967266, %v9901
  %v9907 = vadd.s32 %v9906, 127
  %v9908 = vshll.u32 %v9907, 23
  %v9909 = vor.u32 4788187, %v9908
  %v9910 = vand.u32 2147483647, %v9909
  %v9912 = vcvt.s32.f32 %v9905
  %v9913 = vmul.f32 %v9912, %v9910
  %v9914 = vxor.u32 %v9913, 2147483648
  %v9915 = vsel %vm9794, %v9914, %v9913
  %v9916 = vsub.s32 4, %v9892
  %v9917 = vsel %vm9794, %v9916, %v9892
  %v9918 = vsel %vm9793, %v8371, %v9915
  %v9919 = vsel %vm9793, 0, %v9917
  %v9920 = vmul.f32 %v9918, %v9918
  %v9921 = vmul.f32 %v9920, -0.001358992
  %v9922 = vadd.f32 %v9921, 0.041655596
  %v9923 = vmul.f32 %v9920, %v9922
  %v9924 = vadd.f32 %v9923, -0.4999988
  %v9925 = vmul.f32 %v9920, %v9924
  %v9926 = vadd.f32 1.0, %v9925
  %v9927 = vmul.f32 %v9918, %v9918
  %v9928 = vmul.f32 %v9927, -0.00019511016
  %v9929 = vadd.f32 %v9928, 0.008332121
  %v9930 = vmul.f32 %v9927, %v9929
  %v9931 = vadd.f32 %v9930, -0.16666654
  %v9932 = vmul.f32 %v9927, %v9931
  %v9933 = vadd.f32 %v9932, 1.0
  %v9934 = vmul.f32 %v9933, %v9918
  %vm9935 = vweird.f32 %v8371
  %v9936 = vadd.s32 %v9919, 3
  %v9937 = vand.u32 %v9936, 3
  %vm9938 = vcmp.lt.s32.totalorder %v9937, 2
  %vm9939 = vcmp.eq.s32.totalorder %v9937, 0
  %v9940 = vxor.u32 %v9934, 2147483648
  %v9941 = vsel %vm9939, %v9926, %v9940
  %vm9942 = vcmp.eq.s32.totalorder %v9937, 2
  %v9943 = vxor.u32 %v9926, 2147483648
  %v9944 = vsel %vm9942, %v9943, %v9934
  %v9945 = vsel %vm9938, %v9941, %v9944
  %v9946 = vsel %vm9935, nan, %v9945
  %v9947 = vand.u32 2147483647, %v8375
  %vm9948 = vcmp.le.f32.partialorder %v9947, 0.7853982
  %vm9949 = vcmp.lt.s32.totalorder %v8375, 0
  %v9950 = vand.u32 %v8375, 2139095040
  %v9951 = vshrl.u32 %v9950, 23
  %v9952 = vsub.s32 %v9951, 127
  %v9953 = vand.u32 2147483647, %v8375
  %v9954 = vand.u32 %v9953, 8388607
  %v9955 = vor.u32 %v9954, 8388608
  %v9956 = vsub.s32 0, %v9955
  %v9957 = vadd.s32 %v9952, 1
  %vm9958 = vcmp.gt.s32.totalorder %v9957, 0
  %v9959 = vsel %vm9958, %v9957, 0
  %v9960 = vshrl.u32 %v9959, 5
  %v9961 = vand.u32 %v9959, 31
  %v9962 = vsub.s32 32, %v9961
  %v9963 = vshrl.u32 683565275, %v9962
  %v9964 = vshll.u32 683565275, %v9961
  %v9965 = vshrl.u32 2475754826, %v9962
  %v9966 = vor.u32 %v9964, %v9965
  %v9967 = vshll.u32 2475754826, %v9961
  %v9968 = vshrl.u32 2131351028, %v9962
  %v9969 = vor.u32 %v9967, %v9968
  %v9970 = vshll.u32 2131351028, %v9961
  %v9971 = vshrl.u32 2102212464, %v9962
  %v9972 = vor.u32 %v9970, %v9971
  %v9973 = vshll.u32 2102212464, %v9961
  %v9974 = vshrl.u32 920167782, %v9962
  %v9975 = vor.u32 %v9973, %v9974
  %v9976 = vshll.u32 920167782, %v9961
  %v9977 = vshrl.u32 1326507024, %v9962
  %v9978 = vor.u32 %v9976, %v9977
  %vm9979 = vcmp.lt.s32.totalorder %v9960, 1
  %vm9980 = vcmp.lt.s32.totalorder %v9960, 2
  %vm9981 = vcmp.lt.s32.totalorder %v9960, 3
  %vm9982 = vcmp.lt.s32.totalorder %v9960, 4
  %v9983 = vsel %vm9979, %v9963, %v9966
  %v9984 = vsel %vm9982, %v9972, 2102212464
  %v9985 = vsel %vm9981, %v9969, %v9984
  %v9986 = vsel %vm9980, %v9983, %v9985
  %v9987 = vsel %vm9979, %v9966, %v9969
  %v9988 = vsel %vm9982, %v9975, 920167782
  %v9989 = vsel %vm9981, %v9972, %v9988
  %v9990 = vsel %vm9980, %v9987, %v9989
  %v9991 = vsel %vm9979, %v9969, %v9972
  %v9992 = vsel %vm9982, %v9978, 1326507024
  %v9993 = vsel %vm9981, %v9975, %v9992
  %v9994 = vsel %vm9980, %v9991, %v9993
  %v9995 = vshll.u32 %v9955, 8
  %v9996 = vand.u32 %v9995, 65535
  %v9997 = vshrl.u32 %v9995, 16
  %v9998 = vand.u32 %v9994, 65535
  %v9999 = vshrl.u32 %v9994, 16
  %v10000 = vmul.u32 %v9996, %v9998
  %v10001 = vmul.u32 %v9996, %v9999
  %v10002 = vmul.u32 %v9997, %v9998
  %v10003 = vmul.u32 %v9997, %v9999
  %v10004 = vshll.u32 %v10001, 16
  %v10005 = vshrl.u32 %v10001, 16
  %v10006 = vshll.u32 %v10002, 16
  %v10007 = vshrl.u32 %v10002, 16
  %vm10008 = vc.u32 %v10000, %v10004
  %v10009 = vsel %vm10008, 1, 0
  %v10010 = vadd.s32 %v10000, %v10004
  %v10011 = vadd.s32 %v10003, %v10009
  %vm10012 = vc.u32 %v10010, %v10006
  %v10013 = vsel %vm10012, 1, 0
  %v10014 = vadd.s32 %v10010, %v10006
  %v10015 = vadd.s32 %v10011, %v10013
  %v10016 = vadd.s32 %v10015, %v10005
  %v10017 = vadd.s32 %v10016, %v10007
  %v10018 = vand.u32 %v9995, 65535
  %v10019 = vshrl.u32 %v9995, 16
  %v10020 = vand.u32 %v9990, 65535
  %v10021 = vshrl.u32 %v9990, 16
  %v10022 = vmul.u32 %v10018, %v10020
  %v10023 = vmul.u32 %v10018, %v10021
  %v10024 = vmul.u32 %v10019, %v10020
  %v10025 = vmul.u32 %v10019, %v10021
  %v10026 = vshll.u32 %v10023, 16
  %v10027 = vshrl.u32 %v10023, 16
  %v10028 = vshll.u32 %v10024, 16
  %v10029 = vshrl.u32 %v10024, 16
  %vm10030 = vc.u32 %v10022, %v10026
  %v10031 = vsel %vm10030, 1, 0
  %v10032 = vadd.s32 %v10022, %v10026
  %v10033 = vadd.s32 %v10025, %v10031
  %vm10034 = vc.u32 %v10032, %v10028
  %v10035 = vsel %vm10034, 1, 0
  %v10036 = vadd.s32 %v10032, %v10028
  %v10037 = vadd.s32 %v10033, %v10035
  %v10038 = vadd.s32 %v10037, %v10027
  %v10039 = vadd.s32 %v10038, %v10029
  %v10040 = vmul.u32 %v9995, %v9986
  %v10041 = vadd.s32 %v10017, %v10036
  %vm10042 = vc.u32 %v10017, %v10036
  %v10043 = vadd.s32 %v10039, 1
  %v10044 = vsel %vm10042, %v10043, %v10039
  %v10045 = vadd.s32 %v10040, %v10044
  %v10046 = vadd.s32 %v10045, 536870912
  %v10047 = vshrl.u32 %v10046, 30
  %v10048 = vshll.u32 %v10047, 30
  %v10049 = vsub.s32 %v10045, %v10048
  %vm10050 = vcmp.lt.s32.totalorder %v10049, 0
  %v10051 = vsub.s32 0, %v10049
  %v10052 = vsel %vm10050, %v10051, %v10049
  %v10053 = vclz %v10052
  %v10054 = vsub.s32 %v10053, 2
  %vm10055 = vcmp.gt.s32.totalorder 0, %v10054
  %v10056 = vsel %vm10055, 0, %v10054
  %v10057 = vsub.s32 32, %v10056
  %v10058 = vshll.u32 %v10049, %v10056
  %v10059 = vshrl.u32 %v10041, %v10057
  %v10060 = vor.u32 %v10058, %v10059
  %v10061 = vsub.s32 4294967266, %v10056
  %v10062 = vadd.s32 %v10061, 127
  %v10063 = vshll.u32 %v10062, 23
  %v10064 = vor.u32 4788187, %v10063
  %v10065 = vand.u32 2147483647, %v10064
  %v10067 = vcvt.s32.f32 %v10060
  %v10068 = vmul.f32 %v10067, %v10065
  %v10069 = vxor.u32 %v10068, 2147483648
  %v10070 = vsel %vm9949, %v10069, %v10068
  %v10071 = vsub.s32 4, %v10047
  %v10072 = vsel %vm9949, %v10071, %v10047
  %v10073 = vsel %vm9948, %v8375, %v10070
  %v10074 = vsel %vm9948, 0, %v10072
  %v10075 = vmul.f32 %v10073, %v10073
  %v10076 = vmul.f32 %v10075, -0.001358992
  %v10077 = vadd.f32 %v10076, 0.041655596
  %v10078 = vmul.f32 %v10075, %v10077
  %v10079 = vadd.f32 %v10078, -0.4999988
  %v10080 = vmul.f32 %v10075, %v10079
  %v10081 = vadd.f32 1.0, %v10080
  %v10082 = vmul.f32 %v10073, %v10073
  %v10083 = vmul.f32 %v10082, -0.00019511016
  %v10084 = vadd.f32 %v10083, 0.008332121
  %v10085 = vmul.f32 %v10082, %v10084
  %v10086 = vadd.f32 %v10085, -0.16666654
  %v10087 = vmul.f32 %v10082, %v10086
  %v10088 = vadd.f32 %v10087, 1.0
  %v10089 = vmul.f32 %v10088, %v10073
  %vm10090 = vweird.f32 %v8375
  %v10091 = vadd.s32 %v10074, 3
  %v10092 = vand.u32 %v10091, 3
  %vm10093 = vcmp.lt.s32.totalorder %v10092, 2
  %vm10094 = vcmp.eq.s32.totalorder %v10092, 0
  %v10095 = vxor.u32 %v10089, 2147483648
  %v10096 = vsel %vm10094, %v10081, %v10095
  %vm10097 = vcmp.eq.s32.totalorder %v10092, 2
  %v10098 = vxor.u32 %v10081, 2147483648
  %v10099 = vsel %vm10097, %v10098, %v10089
  %v10100 = vsel %vm10093, %v10096, %v10099
  %v10101 = vsel %vm10090, nan, %v10100
  %v10102 = vand.u32 2147483647, %v8379
  %vm10103 = vcmp.le.f32.partialorder %v10102, 0.7853982
  %vm10104 = vcmp.lt.s32.totalorder %v8379, 0
  %v10105 = vand.u32 %v8379, 2139095040
  %v10106 = vshrl.u32 %v10105, 23
  %v10107 = vsub.s32 %v10106, 127
  %v10108 = vand.u32 2147483647, %v8379
  %v10109 = vand.u32 %v10108, 8388607
  %v10110 = vor.u32 %v10109, 8388608
  %v10111 = vsub.s32 0, %v10110
  %v10112 = vadd.s32 %v10107, 1
  %vm10113 = vcmp.gt.s32.totalorder %v10112, 0
  %v10114 = vsel %vm10113, %v10112, 0
  %v10115 = vshrl.u32 %v10114, 5
  %v10116 = vand.u32 %v10114, 31
  %v10117 = vsub.s32 32, %v10116
  %v10118 = vshrl.u32 683565275, %v10117
  %v10119 = vshll.u32 683565275, %v10116
  %v10120 = vshrl.u32 2475754826, %v10117
  %v10121 = vor.u32 %v10119, %v10120
  %v10122 = vshll.u32 2475754826, %v10116
  %v10123 = vshrl.u32 2131351028, %v10117
  %v10124 = vor.u32 %v10122, %v10123
  %v10125 = vshll.u32 2131351028, %v10116
  %v10126 = vshrl.u32 2102212464, %v10117
  %v10127 = vor.u32 %v10125, %v10126
  %v10128 = vshll.u32 2102212464, %v10116
  %v10129 = vshrl.u32 920167782, %v10117
  %v10130 = vor.u32 %v10128, %v10129
  %v10131 = vshll.u32 920167782, %v10116
  %v10132 = vshrl.u32 1326507024, %v10117
  %v10133 = vor.u32 %v10131, %v10132
  %vm10134 = vcmp.lt.s32.totalorder %v10115, 1
  %vm10135 = vcmp.lt.s32.totalorder %v10115, 2
  %vm10136 = vcmp.lt.s32.totalorder %v10115, 3
  %vm10137 = vcmp.lt.s32.totalorder %v10115, 4
  %v10138 = vsel %vm10134, %v10118, %v10121
  %v10139 = vsel %vm10137, %v10127, 2102212464
  %v10140 = vsel %vm10136, %v10124, %v10139
  %v10141 = vsel %vm10135, %v10138, %v10140
  %v10142 = vsel %vm10134, %v10121, %v10124
  %v10143 = vsel %vm10137, %v10130, 920167782
  %v10144 = vsel %vm10136, %v10127, %v10143
  %v10145 = vsel %vm10135, %v10142, %v10144
  %v10146 = vsel %vm10134, %v10124, %v10127
  %v10147 = vsel %vm10137, %v10133, 1326507024
  %v10148 = vsel %vm10136, %v10130, %v10147
  %v10149 = vsel %vm10135, %v10146, %v10148
  %v10150 = vshll.u32 %v10110, 8
  %v10151 = vand.u32 %v10150, 65535
  %v10152 = vshrl.u32 %v10150, 16
  %v10153 = vand.u32 %v10149, 65535
  %v10154 = vshrl.u32 %v10149, 16
  %v10155 = vmul.u32 %v10151, %v10153
  %v10156 = vmul.u32 %v10151, %v10154
  %v10157 = vmul.u32 %v10152, %v10153
  %v10158 = vmul.u32 %v10152, %v10154
  %v10159 = vshll.u32 %v10156, 16
  %v10160 = vshrl.u32 %v10156, 16
  %v10161 = vshll.u32 %v10157, 16
  %v10162 = vshrl.u32 %v10157, 16
  %vm10163 = vc.u32 %v10155, %v10159
  %v10164 = vsel %vm10163, 1, 0
  %v10165 = vadd.s32 %v10155, %v10159
  %v10166 = vadd.s32 %v10158, %v10164
  %vm10167 = vc.u32 %v10165, %v10161
  %v10168 = vsel %vm10167, 1, 0
  %v10169 = vadd.s32 %v10165, %v10161
  %v10170 = vadd.s32 %v10166, %v10168
  %v10171 = vadd.s32 %v10170, %v10160
  %v10172 = vadd.s32 %v10171, %v10162
  %v10173 = vand.u32 %v10150, 65535
  %v10174 = vshrl.u32 %v10150, 16
  %v10175 = vand.u32 %v10145, 65535
  %v10176 = vshrl.u32 %v10145, 16
  %v10177 = vmul.u32 %v10173, %v10175
  %v10178 = vmul.u32 %v10173, %v10176
  %v10179 = vmul.u32 %v10174, %v10175
  %v10180 = vmul.u32 %v10174, %v10176
  %v10181 = vshll.u32 %v10178, 16
  %v10182 = vshrl.u32 %v10178, 16
  %v10183 = vshll.u32 %v10179, 16
  %v10184 = vshrl.u32 %v10179, 16
  %vm10185 = vc.u32 %v10177, %v10181
  %v10186 = vsel %vm10185, 1, 0
  %v10187 = vadd.s32 %v10177, %v10181
  %v10188 = vadd.s32 %v10180, %v10186
  %vm10189 = vc.u32 %v10187, %v10183
  %v10190 = vsel %vm10189, 1, 0
  %v10191 = vadd.s32 %v10187, %v10183
  %v10192 = vadd.s32 %v10188, %v10190
  %v10193 = vadd.s32 %v10192, %v10182
  %v10194 = vadd.s32 %v10193, %v10184
  %v10195 = vmul.u32 %v10150, %v10141
  %v10196 = vadd.s32 %v10172, %v10191
  %vm10197 = vc.u32 %v10172, %v10191
  %v10198 = vadd.s32 %v10194, 1
  %v10199 = vsel %vm10197, %v10198, %v10194
  %v10200 = vadd.s32 %v10195, %v10199
  %v10201 = vadd.s32 %v10200, 536870912
  %v10202 = vshrl.u32 %v10201, 30
  %v10203 = vshll.u32 %v10202, 30
  %v10204 = vsub.s32 %v10200, %v10203
  %vm10205 = vcmp.lt.s32.totalorder %v10204, 0
  %v10206 = vsub.s32 0, %v10204
  %v10207 = vsel %vm10205, %v10206, %v10204
  %v10208 = vclz %v10207
  %v10209 = vsub.s32 %v10208, 2
  %vm10210 = vcmp.gt.s32.totalorder 0, %v10209
  %v10211 = vsel %vm10210, 0, %v10209
  %v10212 = vsub.s32 32, %v10211
  %v10213 = vshll.u32 %v10204, %v10211
  %v10214 = vshrl.u32 %v10196, %v10212
  %v10215 = vor.u32 %v10213, %v10214
  %v10216 = vsub.s32 4294967266, %v10211
  %v10217 = vadd.s32 %v10216, 127
  %v10218 = vshll.u32 %v10217, 23
  %v10219 = vor.u32 4788187, %v10218
  %v10220 = vand.u32 2147483647, %v10219
  %v10222 = vcvt.s32.f32 %v10215
  %v10223 = vmul.f32 %v10222, %v10220
  %v10224 = vxor.u32 %v10223, 2147483648
  %v10225 = vsel %vm10104, %v10224, %v10223
  %v10226 = vsub.s32 4, %v10202
  %v10227 = vsel %vm10104, %v10226, %v10202
  %v10228 = vsel %vm10103, %v8379, %v10225
  %v10229 = vsel %vm10103, 0, %v10227
  %v10230 = vmul.f32 %v10228, %v10228
  %v10231 = vmul.f32 %v10230, -0.001358992
  %v10232 = vadd.f32 %v10231, 0.041655596
  %v10233 = vmul.f32 %v10230, %v10232
  %v10234 = vadd.f32 %v10233, -0.4999988
  %v10235 = vmul.f32 %v10230, %v10234
  %v10236 = vadd.f32 1.0, %v10235
  %v10237 = vmul.f32 %v10228, %v10228
  %v10238 = vmul.f32 %v10237, -0.00019511016
  %v10239 = vadd.f32 %v10238, 0.008332121
  %v10240 = vmul.f32 %v10237, %v10239
  %v10241 = vadd.f32 %v10240, -0.16666654
  %v10242 = vmul.f32 %v10237, %v10241
  %v10243 = vadd.f32 %v10242, 1.0
  %v10244 = vmul.f32 %v10243, %v10228
  %vm10245 = vweird.f32 %v8379
  %v10246 = vadd.s32 %v10229, 3
  %v10247 = vand.u32 %v10246, 3
  %vm10248 = vcmp.lt.s32.totalorder %v10247, 2
  %vm10249 = vcmp.eq.s32.totalorder %v10247, 0
  %v10250 = vxor.u32 %v10244, 2147483648
  %v10251 = vsel %vm10249, %v10236, %v10250
  %vm10252 = vcmp.eq.s32.totalorder %v10247, 2
  %v10253 = vxor.u32 %v10236, 2147483648
  %v10254 = vsel %vm10252, %v10253, %v10244
  %v10255 = vsel %vm10248, %v10251, %v10254
  %v10256 = vsel %vm10245, nan, %v10255
  %v10257 = vand.u32 2147483647, %v8383
  %vm10258 = vcmp.le.f32.partialorder %v10257, 0.7853982
  %vm10259 = vcmp.lt.s32.totalorder %v8383, 0
  %v10260 = vand.u32 %v8383, 2139095040
  %v10261 = vshrl.u32 %v10260, 23
  %v10262 = vsub.s32 %v10261, 127
  %v10263 = vand.u32 2147483647, %v8383
  %v10264 = vand.u32 %v10263, 8388607
  %v10265 = vor.u32 %v10264, 8388608
  %v10266 = vsub.s32 0, %v10265
  %v10267 = vadd.s32 %v10262, 1
  %vm10268 = vcmp.gt.s32.totalorder %v10267, 0
  %v10269 = vsel %vm10268, %v10267, 0
  %v10270 = vshrl.u32 %v10269, 5
  %v10271 = vand.u32 %v10269, 31
  %v10272 = vsub.s32 32, %v10271
  %v10273 = vshrl.u32 683565275, %v10272
  %v10274 = vshll.u32 683565275, %v10271
  %v10275 = vshrl.u32 2475754826, %v10272
  %v10276 = vor.u32 %v10274, %v10275
  %v10277 = vshll.u32 2475754826, %v10271
  %v10278 = vshrl.u32 2131351028, %v10272
  %v10279 = vor.u32 %v10277, %v10278
  %v10280 = vshll.u32 2131351028, %v10271
  %v10281 = vshrl.u32 2102212464, %v10272
  %v10282 = vor.u32 %v10280, %v10281
  %v10283 = vshll.u32 2102212464, %v10271
  %v10284 = vshrl.u32 920167782, %v10272
  %v10285 = vor.u32 %v10283, %v10284
  %v10286 = vshll.u32 920167782, %v10271
  %v10287 = vshrl.u32 1326507024, %v10272
  %v10288 = vor.u32 %v10286, %v10287
  %vm10289 = vcmp.lt.s32.totalorder %v10270, 1
  %vm10290 = vcmp.lt.s32.totalorder %v10270, 2
  %vm10291 = vcmp.lt.s32.totalorder %v10270, 3
  %vm10292 = vcmp.lt.s32.totalorder %v10270, 4
  %v10293 = vsel %vm10289, %v10273, %v10276
  %v10294 = vsel %vm10292, %v10282, 2102212464
  %v10295 = vsel %vm10291, %v10279, %v10294
  %v10296 = vsel %vm10290, %v10293, %v10295
  %v10297 = vsel %vm10289, %v10276, %v10279
  %v10298 = vsel %vm10292, %v10285, 920167782
  %v10299 = vsel %vm10291, %v10282, %v10298
  %v10300 = vsel %vm10290, %v10297, %v10299
  %v10301 = vsel %vm10289, %v10279, %v10282
  %v10302 = vsel %vm10292, %v10288, 1326507024
  %v10303 = vsel %vm10291, %v10285, %v10302
  %v10304 = vsel %vm10290, %v10301, %v10303
  %v10305 = vshll.u32 %v10265, 8
  %v10306 = vand.u32 %v10305, 65535
  %v10307 = vshrl.u32 %v10305, 16
  %v10308 = vand.u32 %v10304, 65535
  %v10309 = vshrl.u32 %v10304, 16
  %v10310 = vmul.u32 %v10306, %v10308
  %v10311 = vmul.u32 %v10306, %v10309
  %v10312 = vmul.u32 %v10307, %v10308
  %v10313 = vmul.u32 %v10307, %v10309
  %v10314 = vshll.u32 %v10311, 16
  %v10315 = vshrl.u32 %v10311, 16
  %v10316 = vshll.u32 %v10312, 16
  %v10317 = vshrl.u32 %v10312, 16
  %vm10318 = vc.u32 %v10310, %v10314
  %v10319 = vsel %vm10318, 1, 0
  %v10320 = vadd.s32 %v10310, %v10314
  %v10321 = vadd.s32 %v10313, %v10319
  %vm10322 = vc.u32 %v10320, %v10316
  %v10323 = vsel %vm10322, 1, 0
  %v10324 = vadd.s32 %v10320, %v10316
  %v10325 = vadd.s32 %v10321, %v10323
  %v10326 = vadd.s32 %v10325, %v10315
  %v10327 = vadd.s32 %v10326, %v10317
  %v10328 = vand.u32 %v10305, 65535
  %v10329 = vshrl.u32 %v10305, 16
  %v10330 = vand.u32 %v10300, 65535
  %v10331 = vshrl.u32 %v10300, 16
  %v10332 = vmul.u32 %v10328, %v10330
  %v10333 = vmul.u32 %v10328, %v10331
  %v10334 = vmul.u32 %v10329, %v10330
  %v10335 = vmul.u32 %v10329, %v10331
  %v10336 = vshll.u32 %v10333, 16
  %v10337 = vshrl.u32 %v10333, 16
  %v10338 = vshll.u32 %v10334, 16
  %v10339 = vshrl.u32 %v10334, 16
  %vm10340 = vc.u32 %v10332, %v10336
  %v10341 = vsel %vm10340, 1, 0
  %v10342 = vadd.s32 %v10332, %v10336
  %v10343 = vadd.s32 %v10335, %v10341
  %vm10344 = vc.u32 %v10342, %v10338
  %v10345 = vsel %vm10344, 1, 0
  %v10346 = vadd.s32 %v10342, %v10338
  %v10347 = vadd.s32 %v10343, %v10345
  %v10348 = vadd.s32 %v10347, %v10337
  %v10349 = vadd.s32 %v10348, %v10339
  %v10350 = vmul.u32 %v10305, %v10296
  %v10351 = vadd.s32 %v10327, %v10346
  %vm10352 = vc.u32 %v10327, %v10346
  %v10353 = vadd.s32 %v10349, 1
  %v10354 = vsel %vm10352, %v10353, %v10349
  %v10355 = vadd.s32 %v10350, %v10354
  %v10356 = vadd.s32 %v10355, 536870912
  %v10357 = vshrl.u32 %v10356, 30
  %v10358 = vshll.u32 %v10357, 30
  %v10359 = vsub.s32 %v10355, %v10358
  %vm10360 = vcmp.lt.s32.totalorder %v10359, 0
  %v10361 = vsub.s32 0, %v10359
  %v10362 = vsel %vm10360, %v10361, %v10359
  %v10363 = vclz %v10362
  %v10364 = vsub.s32 %v10363, 2
  %vm10365 = vcmp.gt.s32.totalorder 0, %v10364
  %v10366 = vsel %vm10365, 0, %v10364
  %v10367 = vsub.s32 32, %v10366
  %v10368 = vshll.u32 %v10359, %v10366
  %v10369 = vshrl.u32 %v10351, %v10367
  %v10370 = vor.u32 %v10368, %v10369
  %v10371 = vsub.s32 4294967266, %v10366
  %v10372 = vadd.s32 %v10371, 127
  %v10373 = vshll.u32 %v10372, 23
  %v10374 = vor.u32 4788187, %v10373
  %v10375 = vand.u32 2147483647, %v10374
  %v10377 = vcvt.s32.f32 %v10370
  %v10378 = vmul.f32 %v10377, %v10375
  %v10379 = vxor.u32 %v10378, 2147483648
  %v10380 = vsel %vm10259, %v10379, %v10378
  %v10381 = vsub.s32 4, %v10357
  %v10382 = vsel %vm10259, %v10381, %v10357
  %v10383 = vsel %vm10258, %v8383, %v10380
  %v10384 = vsel %vm10258, 0, %v10382
  %v10385 = vmul.f32 %v10383, %v10383
  %v10386 = vmul.f32 %v10385, -0.001358992
  %v10387 = vadd.f32 %v10386, 0.041655596
  %v10388 = vmul.f32 %v10385, %v10387
  %v10389 = vadd.f32 %v10388, -0.4999988
  %v10390 = vmul.f32 %v10385, %v10389
  %v10391 = vadd.f32 1.0, %v10390
  %v10392 = vmul.f32 %v10383, %v10383
  %v10393 = vmul.f32 %v10392, -0.00019511016
  %v10394 = vadd.f32 %v10393, 0.008332121
  %v10395 = vmul.f32 %v10392, %v10394
  %v10396 = vadd.f32 %v10395, -0.16666654
  %v10397 = vmul.f32 %v10392, %v10396
  %v10398 = vadd.f32 %v10397, 1.0
  %v10399 = vmul.f32 %v10398, %v10383
  %vm10400 = vweird.f32 %v8383
  %v10401 = vadd.s32 %v10384, 3
  %v10402 = vand.u32 %v10401, 3
  %vm10403 = vcmp.lt.s32.totalorder %v10402, 2
  %vm10404 = vcmp.eq.s32.totalorder %v10402, 0
  %v10405 = vxor.u32 %v10399, 2147483648
  %v10406 = vsel %vm10404, %v10391, %v10405
  %vm10407 = vcmp.eq.s32.totalorder %v10402, 2
  %v10408 = vxor.u32 %v10391, 2147483648
  %v10409 = vsel %vm10407, %v10408, %v10399
  %v10410 = vsel %vm10403, %v10406, %v10409
  %v10411 = vsel %vm10400, nan, %v10410
  %v10412 = vand.u32 2147483647, %v8387
  %vm10413 = vcmp.le.f32.partialorder %v10412, 0.7853982
  %vm10414 = vcmp.lt.s32.totalorder %v8387, 0
  %v10415 = vand.u32 %v8387, 2139095040
  %v10416 = vshrl.u32 %v10415, 23
  %v10417 = vsub.s32 %v10416, 127
  %v10418 = vand.u32 2147483647, %v8387
  %v10419 = vand.u32 %v10418, 8388607
  %v10420 = vor.u32 %v10419, 8388608
  %v10421 = vsub.s32 0, %v10420
  %v10422 = vadd.s32 %v10417, 1
  %vm10423 = vcmp.gt.s32.totalorder %v10422, 0
  %v10424 = vsel %vm10423, %v10422, 0
  %v10425 = vshrl.u32 %v10424, 5
  %v10426 = vand.u32 %v10424, 31
  %v10427 = vsub.s32 32, %v10426
  %v10428 = vshrl.u32 683565275, %v10427
  %v10429 = vshll.u32 683565275, %v10426
  %v10430 = vshrl.u32 2475754826, %v10427
  %v10431 = vor.u32 %v10429, %v10430
  %v10432 = vshll.u32 2475754826, %v10426
  %v10433 = vshrl.u32 2131351028, %v10427
  %v10434 = vor.u32 %v10432, %v10433
  %v10435 = vshll.u32 2131351028, %v10426
  %v10436 = vshrl.u32 2102212464, %v10427
  %v10437 = vor.u32 %v10435, %v10436
  %v10438 = vshll.u32 2102212464, %v10426
  %v10439 = vshrl.u32 920167782, %v10427
  %v10440 = vor.u32 %v10438, %v10439
  %v10441 = vshll.u32 920167782, %v10426
  %v10442 = vshrl.u32 1326507024, %v10427
  %v10443 = vor.u32 %v10441, %v10442
  %vm10444 = vcmp.lt.s32.totalorder %v10425, 1
  %vm10445 = vcmp.lt.s32.totalorder %v10425, 2
  %vm10446 = vcmp.lt.s32.totalorder %v10425, 3
  %vm10447 = vcmp.lt.s32.totalorder %v10425, 4
  %v10448 = vsel %vm10444, %v10428, %v10431
  %v10449 = vsel %vm10447, %v10437, 2102212464
  %v10450 = vsel %vm10446, %v10434, %v10449
  %v10451 = vsel %vm10445, %v10448, %v10450
  %v10452 = vsel %vm10444, %v10431, %v10434
  %v10453 = vsel %vm10447, %v10440, 920167782
  %v10454 = vsel %vm10446, %v10437, %v10453
  %v10455 = vsel %vm10445, %v10452, %v10454
  %v10456 = vsel %vm10444, %v10434, %v10437
  %v10457 = vsel %vm10447, %v10443, 1326507024
  %v10458 = vsel %vm10446, %v10440, %v10457
  %v10459 = vsel %vm10445, %v10456, %v10458
  %v10460 = vshll.u32 %v10420, 8
  %v10461 = vand.u32 %v10460, 65535
  %v10462 = vshrl.u32 %v10460, 16
  %v10463 = vand.u32 %v10459, 65535
  %v10464 = vshrl.u32 %v10459, 16
  %v10465 = vmul.u32 %v10461, %v10463
  %v10466 = vmul.u32 %v10461, %v10464
  %v10467 = vmul.u32 %v10462, %v10463
  %v10468 = vmul.u32 %v10462, %v10464
  %v10469 = vshll.u32 %v10466, 16
  %v10470 = vshrl.u32 %v10466, 16
  %v10471 = vshll.u32 %v10467, 16
  %v10472 = vshrl.u32 %v10467, 16
  %vm10473 = vc.u32 %v10465, %v10469
  %v10474 = vsel %vm10473, 1, 0
  %v10475 = vadd.s32 %v10465, %v10469
  %v10476 = vadd.s32 %v10468, %v10474
  %vm10477 = vc.u32 %v10475, %v10471
  %v10478 = vsel %vm10477, 1, 0
  %v10479 = vadd.s32 %v10475, %v10471
  %v10480 = vadd.s32 %v10476, %v10478
  %v10481 = vadd.s32 %v10480, %v10470
  %v10482 = vadd.s32 %v10481, %v10472
  %v10483 = vand.u32 %v10460, 65535
  %v10484 = vshrl.u32 %v10460, 16
  %v10485 = vand.u32 %v10455, 65535
  %v10486 = vshrl.u32 %v10455, 16
  %v10487 = vmul.u32 %v10483, %v10485
  %v10488 = vmul.u32 %v10483, %v10486
  %v10489 = vmul.u32 %v10484, %v10485
  %v10490 = vmul.u32 %v10484, %v10486
  %v10491 = vshll.u32 %v10488, 16
  %v10492 = vshrl.u32 %v10488, 16
  %v10493 = vshll.u32 %v10489, 16
  %v10494 = vshrl.u32 %v10489, 16
  %vm10495 = vc.u32 %v10487, %v10491
  %v10496 = vsel %vm10495, 1, 0
  %v10497 = vadd.s32 %v10487, %v10491
  %v10498 = vadd.s32 %v10490, %v10496
  %vm10499 = vc.u32 %v10497, %v10493
  %v10500 = vsel %vm10499, 1, 0
  %v10501 = vadd.s32 %v10497, %v10493
  %v10502 = vadd.s32 %v10498, %v10500
  %v10503 = vadd.s32 %v10502, %v10492
  %v10504 = vadd.s32 %v10503, %v10494
  %v10505 = vmul.u32 %v10460, %v10451
  %v10506 = vadd.s32 %v10482, %v10501
  %vm10507 = vc.u32 %v10482, %v10501
  %v10508 = vadd.s32 %v10504, 1
  %v10509 = vsel %vm10507, %v10508, %v10504
  %v10510 = vadd.s32 %v10505, %v10509
  %v10511 = vadd.s32 %v10510, 536870912
  %v10512 = vshrl.u32 %v10511, 30
  %v10513 = vshll.u32 %v10512, 30
  %v10514 = vsub.s32 %v10510, %v10513
  %vm10515 = vcmp.lt.s32.totalorder %v10514, 0
  %v10516 = vsub.s32 0, %v10514
  %v10517 = vsel %vm10515, %v10516, %v10514
  %v10518 = vclz %v10517
  %v10519 = vsub.s32 %v10518, 2
  %vm10520 = vcmp.gt.s32.totalorder 0, %v10519
  %v10521 = vsel %vm10520, 0, %v10519
  %v10522 = vsub.s32 32, %v10521
  %v10523 = vshll.u32 %v10514, %v10521
  %v10524 = vshrl.u32 %v10506, %v10522
  %v10525 = vor.u32 %v10523, %v10524
  %v10526 = vsub.s32 4294967266, %v10521
  %v10527 = vadd.s32 %v10526, 127
  %v10528 = vshll.u32 %v10527, 23
  %v10529 = vor.u32 4788187, %v10528
  %v10530 = vand.u32 2147483647, %v10529
  %v10532 = vcvt.s32.f32 %v10525
  %v10533 = vmul.f32 %v10532, %v10530
  %v10534 = vxor.u32 %v10533, 2147483648
  %v10535 = vsel %vm10414, %v10534, %v10533
  %v10536 = vsub.s32 4, %v10512
  %v10537 = vsel %vm10414, %v10536, %v10512
  %v10538 = vsel %vm10413, %v8387, %v10535
  %v10539 = vsel %vm10413, 0, %v10537
  %v10540 = vmul.f32 %v10538, %v10538
  %v10541 = vmul.f32 %v10540, -0.001358992
  %v10542 = vadd.f32 %v10541, 0.041655596
  %v10543 = vmul.f32 %v10540, %v10542
  %v10544 = vadd.f32 %v10543, -0.4999988
  %v10545 = vmul.f32 %v10540, %v10544
  %v10546 = vadd.f32 1.0, %v10545
  %v10547 = vmul.f32 %v10538, %v10538
  %v10548 = vmul.f32 %v10547, -0.00019511016
  %v10549 = vadd.f32 %v10548, 0.008332121
  %v10550 = vmul.f32 %v10547, %v10549
  %v10551 = vadd.f32 %v10550, -0.16666654
  %v10552 = vmul.f32 %v10547, %v10551
  %v10553 = vadd.f32 %v10552, 1.0
  %v10554 = vmul.f32 %v10553, %v10538
  %vm10555 = vweird.f32 %v8387
  %v10556 = vadd.s32 %v10539, 3
  %v10557 = vand.u32 %v10556, 3
  %vm10558 = vcmp.lt.s32.totalorder %v10557, 2
  %vm10559 = vcmp.eq.s32.totalorder %v10557, 0
  %v10560 = vxor.u32 %v10554, 2147483648
  %v10561 = vsel %vm10559, %v10546, %v10560
  %vm10562 = vcmp.eq.s32.totalorder %v10557, 2
  %v10563 = vxor.u32 %v10546, 2147483648
  %v10564 = vsel %vm10562, %v10563, %v10554
  %v10565 = vsel %vm10558, %v10561, %v10564
  %v10566 = vsel %vm10555, nan, %v10565
  %v10567 = vand.u32 2147483647, %v8391
  %vm10568 = vcmp.le.f32.partialorder %v10567, 0.7853982
  %vm10569 = vcmp.lt.s32.totalorder %v8391, 0
  %v10570 = vand.u32 %v8391, 2139095040
  %v10571 = vshrl.u32 %v10570, 23
  %v10572 = vsub.s32 %v10571, 127
  %v10573 = vand.u32 2147483647, %v8391
  %v10574 = vand.u32 %v10573, 8388607
  %v10575 = vor.u32 %v10574, 8388608
  %v10576 = vsub.s32 0, %v10575
  %v10577 = vadd.s32 %v10572, 1
  %vm10578 = vcmp.gt.s32.totalorder %v10577, 0
  %v10579 = vsel %vm10578, %v10577, 0
  %v10580 = vshrl.u32 %v10579, 5
  %v10581 = vand.u32 %v10579, 31
  %v10582 = vsub.s32 32, %v10581
  %v10583 = vshrl.u32 683565275, %v10582
  %v10584 = vshll.u32 683565275, %v10581
  %v10585 = vshrl.u32 2475754826, %v10582
  %v10586 = vor.u32 %v10584, %v10585
  %v10587 = vshll.u32 2475754826, %v10581
  %v10588 = vshrl.u32 2131351028, %v10582
  %v10589 = vor.u32 %v10587, %v10588
  %v10590 = vshll.u32 2131351028, %v10581
  %v10591 = vshrl.u32 2102212464, %v10582
  %v10592 = vor.u32 %v10590, %v10591
  %v10593 = vshll.u32 2102212464, %v10581
  %v10594 = vshrl.u32 920167782, %v10582
  %v10595 = vor.u32 %v10593, %v10594
  %v10596 = vshll.u32 920167782, %v10581
  %v10597 = vshrl.u32 1326507024, %v10582
  %v10598 = vor.u32 %v10596, %v10597
  %vm10599 = vcmp.lt.s32.totalorder %v10580, 1
  %vm10600 = vcmp.lt.s32.totalorder %v10580, 2
  %vm10601 = vcmp.lt.s32.totalorder %v10580, 3
  %vm10602 = vcmp.lt.s32.totalorder %v10580, 4
  %v10603 = vsel %vm10599, %v10583, %v10586
  %v10604 = vsel %vm10602, %v10592, 2102212464
  %v10605 = vsel %vm10601, %v10589, %v10604
  %v10606 = vsel %vm10600, %v10603, %v10605
  %v10607 = vsel %vm10599, %v10586, %v10589
  %v10608 = vsel %vm10602, %v10595, 920167782
  %v10609 = vsel %vm10601, %v10592, %v10608
  %v10610 = vsel %vm10600, %v10607, %v10609
  %v10611 = vsel %vm10599, %v10589, %v10592
  %v10612 = vsel %vm10602, %v10598, 1326507024
  %v10613 = vsel %vm10601, %v10595, %v10612
  %v10614 = vsel %vm10600, %v10611, %v10613
  %v10615 = vshll.u32 %v10575, 8
  %v10616 = vand.u32 %v10615, 65535
  %v10617 = vshrl.u32 %v10615, 16
  %v10618 = vand.u32 %v10614, 65535
  %v10619 = vshrl.u32 %v10614, 16
  %v10620 = vmul.u32 %v10616, %v10618
  %v10621 = vmul.u32 %v10616, %v10619
  %v10622 = vmul.u32 %v10617, %v10618
  %v10623 = vmul.u32 %v10617, %v10619
  %v10624 = vshll.u32 %v10621, 16
  %v10625 = vshrl.u32 %v10621, 16
  %v10626 = vshll.u32 %v10622, 16
  %v10627 = vshrl.u32 %v10622, 16
  %vm10628 = vc.u32 %v10620, %v10624
  %v10629 = vsel %vm10628, 1, 0
  %v10630 = vadd.s32 %v10620, %v10624
  %v10631 = vadd.s32 %v10623, %v10629
  %vm10632 = vc.u32 %v10630, %v10626
  %v10633 = vsel %vm10632, 1, 0
  %v10634 = vadd.s32 %v10630, %v10626
  %v10635 = vadd.s32 %v10631, %v10633
  %v10636 = vadd.s32 %v10635, %v10625
  %v10637 = vadd.s32 %v10636, %v10627
  %v10638 = vand.u32 %v10615, 65535
  %v10639 = vshrl.u32 %v10615, 16
  %v10640 = vand.u32 %v10610, 65535
  %v10641 = vshrl.u32 %v10610, 16
  %v10642 = vmul.u32 %v10638, %v10640
  %v10643 = vmul.u32 %v10638, %v10641
  %v10644 = vmul.u32 %v10639, %v10640
  %v10645 = vmul.u32 %v10639, %v10641
  %v10646 = vshll.u32 %v10643, 16
  %v10647 = vshrl.u32 %v10643, 16
  %v10648 = vshll.u32 %v10644, 16
  %v10649 = vshrl.u32 %v10644, 16
  %vm10650 = vc.u32 %v10642, %v10646
  %v10651 = vsel %vm10650, 1, 0
  %v10652 = vadd.s32 %v10642, %v10646
  %v10653 = vadd.s32 %v10645, %v10651
  %vm10654 = vc.u32 %v10652, %v10648
  %v10655 = vsel %vm10654, 1, 0
  %v10656 = vadd.s32 %v10652, %v10648
  %v10657 = vadd.s32 %v10653, %v10655
  %v10658 = vadd.s32 %v10657, %v10647
  %v10659 = vadd.s32 %v10658, %v10649
  %v10660 = vmul.u32 %v10615, %v10606
  %v10661 = vadd.s32 %v10637, %v10656
  %vm10662 = vc.u32 %v10637, %v10656
  %v10663 = vadd.s32 %v10659, 1
  %v10664 = vsel %vm10662, %v10663, %v10659
  %v10665 = vadd.s32 %v10660, %v10664
  %v10666 = vadd.s32 %v10665, 536870912
  %v10667 = vshrl.u32 %v10666, 30
  %v10668 = vshll.u32 %v10667, 30
  %v10669 = vsub.s32 %v10665, %v10668
  %vm10670 = vcmp.lt.s32.totalorder %v10669, 0
  %v10671 = vsub.s32 0, %v10669
  %v10672 = vsel %vm10670, %v10671, %v10669
  %v10673 = vclz %v10672
  %v10674 = vsub.s32 %v10673, 2
  %vm10675 = vcmp.gt.s32.totalorder 0, %v10674
  %v10676 = vsel %vm10675, 0, %v10674
  %v10677 = vsub.s32 32, %v10676
  %v10678 = vshll.u32 %v10669, %v10676
  %v10679 = vshrl.u32 %v10661, %v10677
  %v10680 = vor.u32 %v10678, %v10679
  %v10681 = vsub.s32 4294967266, %v10676
  %v10682 = vadd.s32 %v10681, 127
  %v10683 = vshll.u32 %v10682, 23
  %v10684 = vor.u32 4788187, %v10683
  %v10685 = vand.u32 2147483647, %v10684
  %v10687 = vcvt.s32.f32 %v10680
  %v10688 = vmul.f32 %v10687, %v10685
  %v10689 = vxor.u32 %v10688, 2147483648
  %v10690 = vsel %vm10569, %v10689, %v10688
  %v10691 = vsub.s32 4, %v10667
  %v10692 = vsel %vm10569, %v10691, %v10667
  %v10693 = vsel %vm10568, %v8391, %v10690
  %v10694 = vsel %vm10568, 0, %v10692
  %v10695 = vmul.f32 %v10693, %v10693
  %v10696 = vmul.f32 %v10695, -0.001358992
  %v10697 = vadd.f32 %v10696, 0.041655596
  %v10698 = vmul.f32 %v10695, %v10697
  %v10699 = vadd.f32 %v10698, -0.4999988
  %v10700 = vmul.f32 %v10695, %v10699
  %v10701 = vadd.f32 1.0, %v10700
  %v10702 = vmul.f32 %v10693, %v10693
  %v10703 = vmul.f32 %v10702, -0.00019511016
  %v10704 = vadd.f32 %v10703, 0.008332121
  %v10705 = vmul.f32 %v10702, %v10704
  %v10706 = vadd.f32 %v10705, -0.16666654
  %v10707 = vmul.f32 %v10702, %v10706
  %v10708 = vadd.f32 %v10707, 1.0
  %v10709 = vmul.f32 %v10708, %v10693
  %vm10710 = vweird.f32 %v8391
  %v10711 = vadd.s32 %v10694, 3
  %v10712 = vand.u32 %v10711, 3
  %vm10713 = vcmp.lt.s32.totalorder %v10712, 2
  %vm10714 = vcmp.eq.s32.totalorder %v10712, 0
  %v10715 = vxor.u32 %v10709, 2147483648
  %v10716 = vsel %vm10714, %v10701, %v10715
  %vm10717 = vcmp.eq.s32.totalorder %v10712, 2
  %v10718 = vxor.u32 %v10701, 2147483648
  %v10719 = vsel %vm10717, %v10718, %v10709
  %v10720 = vsel %vm10713, %v10716, %v10719
  %v10721 = vsel %vm10710, nan, %v10720
  %v10722 = vand.u32 2147483647, %v8395
  %vm10723 = vcmp.le.f32.partialorder %v10722, 0.7853982
  %vm10724 = vcmp.lt.s32.totalorder %v8395, 0
  %v10725 = vand.u32 %v8395, 2139095040
  %v10726 = vshrl.u32 %v10725, 23
  %v10727 = vsub.s32 %v10726, 127
  %v10728 = vand.u32 2147483647, %v8395
  %v10729 = vand.u32 %v10728, 8388607
  %v10730 = vor.u32 %v10729, 8388608
  %v10731 = vsub.s32 0, %v10730
  %v10732 = vadd.s32 %v10727, 1
  %vm10733 = vcmp.gt.s32.totalorder %v10732, 0
  %v10734 = vsel %vm10733, %v10732, 0
  %v10735 = vshrl.u32 %v10734, 5
  %v10736 = vand.u32 %v10734, 31
  %v10737 = vsub.s32 32, %v10736
  %v10738 = vshrl.u32 683565275, %v10737
  %v10739 = vshll.u32 683565275, %v10736
  %v10740 = vshrl.u32 2475754826, %v10737
  %v10741 = vor.u32 %v10739, %v10740
  %v10742 = vshll.u32 2475754826, %v10736
  %v10743 = vshrl.u32 2131351028, %v10737
  %v10744 = vor.u32 %v10742, %v10743
  %v10745 = vshll.u32 2131351028, %v10736
  %v10746 = vshrl.u32 2102212464, %v10737
  %v10747 = vor.u32 %v10745, %v10746
  %v10748 = vshll.u32 2102212464, %v10736
  %v10749 = vshrl.u32 920167782, %v10737
  %v10750 = vor.u32 %v10748, %v10749
  %v10751 = vshll.u32 920167782, %v10736
  %v10752 = vshrl.u32 1326507024, %v10737
  %v10753 = vor.u32 %v10751, %v10752
  %vm10754 = vcmp.lt.s32.totalorder %v10735, 1
  %vm10755 = vcmp.lt.s32.totalorder %v10735, 2
  %vm10756 = vcmp.lt.s32.totalorder %v10735, 3
  %vm10757 = vcmp.lt.s32.totalorder %v10735, 4
  %v10758 = vsel %vm10754, %v10738, %v10741
  %v10759 = vsel %vm10757, %v10747, 2102212464
  %v10760 = vsel %vm10756, %v10744, %v10759
  %v10761 = vsel %vm10755, %v10758, %v10760
  %v10762 = vsel %vm10754, %v10741, %v10744
  %v10763 = vsel %vm10757, %v10750, 920167782
  %v10764 = vsel %vm10756, %v10747, %v10763
  %v10765 = vsel %vm10755, %v10762, %v10764
  %v10766 = vsel %vm10754, %v10744, %v10747
  %v10767 = vsel %vm10757, %v10753, 1326507024
  %v10768 = vsel %vm10756, %v10750, %v10767
  %v10769 = vsel %vm10755, %v10766, %v10768
  %v10770 = vshll.u32 %v10730, 8
  %v10771 = vand.u32 %v10770, 65535
  %v10772 = vshrl.u32 %v10770, 16
  %v10773 = vand.u32 %v10769, 65535
  %v10774 = vshrl.u32 %v10769, 16
  %v10775 = vmul.u32 %v10771, %v10773
  %v10776 = vmul.u32 %v10771, %v10774
  %v10777 = vmul.u32 %v10772, %v10773
  %v10778 = vmul.u32 %v10772, %v10774
  %v10779 = vshll.u32 %v10776, 16
  %v10780 = vshrl.u32 %v10776, 16
  %v10781 = vshll.u32 %v10777, 16
  %v10782 = vshrl.u32 %v10777, 16
  %vm10783 = vc.u32 %v10775, %v10779
  %v10784 = vsel %vm10783, 1, 0
  %v10785 = vadd.s32 %v10775, %v10779
  %v10786 = vadd.s32 %v10778, %v10784
  %vm10787 = vc.u32 %v10785, %v10781
  %v10788 = vsel %vm10787, 1, 0
  %v10789 = vadd.s32 %v10785, %v10781
  %v10790 = vadd.s32 %v10786, %v10788
  %v10791 = vadd.s32 %v10790, %v10780
  %v10792 = vadd.s32 %v10791, %v10782
  %v10793 = vand.u32 %v10770, 65535
  %v10794 = vshrl.u32 %v10770, 16
  %v10795 = vand.u32 %v10765, 65535
  %v10796 = vshrl.u32 %v10765, 16
  %v10797 = vmul.u32 %v10793, %v10795
  %v10798 = vmul.u32 %v10793, %v10796
  %v10799 = vmul.u32 %v10794, %v10795
  %v10800 = vmul.u32 %v10794, %v10796
  %v10801 = vshll.u32 %v10798, 16
  %v10802 = vshrl.u32 %v10798, 16
  %v10803 = vshll.u32 %v10799, 16
  %v10804 = vshrl.u32 %v10799, 16
  %vm10805 = vc.u32 %v10797, %v10801
  %v10806 = vsel %vm10805, 1, 0
  %v10807 = vadd.s32 %v10797, %v10801
  %v10808 = vadd.s32 %v10800, %v10806
  %vm10809 = vc.u32 %v10807, %v10803
  %v10810 = vsel %vm10809, 1, 0
  %v10811 = vadd.s32 %v10807, %v10803
  %v10812 = vadd.s32 %v10808, %v10810
  %v10813 = vadd.s32 %v10812, %v10802
  %v10814 = vadd.s32 %v10813, %v10804
  %v10815 = vmul.u32 %v10770, %v10761
  %v10816 = vadd.s32 %v10792, %v10811
  %vm10817 = vc.u32 %v10792, %v10811
  %v10818 = vadd.s32 %v10814, 1
  %v10819 = vsel %vm10817, %v10818, %v10814
  %v10820 = vadd.s32 %v10815, %v10819
  %v10821 = vadd.s32 %v10820, 536870912
  %v10822 = vshrl.u32 %v10821, 30
  %v10823 = vshll.u32 %v10822, 30
  %v10824 = vsub.s32 %v10820, %v10823
  %vm10825 = vcmp.lt.s32.totalorder %v10824, 0
  %v10826 = vsub.s32 0, %v10824
  %v10827 = vsel %vm10825, %v10826, %v10824
  %v10828 = vclz %v10827
  %v10829 = vsub.s32 %v10828, 2
  %vm10830 = vcmp.gt.s32.totalorder 0, %v10829
  %v10831 = vsel %vm10830, 0, %v10829
  %v10832 = vsub.s32 32, %v10831
  %v10833 = vshll.u32 %v10824, %v10831
  %v10834 = vshrl.u32 %v10816, %v10832
  %v10835 = vor.u32 %v10833, %v10834
  %v10836 = vsub.s32 4294967266, %v10831
  %v10837 = vadd.s32 %v10836, 127
  %v10838 = vshll.u32 %v10837, 23
  %v10839 = vor.u32 4788187, %v10838
  %v10840 = vand.u32 2147483647, %v10839
  %v10842 = vcvt.s32.f32 %v10835
  %v10843 = vmul.f32 %v10842, %v10840
  %v10844 = vxor.u32 %v10843, 2147483648
  %v10845 = vsel %vm10724, %v10844, %v10843
  %v10846 = vsub.s32 4, %v10822
  %v10847 = vsel %vm10724, %v10846, %v10822
  %v10848 = vsel %vm10723, %v8395, %v10845
  %v10849 = vsel %vm10723, 0, %v10847
  %v10850 = vmul.f32 %v10848, %v10848
  %v10851 = vmul.f32 %v10850, -0.001358992
  %v10852 = vadd.f32 %v10851, 0.041655596
  %v10853 = vmul.f32 %v10850, %v10852
  %v10854 = vadd.f32 %v10853, -0.4999988
  %v10855 = vmul.f32 %v10850, %v10854
  %v10856 = vadd.f32 1.0, %v10855
  %v10857 = vmul.f32 %v10848, %v10848
  %v10858 = vmul.f32 %v10857, -0.00019511016
  %v10859 = vadd.f32 %v10858, 0.008332121
  %v10860 = vmul.f32 %v10857, %v10859
  %v10861 = vadd.f32 %v10860, -0.16666654
  %v10862 = vmul.f32 %v10857, %v10861
  %v10863 = vadd.f32 %v10862, 1.0
  %v10864 = vmul.f32 %v10863, %v10848
  %vm10865 = vweird.f32 %v8395
  %v10866 = vadd.s32 %v10849, 3
  %v10867 = vand.u32 %v10866, 3
  %vm10868 = vcmp.lt.s32.totalorder %v10867, 2
  %vm10869 = vcmp.eq.s32.totalorder %v10867, 0
  %v10870 = vxor.u32 %v10864, 2147483648
  %v10871 = vsel %vm10869, %v10856, %v10870
  %vm10872 = vcmp.eq.s32.totalorder %v10867, 2
  %v10873 = vxor.u32 %v10856, 2147483648
  %v10874 = vsel %vm10872, %v10873, %v10864
  %v10875 = vsel %vm10868, %v10871, %v10874
  %v10876 = vsel %vm10865, nan, %v10875
  %v10877 = vld [vmem:[%s7] sm:$0xff]
  %v10878 = vld [vmem:[%s7 + $0x8] sm:$0xff]
  %v10879 = vld [vmem:[%s8] sm:$0xff]
  %v10880 = vld [vmem:[%s8 + $0x8] sm:$0xff]
  %10882 = vset.pattern.permute.xlu0 0
  %10883 = vperm.xlu0 %10882, %v10879
  %v10884 = vpop.permute.xlu0 %10883
  %10887 = vset.pattern.permute.xlu0 0
  %10888 = vperm.xlu0 %10887, %v10880
  %v10889 = vpop.permute.xlu0 %10888
  %v10891 = vand.u32 %v10876, 4294901760
  %10892 = vmatpush.msra.mxu0 %v10891
  %v10893 = vand.u32 %v10721, 4294901760
  %10894 = vmatpush.msra.mxu0 %v10893
  %v10895 = vand.u32 %v10566, 4294901760
  %10896 = vmatpush.msra.mxu0 %v10895
  %v10897 = vand.u32 %v10411, 4294901760
  %10898 = vmatpush.msra.mxu0 %v10897
  %v10899 = vand.u32 %v10256, 4294901760
  %10900 = vmatpush.msra.mxu0 %v10899
  %v10901 = vand.u32 %v10101, 4294901760
  %10902 = vmatpush.msra.mxu0 %v10901
  %v10903 = vand.u32 %v9946, 4294901760
  %10904 = vmatpush.msra.mxu0 %v10903
  %v10905 = vand.u32 %v9791, 4294901760
  %10906 = vmatpush.msra.mxu0 %v10905
  %v10907 = vand.u32 %v9636, 4294901760
  %10908 = vmatpush.msra.mxu0 %v10907
  %v10909 = vand.u32 %v9481, 4294901760
  %10910 = vmatpush.msra.mxu0 %v10909
  %v10911 = vand.u32 %v9326, 4294901760
  %10912 = vmatpush.msra.mxu0 %v10911
  %v10913 = vand.u32 %v9171, 4294901760
  %10914 = vmatpush.msra.mxu0 %v10913
  %v10915 = vand.u32 %v9016, 4294901760
  %10916 = vmatpush.msra.mxu0 %v10915
  %v10917 = vand.u32 %v8861, 4294901760
  %10918 = vmatpush.msra.mxu0 %v10917
  %v10919 = vand.u32 %v8706, 4294901760
  %10920 = vmatpush.msra.mxu0 %v10919
  %v10921 = vand.u32 %v8551, 4294901760
  %10922 = vmatpush.msra.mxu0 %v10921
  %v10923 = vand.u32 %v10877, 4294901760
  %v10924 = vsub.f32 %v10877, %v10923
  %v10925 = vand.u32 %v10924, 4294901760
  %v10926 = vsub.f32 %v10924, %v10925
  %v10927 = vand.u32 %v10926, 4294901760
  %10928 = vmatmul.f32.gmra.mxu0 %v10927
  %v10929 = vpop.f32.mrf.mxu0
  %v10930 = vadd.f32 %v10884, %v10929
  %v10931 = vand.u32 %v10878, 4294901760
  %v10932 = vsub.f32 %v10878, %v10931
  %v10933 = vand.u32 %v10932, 4294901760
  %v10934 = vsub.f32 %v10932, %v10933
  %v10935 = vand.u32 %v10934, 4294901760
  %10936 = vmatmul.f32.gmra.mxu0 %v10935
  %v10937 = vpop.f32.mrf.mxu0
  %v10938 = vadd.f32 %v10889, %v10937
  %10939 = vdwg.mxu0
  %v10940 = vand.u32 %v10876, 4294901760
  %v10941 = vsub.f32 %v10876, %v10940
  %v10942 = vand.u32 %v10941, 4294901760
  %v10943 = vsub.f32 %v10941, %v10942
  %v10944 = vand.u32 %v10943, 4294901760
  %10945 = vmatpush.msra.mxu0 %v10944
  %v10946 = vand.u32 %v10721, 4294901760
  %v10947 = vsub.f32 %v10721, %v10946
  %v10948 = vand.u32 %v10947, 4294901760
  %v10949 = vsub.f32 %v10947, %v10948
  %v10950 = vand.u32 %v10949, 4294901760
  %10951 = vmatpush.msra.mxu0 %v10950
  %v10952 = vand.u32 %v10566, 4294901760
  %v10953 = vsub.f32 %v10566, %v10952
  %v10954 = vand.u32 %v10953, 4294901760
  %v10955 = vsub.f32 %v10953, %v10954
  %v10956 = vand.u32 %v10955, 4294901760
  %10957 = vmatpush.msra.mxu0 %v10956
  %v10958 = vand.u32 %v10411, 4294901760
  %v10959 = vsub.f32 %v10411, %v10958
  %v10960 = vand.u32 %v10959, 4294901760
  %v10961 = vsub.f32 %v10959, %v10960
  %v10962 = vand.u32 %v10961, 4294901760
  %10963 = vmatpush.msra.mxu0 %v10962
  %v10964 = vand.u32 %v10256, 4294901760
  %v10965 = vsub.f32 %v10256, %v10964
  %v10966 = vand.u32 %v10965, 4294901760
  %v10967 = vsub.f32 %v10965, %v10966
  %v10968 = vand.u32 %v10967, 4294901760
  %10969 = vmatpush.msra.mxu0 %v10968
  %v10970 = vand.u32 %v10101, 4294901760
  %v10971 = vsub.f32 %v10101, %v10970
  %v10972 = vand.u32 %v10971, 4294901760
  %v10973 = vsub.f32 %v10971, %v10972
  %v10974 = vand.u32 %v10973, 4294901760
  %10975 = vmatpush.msra.mxu0 %v10974
  %v10976 = vand.u32 %v9946, 4294901760
  %v10977 = vsub.f32 %v9946, %v10976
  %v10978 = vand.u32 %v10977, 4294901760
  %v10979 = vsub.f32 %v10977, %v10978
  %v10980 = vand.u32 %v10979, 4294901760
  %10981 = vmatpush.msra.mxu0 %v10980
  %v10982 = vand.u32 %v9791, 4294901760
  %v10983 = vsub.f32 %v9791, %v10982
  %v10984 = vand.u32 %v10983, 4294901760
  %v10985 = vsub.f32 %v10983, %v10984
  %v10986 = vand.u32 %v10985, 4294901760
  %10987 = vmatpush.msra.mxu0 %v10986
  %v10988 = vand.u32 %v9636, 4294901760
  %v10989 = vsub.f32 %v9636, %v10988
  %v10990 = vand.u32 %v10989, 4294901760
  %v10991 = vsub.f32 %v10989, %v10990
  %v10992 = vand.u32 %v10991, 4294901760
  %10993 = vmatpush.msra.mxu0 %v10992
  %v10994 = vand.u32 %v9481, 4294901760
  %v10995 = vsub.f32 %v9481, %v10994
  %v10996 = vand.u32 %v10995, 4294901760
  %v10997 = vsub.f32 %v10995, %v10996
  %v10998 = vand.u32 %v10997, 4294901760
  %10999 = vmatpush.msra.mxu0 %v10998
  %v11000 = vand.u32 %v9326, 4294901760
  %v11001 = vsub.f32 %v9326, %v11000
  %v11002 = vand.u32 %v11001, 4294901760
  %v11003 = vsub.f32 %v11001, %v11002
  %v11004 = vand.u32 %v11003, 4294901760
  %11005 = vmatpush.msra.mxu0 %v11004
  %v11006 = vand.u32 %v9171, 4294901760
  %v11007 = vsub.f32 %v9171, %v11006
  %v11008 = vand.u32 %v11007, 4294901760
  %v11009 = vsub.f32 %v11007, %v11008
  %v11010 = vand.u32 %v11009, 4294901760
  %11011 = vmatpush.msra.mxu0 %v11010
  %v11012 = vand.u32 %v9016, 4294901760
  %v11013 = vsub.f32 %v9016, %v11012
  %v11014 = vand.u32 %v11013, 4294901760
  %v11015 = vsub.f32 %v11013, %v11014
  %v11016 = vand.u32 %v11015, 4294901760
  %11017 = vmatpush.msra.mxu0 %v11016
  %v11018 = vand.u32 %v8861, 4294901760
  %v11019 = vsub.f32 %v8861, %v11018
  %v11020 = vand.u32 %v11019, 4294901760
  %v11021 = vsub.f32 %v11019, %v11020
  %v11022 = vand.u32 %v11021, 4294901760
  %11023 = vmatpush.msra.mxu0 %v11022
  %v11024 = vand.u32 %v8706, 4294901760
  %v11025 = vsub.f32 %v8706, %v11024
  %v11026 = vand.u32 %v11025, 4294901760
  %v11027 = vsub.f32 %v11025, %v11026
  %v11028 = vand.u32 %v11027, 4294901760
  %11029 = vmatpush.msra.mxu0 %v11028
  %v11030 = vand.u32 %v8551, 4294901760
  %v11031 = vsub.f32 %v8551, %v11030
  %v11032 = vand.u32 %v11031, 4294901760
  %v11033 = vsub.f32 %v11031, %v11032
  %v11034 = vand.u32 %v11033, 4294901760
  %11035 = vmatpush.msra.mxu0 %v11034
  %v11036 = vand.u32 %v10877, 4294901760
  %11037 = vmatmul.f32.gmra.mxu0 %v11036
  %v11038 = vpop.f32.mrf.mxu0
  %v11039 = vadd.f32 %v10930, %v11038
  %v11040 = vand.u32 %v10878, 4294901760
  %11041 = vmatmul.f32.gmra.mxu0 %v11040
  %v11042 = vpop.f32.mrf.mxu0
  %v11043 = vadd.f32 %v10938, %v11042
  %11044 = vdwg.mxu0
  %v11045 = vand.u32 %v10876, 4294901760
  %v11046 = vsub.f32 %v10876, %v11045
  %11047 = vmatpush.msra.mxu0 %v11046
  %v11048 = vand.u32 %v10721, 4294901760
  %v11049 = vsub.f32 %v10721, %v11048
  %11050 = vmatpush.msra.mxu0 %v11049
  %v11051 = vand.u32 %v10566, 4294901760
  %v11052 = vsub.f32 %v10566, %v11051
  %11053 = vmatpush.msra.mxu0 %v11052
  %v11054 = vand.u32 %v10411, 4294901760
  %v11055 = vsub.f32 %v10411, %v11054
  %11056 = vmatpush.msra.mxu0 %v11055
  %v11057 = vand.u32 %v10256, 4294901760
  %v11058 = vsub.f32 %v10256, %v11057
  %11059 = vmatpush.msra.mxu0 %v11058
  %v11060 = vand.u32 %v10101, 4294901760
  %v11061 = vsub.f32 %v10101, %v11060
  %11062 = vmatpush.msra.mxu0 %v11061
  %v11063 = vand.u32 %v9946, 4294901760
  %v11064 = vsub.f32 %v9946, %v11063
  %11065 = vmatpush.msra.mxu0 %v11064
  %v11066 = vand.u32 %v9791, 4294901760
  %v11067 = vsub.f32 %v9791, %v11066
  %11068 = vmatpush.msra.mxu0 %v11067
  %v11069 = vand.u32 %v9636, 4294901760
  %v11070 = vsub.f32 %v9636, %v11069
  %11071 = vmatpush.msra.mxu0 %v11070
  %v11072 = vand.u32 %v9481, 4294901760
  %v11073 = vsub.f32 %v9481, %v11072
  %11074 = vmatpush.msra.mxu0 %v11073
  %v11075 = vand.u32 %v9326, 4294901760
  %v11076 = vsub.f32 %v9326, %v11075
  %11077 = vmatpush.msra.mxu0 %v11076
  %v11078 = vand.u32 %v9171, 4294901760
  %v11079 = vsub.f32 %v9171, %v11078
  %11080 = vmatpush.msra.mxu0 %v11079
  %v11081 = vand.u32 %v9016, 4294901760
  %v11082 = vsub.f32 %v9016, %v11081
  %11083 = vmatpush.msra.mxu0 %v11082
  %v11084 = vand.u32 %v8861, 4294901760
  %v11085 = vsub.f32 %v8861, %v11084
  %11086 = vmatpush.msra.mxu0 %v11085
  %v11087 = vand.u32 %v8706, 4294901760
  %v11088 = vsub.f32 %v8706, %v11087
  %11089 = vmatpush.msra.mxu0 %v11088
  %v11090 = vand.u32 %v8551, 4294901760
  %v11091 = vsub.f32 %v8551, %v11090
  %11092 = vmatpush.msra.mxu0 %v11091
  %v11093 = vand.u32 %v10877, 4294901760
  %v11094 = vsub.f32 %v10877, %v11093
  %11095 = vmatmul.f32.gmra.mxu0 %v11094
  %v11096 = vpop.f32.mrf.mxu0
  %v11097 = vadd.f32 %v11039, %v11096
  %v11098 = vand.u32 %v10878, 4294901760
  %v11099 = vsub.f32 %v10878, %v11098
  %11100 = vmatmul.f32.gmra.mxu0 %v11099
  %v11101 = vpop.f32.mrf.mxu0
  %v11102 = vadd.f32 %v11043, %v11101
  %11103 = vdwg.mxu0
  %v11104 = vand.u32 %v10876, 4294901760
  %11105 = vmatpush.msra.mxu0 %v11104
  %v11106 = vand.u32 %v10721, 4294901760
  %11107 = vmatpush.msra.mxu0 %v11106
  %v11108 = vand.u32 %v10566, 4294901760
  %11109 = vmatpush.msra.mxu0 %v11108
  %v11110 = vand.u32 %v10411, 4294901760
  %11111 = vmatpush.msra.mxu0 %v11110
  %v11112 = vand.u32 %v10256, 4294901760
  %11113 = vmatpush.msra.mxu0 %v11112
  %v11114 = vand.u32 %v10101, 4294901760
  %11115 = vmatpush.msra.mxu0 %v11114
  %v11116 = vand.u32 %v9946, 4294901760
  %11117 = vmatpush.msra.mxu0 %v11116
  %v11118 = vand.u32 %v9791, 4294901760
  %11119 = vmatpush.msra.mxu0 %v11118
  %v11120 = vand.u32 %v9636, 4294901760
  %11121 = vmatpush.msra.mxu0 %v11120
  %v11122 = vand.u32 %v9481, 4294901760
  %11123 = vmatpush.msra.mxu0 %v11122
  %v11124 = vand.u32 %v9326, 4294901760
  %11125 = vmatpush.msra.mxu0 %v11124
  %v11126 = vand.u32 %v9171, 4294901760
  %11127 = vmatpush.msra.mxu0 %v11126
  %v11128 = vand.u32 %v9016, 4294901760
  %11129 = vmatpush.msra.mxu0 %v11128
  %v11130 = vand.u32 %v8861, 4294901760
  %11131 = vmatpush.msra.mxu0 %v11130
  %v11132 = vand.u32 %v8706, 4294901760
  %11133 = vmatpush.msra.mxu0 %v11132
  %v11134 = vand.u32 %v8551, 4294901760
  %11135 = vmatpush.msra.mxu0 %v11134
  %v11136 = vand.u32 %v10877, 4294901760
  %v11137 = vsub.f32 %v10877, %v11136
  %v11138 = vand.u32 %v11137, 4294901760
  %11139 = vmatmul.f32.gmra.mxu0 %v11138
  %v11140 = vpop.f32.mrf.mxu0
  %v11141 = vadd.f32 %v11097, %v11140
  %v11142 = vand.u32 %v10878, 4294901760
  %v11143 = vsub.f32 %v10878, %v11142
  %v11144 = vand.u32 %v11143, 4294901760
  %11145 = vmatmul.f32.gmra.mxu0 %v11144
  %v11146 = vpop.f32.mrf.mxu0
  %v11147 = vadd.f32 %v11102, %v11146
  %11148 = vdwg.mxu0
  %v11149 = vand.u32 %v10876, 4294901760
  %v11150 = vsub.f32 %v10876, %v11149
  %v11151 = vand.u32 %v11150, 4294901760
  %11152 = vmatpush.msra.mxu0 %v11151
  %v11153 = vand.u32 %v10721, 4294901760
  %v11154 = vsub.f32 %v10721, %v11153
  %v11155 = vand.u32 %v11154, 4294901760
  %11156 = vmatpush.msra.mxu0 %v11155
  %v11157 = vand.u32 %v10566, 4294901760
  %v11158 = vsub.f32 %v10566, %v11157
  %v11159 = vand.u32 %v11158, 4294901760
  %11160 = vmatpush.msra.mxu0 %v11159
  %v11161 = vand.u32 %v10411, 4294901760
  %v11162 = vsub.f32 %v10411, %v11161
  %v11163 = vand.u32 %v11162, 4294901760
  %11164 = vmatpush.msra.mxu0 %v11163
  %v11165 = vand.u32 %v10256, 4294901760
  %v11166 = vsub.f32 %v10256, %v11165
  %v11167 = vand.u32 %v11166, 4294901760
  %11168 = vmatpush.msra.mxu0 %v11167
  %v11169 = vand.u32 %v10101, 4294901760
  %v11170 = vsub.f32 %v10101, %v11169
  %v11171 = vand.u32 %v11170, 4294901760
  %11172 = vmatpush.msra.mxu0 %v11171
  %v11173 = vand.u32 %v9946, 4294901760
  %v11174 = vsub.f32 %v9946, %v11173
  %v11175 = vand.u32 %v11174, 4294901760
  %11176 = vmatpush.msra.mxu0 %v11175
  %v11177 = vand.u32 %v9791, 4294901760
  %v11178 = vsub.f32 %v9791, %v11177
  %v11179 = vand.u32 %v11178, 4294901760
  %11180 = vmatpush.msra.mxu0 %v11179
  %v11181 = vand.u32 %v9636, 4294901760
  %v11182 = vsub.f32 %v9636, %v11181
  %v11183 = vand.u32 %v11182, 4294901760
  %11184 = vmatpush.msra.mxu0 %v11183
  %v11185 = vand.u32 %v9481, 4294901760
  %v11186 = vsub.f32 %v9481, %v11185
  %v11187 = vand.u32 %v11186, 4294901760
  %11188 = vmatpush.msra.mxu0 %v11187
  %v11189 = vand.u32 %v9326, 4294901760
  %v11190 = vsub.f32 %v9326, %v11189
  %v11191 = vand.u32 %v11190, 4294901760
  %11192 = vmatpush.msra.mxu0 %v11191
  %v11193 = vand.u32 %v9171, 4294901760
  %v11194 = vsub.f32 %v9171, %v11193
  %v11195 = vand.u32 %v11194, 4294901760
  %11196 = vmatpush.msra.mxu0 %v11195
  %v11197 = vand.u32 %v9016, 4294901760
  %v11198 = vsub.f32 %v9016, %v11197
  %v11199 = vand.u32 %v11198, 4294901760
  %11200 = vmatpush.msra.mxu0 %v11199
  %v11201 = vand.u32 %v8861, 4294901760
  %v11202 = vsub.f32 %v8861, %v11201
  %v11203 = vand.u32 %v11202, 4294901760
  %11204 = vmatpush.msra.mxu0 %v11203
  %v11205 = vand.u32 %v8706, 4294901760
  %v11206 = vsub.f32 %v8706, %v11205
  %v11207 = vand.u32 %v11206, 4294901760
  %11208 = vmatpush.msra.mxu0 %v11207
  %v11209 = vand.u32 %v8551, 4294901760
  %v11210 = vsub.f32 %v8551, %v11209
  %v11211 = vand.u32 %v11210, 4294901760
  %11212 = vmatpush.msra.mxu0 %v11211
  %v11213 = vand.u32 %v10877, 4294901760
  %11214 = vmatmul.f32.gmra.mxu0 %v11213
  %v11215 = vpop.f32.mrf.mxu0
  %v11216 = vadd.f32 %v11141, %v11215
  %v11217 = vand.u32 %v10878, 4294901760
  %11218 = vmatmul.f32.gmra.mxu0 %v11217
  %v11219 = vpop.f32.mrf.mxu0
  %v11220 = vadd.f32 %v11147, %v11219
  %11221 = vdwg.mxu0
  %v11222 = vand.u32 %v10876, 4294901760
  %11223 = vmatpush.msra.mxu0 %v11222
  %v11224 = vand.u32 %v10721, 4294901760
  %11225 = vmatpush.msra.mxu0 %v11224
  %v11226 = vand.u32 %v10566, 4294901760
  %11227 = vmatpush.msra.mxu0 %v11226
  %v11228 = vand.u32 %v10411, 4294901760
  %11229 = vmatpush.msra.mxu0 %v11228
  %v11230 = vand.u32 %v10256, 4294901760
  %11231 = vmatpush.msra.mxu0 %v11230
  %v11232 = vand.u32 %v10101, 4294901760
  %11233 = vmatpush.msra.mxu0 %v11232
  %v11234 = vand.u32 %v9946, 4294901760
  %11235 = vmatpush.msra.mxu0 %v11234
  %v11236 = vand.u32 %v9791, 4294901760
  %11237 = vmatpush.msra.mxu0 %v11236
  %v11238 = vand.u32 %v9636, 4294901760
  %11239 = vmatpush.msra.mxu0 %v11238
  %v11240 = vand.u32 %v9481, 4294901760
  %11241 = vmatpush.msra.mxu0 %v11240
  %v11242 = vand.u32 %v9326, 4294901760
  %11243 = vmatpush.msra.mxu0 %v11242
  %v11244 = vand.u32 %v9171, 4294901760
  %11245 = vmatpush.msra.mxu0 %v11244
  %v11246 = vand.u32 %v9016, 4294901760
  %11247 = vmatpush.msra.mxu0 %v11246
  %v11248 = vand.u32 %v8861, 4294901760
  %11249 = vmatpush.msra.mxu0 %v11248
  %v11250 = vand.u32 %v8706, 4294901760
  %11251 = vmatpush.msra.mxu0 %v11250
  %v11252 = vand.u32 %v8551, 4294901760
  %11253 = vmatpush.msra.mxu0 %v11252
  %v11254 = vand.u32 %v10877, 4294901760
  %11255 = vmatmul.f32.gmra.mxu0 %v11254
  %v11256 = vpop.f32.mrf.mxu0
  %v11257 = vadd.f32 %v11216, %v11256
  %v11258 = vand.u32 %v10878, 4294901760
  %11259 = vmatmul.f32.gmra.mxu0 %v11258
  %v11260 = vpop.f32.mrf.mxu0
  %v11261 = vadd.f32 %v11220, %v11260
  %11262 = vdwg.mxu0
  %v11263 = vtanh.pop %v11257
  %v11264 = vtanh.pop %v11261
  %11265 = vst [vmem:[%s9] sm:$0xff] %v11263
  %11266 = vst [vmem:[%s9 + $0x8] sm:$0xff] %v11264
  // Predicated region
  $region38: #{brdf_net_pallas.1} parent=0 // pred_check
    _
  $region39: #{brdf_net_pallas.1} parent=0 // pred_check_branch
    %11268 = sbr.rel (0) target = $region41
  $region40: #{brdf_net_pallas.1} parent=0 // pred_region
    _
  $region41: #{brdf_net_pallas.1} parent=0 // pred_fallthru
    _
  // Predicated region
  $region42: #{brdf_net_pallas.1} parent=0 // pred_check
    _
  $region43: #{brdf_net_pallas.1} parent=0 // pred_check_branch
    %11270 = sbr.rel (0) target = $region45
  $region44: #{brdf_net_pallas.1} parent=0 // pred_region
    _
  $region45: #{brdf_net_pallas.1} parent=0 // pred_fallthru
    _

</llo_original>
